<compile_context>
chip_gen: v7x
topology: tpu7x:2x2x1
jax: 0.10.0
libtpu: 0.0.40
codegen_flags: <defaults>
</compile_context>

<pallas_src>
import math
import jax
import jax.numpy as jnp
from jax import lax
from jax.experimental import pallas as pl
from jax.experimental.pallas import tpu as pltpu

# ---- scaled-down "kcbert" config (same structure as kcbert_config, small sizes) ----
HIDDEN = 64
NUM_LAYERS = 2
NUM_HEADS = 4
HEAD_DIM = HIDDEN // NUM_HEADS
INTERMEDIATE = 128
VOCAB = 100
MAX_POS = 32
TYPE_VOCAB = 2
NUM_CLASSES = 5
PAD_ID = 0
LN_EPS = 1e-12


# ----------------------------------------------------------------------------------
# In-kernel math helpers (traced inside the Pallas kernel body)
# ----------------------------------------------------------------------------------
def _ln(x, g, b, eps=LN_EPS):
    mu = jnp.mean(x, axis=-1, keepdims=True)
    var = jnp.mean(jnp.square(x - mu), axis=-1, keepdims=True)
    return (x - mu) * lax.rsqrt(var + eps) * g + b


def _erf(x):
    # Abramowitz & Stegun 7.1.26 (max abs err ~1.5e-7): in-kernel erf, exp -> EUP.
    p = 0.3275911
    a1, a2, a3, a4, a5 = 0.254829592, -0.284496736, 1.421413741, -1.453152027, 1.061405429
    sgn = jnp.where(x >= 0.0, 1.0, -1.0)
    ax = jnp.abs(x)
    t = 1.0 / (1.0 + p * ax)
    poly = t * (a1 + t * (a2 + t * (a3 + t * (a4 + t * a5))))
    return sgn * (1.0 - poly * jnp.exp(-ax * ax))


def _gelu_exact(x):
    # BERT 'gelu' (exact erf form); FFN intermediate never round-trips to HBM.
    return 0.5 * x * (1.0 + _erf(x * (1.0 / math.sqrt(2.0))))


# ----------------------------------------------------------------------------------
# Weight packing (stack per-layer weights, fuse QKV / both-direction LSTM weights,
# pre-cast the big matmul weights to bf16).  Tiny XLA ops outside the kernel.
# ----------------------------------------------------------------------------------
def pack_weights(params):
    bf = jnp.bfloat16
    ls = params["layers"]
    H, I = HIDDEN, INTERMEDIATE
    Hd = H // 2

    wqkv = jnp.stack([jnp.concatenate([lp["wq"], lp["wk"], lp["wv"]], axis=1)
                      for lp in ls]).astype(bf)                       # (L, H, 3H)
    bqkv = jnp.stack([jnp.concatenate([lp["bq"], lp["bk"], lp["bv"]]).reshape(1, 3 * H)
                      for lp in ls])                                  # (L, 1, 3H)
    wo = jnp.stack([lp["wo"] for lp in ls]).astype(bf)                # (L, H, H)
    bo = jnp.stack([lp["bo"].reshape(1, H) for lp in ls])
    g1 = jnp.stack([lp["ln1_g"].reshape(1, H) for lp in ls])
    be1 = jnp.stack([lp["ln1_b"].reshape(1, H) for lp in ls])
    w1 = jnp.stack([lp["w1"] for lp in ls]).astype(bf)                # (L, H, I)
    fb1 = jnp.stack([lp["b1"].reshape(1, I) for lp in ls])
    w2 = jnp.stack([lp["w2"] for lp in ls]).astype(bf)                # (L, I, H)
    fb2 = jnp.stack([lp["b2"].reshape(1, H) for lp in ls])
    g2 = jnp.stack([lp["ln2_g"].reshape(1, H) for lp in ls])
    be2 = jnp.stack([lp["ln2_b"].reshape(1, H) for lp in ls])

    lw = params["lstm"]
    wih = jnp.concatenate([lw["w_ih_f"].T, lw["w_ih_b"].T], axis=1).astype(bf)   # (H, 8Hd)
    lbias = jnp.concatenate([lw["b_ih_f"] + lw["b_hh_f"],
                             lw["b_ih_b"] + lw["b_hh_b"]]).reshape(1, 8 * Hd)
    whh_f = lw["w_hh_f"].T                                            # (Hd, 4Hd)
    whh_b = lw["w_hh_b"].T

    ffw = params["ff_w"]                                              # (2Hd, C)
    ffb = params["ff_b"].reshape(1, -1)
    trT = params["crf_trans"].T                                       # trT[next, prev]
    st = params["crf_start"].reshape(1, -1)
    en = params["crf_end"].reshape(1, -1)
    emb_g = params["emb_ln_g"].reshape(1, H)
    emb_b = params["emb_ln_b"].reshape(1, H)

    return [emb_g, emb_b,
            wqkv, bqkv, wo, bo, g1, be1, w1, fb1, w2, fb2, g2, be2,
            wih, lbias, whh_f, whh_b, ffw, ffb, trT, st, en]


# ----------------------------------------------------------------------------------
# The single fused Pallas kernel: LN -> BERT layers -> BiLSTM -> emissions -> CRF
# ----------------------------------------------------------------------------------
def fused_forward(x_emb, neg, packed):
    B, T, H = x_emb.shape
    (emb_g, emb_b, wqkv_a, bqkv_a, wo_a, bo_a, g1_a, be1_a, w1_a, fb1_a,
     w2_a, fb2_a, g2_a, be2_a, wih_a, lbias_a, whhf_a, whhb_a,
     ffw_a, ffb_a, trT_a, st_a, en_a) = packed
    L = wqkv_a.shape[0]
    NH = NUM_HEADS
    D = H // NH
    Hd = H // 2
    C = ffw_a.shape[1]
    scale = 1.0 / math.sqrt(D)
    bf16 = jnp.bfloat16

    def kernel(x_ref, neg_ref,
               eg_ref, eb_ref,
               wqkv_ref, bqkv_ref, wo_ref, bo_ref, g1_ref, be1_ref,
               w1_ref, fb1_ref, w2_ref, fb2_ref, g2_ref, be2_ref,
               wih_ref, lb_ref, whhf_ref, whhb_ref, ffw_ref, ffb_ref,
               trt_ref, st_ref, en_ref, tags_ref):
        # ---- embedding LayerNorm prologue (this batch element only) ----
        x = _ln(x_ref[0], eg_ref[...], eb_ref[...])                    # (T, H) f32
        # key mask, broadcast hoisted once for all layers / heads
        neg_b = jnp.broadcast_to(neg_ref[0], (T, T))                   # (T, T)

        # ---- BERT encoder: static python loop over stacked layer weights ----
        for l in range(L):
            qkv = jnp.dot(x.astype(bf16), wqkv_ref[l],
                          preferred_element_type=jnp.float32) + bqkv_ref[l]
            q, k, v = qkv[:, :H], qkv[:, H:2 * H], qkv[:, 2 * H:]
            ctx_heads = []
            for h in range(NH):                    # small static head loop
                sl = slice(h * D, (h + 1) * D)
                qh, kh, vh = q[:, sl], k[:, sl], v[:, sl]              # (T, D)
                s = jnp.einsum("qd,kd->qk", qh, kh,
                               preferred_element_type=jnp.float32) * scale + neg_b
                s = s - jnp.max(s, axis=-1, keepdims=True)
                e = jnp.exp(s)
                p_attn = e / jnp.sum(e, axis=-1, keepdims=True)
                ctx_heads.append(jnp.dot(p_attn, vh,
                                         preferred_element_type=jnp.float32))
            ctx = jnp.concatenate(ctx_heads, axis=-1)                  # (T, H)

            attn = jnp.dot(ctx.astype(bf16), wo_ref[l],
                           preferred_element_type=jnp.float32) + bo_ref[l]
            x1 = _ln(x + attn, g1_ref[l], be1_ref[l])

            hmid = jnp.dot(x1.astype(bf16), w1_ref[l],
                           preferred_element_type=jnp.float32) + fb1_ref[l]
            hmid = _gelu_exact(hmid)
            ff = jnp.dot(hmid.astype(bf16), w2_ref[l],
                         preferred_element_type=jnp.float32) + fb2_ref[l]
            x = _ln(x1 + ff, g2_ref[l], be2_ref[l])

        # ---- BiLSTM: fused input projection (both directions), unrolled time loop ----
        xg = jnp.dot(x.astype(bf16), wih_ref[...],
                     preferred_element_type=jnp.float32) + lb_ref[...]  # (T, 8Hd)
        whhf = whhf_ref[...]
        whhb = whhb_ref[...]

        def cell(gates, c):
            i_g = jax.nn.sigmoid(gates[:, 0:Hd])
            f_g = jax.nn.sigmoid(gates[:, Hd:2 * Hd])
            g_g = jnp.tanh(gates[:, 2 * Hd:3 * Hd])
            o_g = jax.nn.sigmoid(gates[:, 3 * Hd:4 * Hd])
            c_new = f_g * c + i_g * g_g
            return o_g * jnp.tanh(c_new), c_new

        hf = jnp.zeros((1, Hd), jnp.float32)
        cf = jnp.zeros((1, Hd), jnp.float32)
        hb = jnp.zeros((1, Hd), jnp.float32)
        cb = jnp.zeros((1, Hd), jnp.float32)
        outs_f = [None] * T
        outs_b = [None] * T
        for step in range(T):                      # static unroll (T small & fixed)
            tb = T - 1 - step
            gf = xg[step:step + 1, 0:4 * Hd] + jnp.dot(
                hf, whhf, preferred_element_type=jnp.float32)
            gb = xg[tb:tb + 1, 4 * Hd:8 * Hd] + jnp.dot(
                hb, whhb, preferred_element_type=jnp.float32)
            hf, cf = cell(gf, cf)
            hb, cb = cell(gb, cb)
            outs_f[step] = hf
            outs_b[tb] = hb

        # ---- emissions head: one stacked matmul, kept entirely in VMEM ----
        hcat = jnp.concatenate([jnp.concatenate(outs_f, axis=0),
                                jnp.concatenate(outs_b, axis=0)], axis=1)  # (T, 2Hd)
        em = jnp.dot(hcat, ffw_ref[...],
                     preferred_element_type=jnp.float32) + ffb_ref[...]    # (T, C)

        # ---- CRF Viterbi decode (forward + backtracking, only tags written out) ----
        trTb = trt_ref[...][None, :, :]                                # (1, C, C)
        idx3 = lax.broadcasted_iota(jnp.int32, (1, C, C), 2)           # hoisted
        lane = lax.broadcasted_iota(jnp.int32, (1, C), 1)              # hoisted

        score = st_ref[...] + em[0:1, :]                               # (1, C)
        hist = []
        for t in range(1, T):
            # combined[0, next, prev] = score[prev] + transitions[prev, next]
            combined = score[:, None, :] + trTb
            best = jnp.max(combined, axis=-1)
            arg = jnp.min(jnp.where(combined == best[..., None], idx3, C),
                          axis=-1).astype(jnp.int32)                   # first-max argmax
            score = best + em[t:t + 1, :]
            hist.append(arg)
        last = score + en_ref[...]

        bm = jnp.max(last, axis=-1, keepdims=True)
        tag = jnp.min(jnp.where(last == bm, lane, C),
                      axis=-1, keepdims=True).astype(jnp.int32)        # (1, 1)
        tags = [None] * T
        tags[T - 1] = tag
        for t in range(T - 2, -1, -1):
            tag = jnp.sum(jnp.where(lane == tag, hist[t], 0),
                          axis=-1, keepdims=True).astype(jnp.int32)    # one-hot select
            tags[t] = tag
        tags_ref[...] = jnp.concatenate(tags, axis=-1)[None]           # (1, 1, T)

    # Batch-blocked specs for activations / mask / output; full-array resident
    # specs (constant index_map) for every weight.
    in_specs = [pl.BlockSpec((1, T, H), lambda b: (b, 0, 0)),
                pl.BlockSpec((1, 1, T), lambda b: (b, 0, 0))]
    for a in packed:
        in_specs.append(pl.BlockSpec(a.shape, lambda b, _n=a.ndim: (0,) * _n))

    out = pl.pallas_call(
        kernel,
        grid=(B,),
        out_shape=jax.ShapeDtypeStruct((B, 1, T), jnp.int32),
        in_specs=in_specs,
        out_specs=pl.BlockSpec((1, 1, T), lambda b: (b, 0, 0)),
        compiler_params=pltpu.CompilerParams(
            dimension_semantics=("parallel",)),     # v7x: 2 TCs split the batch
    )(x_emb, neg, *packed)
    return out.reshape(B, T)


# ----------------------------------------------------------------------------------
# Model glue (embedding gathers / parameter plumbing in plain JAX)
# ----------------------------------------------------------------------------------
def forward(params, input_ids, token_type_ids=None):
    B, T = input_ids.shape
    # attention_mask = input_ids.ne(pad_id).float(); seq_length only feeds the
    # pack_padded_sequence path (using_pack_sequence=False in the default forward).
    mask = (input_ids != PAD_ID).astype(jnp.float32)
    neg = ((1.0 - mask) * (-1e9)).reshape(B, 1, T)
    if token_type_ids is None:
        token_type_ids = jnp.zeros_like(input_ids)

    # BERT embeddings (gathers in JAX); LayerNorm happens in the kernel prologue.
    x = (params["word_emb"][input_ids]
         + params["pos_emb"][jnp.arange(T)][None, :, :]
         + params["type_emb"][token_type_ids])

    packed = pack_weights(params)
    # dropout(p=config.dropout) -> identity (inference / eval mode)
    # TODO(synk): CRF log-likelihood (tags is not None branch), training-mode dropout
    # and the pack_padded_sequence path are not implemented; only inference decode is
    # reproduced.
    return fused_forward(x, neg, packed)


# ----------------------------------------------------------------------------------
# Deterministic parameter init (shapes implied by the module's __init__)
# ----------------------------------------------------------------------------------
def init_params(key):
    keys = iter(jax.random.split(key, 64))
    nrm = lambda shape, std=0.02: jax.random.normal(next(keys), shape, jnp.float32) * std
    uni = lambda shape, b: jax.random.uniform(next(keys), shape, jnp.float32, -b, b)
    ones = lambda n: jnp.ones((n,), jnp.float32)
    zeros = lambda n: jnp.zeros((n,), jnp.float32)

    params = {
        "word_emb": nrm((VOCAB, HIDDEN)),
        "pos_emb": nrm((MAX_POS, HIDDEN)),
        "type_emb": nrm((TYPE_VOCAB, HIDDEN)),
        "emb_ln_g": ones(HIDDEN), "emb_ln_b": zeros(HIDDEN),
        "layers": [],
    }
    for _ in range(NUM_LAYERS):
        params["layers"].append({
            "wq": nrm((HIDDEN, HIDDEN)), "bq": zeros(HIDDEN),
            "wk": nrm((HIDDEN, HIDDEN)), "bk": zeros(HIDDEN),
            "wv": nrm((HIDDEN, HIDDEN)), "bv": zeros(HIDDEN),
            "wo": nrm((HIDDEN, HIDDEN)), "bo": zeros(HIDDEN),
            "ln1_g": ones(HIDDEN), "ln1_b": zeros(HIDDEN),
            "w1": nrm((HIDDEN, INTERMEDIATE)), "b1": zeros(INTERMEDIATE),
            "w2": nrm((INTERMEDIATE, HIDDEN)), "b2": zeros(HIDDEN),
            "ln2_g": ones(HIDDEN), "ln2_b": zeros(HIDDEN),
        })
    Hd = HIDDEN // 2
    bl = 1.0 / math.sqrt(Hd)
    params["lstm"] = {
        "w_ih_f": uni((4 * Hd, HIDDEN), bl), "w_hh_f": uni((4 * Hd, Hd), bl),
        "b_ih_f": uni((4 * Hd,), bl), "b_hh_f": uni((4 * Hd,), bl),
        "w_ih_b": uni((4 * Hd, HIDDEN), bl), "w_hh_b": uni((4 * Hd, Hd), bl),
        "b_ih_b": uni((4 * Hd,), bl), "b_hh_b": uni((4 * Hd,), bl),
    }
    bf = 1.0 / math.sqrt(HIDDEN)
    params["ff_w"] = uni((HIDDEN, NUM_CLASSES), bf)
    params["ff_b"] = uni((NUM_CLASSES,), bf)
    params["crf_start"] = uni((NUM_CLASSES,), 0.1)
    params["crf_end"] = uni((NUM_CLASSES,), 0.1)
    params["crf_trans"] = uni((NUM_CLASSES, NUM_CLASSES), 0.1)
    return params


if __name__ == "__main__":
    key = jax.random.PRNGKey(0)
    pkey, dkey = jax.random.split(key)
    params = init_params(pkey)

    B, T = 2, 8
    input_ids = jax.random.randint(dkey, (B, T), 1, VOCAB, dtype=jnp.int32)
    input_ids = input_ids.at[1, 5:].set(PAD_ID)   # trailing padding in sample 1

    tags = jax.jit(forward)(params, input_ids)
    tags = jax.block_until_ready(tags)
    assert tags.shape == (B, T) and tags.dtype == jnp.int32
    print("KERNEL_OK")
</pallas_src>

<mosaic_0001>
module attributes {stable_mosaic.version = 11 : i64} {
  func.func @kernel(%arg0: i32, %arg1: memref<1x8x64xf32, #tpu.memory_space<vmem>>, %arg2: memref<1x1x8xf32, #tpu.memory_space<vmem>>, %arg3: memref<1x64xf32, #tpu.memory_space<vmem>>, %arg4: memref<1x64xf32, #tpu.memory_space<vmem>>, %arg5: memref<2x64x192xbf16, #tpu.memory_space<vmem>>, %arg6: memref<2x1x192xf32, #tpu.memory_space<vmem>>, %arg7: memref<2x64x64xbf16, #tpu.memory_space<vmem>>, %arg8: memref<2x1x64xf32, #tpu.memory_space<vmem>>, %arg9: memref<2x1x64xf32, #tpu.memory_space<vmem>>, %arg10: memref<2x1x64xf32, #tpu.memory_space<vmem>>, %arg11: memref<2x64x128xbf16, #tpu.memory_space<vmem>>, %arg12: memref<2x1x128xf32, #tpu.memory_space<vmem>>, %arg13: memref<2x128x64xbf16, #tpu.memory_space<vmem>>, %arg14: memref<2x1x64xf32, #tpu.memory_space<vmem>>, %arg15: memref<2x1x64xf32, #tpu.memory_space<vmem>>, %arg16: memref<2x1x64xf32, #tpu.memory_space<vmem>>, %arg17: memref<64x256xbf16, #tpu.memory_space<vmem>>, %arg18: memref<1x256xf32, #tpu.memory_space<vmem>>, %arg19: memref<32x128xf32, #tpu.memory_space<vmem>>, %arg20: memref<32x128xf32, #tpu.memory_space<vmem>>, %arg21: memref<64x5xf32, #tpu.memory_space<vmem>>, %arg22: memref<1x5xf32, #tpu.memory_space<vmem>>, %arg23: memref<5x5xf32, #tpu.memory_space<vmem>>, %arg24: memref<1x5xf32, #tpu.memory_space<vmem>>, %arg25: memref<1x5xf32, #tpu.memory_space<vmem>>, %arg26: memref<1x1x8xi32, #tpu.memory_space<vmem>>) attributes {dimension_semantics = [#tpu.dimension_semantics<parallel>], iteration_bounds = array<i64: 2>, scalar_prefetch = 0 : i64, scratch_operands = 0 : i64, tpu.core_type = #tpu.core_type<tc>, window_params = [{transform_indices = @transform_0, window_bounds = array<i64: 1, 8, 64>}, {transform_indices = @transform_1, window_bounds = array<i64: 1, 1, 8>}, {pipeline_mode = #tpu.pipeline_mode<synchronous>, transform_indices = @transform_2, window_bounds = array<i64: 1, 64>}, {pipeline_mode = #tpu.pipeline_mode<synchronous>, transform_indices = @transform_3, window_bounds = array<i64: 1, 64>}, {pipeline_mode = #tpu.pipeline_mode<synchronous>, transform_indices = @transform_4, window_bounds = array<i64: 2, 64, 192>}, {pipeline_mode = #tpu.pipeline_mode<synchronous>, transform_indices = @transform_5, window_bounds = array<i64: 2, 1, 192>}, {pipeline_mode = #tpu.pipeline_mode<synchronous>, transform_indices = @transform_6, window_bounds = array<i64: 2, 64, 64>}, {pipeline_mode = #tpu.pipeline_mode<synchronous>, transform_indices = @transform_7, window_bounds = array<i64: 2, 1, 64>}, {pipeline_mode = #tpu.pipeline_mode<synchronous>, transform_indices = @transform_8, window_bounds = array<i64: 2, 1, 64>}, {pipeline_mode = #tpu.pipeline_mode<synchronous>, transform_indices = @transform_9, window_bounds = array<i64: 2, 1, 64>}, {pipeline_mode = #tpu.pipeline_mode<synchronous>, transform_indices = @transform_10, window_bounds = array<i64: 2, 64, 128>}, {pipeline_mode = #tpu.pipeline_mode<synchronous>, transform_indices = @transform_11, window_bounds = array<i64: 2, 1, 128>}, {pipeline_mode = #tpu.pipeline_mode<synchronous>, transform_indices = @transform_12, window_bounds = array<i64: 2, 128, 64>}, {pipeline_mode = #tpu.pipeline_mode<synchronous>, transform_indices = @transform_13, window_bounds = array<i64: 2, 1, 64>}, {pipeline_mode = #tpu.pipeline_mode<synchronous>, transform_indices = @transform_14, window_bounds = array<i64: 2, 1, 64>}, {pipeline_mode = #tpu.pipeline_mode<synchronous>, transform_indices = @transform_15, window_bounds = array<i64: 2, 1, 64>}, {pipeline_mode = #tpu.pipeline_mode<synchronous>, transform_indices = @transform_16, window_bounds = array<i64: 64, 256>}, {pipeline_mode = #tpu.pipeline_mode<synchronous>, transform_indices = @transform_17, window_bounds = array<i64: 1, 256>}, {pipeline_mode = #tpu.pipeline_mode<synchronous>, transform_indices = @transform_18, window_bounds = array<i64: 32, 128>}, {pipeline_mode = #tpu.pipeline_mode<synchronous>, transform_indices = @transform_19, window_bounds = array<i64: 32, 128>}, {pipeline_mode = #tpu.pipeline_mode<synchronous>, transform_indices = @transform_20, window_bounds = array<i64: 64, 5>}, {pipeline_mode = #tpu.pipeline_mode<synchronous>, transform_indices = @transform_21, window_bounds = array<i64: 1, 5>}, {pipeline_mode = #tpu.pipeline_mode<synchronous>, transform_indices = @transform_22, window_bounds = array<i64: 5, 5>}, {pipeline_mode = #tpu.pipeline_mode<synchronous>, transform_indices = @transform_23, window_bounds = array<i64: 1, 5>}, {pipeline_mode = #tpu.pipeline_mode<synchronous>, transform_indices = @transform_24, window_bounds = array<i64: 1, 5>}, {transform_indices = @transform_25, window_bounds = array<i64: 1, 1, 8>}]} {
    %c0 = arith.constant 0 : index
    %c0_0 = arith.constant 0 : index
    %c0_1 = arith.constant 0 : index
    %0 = vector.load %arg1[%c0, %c0_0, %c0_1] : memref<1x8x64xf32, #tpu.memory_space<vmem>>, vector<1x8x64xf32>
    %1 = vector.shape_cast %0 : vector<1x8x64xf32> to vector<8x64xf32>
    %c0_2 = arith.constant 0 : index
    %c0_3 = arith.constant 0 : index
    %2 = vector.load %arg3[%c0_2, %c0_3] : memref<1x64xf32, #tpu.memory_space<vmem>>, vector<1x64xf32>
    %c0_4 = arith.constant 0 : index
    %c0_5 = arith.constant 0 : index
    %3 = vector.load %arg4[%c0_4, %c0_5] : memref<1x64xf32, #tpu.memory_space<vmem>>, vector<1x64xf32>
    %cst = arith.constant dense<0.000000e+00> : vector<8xf32>
    %4 = vector.multi_reduction <add>, %1, %cst [1] : vector<8x64xf32> to vector<8xf32>
    %5 = vector.shape_cast %4 : vector<8xf32> to vector<8x1xf32>
    %cst_6 = arith.constant 6.400000e+01 : f32
    %6 = vector.broadcast %cst_6 : f32 to vector<8x1xf32>
    %7 = arith.divf %5, %6 : vector<8x1xf32>
    %8 = vector.broadcast %7 : vector<8x1xf32> to vector<8x64xf32>
    %9 = arith.subf %1, %8 : vector<8x64xf32>
    %10 = arith.mulf %9, %9 : vector<8x64xf32>
    %cst_7 = arith.constant dense<0.000000e+00> : vector<8xf32>
    %11 = vector.multi_reduction <add>, %10, %cst_7 [1] : vector<8x64xf32> to vector<8xf32>
    %12 = vector.shape_cast %11 : vector<8xf32> to vector<8x1xf32>
    %cst_8 = arith.constant 6.400000e+01 : f32
    %13 = vector.broadcast %cst_8 : f32 to vector<8x1xf32>
    %14 = arith.divf %12, %13 : vector<8x1xf32>
    %15 = vector.broadcast %7 : vector<8x1xf32> to vector<8x64xf32>
    %16 = arith.subf %1, %15 : vector<8x64xf32>
    %cst_9 = arith.constant 9.99999996E-13 : f32
    %17 = vector.broadcast %cst_9 : f32 to vector<8x1xf32>
    %18 = arith.addf %14, %17 : vector<8x1xf32>
    %19 = math.rsqrt %18 : vector<8x1xf32>
    %20 = vector.broadcast %19 : vector<8x1xf32> to vector<8x64xf32>
    %21 = arith.mulf %16, %20 : vector<8x64xf32>
    %22 = vector.broadcast %2 : vector<1x64xf32> to vector<8x64xf32>
    %23 = arith.mulf %21, %22 : vector<8x64xf32>
    %24 = vector.broadcast %3 : vector<1x64xf32> to vector<8x64xf32>
    %25 = arith.addf %23, %24 : vector<8x64xf32>
    %c0_10 = arith.constant 0 : index
    %c0_11 = arith.constant 0 : index
    %c0_12 = arith.constant 0 : index
    %26 = vector.load %arg2[%c0_10, %c0_11, %c0_12] : memref<1x1x8xf32, #tpu.memory_space<vmem>>, vector<1x1x8xf32>
    %27 = vector.shape_cast %26 : vector<1x1x8xf32> to vector<1x8xf32>
    %28 = vector.shape_cast %27 : vector<1x8xf32> to vector<1x8xf32>
    %29 = vector.broadcast %28 : vector<1x8xf32> to vector<8x8xf32>
    %30 = arith.truncf %25 : vector<8x64xf32> to vector<8x64xbf16>
    %c0_13 = arith.constant 0 : index
    %c0_14 = arith.constant 0 : index
    %c0_15 = arith.constant 0 : index
    %31 = vector.load %arg5[%c0_13, %c0_14, %c0_15] : memref<2x64x192xbf16, #tpu.memory_space<vmem>>, vector<1x64x192xbf16>
    %32 = vector.shape_cast %31 : vector<1x64x192xbf16> to vector<64x192xbf16>
    %cst_16 = arith.constant dense<0.000000e+00> : vector<8x192xf32>
    %33 = tpu.matmul %30, %32, %cst_16 {dimension_numbers = #tpu.dot_dimension_numbers<[1], [0], [0], [1], [0, 0, 1, 1], [], []>} : vector<8x64xbf16>, vector<64x192xbf16>, vector<8x192xf32> -> vector<8x192xf32>
    %c0_17 = arith.constant 0 : index
    %c0_18 = arith.constant 0 : index
    %c0_19 = arith.constant 0 : index
    %34 = vector.load %arg6[%c0_17, %c0_18, %c0_19] : memref<2x1x192xf32, #tpu.memory_space<vmem>>, vector<1x1x192xf32>
    %35 = vector.shape_cast %34 : vector<1x1x192xf32> to vector<1x192xf32>
    %36 = vector.broadcast %35 : vector<1x192xf32> to vector<8x192xf32>
    %37 = arith.addf %33, %36 : vector<8x192xf32>
    %38 = vector.extract_strided_slice %37 {offsets = [0, 0], sizes = [8, 64], strides = [1, 1]} : vector<8x192xf32> to vector<8x64xf32>
    %39 = vector.extract_strided_slice %37 {offsets = [0, 64], sizes = [8, 64], strides = [1, 1]} : vector<8x192xf32> to vector<8x64xf32>
    %40 = vector.extract_strided_slice %37 {offsets = [0, 128], sizes = [8, 64], strides = [1, 1]} : vector<8x192xf32> to vector<8x64xf32>
    %41 = vector.extract_strided_slice %38 {offsets = [0, 0], sizes = [8, 16], strides = [1, 1]} : vector<8x64xf32> to vector<8x16xf32>
    %42 = vector.extract_strided_slice %39 {offsets = [0, 0], sizes = [8, 16], strides = [1, 1]} : vector<8x64xf32> to vector<8x16xf32>
    %43 = vector.extract_strided_slice %40 {offsets = [0, 0], sizes = [8, 16], strides = [1, 1]} : vector<8x64xf32> to vector<8x16xf32>
    "tpu.trace_start"() <{level = 10 : i32, message = "qd,kd->qk"}> : () -> ()
    %cst_20 = arith.constant dense<0.000000e+00> : vector<8x8xf32>
    %44 = tpu.matmul %41, %42, %cst_20 {dimension_numbers = #tpu.dot_dimension_numbers<[1], [1], [0], [0], [0, 0, 1, 0], [], []>} : vector<8x16xf32>, vector<8x16xf32>, vector<8x8xf32> -> vector<8x8xf32>
    "tpu.trace_stop"() : () -> ()
    %cst_21 = arith.constant 2.500000e-01 : f32
    %45 = vector.broadcast %cst_21 : f32 to vector<8x8xf32>
    %46 = arith.mulf %44, %45 : vector<8x8xf32>
    %47 = arith.addf %46, %29 : vector<8x8xf32>
    %cst_22 = arith.constant dense<0xFF800000> : vector<8xf32>
    %48 = vector.multi_reduction <maximumf>, %47, %cst_22 [1] : vector<8x8xf32> to vector<8xf32>
    %49 = vector.shape_cast %48 : vector<8xf32> to vector<8x1xf32>
    %50 = vector.broadcast %49 : vector<8x1xf32> to vector<8x8xf32>
    %51 = arith.subf %47, %50 : vector<8x8xf32>
    %52 = math.exp %51 : vector<8x8xf32>
    %cst_23 = arith.constant dense<0.000000e+00> : vector<8xf32>
    %53 = vector.multi_reduction <add>, %52, %cst_23 [1] : vector<8x8xf32> to vector<8xf32>
    %54 = vector.shape_cast %53 : vector<8xf32> to vector<8x1xf32>
    %55 = vector.broadcast %54 : vector<8x1xf32> to vector<8x8xf32>
    %56 = arith.divf %52, %55 : vector<8x8xf32>
    %cst_24 = arith.constant dense<0.000000e+00> : vector<8x16xf32>
    %57 = tpu.matmul %56, %43, %cst_24 {dimension_numbers = #tpu.dot_dimension_numbers<[1], [0], [0], [1], [0, 0, 1, 1], [], []>} : vector<8x8xf32>, vector<8x16xf32>, vector<8x16xf32> -> vector<8x16xf32>
    %58 = vector.extract_strided_slice %38 {offsets = [0, 16], sizes = [8, 16], strides = [1, 1]} : vector<8x64xf32> to vector<8x16xf32>
    %59 = vector.extract_strided_slice %39 {offsets = [0, 16], sizes = [8, 16], strides = [1, 1]} : vector<8x64xf32> to vector<8x16xf32>
    %60 = vector.extract_strided_slice %40 {offsets = [0, 16], sizes = [8, 16], strides = [1, 1]} : vector<8x64xf32> to vector<8x16xf32>
    "tpu.trace_start"() <{level = 10 : i32, message = "qd,kd->qk"}> : () -> ()
    %cst_25 = arith.constant dense<0.000000e+00> : vector<8x8xf32>
    %61 = tpu.matmul %58, %59, %cst_25 {dimension_numbers = #tpu.dot_dimension_numbers<[1], [1], [0], [0], [0, 0, 1, 0], [], []>} : vector<8x16xf32>, vector<8x16xf32>, vector<8x8xf32> -> vector<8x8xf32>
    "tpu.trace_stop"() : () -> ()
    %cst_26 = arith.constant 2.500000e-01 : f32
    %62 = vector.broadcast %cst_26 : f32 to vector<8x8xf32>
    %63 = arith.mulf %61, %62 : vector<8x8xf32>
    %64 = arith.addf %63, %29 : vector<8x8xf32>
    %cst_27 = arith.constant dense<0xFF800000> : vector<8xf32>
    %65 = vector.multi_reduction <maximumf>, %64, %cst_27 [1] : vector<8x8xf32> to vector<8xf32>
    %66 = vector.shape_cast %65 : vector<8xf32> to vector<8x1xf32>
    %67 = vector.broadcast %66 : vector<8x1xf32> to vector<8x8xf32>
    %68 = arith.subf %64, %67 : vector<8x8xf32>
    %69 = math.exp %68 : vector<8x8xf32>
    %cst_28 = arith.constant dense<0.000000e+00> : vector<8xf32>
    %70 = vector.multi_reduction <add>, %69, %cst_28 [1] : vector<8x8xf32> to vector<8xf32>
    %71 = vector.shape_cast %70 : vector<8xf32> to vector<8x1xf32>
    %72 = vector.broadcast %71 : vector<8x1xf32> to vector<8x8xf32>
    %73 = arith.divf %69, %72 : vector<8x8xf32>
    %cst_29 = arith.constant dense<0.000000e+00> : vector<8x16xf32>
    %74 = tpu.matmul %73, %60, %cst_29 {dimension_numbers = #tpu.dot_dimension_numbers<[1], [0], [0], [1], [0, 0, 1, 1], [], []>} : vector<8x8xf32>, vector<8x16xf32>, vector<8x16xf32> -> vector<8x16xf32>
    %75 = vector.extract_strided_slice %38 {offsets = [0, 32], sizes = [8, 16], strides = [1, 1]} : vector<8x64xf32> to vector<8x16xf32>
    %76 = vector.extract_strided_slice %39 {offsets = [0, 32], sizes = [8, 16], strides = [1, 1]} : vector<8x64xf32> to vector<8x16xf32>
    %77 = vector.extract_strided_slice %40 {offsets = [0, 32], sizes = [8, 16], strides = [1, 1]} : vector<8x64xf32> to vector<8x16xf32>
    "tpu.trace_start"() <{level = 10 : i32, message = "qd,kd->qk"}> : () -> ()
    %cst_30 = arith.constant dense<0.000000e+00> : vector<8x8xf32>
    %78 = tpu.matmul %75, %76, %cst_30 {dimension_numbers = #tpu.dot_dimension_numbers<[1], [1], [0], [0], [0, 0, 1, 0], [], []>} : vector<8x16xf32>, vector<8x16xf32>, vector<8x8xf32> -> vector<8x8xf32>
    "tpu.trace_stop"() : () -> ()
    %cst_31 = arith.constant 2.500000e-01 : f32
    %79 = vector.broadcast %cst_31 : f32 to vector<8x8xf32>
    %80 = arith.mulf %78, %79 : vector<8x8xf32>
    %81 = arith.addf %80, %29 : vector<8x8xf32>
    %cst_32 = arith.constant dense<0xFF800000> : vector<8xf32>
    %82 = vector.multi_reduction <maximumf>, %81, %cst_32 [1] : vector<8x8xf32> to vector<8xf32>
    %83 = vector.shape_cast %82 : vector<8xf32> to vector<8x1xf32>
    %84 = vector.broadcast %83 : vector<8x1xf32> to vector<8x8xf32>
    %85 = arith.subf %81, %84 : vector<8x8xf32>
    %86 = math.exp %85 : vector<8x8xf32>
    %cst_33 = arith.constant dense<0.000000e+00> : vector<8xf32>
    %87 = vector.multi_reduction <add>, %86, %cst_33 [1] : vector<8x8xf32> to vector<8xf32>
    %88 = vector.shape_cast %87 : vector<8xf32> to vector<8x1xf32>
    %89 = vector.broadcast %88 : vector<8x1xf32> to vector<8x8xf32>
    %90 = arith.divf %86, %89 : vector<8x8xf32>
    %cst_34 = arith.constant dense<0.000000e+00> : vector<8x16xf32>
    %91 = tpu.matmul %90, %77, %cst_34 {dimension_numbers = #tpu.dot_dimension_numbers<[1], [0], [0], [1], [0, 0, 1, 1], [], []>} : vector<8x8xf32>, vector<8x16xf32>, vector<8x16xf32> -> vector<8x16xf32>
    %92 = vector.extract_strided_slice %38 {offsets = [0, 48], sizes = [8, 16], strides = [1, 1]} : vector<8x64xf32> to vector<8x16xf32>
    %93 = vector.extract_strided_slice %39 {offsets = [0, 48], sizes = [8, 16], strides = [1, 1]} : vector<8x64xf32> to vector<8x16xf32>
    %94 = vector.extract_strided_slice %40 {offsets = [0, 48], sizes = [8, 16], strides = [1, 1]} : vector<8x64xf32> to vector<8x16xf32>
    "tpu.trace_start"() <{level = 10 : i32, message = "qd,kd->qk"}> : () -> ()
    %cst_35 = arith.constant dense<0.000000e+00> : vector<8x8xf32>
    %95 = tpu.matmul %92, %93, %cst_35 {dimension_numbers = #tpu.dot_dimension_numbers<[1], [1], [0], [0], [0, 0, 1, 0], [], []>} : vector<8x16xf32>, vector<8x16xf32>, vector<8x8xf32> -> vector<8x8xf32>
    "tpu.trace_stop"() : () -> ()
    %cst_36 = arith.constant 2.500000e-01 : f32
    %96 = vector.broadcast %cst_36 : f32 to vector<8x8xf32>
    %97 = arith.mulf %95, %96 : vector<8x8xf32>
    %98 = arith.addf %97, %29 : vector<8x8xf32>
    %cst_37 = arith.constant dense<0xFF800000> : vector<8xf32>
    %99 = vector.multi_reduction <maximumf>, %98, %cst_37 [1] : vector<8x8xf32> to vector<8xf32>
    %100 = vector.shape_cast %99 : vector<8xf32> to vector<8x1xf32>
    %101 = vector.broadcast %100 : vector<8x1xf32> to vector<8x8xf32>
    %102 = arith.subf %98, %101 : vector<8x8xf32>
    %103 = math.exp %102 : vector<8x8xf32>
    %cst_38 = arith.constant dense<0.000000e+00> : vector<8xf32>
    %104 = vector.multi_reduction <add>, %103, %cst_38 [1] : vector<8x8xf32> to vector<8xf32>
    %105 = vector.shape_cast %104 : vector<8xf32> to vector<8x1xf32>
    %106 = vector.broadcast %105 : vector<8x1xf32> to vector<8x8xf32>
    %107 = arith.divf %103, %106 : vector<8x8xf32>
    %cst_39 = arith.constant dense<0.000000e+00> : vector<8x16xf32>
    %108 = tpu.matmul %107, %94, %cst_39 {dimension_numbers = #tpu.dot_dimension_numbers<[1], [0], [0], [1], [0, 0, 1, 1], [], []>} : vector<8x8xf32>, vector<8x16xf32>, vector<8x16xf32> -> vector<8x16xf32>
    %109 = tpu.concatenate %57, %74, %91, %108 in 1 : vector<8x16xf32>, vector<8x16xf32>, vector<8x16xf32>, vector<8x16xf32> -> vector<8x64xf32>
    %110 = arith.truncf %109 : vector<8x64xf32> to vector<8x64xbf16>
    %c0_40 = arith.constant 0 : index
    %c0_41 = arith.constant 0 : index
    %c0_42 = arith.constant 0 : index
    %111 = vector.load %arg7[%c0_40, %c0_41, %c0_42] : memref<2x64x64xbf16, #tpu.memory_space<vmem>>, vector<1x64x64xbf16>
    %112 = vector.shape_cast %111 : vector<1x64x64xbf16> to vector<64x64xbf16>
    %cst_43 = arith.constant dense<0.000000e+00> : vector<8x64xf32>
    %113 = tpu.matmul %110, %112, %cst_43 {dimension_numbers = #tpu.dot_dimension_numbers<[1], [0], [0], [1], [0, 0, 1, 1], [], []>} : vector<8x64xbf16>, vector<64x64xbf16>, vector<8x64xf32> -> vector<8x64xf32>
    %c0_44 = arith.constant 0 : index
    %c0_45 = arith.constant 0 : index
    %c0_46 = arith.constant 0 : index
    %114 = vector.load %arg8[%c0_44, %c0_45, %c0_46] : memref<2x1x64xf32, #tpu.memory_space<vmem>>, vector<1x1x64xf32>
    %115 = vector.shape_cast %114 : vector<1x1x64xf32> to vector<1x64xf32>
    %116 = vector.broadcast %115 : vector<1x64xf32> to vector<8x64xf32>
    %117 = arith.addf %113, %116 : vector<8x64xf32>
    %118 = arith.addf %25, %117 : vector<8x64xf32>
    %c0_47 = arith.constant 0 : index
    %c0_48 = arith.constant 0 : index
    %c0_49 = arith.constant 0 : index
    %119 = vector.load %arg9[%c0_47, %c0_48, %c0_49] : memref<2x1x64xf32, #tpu.memory_space<vmem>>, vector<1x1x64xf32>
    %120 = vector.shape_cast %119 : vector<1x1x64xf32> to vector<1x64xf32>
    %c0_50 = arith.constant 0 : index
    %c0_51 = arith.constant 0 : index
    %c0_52 = arith.constant 0 : index
    %121 = vector.load %arg10[%c0_50, %c0_51, %c0_52] : memref<2x1x64xf32, #tpu.memory_space<vmem>>, vector<1x1x64xf32>
    %122 = vector.shape_cast %121 : vector<1x1x64xf32> to vector<1x64xf32>
    %cst_53 = arith.constant dense<0.000000e+00> : vector<8xf32>
    %123 = vector.multi_reduction <add>, %118, %cst_53 [1] : vector<8x64xf32> to vector<8xf32>
    %124 = vector.shape_cast %123 : vector<8xf32> to vector<8x1xf32>
    %cst_54 = arith.constant 6.400000e+01 : f32
    %125 = vector.broadcast %cst_54 : f32 to vector<8x1xf32>
    %126 = arith.divf %124, %125 : vector<8x1xf32>
    %127 = vector.broadcast %126 : vector<8x1xf32> to vector<8x64xf32>
    %128 = arith.subf %118, %127 : vector<8x64xf32>
    %129 = arith.mulf %128, %128 : vector<8x64xf32>
    %cst_55 = arith.constant dense<0.000000e+00> : vector<8xf32>
    %130 = vector.multi_reduction <add>, %129, %cst_55 [1] : vector<8x64xf32> to vector<8xf32>
    %131 = vector.shape_cast %130 : vector<8xf32> to vector<8x1xf32>
    %cst_56 = arith.constant 6.400000e+01 : f32
    %132 = vector.broadcast %cst_56 : f32 to vector<8x1xf32>
    %133 = arith.divf %131, %132 : vector<8x1xf32>
    %134 = vector.broadcast %126 : vector<8x1xf32> to vector<8x64xf32>
    %135 = arith.subf %118, %134 : vector<8x64xf32>
    %cst_57 = arith.constant 9.99999996E-13 : f32
    %136 = vector.broadcast %cst_57 : f32 to vector<8x1xf32>
    %137 = arith.addf %133, %136 : vector<8x1xf32>
    %138 = math.rsqrt %137 : vector<8x1xf32>
    %139 = vector.broadcast %138 : vector<8x1xf32> to vector<8x64xf32>
    %140 = arith.mulf %135, %139 : vector<8x64xf32>
    %141 = vector.broadcast %120 : vector<1x64xf32> to vector<8x64xf32>
    %142 = arith.mulf %140, %141 : vector<8x64xf32>
    %143 = vector.broadcast %122 : vector<1x64xf32> to vector<8x64xf32>
    %144 = arith.addf %142, %143 : vector<8x64xf32>
    %145 = arith.truncf %144 : vector<8x64xf32> to vector<8x64xbf16>
    %c0_58 = arith.constant 0 : index
    %c0_59 = arith.constant 0 : index
    %c0_60 = arith.constant 0 : index
    %146 = vector.load %arg11[%c0_58, %c0_59, %c0_60] : memref<2x64x128xbf16, #tpu.memory_space<vmem>>, vector<1x64x128xbf16>
    %147 = vector.shape_cast %146 : vector<1x64x128xbf16> to vector<64x128xbf16>
    %cst_61 = arith.constant dense<0.000000e+00> : vector<8x128xf32>
    %148 = tpu.matmul %145, %147, %cst_61 {dimension_numbers = #tpu.dot_dimension_numbers<[1], [0], [0], [1], [0, 0, 1, 1], [], []>} : vector<8x64xbf16>, vector<64x128xbf16>, vector<8x128xf32> -> vector<8x128xf32>
    %c0_62 = arith.constant 0 : index
    %c0_63 = arith.constant 0 : index
    %c0_64 = arith.constant 0 : index
    %149 = vector.load %arg12[%c0_62, %c0_63, %c0_64] : memref<2x1x128xf32, #tpu.memory_space<vmem>>, vector<1x1x128xf32>
    %150 = vector.shape_cast %149 : vector<1x1x128xf32> to vector<1x128xf32>
    %151 = vector.broadcast %150 : vector<1x128xf32> to vector<8x128xf32>
    %152 = arith.addf %148, %151 : vector<8x128xf32>
    %cst_65 = arith.constant 5.000000e-01 : f32
    %153 = vector.broadcast %cst_65 : f32 to vector<8x128xf32>
    %154 = arith.mulf %153, %152 : vector<8x128xf32>
    %cst_66 = arith.constant 0.707106769 : f32
    %155 = vector.broadcast %cst_66 : f32 to vector<8x128xf32>
    %156 = arith.mulf %152, %155 : vector<8x128xf32>
    %cst_67 = arith.constant 0.000000e+00 : f32
    %157 = vector.broadcast %cst_67 : f32 to vector<8x128xf32>
    %158 = arith.cmpf oge, %156, %157 : vector<8x128xf32>
    %cst_68 = arith.constant 1.000000e+00 : f32
    %cst_69 = arith.constant -1.000000e+00 : f32
    %159 = vector.broadcast %cst_68 : f32 to vector<8x128xf32>
    %160 = vector.broadcast %cst_69 : f32 to vector<8x128xf32>
    %161 = arith.select %158, %159, %160 : vector<8x128xi1>, vector<8x128xf32>
    %162 = math.absf %156 : vector<8x128xf32>
    %cst_70 = arith.constant 0.327591091 : f32
    %163 = vector.broadcast %cst_70 : f32 to vector<8x128xf32>
    %164 = arith.mulf %163, %162 : vector<8x128xf32>
    %cst_71 = arith.constant 1.000000e+00 : f32
    %165 = vector.broadcast %cst_71 : f32 to vector<8x128xf32>
    %166 = arith.addf %165, %164 : vector<8x128xf32>
    %cst_72 = arith.constant 1.000000e+00 : f32
    %167 = vector.broadcast %cst_72 : f32 to vector<8x128xf32>
    %168 = arith.divf %167, %166 : vector<8x128xf32>
    %cst_73 = arith.constant 1.06140542 : f32
    %169 = vector.broadcast %cst_73 : f32 to vector<8x128xf32>
    %170 = arith.mulf %168, %169 : vector<8x128xf32>
    %cst_74 = arith.constant -1.45315206 : f32
    %171 = vector.broadcast %cst_74 : f32 to vector<8x128xf32>
    %172 = arith.addf %171, %170 : vector<8x128xf32>
    %173 = arith.mulf %168, %172 : vector<8x128xf32>
    %cst_75 = arith.constant 1.42141378 : f32
    %174 = vector.broadcast %cst_75 : f32 to vector<8x128xf32>
    %175 = arith.addf %174, %173 : vector<8x128xf32>
    %176 = arith.mulf %168, %175 : vector<8x128xf32>
    %cst_76 = arith.constant -0.284496725 : f32
    %177 = vector.broadcast %cst_76 : f32 to vector<8x128xf32>
    %178 = arith.addf %177, %176 : vector<8x128xf32>
    %179 = arith.mulf %168, %178 : vector<8x128xf32>
    %cst_77 = arith.constant 0.254829586 : f32
    %180 = vector.broadcast %cst_77 : f32 to vector<8x128xf32>
    %181 = arith.addf %180, %179 : vector<8x128xf32>
    %182 = arith.mulf %168, %181 : vector<8x128xf32>
    %cst_78 = arith.constant 0.000000e+00 : f32
    %183 = vector.broadcast %cst_78 : f32 to vector<8x128xf32>
    %184 = arith.subf %183, %162 : vector<8x128xf32>
    %185 = arith.mulf %184, %162 : vector<8x128xf32>
    %186 = math.exp %185 : vector<8x128xf32>
    %187 = arith.mulf %182, %186 : vector<8x128xf32>
    %cst_79 = arith.constant 1.000000e+00 : f32
    %188 = vector.broadcast %cst_79 : f32 to vector<8x128xf32>
    %189 = arith.subf %188, %187 : vector<8x128xf32>
    %190 = arith.mulf %161, %189 : vector<8x128xf32>
    %cst_80 = arith.constant 1.000000e+00 : f32
    %191 = vector.broadcast %cst_80 : f32 to vector<8x128xf32>
    %192 = arith.addf %191, %190 : vector<8x128xf32>
    %193 = arith.mulf %154, %192 : vector<8x128xf32>
    %194 = arith.truncf %193 : vector<8x128xf32> to vector<8x128xbf16>
    %c0_81 = arith.constant 0 : index
    %c0_82 = arith.constant 0 : index
    %c0_83 = arith.constant 0 : index
    %195 = vector.load %arg13[%c0_81, %c0_82, %c0_83] : memref<2x128x64xbf16, #tpu.memory_space<vmem>>, vector<1x128x64xbf16>
    %196 = vector.shape_cast %195 : vector<1x128x64xbf16> to vector<128x64xbf16>
    %cst_84 = arith.constant dense<0.000000e+00> : vector<8x64xf32>
    %197 = tpu.matmul %194, %196, %cst_84 {dimension_numbers = #tpu.dot_dimension_numbers<[1], [0], [0], [1], [0, 0, 1, 1], [], []>} : vector<8x128xbf16>, vector<128x64xbf16>, vector<8x64xf32> -> vector<8x64xf32>
    %c0_85 = arith.constant 0 : index
    %c0_86 = arith.constant 0 : index
    %c0_87 = arith.constant 0 : index
    %198 = vector.load %arg14[%c0_85, %c0_86, %c0_87] : memref<2x1x64xf32, #tpu.memory_space<vmem>>, vector<1x1x64xf32>
    %199 = vector.shape_cast %198 : vector<1x1x64xf32> to vector<1x64xf32>
    %200 = vector.broadcast %199 : vector<1x64xf32> to vector<8x64xf32>
    %201 = arith.addf %197, %200 : vector<8x64xf32>
    %202 = arith.addf %144, %201 : vector<8x64xf32>
    %c0_88 = arith.constant 0 : index
    %c0_89 = arith.constant 0 : index
    %c0_90 = arith.constant 0 : index
    %203 = vector.load %arg15[%c0_88, %c0_89, %c0_90] : memref<2x1x64xf32, #tpu.memory_space<vmem>>, vector<1x1x64xf32>
    %204 = vector.shape_cast %203 : vector<1x1x64xf32> to vector<1x64xf32>
    %c0_91 = arith.constant 0 : index
    %c0_92 = arith.constant 0 : index
    %c0_93 = arith.constant 0 : index
    %205 = vector.load %arg16[%c0_91, %c0_92, %c0_93] : memref<2x1x64xf32, #tpu.memory_space<vmem>>, vector<1x1x64xf32>
    %206 = vector.shape_cast %205 : vector<1x1x64xf32> to vector<1x64xf32>
    %cst_94 = arith.constant dense<0.000000e+00> : vector<8xf32>
    %207 = vector.multi_reduction <add>, %202, %cst_94 [1] : vector<8x64xf32> to vector<8xf32>
    %208 = vector.shape_cast %207 : vector<8xf32> to vector<8x1xf32>
    %cst_95 = arith.constant 6.400000e+01 : f32
    %209 = vector.broadcast %cst_95 : f32 to vector<8x1xf32>
    %210 = arith.divf %208, %209 : vector<8x1xf32>
    %211 = vector.broadcast %210 : vector<8x1xf32> to vector<8x64xf32>
    %212 = arith.subf %202, %211 : vector<8x64xf32>
    %213 = arith.mulf %212, %212 : vector<8x64xf32>
    %cst_96 = arith.constant dense<0.000000e+00> : vector<8xf32>
    %214 = vector.multi_reduction <add>, %213, %cst_96 [1] : vector<8x64xf32> to vector<8xf32>
    %215 = vector.shape_cast %214 : vector<8xf32> to vector<8x1xf32>
    %cst_97 = arith.constant 6.400000e+01 : f32
    %216 = vector.broadcast %cst_97 : f32 to vector<8x1xf32>
    %217 = arith.divf %215, %216 : vector<8x1xf32>
    %218 = vector.broadcast %210 : vector<8x1xf32> to vector<8x64xf32>
    %219 = arith.subf %202, %218 : vector<8x64xf32>
    %cst_98 = arith.constant 9.99999996E-13 : f32
    %220 = vector.broadcast %cst_98 : f32 to vector<8x1xf32>
    %221 = arith.addf %217, %220 : vector<8x1xf32>
    %222 = math.rsqrt %221 : vector<8x1xf32>
    %223 = vector.broadcast %222 : vector<8x1xf32> to vector<8x64xf32>
    %224 = arith.mulf %219, %223 : vector<8x64xf32>
    %225 = vector.broadcast %204 : vector<1x64xf32> to vector<8x64xf32>
    %226 = arith.mulf %224, %225 : vector<8x64xf32>
    %227 = vector.broadcast %206 : vector<1x64xf32> to vector<8x64xf32>
    %228 = arith.addf %226, %227 : vector<8x64xf32>
    %229 = arith.truncf %228 : vector<8x64xf32> to vector<8x64xbf16>
    %c1 = arith.constant 1 : index
    %c0_99 = arith.constant 0 : index
    %c0_100 = arith.constant 0 : index
    %230 = vector.load %arg5[%c1, %c0_99, %c0_100] : memref<2x64x192xbf16, #tpu.memory_space<vmem>>, vector<1x64x192xbf16>
    %231 = vector.shape_cast %230 : vector<1x64x192xbf16> to vector<64x192xbf16>
    %cst_101 = arith.constant dense<0.000000e+00> : vector<8x192xf32>
    %232 = tpu.matmul %229, %231, %cst_101 {dimension_numbers = #tpu.dot_dimension_numbers<[1], [0], [0], [1], [0, 0, 1, 1], [], []>} : vector<8x64xbf16>, vector<64x192xbf16>, vector<8x192xf32> -> vector<8x192xf32>
    %c1_102 = arith.constant 1 : index
    %c0_103 = arith.constant 0 : index
    %c0_104 = arith.constant 0 : index
    %233 = vector.load %arg6[%c1_102, %c0_103, %c0_104] : memref<2x1x192xf32, #tpu.memory_space<vmem>>, vector<1x1x192xf32>
    %234 = vector.shape_cast %233 : vector<1x1x192xf32> to vector<1x192xf32>
    %235 = vector.broadcast %234 : vector<1x192xf32> to vector<8x192xf32>
    %236 = arith.addf %232, %235 : vector<8x192xf32>
    %237 = vector.extract_strided_slice %236 {offsets = [0, 0], sizes = [8, 64], strides = [1, 1]} : vector<8x192xf32> to vector<8x64xf32>
    %238 = vector.extract_strided_slice %236 {offsets = [0, 64], sizes = [8, 64], strides = [1, 1]} : vector<8x192xf32> to vector<8x64xf32>
    %239 = vector.extract_strided_slice %236 {offsets = [0, 128], sizes = [8, 64], strides = [1, 1]} : vector<8x192xf32> to vector<8x64xf32>
    %240 = vector.extract_strided_slice %237 {offsets = [0, 0], sizes = [8, 16], strides = [1, 1]} : vector<8x64xf32> to vector<8x16xf32>
    %241 = vector.extract_strided_slice %238 {offsets = [0, 0], sizes = [8, 16], strides = [1, 1]} : vector<8x64xf32> to vector<8x16xf32>
    %242 = vector.extract_strided_slice %239 {offsets = [0, 0], sizes = [8, 16], strides = [1, 1]} : vector<8x64xf32> to vector<8x16xf32>
    "tpu.trace_start"() <{level = 10 : i32, message = "qd,kd->qk"}> : () -> ()
    %cst_105 = arith.constant dense<0.000000e+00> : vector<8x8xf32>
    %243 = tpu.matmul %240, %241, %cst_105 {dimension_numbers = #tpu.dot_dimension_numbers<[1], [1], [0], [0], [0, 0, 1, 0], [], []>} : vector<8x16xf32>, vector<8x16xf32>, vector<8x8xf32> -> vector<8x8xf32>
    "tpu.trace_stop"() : () -> ()
    %cst_106 = arith.constant 2.500000e-01 : f32
    %244 = vector.broadcast %cst_106 : f32 to vector<8x8xf32>
    %245 = arith.mulf %243, %244 : vector<8x8xf32>
    %246 = arith.addf %245, %29 : vector<8x8xf32>
    %cst_107 = arith.constant dense<0xFF800000> : vector<8xf32>
    %247 = vector.multi_reduction <maximumf>, %246, %cst_107 [1] : vector<8x8xf32> to vector<8xf32>
    %248 = vector.shape_cast %247 : vector<8xf32> to vector<8x1xf32>
    %249 = vector.broadcast %248 : vector<8x1xf32> to vector<8x8xf32>
    %250 = arith.subf %246, %249 : vector<8x8xf32>
    %251 = math.exp %250 : vector<8x8xf32>
    %cst_108 = arith.constant dense<0.000000e+00> : vector<8xf32>
    %252 = vector.multi_reduction <add>, %251, %cst_108 [1] : vector<8x8xf32> to vector<8xf32>
    %253 = vector.shape_cast %252 : vector<8xf32> to vector<8x1xf32>
    %254 = vector.broadcast %253 : vector<8x1xf32> to vector<8x8xf32>
    %255 = arith.divf %251, %254 : vector<8x8xf32>
    %cst_109 = arith.constant dense<0.000000e+00> : vector<8x16xf32>
    %256 = tpu.matmul %255, %242, %cst_109 {dimension_numbers = #tpu.dot_dimension_numbers<[1], [0], [0], [1], [0, 0, 1, 1], [], []>} : vector<8x8xf32>, vector<8x16xf32>, vector<8x16xf32> -> vector<8x16xf32>
    %257 = vector.extract_strided_slice %237 {offsets = [0, 16], sizes = [8, 16], strides = [1, 1]} : vector<8x64xf32> to vector<8x16xf32>
    %258 = vector.extract_strided_slice %238 {offsets = [0, 16], sizes = [8, 16], strides = [1, 1]} : vector<8x64xf32> to vector<8x16xf32>
    %259 = vector.extract_strided_slice %239 {offsets = [0, 16], sizes = [8, 16], strides = [1, 1]} : vector<8x64xf32> to vector<8x16xf32>
    "tpu.trace_start"() <{level = 10 : i32, message = "qd,kd->qk"}> : () -> ()
    %cst_110 = arith.constant dense<0.000000e+00> : vector<8x8xf32>
    %260 = tpu.matmul %257, %258, %cst_110 {dimension_numbers = #tpu.dot_dimension_numbers<[1], [1], [0], [0], [0, 0, 1, 0], [], []>} : vector<8x16xf32>, vector<8x16xf32>, vector<8x8xf32> -> vector<8x8xf32>
    "tpu.trace_stop"() : () -> ()
    %cst_111 = arith.constant 2.500000e-01 : f32
    %261 = vector.broadcast %cst_111 : f32 to vector<8x8xf32>
    %262 = arith.mulf %260, %261 : vector<8x8xf32>
    %263 = arith.addf %262, %29 : vector<8x8xf32>
    %cst_112 = arith.constant dense<0xFF800000> : vector<8xf32>
    %264 = vector.multi_reduction <maximumf>, %263, %cst_112 [1] : vector<8x8xf32> to vector<8xf32>
    %265 = vector.shape_cast %264 : vector<8xf32> to vector<8x1xf32>
    %266 = vector.broadcast %265 : vector<8x1xf32> to vector<8x8xf32>
    %267 = arith.subf %263, %266 : vector<8x8xf32>
    %268 = math.exp %267 : vector<8x8xf32>
    %cst_113 = arith.constant dense<0.000000e+00> : vector<8xf32>
    %269 = vector.multi_reduction <add>, %268, %cst_113 [1] : vector<8x8xf32> to vector<8xf32>
    %270 = vector.shape_cast %269 : vector<8xf32> to vector<8x1xf32>
    %271 = vector.broadcast %270 : vector<8x1xf32> to vector<8x8xf32>
    %272 = arith.divf %268, %271 : vector<8x8xf32>
    %cst_114 = arith.constant dense<0.000000e+00> : vector<8x16xf32>
    %273 = tpu.matmul %272, %259, %cst_114 {dimension_numbers = #tpu.dot_dimension_numbers<[1], [0], [0], [1], [0, 0, 1, 1], [], []>} : vector<8x8xf32>, vector<8x16xf32>, vector<8x16xf32> -> vector<8x16xf32>
    %274 = vector.extract_strided_slice %237 {offsets = [0, 32], sizes = [8, 16], strides = [1, 1]} : vector<8x64xf32> to vector<8x16xf32>
    %275 = vector.extract_strided_slice %238 {offsets = [0, 32], sizes = [8, 16], strides = [1, 1]} : vector<8x64xf32> to vector<8x16xf32>
    %276 = vector.extract_strided_slice %239 {offsets = [0, 32], sizes = [8, 16], strides = [1, 1]} : vector<8x64xf32> to vector<8x16xf32>
    "tpu.trace_start"() <{level = 10 : i32, message = "qd,kd->qk"}> : () -> ()
    %cst_115 = arith.constant dense<0.000000e+00> : vector<8x8xf32>
    %277 = tpu.matmul %274, %275, %cst_115 {dimension_numbers = #tpu.dot_dimension_numbers<[1], [1], [0], [0], [0, 0, 1, 0], [], []>} : vector<8x16xf32>, vector<8x16xf32>, vector<8x8xf32> -> vector<8x8xf32>
    "tpu.trace_stop"() : () -> ()
    %cst_116 = arith.constant 2.500000e-01 : f32
    %278 = vector.broadcast %cst_116 : f32 to vector<8x8xf32>
    %279 = arith.mulf %277, %278 : vector<8x8xf32>
    %280 = arith.addf %279, %29 : vector<8x8xf32>
    %cst_117 = arith.constant dense<0xFF800000> : vector<8xf32>
    %281 = vector.multi_reduction <maximumf>, %280, %cst_117 [1] : vector<8x8xf32> to vector<8xf32>
    %282 = vector.shape_cast %281 : vector<8xf32> to vector<8x1xf32>
    %283 = vector.broadcast %282 : vector<8x1xf32> to vector<8x8xf32>
    %284 = arith.subf %280, %283 : vector<8x8xf32>
    %285 = math.exp %284 : vector<8x8xf32>
    %cst_118 = arith.constant dense<0.000000e+00> : vector<8xf32>
    %286 = vector.multi_reduction <add>, %285, %cst_118 [1] : vector<8x8xf32> to vector<8xf32>
    %287 = vector.shape_cast %286 : vector<8xf32> to vector<8x1xf32>
    %288 = vector.broadcast %287 : vector<8x1xf32> to vector<8x8xf32>
    %289 = arith.divf %285, %288 : vector<8x8xf32>
    %cst_119 = arith.constant dense<0.000000e+00> : vector<8x16xf32>
    %290 = tpu.matmul %289, %276, %cst_119 {dimension_numbers = #tpu.dot_dimension_numbers<[1], [0], [0], [1], [0, 0, 1, 1], [], []>} : vector<8x8xf32>, vector<8x16xf32>, vector<8x16xf32> -> vector<8x16xf32>
    %291 = vector.extract_strided_slice %237 {offsets = [0, 48], sizes = [8, 16], strides = [1, 1]} : vector<8x64xf32> to vector<8x16xf32>
    %292 = vector.extract_strided_slice %238 {offsets = [0, 48], sizes = [8, 16], strides = [1, 1]} : vector<8x64xf32> to vector<8x16xf32>
    %293 = vector.extract_strided_slice %239 {offsets = [0, 48], sizes = [8, 16], strides = [1, 1]} : vector<8x64xf32> to vector<8x16xf32>
    "tpu.trace_start"() <{level = 10 : i32, message = "qd,kd->qk"}> : () -> ()
    %cst_120 = arith.constant dense<0.000000e+00> : vector<8x8xf32>
    %294 = tpu.matmul %291, %292, %cst_120 {dimension_numbers = #tpu.dot_dimension_numbers<[1], [1], [0], [0], [0, 0, 1, 0], [], []>} : vector<8x16xf32>, vector<8x16xf32>, vector<8x8xf32> -> vector<8x8xf32>
    "tpu.trace_stop"() : () -> ()
    %cst_121 = arith.constant 2.500000e-01 : f32
    %295 = vector.broadcast %cst_121 : f32 to vector<8x8xf32>
    %296 = arith.mulf %294, %295 : vector<8x8xf32>
    %297 = arith.addf %296, %29 : vector<8x8xf32>
    %cst_122 = arith.constant dense<0xFF800000> : vector<8xf32>
    %298 = vector.multi_reduction <maximumf>, %297, %cst_122 [1] : vector<8x8xf32> to vector<8xf32>
    %299 = vector.shape_cast %298 : vector<8xf32> to vector<8x1xf32>
    %300 = vector.broadcast %299 : vector<8x1xf32> to vector<8x8xf32>
    %301 = arith.subf %297, %300 : vector<8x8xf32>
    %302 = math.exp %301 : vector<8x8xf32>
    %cst_123 = arith.constant dense<0.000000e+00> : vector<8xf32>
    %303 = vector.multi_reduction <add>, %302, %cst_123 [1] : vector<8x8xf32> to vector<8xf32>
    %304 = vector.shape_cast %303 : vector<8xf32> to vector<8x1xf32>
    %305 = vector.broadcast %304 : vector<8x1xf32> to vector<8x8xf32>
    %306 = arith.divf %302, %305 : vector<8x8xf32>
    %cst_124 = arith.constant dense<0.000000e+00> : vector<8x16xf32>
    %307 = tpu.matmul %306, %293, %cst_124 {dimension_numbers = #tpu.dot_dimension_numbers<[1], [0], [0], [1], [0, 0, 1, 1], [], []>} : vector<8x8xf32>, vector<8x16xf32>, vector<8x16xf32> -> vector<8x16xf32>
    %308 = tpu.concatenate %256, %273, %290, %307 in 1 : vector<8x16xf32>, vector<8x16xf32>, vector<8x16xf32>, vector<8x16xf32> -> vector<8x64xf32>
    %309 = arith.truncf %308 : vector<8x64xf32> to vector<8x64xbf16>
    %c1_125 = arith.constant 1 : index
    %c0_126 = arith.constant 0 : index
    %c0_127 = arith.constant 0 : index
    %310 = vector.load %arg7[%c1_125, %c0_126, %c0_127] : memref<2x64x64xbf16, #tpu.memory_space<vmem>>, vector<1x64x64xbf16>
    %311 = vector.shape_cast %310 : vector<1x64x64xbf16> to vector<64x64xbf16>
    %cst_128 = arith.constant dense<0.000000e+00> : vector<8x64xf32>
    %312 = tpu.matmul %309, %311, %cst_128 {dimension_numbers = #tpu.dot_dimension_numbers<[1], [0], [0], [1], [0, 0, 1, 1], [], []>} : vector<8x64xbf16>, vector<64x64xbf16>, vector<8x64xf32> -> vector<8x64xf32>
    %c1_129 = arith.constant 1 : index
    %c0_130 = arith.constant 0 : index
    %c0_131 = arith.constant 0 : index
    %313 = vector.load %arg8[%c1_129, %c0_130, %c0_131] : memref<2x1x64xf32, #tpu.memory_space<vmem>>, vector<1x1x64xf32>
    %314 = vector.shape_cast %313 : vector<1x1x64xf32> to vector<1x64xf32>
    %315 = vector.broadcast %314 : vector<1x64xf32> to vector<8x64xf32>
    %316 = arith.addf %312, %315 : vector<8x64xf32>
    %317 = arith.addf %228, %316 : vector<8x64xf32>
    %c1_132 = arith.constant 1 : index
    %c0_133 = arith.constant 0 : index
    %c0_134 = arith.constant 0 : index
    %318 = vector.load %arg9[%c1_132, %c0_133, %c0_134] : memref<2x1x64xf32, #tpu.memory_space<vmem>>, vector<1x1x64xf32>
    %319 = vector.shape_cast %318 : vector<1x1x64xf32> to vector<1x64xf32>
    %c1_135 = arith.constant 1 : index
    %c0_136 = arith.constant 0 : index
    %c0_137 = arith.constant 0 : index
    %320 = vector.load %arg10[%c1_135, %c0_136, %c0_137] : memref<2x1x64xf32, #tpu.memory_space<vmem>>, vector<1x1x64xf32>
    %321 = vector.shape_cast %320 : vector<1x1x64xf32> to vector<1x64xf32>
    %cst_138 = arith.constant dense<0.000000e+00> : vector<8xf32>
    %322 = vector.multi_reduction <add>, %317, %cst_138 [1] : vector<8x64xf32> to vector<8xf32>
    %323 = vector.shape_cast %322 : vector<8xf32> to vector<8x1xf32>
    %cst_139 = arith.constant 6.400000e+01 : f32
    %324 = vector.broadcast %cst_139 : f32 to vector<8x1xf32>
    %325 = arith.divf %323, %324 : vector<8x1xf32>
    %326 = vector.broadcast %325 : vector<8x1xf32> to vector<8x64xf32>
    %327 = arith.subf %317, %326 : vector<8x64xf32>
    %328 = arith.mulf %327, %327 : vector<8x64xf32>
    %cst_140 = arith.constant dense<0.000000e+00> : vector<8xf32>
    %329 = vector.multi_reduction <add>, %328, %cst_140 [1] : vector<8x64xf32> to vector<8xf32>
    %330 = vector.shape_cast %329 : vector<8xf32> to vector<8x1xf32>
    %cst_141 = arith.constant 6.400000e+01 : f32
    %331 = vector.broadcast %cst_141 : f32 to vector<8x1xf32>
    %332 = arith.divf %330, %331 : vector<8x1xf32>
    %333 = vector.broadcast %325 : vector<8x1xf32> to vector<8x64xf32>
    %334 = arith.subf %317, %333 : vector<8x64xf32>
    %cst_142 = arith.constant 9.99999996E-13 : f32
    %335 = vector.broadcast %cst_142 : f32 to vector<8x1xf32>
    %336 = arith.addf %332, %335 : vector<8x1xf32>
    %337 = math.rsqrt %336 : vector<8x1xf32>
    %338 = vector.broadcast %337 : vector<8x1xf32> to vector<8x64xf32>
    %339 = arith.mulf %334, %338 : vector<8x64xf32>
    %340 = vector.broadcast %319 : vector<1x64xf32> to vector<8x64xf32>
    %341 = arith.mulf %339, %340 : vector<8x64xf32>
    %342 = vector.broadcast %321 : vector<1x64xf32> to vector<8x64xf32>
    %343 = arith.addf %341, %342 : vector<8x64xf32>
    %344 = arith.truncf %343 : vector<8x64xf32> to vector<8x64xbf16>
    %c1_143 = arith.constant 1 : index
    %c0_144 = arith.constant 0 : index
    %c0_145 = arith.constant 0 : index
    %345 = vector.load %arg11[%c1_143, %c0_144, %c0_145] : memref<2x64x128xbf16, #tpu.memory_space<vmem>>, vector<1x64x128xbf16>
    %346 = vector.shape_cast %345 : vector<1x64x128xbf16> to vector<64x128xbf16>
    %cst_146 = arith.constant dense<0.000000e+00> : vector<8x128xf32>
    %347 = tpu.matmul %344, %346, %cst_146 {dimension_numbers = #tpu.dot_dimension_numbers<[1], [0], [0], [1], [0, 0, 1, 1], [], []>} : vector<8x64xbf16>, vector<64x128xbf16>, vector<8x128xf32> -> vector<8x128xf32>
    %c1_147 = arith.constant 1 : index
    %c0_148 = arith.constant 0 : index
    %c0_149 = arith.constant 0 : index
    %348 = vector.load %arg12[%c1_147, %c0_148, %c0_149] : memref<2x1x128xf32, #tpu.memory_space<vmem>>, vector<1x1x128xf32>
    %349 = vector.shape_cast %348 : vector<1x1x128xf32> to vector<1x128xf32>
    %350 = vector.broadcast %349 : vector<1x128xf32> to vector<8x128xf32>
    %351 = arith.addf %347, %350 : vector<8x128xf32>
    %cst_150 = arith.constant 5.000000e-01 : f32
    %352 = vector.broadcast %cst_150 : f32 to vector<8x128xf32>
    %353 = arith.mulf %352, %351 : vector<8x128xf32>
    %cst_151 = arith.constant 0.707106769 : f32
    %354 = vector.broadcast %cst_151 : f32 to vector<8x128xf32>
    %355 = arith.mulf %351, %354 : vector<8x128xf32>
    %cst_152 = arith.constant 0.000000e+00 : f32
    %356 = vector.broadcast %cst_152 : f32 to vector<8x128xf32>
    %357 = arith.cmpf oge, %355, %356 : vector<8x128xf32>
    %cst_153 = arith.constant 1.000000e+00 : f32
    %cst_154 = arith.constant -1.000000e+00 : f32
    %358 = vector.broadcast %cst_153 : f32 to vector<8x128xf32>
    %359 = vector.broadcast %cst_154 : f32 to vector<8x128xf32>
    %360 = arith.select %357, %358, %359 : vector<8x128xi1>, vector<8x128xf32>
    %361 = math.absf %355 : vector<8x128xf32>
    %cst_155 = arith.constant 0.327591091 : f32
    %362 = vector.broadcast %cst_155 : f32 to vector<8x128xf32>
    %363 = arith.mulf %362, %361 : vector<8x128xf32>
    %cst_156 = arith.constant 1.000000e+00 : f32
    %364 = vector.broadcast %cst_156 : f32 to vector<8x128xf32>
    %365 = arith.addf %364, %363 : vector<8x128xf32>
    %cst_157 = arith.constant 1.000000e+00 : f32
    %366 = vector.broadcast %cst_157 : f32 to vector<8x128xf32>
    %367 = arith.divf %366, %365 : vector<8x128xf32>
    %cst_158 = arith.constant 1.06140542 : f32
    %368 = vector.broadcast %cst_158 : f32 to vector<8x128xf32>
    %369 = arith.mulf %367, %368 : vector<8x128xf32>
    %cst_159 = arith.constant -1.45315206 : f32
    %370 = vector.broadcast %cst_159 : f32 to vector<8x128xf32>
    %371 = arith.addf %370, %369 : vector<8x128xf32>
    %372 = arith.mulf %367, %371 : vector<8x128xf32>
    %cst_160 = arith.constant 1.42141378 : f32
    %373 = vector.broadcast %cst_160 : f32 to vector<8x128xf32>
    %374 = arith.addf %373, %372 : vector<8x128xf32>
    %375 = arith.mulf %367, %374 : vector<8x128xf32>
    %cst_161 = arith.constant -0.284496725 : f32
    %376 = vector.broadcast %cst_161 : f32 to vector<8x128xf32>
    %377 = arith.addf %376, %375 : vector<8x128xf32>
    %378 = arith.mulf %367, %377 : vector<8x128xf32>
    %cst_162 = arith.constant 0.254829586 : f32
    %379 = vector.broadcast %cst_162 : f32 to vector<8x128xf32>
    %380 = arith.addf %379, %378 : vector<8x128xf32>
    %381 = arith.mulf %367, %380 : vector<8x128xf32>
    %cst_163 = arith.constant 0.000000e+00 : f32
    %382 = vector.broadcast %cst_163 : f32 to vector<8x128xf32>
    %383 = arith.subf %382, %361 : vector<8x128xf32>
    %384 = arith.mulf %383, %361 : vector<8x128xf32>
    %385 = math.exp %384 : vector<8x128xf32>
    %386 = arith.mulf %381, %385 : vector<8x128xf32>
    %cst_164 = arith.constant 1.000000e+00 : f32
    %387 = vector.broadcast %cst_164 : f32 to vector<8x128xf32>
    %388 = arith.subf %387, %386 : vector<8x128xf32>
    %389 = arith.mulf %360, %388 : vector<8x128xf32>
    %cst_165 = arith.constant 1.000000e+00 : f32
    %390 = vector.broadcast %cst_165 : f32 to vector<8x128xf32>
    %391 = arith.addf %390, %389 : vector<8x128xf32>
    %392 = arith.mulf %353, %391 : vector<8x128xf32>
    %393 = arith.truncf %392 : vector<8x128xf32> to vector<8x128xbf16>
    %c1_166 = arith.constant 1 : index
    %c0_167 = arith.constant 0 : index
    %c0_168 = arith.constant 0 : index
    %394 = vector.load %arg13[%c1_166, %c0_167, %c0_168] : memref<2x128x64xbf16, #tpu.memory_space<vmem>>, vector<1x128x64xbf16>
    %395 = vector.shape_cast %394 : vector<1x128x64xbf16> to vector<128x64xbf16>
    %cst_169 = arith.constant dense<0.000000e+00> : vector<8x64xf32>
    %396 = tpu.matmul %393, %395, %cst_169 {dimension_numbers = #tpu.dot_dimension_numbers<[1], [0], [0], [1], [0, 0, 1, 1], [], []>} : vector<8x128xbf16>, vector<128x64xbf16>, vector<8x64xf32> -> vector<8x64xf32>
    %c1_170 = arith.constant 1 : index
    %c0_171 = arith.constant 0 : index
    %c0_172 = arith.constant 0 : index
    %397 = vector.load %arg14[%c1_170, %c0_171, %c0_172] : memref<2x1x64xf32, #tpu.memory_space<vmem>>, vector<1x1x64xf32>
    %398 = vector.shape_cast %397 : vector<1x1x64xf32> to vector<1x64xf32>
    %399 = vector.broadcast %398 : vector<1x64xf32> to vector<8x64xf32>
    %400 = arith.addf %396, %399 : vector<8x64xf32>
    %401 = arith.addf %343, %400 : vector<8x64xf32>
    %c1_173 = arith.constant 1 : index
    %c0_174 = arith.constant 0 : index
    %c0_175 = arith.constant 0 : index
    %402 = vector.load %arg15[%c1_173, %c0_174, %c0_175] : memref<2x1x64xf32, #tpu.memory_space<vmem>>, vector<1x1x64xf32>
    %403 = vector.shape_cast %402 : vector<1x1x64xf32> to vector<1x64xf32>
    %c1_176 = arith.constant 1 : index
    %c0_177 = arith.constant 0 : index
    %c0_178 = arith.constant 0 : index
    %404 = vector.load %arg16[%c1_176, %c0_177, %c0_178] : memref<2x1x64xf32, #tpu.memory_space<vmem>>, vector<1x1x64xf32>
    %405 = vector.shape_cast %404 : vector<1x1x64xf32> to vector<1x64xf32>
    %cst_179 = arith.constant dense<0.000000e+00> : vector<8xf32>
    %406 = vector.multi_reduction <add>, %401, %cst_179 [1] : vector<8x64xf32> to vector<8xf32>
    %407 = vector.shape_cast %406 : vector<8xf32> to vector<8x1xf32>
    %cst_180 = arith.constant 6.400000e+01 : f32
    %408 = vector.broadcast %cst_180 : f32 to vector<8x1xf32>
    %409 = arith.divf %407, %408 : vector<8x1xf32>
    %410 = vector.broadcast %409 : vector<8x1xf32> to vector<8x64xf32>
    %411 = arith.subf %401, %410 : vector<8x64xf32>
    %412 = arith.mulf %411, %411 : vector<8x64xf32>
    %cst_181 = arith.constant dense<0.000000e+00> : vector<8xf32>
    %413 = vector.multi_reduction <add>, %412, %cst_181 [1] : vector<8x64xf32> to vector<8xf32>
    %414 = vector.shape_cast %413 : vector<8xf32> to vector<8x1xf32>
    %cst_182 = arith.constant 6.400000e+01 : f32
    %415 = vector.broadcast %cst_182 : f32 to vector<8x1xf32>
    %416 = arith.divf %414, %415 : vector<8x1xf32>
    %417 = vector.broadcast %409 : vector<8x1xf32> to vector<8x64xf32>
    %418 = arith.subf %401, %417 : vector<8x64xf32>
    %cst_183 = arith.constant 9.99999996E-13 : f32
    %419 = vector.broadcast %cst_183 : f32 to vector<8x1xf32>
    %420 = arith.addf %416, %419 : vector<8x1xf32>
    %421 = math.rsqrt %420 : vector<8x1xf32>
    %422 = vector.broadcast %421 : vector<8x1xf32> to vector<8x64xf32>
    %423 = arith.mulf %418, %422 : vector<8x64xf32>
    %424 = vector.broadcast %403 : vector<1x64xf32> to vector<8x64xf32>
    %425 = arith.mulf %423, %424 : vector<8x64xf32>
    %426 = vector.broadcast %405 : vector<1x64xf32> to vector<8x64xf32>
    %427 = arith.addf %425, %426 : vector<8x64xf32>
    %428 = arith.truncf %427 : vector<8x64xf32> to vector<8x64xbf16>
    %c0_184 = arith.constant 0 : index
    %c0_185 = arith.constant 0 : index
    %429 = vector.load %arg17[%c0_184, %c0_185] : memref<64x256xbf16, #tpu.memory_space<vmem>>, vector<64x256xbf16>
    %cst_186 = arith.constant dense<0.000000e+00> : vector<8x256xf32>
    %430 = tpu.matmul %428, %429, %cst_186 {dimension_numbers = #tpu.dot_dimension_numbers<[1], [0], [0], [1], [0, 0, 1, 1], [], []>} : vector<8x64xbf16>, vector<64x256xbf16>, vector<8x256xf32> -> vector<8x256xf32>
    %c0_187 = arith.constant 0 : index
    %c0_188 = arith.constant 0 : index
    %431 = vector.load %arg18[%c0_187, %c0_188] : memref<1x256xf32, #tpu.memory_space<vmem>>, vector<1x256xf32>
    %432 = vector.broadcast %431 : vector<1x256xf32> to vector<8x256xf32>
    %433 = arith.addf %430, %432 : vector<8x256xf32>
    %c0_189 = arith.constant 0 : index
    %c0_190 = arith.constant 0 : index
    %434 = vector.load %arg19[%c0_189, %c0_190] : memref<32x128xf32, #tpu.memory_space<vmem>>, vector<32x128xf32>
    %c0_191 = arith.constant 0 : index
    %c0_192 = arith.constant 0 : index
    %435 = vector.load %arg20[%c0_191, %c0_192] : memref<32x128xf32, #tpu.memory_space<vmem>>, vector<32x128xf32>
    %cst_193 = arith.constant 0.000000e+00 : f32
    %436 = vector.broadcast %cst_193 : f32 to vector<1x32xf32>
    %cst_194 = arith.constant 0.000000e+00 : f32
    %437 = vector.broadcast %cst_194 : f32 to vector<1x32xf32>
    %cst_195 = arith.constant 0.000000e+00 : f32
    %438 = vector.broadcast %cst_195 : f32 to vector<1x32xf32>
    %cst_196 = arith.constant 0.000000e+00 : f32
    %439 = vector.broadcast %cst_196 : f32 to vector<1x32xf32>
    %440 = vector.extract_strided_slice %433 {offsets = [0, 0], sizes = [1, 128], strides = [1, 1]} : vector<8x256xf32> to vector<1x128xf32>
    %cst_197 = arith.constant dense<0.000000e+00> : vector<1x128xf32>
    %441 = tpu.matmul %436, %434, %cst_197 {dimension_numbers = #tpu.dot_dimension_numbers<[1], [0], [0], [1], [0, 0, 1, 1], [], []>} : vector<1x32xf32>, vector<32x128xf32>, vector<1x128xf32> -> vector<1x128xf32>
    %442 = arith.addf %440, %441 : vector<1x128xf32>
    %443 = vector.extract_strided_slice %433 {offsets = [7, 128], sizes = [1, 128], strides = [1, 1]} : vector<8x256xf32> to vector<1x128xf32>
    %cst_198 = arith.constant dense<0.000000e+00> : vector<1x128xf32>
    %444 = tpu.matmul %438, %435, %cst_198 {dimension_numbers = #tpu.dot_dimension_numbers<[1], [0], [0], [1], [0, 0, 1, 1], [], []>} : vector<1x32xf32>, vector<32x128xf32>, vector<1x128xf32> -> vector<1x128xf32>
    %445 = arith.addf %443, %444 : vector<1x128xf32>
    %446 = vector.extract_strided_slice %442 {offsets = [0, 0], sizes = [1, 32], strides = [1, 1]} : vector<1x128xf32> to vector<1x32xf32>
    %447 = arith.negf %446 : vector<1x32xf32>
    %448 = math.exp %447 : vector<1x32xf32>
    %cst_199 = arith.constant 1.000000e+00 : f32
    %449 = vector.broadcast %cst_199 : f32 to vector<1x32xf32>
    %450 = arith.addf %449, %448 : vector<1x32xf32>
    %451 = arith.divf %449, %450 : vector<1x32xf32>
    %452 = vector.extract_strided_slice %442 {offsets = [0, 32], sizes = [1, 32], strides = [1, 1]} : vector<1x128xf32> to vector<1x32xf32>
    %453 = arith.negf %452 : vector<1x32xf32>
    %454 = math.exp %453 : vector<1x32xf32>
    %cst_200 = arith.constant 1.000000e+00 : f32
    %455 = vector.broadcast %cst_200 : f32 to vector<1x32xf32>
    %456 = arith.addf %455, %454 : vector<1x32xf32>
    %457 = arith.divf %455, %456 : vector<1x32xf32>
    %458 = vector.extract_strided_slice %442 {offsets = [0, 64], sizes = [1, 32], strides = [1, 1]} : vector<1x128xf32> to vector<1x32xf32>
    %459 = math.tanh %458 : vector<1x32xf32>
    %460 = vector.extract_strided_slice %442 {offsets = [0, 96], sizes = [1, 32], strides = [1, 1]} : vector<1x128xf32> to vector<1x32xf32>
    %461 = arith.negf %460 : vector<1x32xf32>
    %462 = math.exp %461 : vector<1x32xf32>
    %cst_201 = arith.constant 1.000000e+00 : f32
    %463 = vector.broadcast %cst_201 : f32 to vector<1x32xf32>
    %464 = arith.addf %463, %462 : vector<1x32xf32>
    %465 = arith.divf %463, %464 : vector<1x32xf32>
    %466 = arith.mulf %457, %437 : vector<1x32xf32>
    %467 = arith.mulf %451, %459 : vector<1x32xf32>
    %468 = arith.addf %466, %467 : vector<1x32xf32>
    %469 = math.tanh %468 : vector<1x32xf32>
    %470 = arith.mulf %465, %469 : vector<1x32xf32>
    %471 = vector.extract_strided_slice %445 {offsets = [0, 0], sizes = [1, 32], strides = [1, 1]} : vector<1x128xf32> to vector<1x32xf32>
    %472 = arith.negf %471 : vector<1x32xf32>
    %473 = math.exp %472 : vector<1x32xf32>
    %cst_202 = arith.constant 1.000000e+00 : f32
    %474 = vector.broadcast %cst_202 : f32 to vector<1x32xf32>
    %475 = arith.addf %474, %473 : vector<1x32xf32>
    %476 = arith.divf %474, %475 : vector<1x32xf32>
    %477 = vector.extract_strided_slice %445 {offsets = [0, 32], sizes = [1, 32], strides = [1, 1]} : vector<1x128xf32> to vector<1x32xf32>
    %478 = arith.negf %477 : vector<1x32xf32>
    %479 = math.exp %478 : vector<1x32xf32>
    %cst_203 = arith.constant 1.000000e+00 : f32
    %480 = vector.broadcast %cst_203 : f32 to vector<1x32xf32>
    %481 = arith.addf %480, %479 : vector<1x32xf32>
    %482 = arith.divf %480, %481 : vector<1x32xf32>
    %483 = vector.extract_strided_slice %445 {offsets = [0, 64], sizes = [1, 32], strides = [1, 1]} : vector<1x128xf32> to vector<1x32xf32>
    %484 = math.tanh %483 : vector<1x32xf32>
    %485 = vector.extract_strided_slice %445 {offsets = [0, 96], sizes = [1, 32], strides = [1, 1]} : vector<1x128xf32> to vector<1x32xf32>
    %486 = arith.negf %485 : vector<1x32xf32>
    %487 = math.exp %486 : vector<1x32xf32>
    %cst_204 = arith.constant 1.000000e+00 : f32
    %488 = vector.broadcast %cst_204 : f32 to vector<1x32xf32>
    %489 = arith.addf %488, %487 : vector<1x32xf32>
    %490 = arith.divf %488, %489 : vector<1x32xf32>
    %491 = arith.mulf %482, %439 : vector<1x32xf32>
    %492 = arith.mulf %476, %484 : vector<1x32xf32>
    %493 = arith.addf %491, %492 : vector<1x32xf32>
    %494 = math.tanh %493 : vector<1x32xf32>
    %495 = arith.mulf %490, %494 : vector<1x32xf32>
    %496 = vector.extract_strided_slice %433 {offsets = [1, 0], sizes = [1, 128], strides = [1, 1]} : vector<8x256xf32> to vector<1x128xf32>
    %cst_205 = arith.constant dense<0.000000e+00> : vector<1x128xf32>
    %497 = tpu.matmul %470, %434, %cst_205 {dimension_numbers = #tpu.dot_dimension_numbers<[1], [0], [0], [1], [0, 0, 1, 1], [], []>} : vector<1x32xf32>, vector<32x128xf32>, vector<1x128xf32> -> vector<1x128xf32>
    %498 = arith.addf %496, %497 : vector<1x128xf32>
    %499 = vector.extract_strided_slice %433 {offsets = [6, 128], sizes = [1, 128], strides = [1, 1]} : vector<8x256xf32> to vector<1x128xf32>
    %cst_206 = arith.constant dense<0.000000e+00> : vector<1x128xf32>
    %500 = tpu.matmul %495, %435, %cst_206 {dimension_numbers = #tpu.dot_dimension_numbers<[1], [0], [0], [1], [0, 0, 1, 1], [], []>} : vector<1x32xf32>, vector<32x128xf32>, vector<1x128xf32> -> vector<1x128xf32>
    %501 = arith.addf %499, %500 : vector<1x128xf32>
    %502 = vector.extract_strided_slice %498 {offsets = [0, 0], sizes = [1, 32], strides = [1, 1]} : vector<1x128xf32> to vector<1x32xf32>
    %503 = arith.negf %502 : vector<1x32xf32>
    %504 = math.exp %503 : vector<1x32xf32>
    %cst_207 = arith.constant 1.000000e+00 : f32
    %505 = vector.broadcast %cst_207 : f32 to vector<1x32xf32>
    %506 = arith.addf %505, %504 : vector<1x32xf32>
    %507 = arith.divf %505, %506 : vector<1x32xf32>
    %508 = vector.extract_strided_slice %498 {offsets = [0, 32], sizes = [1, 32], strides = [1, 1]} : vector<1x128xf32> to vector<1x32xf32>
    %509 = arith.negf %508 : vector<1x32xf32>
    %510 = math.exp %509 : vector<1x32xf32>
    %cst_208 = arith.constant 1.000000e+00 : f32
    %511 = vector.broadcast %cst_208 : f32 to vector<1x32xf32>
    %512 = arith.addf %511, %510 : vector<1x32xf32>
    %513 = arith.divf %511, %512 : vector<1x32xf32>
    %514 = vector.extract_strided_slice %498 {offsets = [0, 64], sizes = [1, 32], strides = [1, 1]} : vector<1x128xf32> to vector<1x32xf32>
    %515 = math.tanh %514 : vector<1x32xf32>
    %516 = vector.extract_strided_slice %498 {offsets = [0, 96], sizes = [1, 32], strides = [1, 1]} : vector<1x128xf32> to vector<1x32xf32>
    %517 = arith.negf %516 : vector<1x32xf32>
    %518 = math.exp %517 : vector<1x32xf32>
    %cst_209 = arith.constant 1.000000e+00 : f32
    %519 = vector.broadcast %cst_209 : f32 to vector<1x32xf32>
    %520 = arith.addf %519, %518 : vector<1x32xf32>
    %521 = arith.divf %519, %520 : vector<1x32xf32>
    %522 = arith.mulf %513, %468 : vector<1x32xf32>
    %523 = arith.mulf %507, %515 : vector<1x32xf32>
    %524 = arith.addf %522, %523 : vector<1x32xf32>
    %525 = math.tanh %524 : vector<1x32xf32>
    %526 = arith.mulf %521, %525 : vector<1x32xf32>
    %527 = vector.extract_strided_slice %501 {offsets = [0, 0], sizes = [1, 32], strides = [1, 1]} : vector<1x128xf32> to vector<1x32xf32>
    %528 = arith.negf %527 : vector<1x32xf32>
    %529 = math.exp %528 : vector<1x32xf32>
    %cst_210 = arith.constant 1.000000e+00 : f32
    %530 = vector.broadcast %cst_210 : f32 to vector<1x32xf32>
    %531 = arith.addf %530, %529 : vector<1x32xf32>
    %532 = arith.divf %530, %531 : vector<1x32xf32>
    %533 = vector.extract_strided_slice %501 {offsets = [0, 32], sizes = [1, 32], strides = [1, 1]} : vector<1x128xf32> to vector<1x32xf32>
    %534 = arith.negf %533 : vector<1x32xf32>
    %535 = math.exp %534 : vector<1x32xf32>
    %cst_211 = arith.constant 1.000000e+00 : f32
    %536 = vector.broadcast %cst_211 : f32 to vector<1x32xf32>
    %537 = arith.addf %536, %535 : vector<1x32xf32>
    %538 = arith.divf %536, %537 : vector<1x32xf32>
    %539 = vector.extract_strided_slice %501 {offsets = [0, 64], sizes = [1, 32], strides = [1, 1]} : vector<1x128xf32> to vector<1x32xf32>
    %540 = math.tanh %539 : vector<1x32xf32>
    %541 = vector.extract_strided_slice %501 {offsets = [0, 96], sizes = [1, 32], strides = [1, 1]} : vector<1x128xf32> to vector<1x32xf32>
    %542 = arith.negf %541 : vector<1x32xf32>
    %543 = math.exp %542 : vector<1x32xf32>
    %cst_212 = arith.constant 1.000000e+00 : f32
    %544 = vector.broadcast %cst_212 : f32 to vector<1x32xf32>
    %545 = arith.addf %544, %543 : vector<1x32xf32>
    %546 = arith.divf %544, %545 : vector<1x32xf32>
    %547 = arith.mulf %538, %493 : vector<1x32xf32>
    %548 = arith.mulf %532, %540 : vector<1x32xf32>
    %549 = arith.addf %547, %548 : vector<1x32xf32>
    %550 = math.tanh %549 : vector<1x32xf32>
    %551 = arith.mulf %546, %550 : vector<1x32xf32>
    %552 = vector.extract_strided_slice %433 {offsets = [2, 0], sizes = [1, 128], strides = [1, 1]} : vector<8x256xf32> to vector<1x128xf32>
    %cst_213 = arith.constant dense<0.000000e+00> : vector<1x128xf32>
    %553 = tpu.matmul %526, %434, %cst_213 {dimension_numbers = #tpu.dot_dimension_numbers<[1], [0], [0], [1], [0, 0, 1, 1], [], []>} : vector<1x32xf32>, vector<32x128xf32>, vector<1x128xf32> -> vector<1x128xf32>
    %554 = arith.addf %552, %553 : vector<1x128xf32>
    %555 = vector.extract_strided_slice %433 {offsets = [5, 128], sizes = [1, 128], strides = [1, 1]} : vector<8x256xf32> to vector<1x128xf32>
    %cst_214 = arith.constant dense<0.000000e+00> : vector<1x128xf32>
    %556 = tpu.matmul %551, %435, %cst_214 {dimension_numbers = #tpu.dot_dimension_numbers<[1], [0], [0], [1], [0, 0, 1, 1], [], []>} : vector<1x32xf32>, vector<32x128xf32>, vector<1x128xf32> -> vector<1x128xf32>
    %557 = arith.addf %555, %556 : vector<1x128xf32>
    %558 = vector.extract_strided_slice %554 {offsets = [0, 0], sizes = [1, 32], strides = [1, 1]} : vector<1x128xf32> to vector<1x32xf32>
    %559 = arith.negf %558 : vector<1x32xf32>
    %560 = math.exp %559 : vector<1x32xf32>
    %cst_215 = arith.constant 1.000000e+00 : f32
    %561 = vector.broadcast %cst_215 : f32 to vector<1x32xf32>
    %562 = arith.addf %561, %560 : vector<1x32xf32>
    %563 = arith.divf %561, %562 : vector<1x32xf32>
    %564 = vector.extract_strided_slice %554 {offsets = [0, 32], sizes = [1, 32], strides = [1, 1]} : vector<1x128xf32> to vector<1x32xf32>
    %565 = arith.negf %564 : vector<1x32xf32>
    %566 = math.exp %565 : vector<1x32xf32>
    %cst_216 = arith.constant 1.000000e+00 : f32
    %567 = vector.broadcast %cst_216 : f32 to vector<1x32xf32>
    %568 = arith.addf %567, %566 : vector<1x32xf32>
    %569 = arith.divf %567, %568 : vector<1x32xf32>
    %570 = vector.extract_strided_slice %554 {offsets = [0, 64], sizes = [1, 32], strides = [1, 1]} : vector<1x128xf32> to vector<1x32xf32>
    %571 = math.tanh %570 : vector<1x32xf32>
    %572 = vector.extract_strided_slice %554 {offsets = [0, 96], sizes = [1, 32], strides = [1, 1]} : vector<1x128xf32> to vector<1x32xf32>
    %573 = arith.negf %572 : vector<1x32xf32>
    %574 = math.exp %573 : vector<1x32xf32>
    %cst_217 = arith.constant 1.000000e+00 : f32
    %575 = vector.broadcast %cst_217 : f32 to vector<1x32xf32>
    %576 = arith.addf %575, %574 : vector<1x32xf32>
    %577 = arith.divf %575, %576 : vector<1x32xf32>
    %578 = arith.mulf %569, %524 : vector<1x32xf32>
    %579 = arith.mulf %563, %571 : vector<1x32xf32>
    %580 = arith.addf %578, %579 : vector<1x32xf32>
    %581 = math.tanh %580 : vector<1x32xf32>
    %582 = arith.mulf %577, %581 : vector<1x32xf32>
    %583 = vector.extract_strided_slice %557 {offsets = [0, 0], sizes = [1, 32], strides = [1, 1]} : vector<1x128xf32> to vector<1x32xf32>
    %584 = arith.negf %583 : vector<1x32xf32>
    %585 = math.exp %584 : vector<1x32xf32>
    %cst_218 = arith.constant 1.000000e+00 : f32
    %586 = vector.broadcast %cst_218 : f32 to vector<1x32xf32>
    %587 = arith.addf %586, %585 : vector<1x32xf32>
    %588 = arith.divf %586, %587 : vector<1x32xf32>
    %589 = vector.extract_strided_slice %557 {offsets = [0, 32], sizes = [1, 32], strides = [1, 1]} : vector<1x128xf32> to vector<1x32xf32>
    %590 = arith.negf %589 : vector<1x32xf32>
    %591 = math.exp %590 : vector<1x32xf32>
    %cst_219 = arith.constant 1.000000e+00 : f32
    %592 = vector.broadcast %cst_219 : f32 to vector<1x32xf32>
    %593 = arith.addf %592, %591 : vector<1x32xf32>
    %594 = arith.divf %592, %593 : vector<1x32xf32>
    %595 = vector.extract_strided_slice %557 {offsets = [0, 64], sizes = [1, 32], strides = [1, 1]} : vector<1x128xf32> to vector<1x32xf32>
    %596 = math.tanh %595 : vector<1x32xf32>
    %597 = vector.extract_strided_slice %557 {offsets = [0, 96], sizes = [1, 32], strides = [1, 1]} : vector<1x128xf32> to vector<1x32xf32>
    %598 = arith.negf %597 : vector<1x32xf32>
    %599 = math.exp %598 : vector<1x32xf32>
    %cst_220 = arith.constant 1.000000e+00 : f32
    %600 = vector.broadcast %cst_220 : f32 to vector<1x32xf32>
    %601 = arith.addf %600, %599 : vector<1x32xf32>
    %602 = arith.divf %600, %601 : vector<1x32xf32>
    %603 = arith.mulf %594, %549 : vector<1x32xf32>
    %604 = arith.mulf %588, %596 : vector<1x32xf32>
    %605 = arith.addf %603, %604 : vector<1x32xf32>
    %606 = math.tanh %605 : vector<1x32xf32>
    %607 = arith.mulf %602, %606 : vector<1x32xf32>
    %608 = vector.extract_strided_slice %433 {offsets = [3, 0], sizes = [1, 128], strides = [1, 1]} : vector<8x256xf32> to vector<1x128xf32>
    %cst_221 = arith.constant dense<0.000000e+00> : vector<1x128xf32>
    %609 = tpu.matmul %582, %434, %cst_221 {dimension_numbers = #tpu.dot_dimension_numbers<[1], [0], [0], [1], [0, 0, 1, 1], [], []>} : vector<1x32xf32>, vector<32x128xf32>, vector<1x128xf32> -> vector<1x128xf32>
    %610 = arith.addf %608, %609 : vector<1x128xf32>
    %611 = vector.extract_strided_slice %433 {offsets = [4, 128], sizes = [1, 128], strides = [1, 1]} : vector<8x256xf32> to vector<1x128xf32>
    %cst_222 = arith.constant dense<0.000000e+00> : vector<1x128xf32>
    %612 = tpu.matmul %607, %435, %cst_222 {dimension_numbers = #tpu.dot_dimension_numbers<[1], [0], [0], [1], [0, 0, 1, 1], [], []>} : vector<1x32xf32>, vector<32x128xf32>, vector<1x128xf32> -> vector<1x128xf32>
    %613 = arith.addf %611, %612 : vector<1x128xf32>
    %614 = vector.extract_strided_slice %610 {offsets = [0, 0], sizes = [1, 32], strides = [1, 1]} : vector<1x128xf32> to vector<1x32xf32>
    %615 = arith.negf %614 : vector<1x32xf32>
    %616 = math.exp %615 : vector<1x32xf32>
    %cst_223 = arith.constant 1.000000e+00 : f32
    %617 = vector.broadcast %cst_223 : f32 to vector<1x32xf32>
    %618 = arith.addf %617, %616 : vector<1x32xf32>
    %619 = arith.divf %617, %618 : vector<1x32xf32>
    %620 = vector.extract_strided_slice %610 {offsets = [0, 32], sizes = [1, 32], strides = [1, 1]} : vector<1x128xf32> to vector<1x32xf32>
    %621 = arith.negf %620 : vector<1x32xf32>
    %622 = math.exp %621 : vector<1x32xf32>
    %cst_224 = arith.constant 1.000000e+00 : f32
    %623 = vector.broadcast %cst_224 : f32 to vector<1x32xf32>
    %624 = arith.addf %623, %622 : vector<1x32xf32>
    %625 = arith.divf %623, %624 : vector<1x32xf32>
    %626 = vector.extract_strided_slice %610 {offsets = [0, 64], sizes = [1, 32], strides = [1, 1]} : vector<1x128xf32> to vector<1x32xf32>
    %627 = math.tanh %626 : vector<1x32xf32>
    %628 = vector.extract_strided_slice %610 {offsets = [0, 96], sizes = [1, 32], strides = [1, 1]} : vector<1x128xf32> to vector<1x32xf32>
    %629 = arith.negf %628 : vector<1x32xf32>
    %630 = math.exp %629 : vector<1x32xf32>
    %cst_225 = arith.constant 1.000000e+00 : f32
    %631 = vector.broadcast %cst_225 : f32 to vector<1x32xf32>
    %632 = arith.addf %631, %630 : vector<1x32xf32>
    %633 = arith.divf %631, %632 : vector<1x32xf32>
    %634 = arith.mulf %625, %580 : vector<1x32xf32>
    %635 = arith.mulf %619, %627 : vector<1x32xf32>
    %636 = arith.addf %634, %635 : vector<1x32xf32>
    %637 = math.tanh %636 : vector<1x32xf32>
    %638 = arith.mulf %633, %637 : vector<1x32xf32>
    %639 = vector.extract_strided_slice %613 {offsets = [0, 0], sizes = [1, 32], strides = [1, 1]} : vector<1x128xf32> to vector<1x32xf32>
    %640 = arith.negf %639 : vector<1x32xf32>
    %641 = math.exp %640 : vector<1x32xf32>
    %cst_226 = arith.constant 1.000000e+00 : f32
    %642 = vector.broadcast %cst_226 : f32 to vector<1x32xf32>
    %643 = arith.addf %642, %641 : vector<1x32xf32>
    %644 = arith.divf %642, %643 : vector<1x32xf32>
    %645 = vector.extract_strided_slice %613 {offsets = [0, 32], sizes = [1, 32], strides = [1, 1]} : vector<1x128xf32> to vector<1x32xf32>
    %646 = arith.negf %645 : vector<1x32xf32>
    %647 = math.exp %646 : vector<1x32xf32>
    %cst_227 = arith.constant 1.000000e+00 : f32
    %648 = vector.broadcast %cst_227 : f32 to vector<1x32xf32>
    %649 = arith.addf %648, %647 : vector<1x32xf32>
    %650 = arith.divf %648, %649 : vector<1x32xf32>
    %651 = vector.extract_strided_slice %613 {offsets = [0, 64], sizes = [1, 32], strides = [1, 1]} : vector<1x128xf32> to vector<1x32xf32>
    %652 = math.tanh %651 : vector<1x32xf32>
    %653 = vector.extract_strided_slice %613 {offsets = [0, 96], sizes = [1, 32], strides = [1, 1]} : vector<1x128xf32> to vector<1x32xf32>
    %654 = arith.negf %653 : vector<1x32xf32>
    %655 = math.exp %654 : vector<1x32xf32>
    %cst_228 = arith.constant 1.000000e+00 : f32
    %656 = vector.broadcast %cst_228 : f32 to vector<1x32xf32>
    %657 = arith.addf %656, %655 : vector<1x32xf32>
    %658 = arith.divf %656, %657 : vector<1x32xf32>
    %659 = arith.mulf %650, %605 : vector<1x32xf32>
    %660 = arith.mulf %644, %652 : vector<1x32xf32>
    %661 = arith.addf %659, %660 : vector<1x32xf32>
    %662 = math.tanh %661 : vector<1x32xf32>
    %663 = arith.mulf %658, %662 : vector<1x32xf32>
    %664 = vector.extract_strided_slice %433 {offsets = [4, 0], sizes = [1, 128], strides = [1, 1]} : vector<8x256xf32> to vector<1x128xf32>
    %cst_229 = arith.constant dense<0.000000e+00> : vector<1x128xf32>
    %665 = tpu.matmul %638, %434, %cst_229 {dimension_numbers = #tpu.dot_dimension_numbers<[1], [0], [0], [1], [0, 0, 1, 1], [], []>} : vector<1x32xf32>, vector<32x128xf32>, vector<1x128xf32> -> vector<1x128xf32>
    %666 = arith.addf %664, %665 : vector<1x128xf32>
    %667 = vector.extract_strided_slice %433 {offsets = [3, 128], sizes = [1, 128], strides = [1, 1]} : vector<8x256xf32> to vector<1x128xf32>
    %cst_230 = arith.constant dense<0.000000e+00> : vector<1x128xf32>
    %668 = tpu.matmul %663, %435, %cst_230 {dimension_numbers = #tpu.dot_dimension_numbers<[1], [0], [0], [1], [0, 0, 1, 1], [], []>} : vector<1x32xf32>, vector<32x128xf32>, vector<1x128xf32> -> vector<1x128xf32>
    %669 = arith.addf %667, %668 : vector<1x128xf32>
    %670 = vector.extract_strided_slice %666 {offsets = [0, 0], sizes = [1, 32], strides = [1, 1]} : vector<1x128xf32> to vector<1x32xf32>
    %671 = arith.negf %670 : vector<1x32xf32>
    %672 = math.exp %671 : vector<1x32xf32>
    %cst_231 = arith.constant 1.000000e+00 : f32
    %673 = vector.broadcast %cst_231 : f32 to vector<1x32xf32>
    %674 = arith.addf %673, %672 : vector<1x32xf32>
    %675 = arith.divf %673, %674 : vector<1x32xf32>
    %676 = vector.extract_strided_slice %666 {offsets = [0, 32], sizes = [1, 32], strides = [1, 1]} : vector<1x128xf32> to vector<1x32xf32>
    %677 = arith.negf %676 : vector<1x32xf32>
    %678 = math.exp %677 : vector<1x32xf32>
    %cst_232 = arith.constant 1.000000e+00 : f32
    %679 = vector.broadcast %cst_232 : f32 to vector<1x32xf32>
    %680 = arith.addf %679, %678 : vector<1x32xf32>
    %681 = arith.divf %679, %680 : vector<1x32xf32>
    %682 = vector.extract_strided_slice %666 {offsets = [0, 64], sizes = [1, 32], strides = [1, 1]} : vector<1x128xf32> to vector<1x32xf32>
    %683 = math.tanh %682 : vector<1x32xf32>
    %684 = vector.extract_strided_slice %666 {offsets = [0, 96], sizes = [1, 32], strides = [1, 1]} : vector<1x128xf32> to vector<1x32xf32>
    %685 = arith.negf %684 : vector<1x32xf32>
    %686 = math.exp %685 : vector<1x32xf32>
    %cst_233 = arith.constant 1.000000e+00 : f32
    %687 = vector.broadcast %cst_233 : f32 to vector<1x32xf32>
    %688 = arith.addf %687, %686 : vector<1x32xf32>
    %689 = arith.divf %687, %688 : vector<1x32xf32>
    %690 = arith.mulf %681, %636 : vector<1x32xf32>
    %691 = arith.mulf %675, %683 : vector<1x32xf32>
    %692 = arith.addf %690, %691 : vector<1x32xf32>
    %693 = math.tanh %692 : vector<1x32xf32>
    %694 = arith.mulf %689, %693 : vector<1x32xf32>
    %695 = vector.extract_strided_slice %669 {offsets = [0, 0], sizes = [1, 32], strides = [1, 1]} : vector<1x128xf32> to vector<1x32xf32>
    %696 = arith.negf %695 : vector<1x32xf32>
    %697 = math.exp %696 : vector<1x32xf32>
    %cst_234 = arith.constant 1.000000e+00 : f32
    %698 = vector.broadcast %cst_234 : f32 to vector<1x32xf32>
    %699 = arith.addf %698, %697 : vector<1x32xf32>
    %700 = arith.divf %698, %699 : vector<1x32xf32>
    %701 = vector.extract_strided_slice %669 {offsets = [0, 32], sizes = [1, 32], strides = [1, 1]} : vector<1x128xf32> to vector<1x32xf32>
    %702 = arith.negf %701 : vector<1x32xf32>
    %703 = math.exp %702 : vector<1x32xf32>
    %cst_235 = arith.constant 1.000000e+00 : f32
    %704 = vector.broadcast %cst_235 : f32 to vector<1x32xf32>
    %705 = arith.addf %704, %703 : vector<1x32xf32>
    %706 = arith.divf %704, %705 : vector<1x32xf32>
    %707 = vector.extract_strided_slice %669 {offsets = [0, 64], sizes = [1, 32], strides = [1, 1]} : vector<1x128xf32> to vector<1x32xf32>
    %708 = math.tanh %707 : vector<1x32xf32>
    %709 = vector.extract_strided_slice %669 {offsets = [0, 96], sizes = [1, 32], strides = [1, 1]} : vector<1x128xf32> to vector<1x32xf32>
    %710 = arith.negf %709 : vector<1x32xf32>
    %711 = math.exp %710 : vector<1x32xf32>
    %cst_236 = arith.constant 1.000000e+00 : f32
    %712 = vector.broadcast %cst_236 : f32 to vector<1x32xf32>
    %713 = arith.addf %712, %711 : vector<1x32xf32>
    %714 = arith.divf %712, %713 : vector<1x32xf32>
    %715 = arith.mulf %706, %661 : vector<1x32xf32>
    %716 = arith.mulf %700, %708 : vector<1x32xf32>
    %717 = arith.addf %715, %716 : vector<1x32xf32>
    %718 = math.tanh %717 : vector<1x32xf32>
    %719 = arith.mulf %714, %718 : vector<1x32xf32>
    %720 = vector.extract_strided_slice %433 {offsets = [5, 0], sizes = [1, 128], strides = [1, 1]} : vector<8x256xf32> to vector<1x128xf32>
    %cst_237 = arith.constant dense<0.000000e+00> : vector<1x128xf32>
    %721 = tpu.matmul %694, %434, %cst_237 {dimension_numbers = #tpu.dot_dimension_numbers<[1], [0], [0], [1], [0, 0, 1, 1], [], []>} : vector<1x32xf32>, vector<32x128xf32>, vector<1x128xf32> -> vector<1x128xf32>
    %722 = arith.addf %720, %721 : vector<1x128xf32>
    %723 = vector.extract_strided_slice %433 {offsets = [2, 128], sizes = [1, 128], strides = [1, 1]} : vector<8x256xf32> to vector<1x128xf32>
    %cst_238 = arith.constant dense<0.000000e+00> : vector<1x128xf32>
    %724 = tpu.matmul %719, %435, %cst_238 {dimension_numbers = #tpu.dot_dimension_numbers<[1], [0], [0], [1], [0, 0, 1, 1], [], []>} : vector<1x32xf32>, vector<32x128xf32>, vector<1x128xf32> -> vector<1x128xf32>
    %725 = arith.addf %723, %724 : vector<1x128xf32>
    %726 = vector.extract_strided_slice %722 {offsets = [0, 0], sizes = [1, 32], strides = [1, 1]} : vector<1x128xf32> to vector<1x32xf32>
    %727 = arith.negf %726 : vector<1x32xf32>
    %728 = math.exp %727 : vector<1x32xf32>
    %cst_239 = arith.constant 1.000000e+00 : f32
    %729 = vector.broadcast %cst_239 : f32 to vector<1x32xf32>
    %730 = arith.addf %729, %728 : vector<1x32xf32>
    %731 = arith.divf %729, %730 : vector<1x32xf32>
    %732 = vector.extract_strided_slice %722 {offsets = [0, 32], sizes = [1, 32], strides = [1, 1]} : vector<1x128xf32> to vector<1x32xf32>
    %733 = arith.negf %732 : vector<1x32xf32>
    %734 = math.exp %733 : vector<1x32xf32>
    %cst_240 = arith.constant 1.000000e+00 : f32
    %735 = vector.broadcast %cst_240 : f32 to vector<1x32xf32>
    %736 = arith.addf %735, %734 : vector<1x32xf32>
    %737 = arith.divf %735, %736 : vector<1x32xf32>
    %738 = vector.extract_strided_slice %722 {offsets = [0, 64], sizes = [1, 32], strides = [1, 1]} : vector<1x128xf32> to vector<1x32xf32>
    %739 = math.tanh %738 : vector<1x32xf32>
    %740 = vector.extract_strided_slice %722 {offsets = [0, 96], sizes = [1, 32], strides = [1, 1]} : vector<1x128xf32> to vector<1x32xf32>
    %741 = arith.negf %740 : vector<1x32xf32>
    %742 = math.exp %741 : vector<1x32xf32>
    %cst_241 = arith.constant 1.000000e+00 : f32
    %743 = vector.broadcast %cst_241 : f32 to vector<1x32xf32>
    %744 = arith.addf %743, %742 : vector<1x32xf32>
    %745 = arith.divf %743, %744 : vector<1x32xf32>
    %746 = arith.mulf %737, %692 : vector<1x32xf32>
    %747 = arith.mulf %731, %739 : vector<1x32xf32>
    %748 = arith.addf %746, %747 : vector<1x32xf32>
    %749 = math.tanh %748 : vector<1x32xf32>
    %750 = arith.mulf %745, %749 : vector<1x32xf32>
    %751 = vector.extract_strided_slice %725 {offsets = [0, 0], sizes = [1, 32], strides = [1, 1]} : vector<1x128xf32> to vector<1x32xf32>
    %752 = arith.negf %751 : vector<1x32xf32>
    %753 = math.exp %752 : vector<1x32xf32>
    %cst_242 = arith.constant 1.000000e+00 : f32
    %754 = vector.broadcast %cst_242 : f32 to vector<1x32xf32>
    %755 = arith.addf %754, %753 : vector<1x32xf32>
    %756 = arith.divf %754, %755 : vector<1x32xf32>
    %757 = vector.extract_strided_slice %725 {offsets = [0, 32], sizes = [1, 32], strides = [1, 1]} : vector<1x128xf32> to vector<1x32xf32>
    %758 = arith.negf %757 : vector<1x32xf32>
    %759 = math.exp %758 : vector<1x32xf32>
    %cst_243 = arith.constant 1.000000e+00 : f32
    %760 = vector.broadcast %cst_243 : f32 to vector<1x32xf32>
    %761 = arith.addf %760, %759 : vector<1x32xf32>
    %762 = arith.divf %760, %761 : vector<1x32xf32>
    %763 = vector.extract_strided_slice %725 {offsets = [0, 64], sizes = [1, 32], strides = [1, 1]} : vector<1x128xf32> to vector<1x32xf32>
    %764 = math.tanh %763 : vector<1x32xf32>
    %765 = vector.extract_strided_slice %725 {offsets = [0, 96], sizes = [1, 32], strides = [1, 1]} : vector<1x128xf32> to vector<1x32xf32>
    %766 = arith.negf %765 : vector<1x32xf32>
    %767 = math.exp %766 : vector<1x32xf32>
    %cst_244 = arith.constant 1.000000e+00 : f32
    %768 = vector.broadcast %cst_244 : f32 to vector<1x32xf32>
    %769 = arith.addf %768, %767 : vector<1x32xf32>
    %770 = arith.divf %768, %769 : vector<1x32xf32>
    %771 = arith.mulf %762, %717 : vector<1x32xf32>
    %772 = arith.mulf %756, %764 : vector<1x32xf32>
    %773 = arith.addf %771, %772 : vector<1x32xf32>
    %774 = math.tanh %773 : vector<1x32xf32>
    %775 = arith.mulf %770, %774 : vector<1x32xf32>
    %776 = vector.extract_strided_slice %433 {offsets = [6, 0], sizes = [1, 128], strides = [1, 1]} : vector<8x256xf32> to vector<1x128xf32>
    %cst_245 = arith.constant dense<0.000000e+00> : vector<1x128xf32>
    %777 = tpu.matmul %750, %434, %cst_245 {dimension_numbers = #tpu.dot_dimension_numbers<[1], [0], [0], [1], [0, 0, 1, 1], [], []>} : vector<1x32xf32>, vector<32x128xf32>, vector<1x128xf32> -> vector<1x128xf32>
    %778 = arith.addf %776, %777 : vector<1x128xf32>
    %779 = vector.extract_strided_slice %433 {offsets = [1, 128], sizes = [1, 128], strides = [1, 1]} : vector<8x256xf32> to vector<1x128xf32>
    %cst_246 = arith.constant dense<0.000000e+00> : vector<1x128xf32>
    %780 = tpu.matmul %775, %435, %cst_246 {dimension_numbers = #tpu.dot_dimension_numbers<[1], [0], [0], [1], [0, 0, 1, 1], [], []>} : vector<1x32xf32>, vector<32x128xf32>, vector<1x128xf32> -> vector<1x128xf32>
    %781 = arith.addf %779, %780 : vector<1x128xf32>
    %782 = vector.extract_strided_slice %778 {offsets = [0, 0], sizes = [1, 32], strides = [1, 1]} : vector<1x128xf32> to vector<1x32xf32>
    %783 = arith.negf %782 : vector<1x32xf32>
    %784 = math.exp %783 : vector<1x32xf32>
    %cst_247 = arith.constant 1.000000e+00 : f32
    %785 = vector.broadcast %cst_247 : f32 to vector<1x32xf32>
    %786 = arith.addf %785, %784 : vector<1x32xf32>
    %787 = arith.divf %785, %786 : vector<1x32xf32>
    %788 = vector.extract_strided_slice %778 {offsets = [0, 32], sizes = [1, 32], strides = [1, 1]} : vector<1x128xf32> to vector<1x32xf32>
    %789 = arith.negf %788 : vector<1x32xf32>
    %790 = math.exp %789 : vector<1x32xf32>
    %cst_248 = arith.constant 1.000000e+00 : f32
    %791 = vector.broadcast %cst_248 : f32 to vector<1x32xf32>
    %792 = arith.addf %791, %790 : vector<1x32xf32>
    %793 = arith.divf %791, %792 : vector<1x32xf32>
    %794 = vector.extract_strided_slice %778 {offsets = [0, 64], sizes = [1, 32], strides = [1, 1]} : vector<1x128xf32> to vector<1x32xf32>
    %795 = math.tanh %794 : vector<1x32xf32>
    %796 = vector.extract_strided_slice %778 {offsets = [0, 96], sizes = [1, 32], strides = [1, 1]} : vector<1x128xf32> to vector<1x32xf32>
    %797 = arith.negf %796 : vector<1x32xf32>
    %798 = math.exp %797 : vector<1x32xf32>
    %cst_249 = arith.constant 1.000000e+00 : f32
    %799 = vector.broadcast %cst_249 : f32 to vector<1x32xf32>
    %800 = arith.addf %799, %798 : vector<1x32xf32>
    %801 = arith.divf %799, %800 : vector<1x32xf32>
    %802 = arith.mulf %793, %748 : vector<1x32xf32>
    %803 = arith.mulf %787, %795 : vector<1x32xf32>
    %804 = arith.addf %802, %803 : vector<1x32xf32>
    %805 = math.tanh %804 : vector<1x32xf32>
    %806 = arith.mulf %801, %805 : vector<1x32xf32>
    %807 = vector.extract_strided_slice %781 {offsets = [0, 0], sizes = [1, 32], strides = [1, 1]} : vector<1x128xf32> to vector<1x32xf32>
    %808 = arith.negf %807 : vector<1x32xf32>
    %809 = math.exp %808 : vector<1x32xf32>
    %cst_250 = arith.constant 1.000000e+00 : f32
    %810 = vector.broadcast %cst_250 : f32 to vector<1x32xf32>
    %811 = arith.addf %810, %809 : vector<1x32xf32>
    %812 = arith.divf %810, %811 : vector<1x32xf32>
    %813 = vector.extract_strided_slice %781 {offsets = [0, 32], sizes = [1, 32], strides = [1, 1]} : vector<1x128xf32> to vector<1x32xf32>
    %814 = arith.negf %813 : vector<1x32xf32>
    %815 = math.exp %814 : vector<1x32xf32>
    %cst_251 = arith.constant 1.000000e+00 : f32
    %816 = vector.broadcast %cst_251 : f32 to vector<1x32xf32>
    %817 = arith.addf %816, %815 : vector<1x32xf32>
    %818 = arith.divf %816, %817 : vector<1x32xf32>
    %819 = vector.extract_strided_slice %781 {offsets = [0, 64], sizes = [1, 32], strides = [1, 1]} : vector<1x128xf32> to vector<1x32xf32>
    %820 = math.tanh %819 : vector<1x32xf32>
    %821 = vector.extract_strided_slice %781 {offsets = [0, 96], sizes = [1, 32], strides = [1, 1]} : vector<1x128xf32> to vector<1x32xf32>
    %822 = arith.negf %821 : vector<1x32xf32>
    %823 = math.exp %822 : vector<1x32xf32>
    %cst_252 = arith.constant 1.000000e+00 : f32
    %824 = vector.broadcast %cst_252 : f32 to vector<1x32xf32>
    %825 = arith.addf %824, %823 : vector<1x32xf32>
    %826 = arith.divf %824, %825 : vector<1x32xf32>
    %827 = arith.mulf %818, %773 : vector<1x32xf32>
    %828 = arith.mulf %812, %820 : vector<1x32xf32>
    %829 = arith.addf %827, %828 : vector<1x32xf32>
    %830 = math.tanh %829 : vector<1x32xf32>
    %831 = arith.mulf %826, %830 : vector<1x32xf32>
    %832 = vector.extract_strided_slice %433 {offsets = [7, 0], sizes = [1, 128], strides = [1, 1]} : vector<8x256xf32> to vector<1x128xf32>
    %cst_253 = arith.constant dense<0.000000e+00> : vector<1x128xf32>
    %833 = tpu.matmul %806, %434, %cst_253 {dimension_numbers = #tpu.dot_dimension_numbers<[1], [0], [0], [1], [0, 0, 1, 1], [], []>} : vector<1x32xf32>, vector<32x128xf32>, vector<1x128xf32> -> vector<1x128xf32>
    %834 = arith.addf %832, %833 : vector<1x128xf32>
    %835 = vector.extract_strided_slice %433 {offsets = [0, 128], sizes = [1, 128], strides = [1, 1]} : vector<8x256xf32> to vector<1x128xf32>
    %cst_254 = arith.constant dense<0.000000e+00> : vector<1x128xf32>
    %836 = tpu.matmul %831, %435, %cst_254 {dimension_numbers = #tpu.dot_dimension_numbers<[1], [0], [0], [1], [0, 0, 1, 1], [], []>} : vector<1x32xf32>, vector<32x128xf32>, vector<1x128xf32> -> vector<1x128xf32>
    %837 = arith.addf %835, %836 : vector<1x128xf32>
    %838 = vector.extract_strided_slice %834 {offsets = [0, 0], sizes = [1, 32], strides = [1, 1]} : vector<1x128xf32> to vector<1x32xf32>
    %839 = arith.negf %838 : vector<1x32xf32>
    %840 = math.exp %839 : vector<1x32xf32>
    %cst_255 = arith.constant 1.000000e+00 : f32
    %841 = vector.broadcast %cst_255 : f32 to vector<1x32xf32>
    %842 = arith.addf %841, %840 : vector<1x32xf32>
    %843 = arith.divf %841, %842 : vector<1x32xf32>
    %844 = vector.extract_strided_slice %834 {offsets = [0, 32], sizes = [1, 32], strides = [1, 1]} : vector<1x128xf32> to vector<1x32xf32>
    %845 = arith.negf %844 : vector<1x32xf32>
    %846 = math.exp %845 : vector<1x32xf32>
    %cst_256 = arith.constant 1.000000e+00 : f32
    %847 = vector.broadcast %cst_256 : f32 to vector<1x32xf32>
    %848 = arith.addf %847, %846 : vector<1x32xf32>
    %849 = arith.divf %847, %848 : vector<1x32xf32>
    %850 = vector.extract_strided_slice %834 {offsets = [0, 64], sizes = [1, 32], strides = [1, 1]} : vector<1x128xf32> to vector<1x32xf32>
    %851 = math.tanh %850 : vector<1x32xf32>
    %852 = vector.extract_strided_slice %834 {offsets = [0, 96], sizes = [1, 32], strides = [1, 1]} : vector<1x128xf32> to vector<1x32xf32>
    %853 = arith.negf %852 : vector<1x32xf32>
    %854 = math.exp %853 : vector<1x32xf32>
    %cst_257 = arith.constant 1.000000e+00 : f32
    %855 = vector.broadcast %cst_257 : f32 to vector<1x32xf32>
    %856 = arith.addf %855, %854 : vector<1x32xf32>
    %857 = arith.divf %855, %856 : vector<1x32xf32>
    %858 = arith.mulf %849, %804 : vector<1x32xf32>
    %859 = arith.mulf %843, %851 : vector<1x32xf32>
    %860 = arith.addf %858, %859 : vector<1x32xf32>
    %861 = math.tanh %860 : vector<1x32xf32>
    %862 = arith.mulf %857, %861 : vector<1x32xf32>
    %863 = vector.extract_strided_slice %837 {offsets = [0, 0], sizes = [1, 32], strides = [1, 1]} : vector<1x128xf32> to vector<1x32xf32>
    %864 = arith.negf %863 : vector<1x32xf32>
    %865 = math.exp %864 : vector<1x32xf32>
    %cst_258 = arith.constant 1.000000e+00 : f32
    %866 = vector.broadcast %cst_258 : f32 to vector<1x32xf32>
    %867 = arith.addf %866, %865 : vector<1x32xf32>
    %868 = arith.divf %866, %867 : vector<1x32xf32>
    %869 = vector.extract_strided_slice %837 {offsets = [0, 32], sizes = [1, 32], strides = [1, 1]} : vector<1x128xf32> to vector<1x32xf32>
    %870 = arith.negf %869 : vector<1x32xf32>
    %871 = math.exp %870 : vector<1x32xf32>
    %cst_259 = arith.constant 1.000000e+00 : f32
    %872 = vector.broadcast %cst_259 : f32 to vector<1x32xf32>
    %873 = arith.addf %872, %871 : vector<1x32xf32>
    %874 = arith.divf %872, %873 : vector<1x32xf32>
    %875 = vector.extract_strided_slice %837 {offsets = [0, 64], sizes = [1, 32], strides = [1, 1]} : vector<1x128xf32> to vector<1x32xf32>
    %876 = math.tanh %875 : vector<1x32xf32>
    %877 = vector.extract_strided_slice %837 {offsets = [0, 96], sizes = [1, 32], strides = [1, 1]} : vector<1x128xf32> to vector<1x32xf32>
    %878 = arith.negf %877 : vector<1x32xf32>
    %879 = math.exp %878 : vector<1x32xf32>
    %cst_260 = arith.constant 1.000000e+00 : f32
    %880 = vector.broadcast %cst_260 : f32 to vector<1x32xf32>
    %881 = arith.addf %880, %879 : vector<1x32xf32>
    %882 = arith.divf %880, %881 : vector<1x32xf32>
    %883 = arith.mulf %874, %829 : vector<1x32xf32>
    %884 = arith.mulf %868, %876 : vector<1x32xf32>
    %885 = arith.addf %883, %884 : vector<1x32xf32>
    %886 = math.tanh %885 : vector<1x32xf32>
    %887 = arith.mulf %882, %886 : vector<1x32xf32>
    %888 = tpu.concatenate %470, %526, %582, %638, %694, %750, %806, %862 in 0 : vector<1x32xf32>, vector<1x32xf32>, vector<1x32xf32>, vector<1x32xf32>, vector<1x32xf32>, vector<1x32xf32>, vector<1x32xf32>, vector<1x32xf32> -> vector<8x32xf32>
    %889 = tpu.concatenate %887, %831, %775, %719, %663, %607, %551, %495 in 0 : vector<1x32xf32>, vector<1x32xf32>, vector<1x32xf32>, vector<1x32xf32>, vector<1x32xf32>, vector<1x32xf32>, vector<1x32xf32>, vector<1x32xf32> -> vector<8x32xf32>
    %890 = tpu.concatenate %888, %889 in 1 : vector<8x32xf32>, vector<8x32xf32> -> vector<8x64xf32>
    %c0_261 = arith.constant 0 : index
    %c0_262 = arith.constant 0 : index
    %891 = vector.load %arg21[%c0_261, %c0_262] : memref<64x5xf32, #tpu.memory_space<vmem>>, vector<64x5xf32>
    %cst_263 = arith.constant dense<0.000000e+00> : vector<8x5xf32>
    %892 = tpu.matmul %890, %891, %cst_263 {dimension_numbers = #tpu.dot_dimension_numbers<[1], [0], [0], [1], [0, 0, 1, 1], [], []>} : vector<8x64xf32>, vector<64x5xf32>, vector<8x5xf32> -> vector<8x5xf32>
    %c0_264 = arith.constant 0 : index
    %c0_265 = arith.constant 0 : index
    %893 = vector.load %arg22[%c0_264, %c0_265] : memref<1x5xf32, #tpu.memory_space<vmem>>, vector<1x5xf32>
    %894 = vector.broadcast %893 : vector<1x5xf32> to vector<8x5xf32>
    %895 = arith.addf %892, %894 : vector<8x5xf32>
    %c0_266 = arith.constant 0 : index
    %c0_267 = arith.constant 0 : index
    %896 = vector.load %arg23[%c0_266, %c0_267] : memref<5x5xf32, #tpu.memory_space<vmem>>, vector<5x5xf32>
    %897 = vector.shape_cast %896 : vector<5x5xf32> to vector<1x5x5xf32>
    %898 = tpu.iota {dimensions = array<i32: 2>} : vector<1x5x5xi32>
    %899 = tpu.iota {dimensions = array<i32: 1>} : vector<1x5xi32>
    %c0_268 = arith.constant 0 : index
    %c0_269 = arith.constant 0 : index
    %900 = vector.load %arg24[%c0_268, %c0_269] : memref<1x5xf32, #tpu.memory_space<vmem>>, vector<1x5xf32>
    %901 = vector.extract_strided_slice %895 {offsets = [0, 0], sizes = [1, 5], strides = [1, 1]} : vector<8x5xf32> to vector<1x5xf32>
    %902 = arith.addf %900, %901 : vector<1x5xf32>
    %903 = vector.shape_cast %902 : vector<1x5xf32> to vector<1x1x5xf32>
    %904 = vector.broadcast %903 : vector<1x1x5xf32> to vector<1x5x5xf32>
    %905 = arith.addf %904, %897 : vector<1x5x5xf32>
    %cst_270 = arith.constant dense<0xFF800000> : vector<1x5xf32>
    %906 = vector.multi_reduction <maximumf>, %905, %cst_270 [2] : vector<1x5x5xf32> to vector<1x5xf32>
    %907 = vector.shape_cast %906 : vector<1x5xf32> to vector<1x5x1xf32>
    %908 = vector.broadcast %907 : vector<1x5x1xf32> to vector<1x5x5xf32>
    %909 = arith.cmpf oeq, %905, %908 : vector<1x5x5xf32>
    %c5_i32 = arith.constant 5 : i32
    %910 = vector.broadcast %c5_i32 : i32 to vector<1x5x5xi32>
    %911 = arith.select %909, %898, %910 : vector<1x5x5xi1>, vector<1x5x5xi32>
    %cst_271 = arith.constant dense<2147483647> : vector<1x5xi32>
    %912 = vector.multi_reduction <minsi>, %911, %cst_271 [2] : vector<1x5x5xi32> to vector<1x5xi32>
    %913 = vector.extract_strided_slice %895 {offsets = [1, 0], sizes = [1, 5], strides = [1, 1]} : vector<8x5xf32> to vector<1x5xf32>
    %914 = arith.addf %906, %913 : vector<1x5xf32>
    %915 = vector.shape_cast %914 : vector<1x5xf32> to vector<1x1x5xf32>
    %916 = vector.broadcast %915 : vector<1x1x5xf32> to vector<1x5x5xf32>
    %917 = arith.addf %916, %897 : vector<1x5x5xf32>
    %cst_272 = arith.constant dense<0xFF800000> : vector<1x5xf32>
    %918 = vector.multi_reduction <maximumf>, %917, %cst_272 [2] : vector<1x5x5xf32> to vector<1x5xf32>
    %919 = vector.shape_cast %918 : vector<1x5xf32> to vector<1x5x1xf32>
    %920 = vector.broadcast %919 : vector<1x5x1xf32> to vector<1x5x5xf32>
    %921 = arith.cmpf oeq, %917, %920 : vector<1x5x5xf32>
    %c5_i32_273 = arith.constant 5 : i32
    %922 = vector.broadcast %c5_i32_273 : i32 to vector<1x5x5xi32>
    %923 = arith.select %921, %898, %922 : vector<1x5x5xi1>, vector<1x5x5xi32>
    %cst_274 = arith.constant dense<2147483647> : vector<1x5xi32>
    %924 = vector.multi_reduction <minsi>, %923, %cst_274 [2] : vector<1x5x5xi32> to vector<1x5xi32>
    %925 = vector.extract_strided_slice %895 {offsets = [2, 0], sizes = [1, 5], strides = [1, 1]} : vector<8x5xf32> to vector<1x5xf32>
    %926 = arith.addf %918, %925 : vector<1x5xf32>
    %927 = vector.shape_cast %926 : vector<1x5xf32> to vector<1x1x5xf32>
    %928 = vector.broadcast %927 : vector<1x1x5xf32> to vector<1x5x5xf32>
    %929 = arith.addf %928, %897 : vector<1x5x5xf32>
    %cst_275 = arith.constant dense<0xFF800000> : vector<1x5xf32>
    %930 = vector.multi_reduction <maximumf>, %929, %cst_275 [2] : vector<1x5x5xf32> to vector<1x5xf32>
    %931 = vector.shape_cast %930 : vector<1x5xf32> to vector<1x5x1xf32>
    %932 = vector.broadcast %931 : vector<1x5x1xf32> to vector<1x5x5xf32>
    %933 = arith.cmpf oeq, %929, %932 : vector<1x5x5xf32>
    %c5_i32_276 = arith.constant 5 : i32
    %934 = vector.broadcast %c5_i32_276 : i32 to vector<1x5x5xi32>
    %935 = arith.select %933, %898, %934 : vector<1x5x5xi1>, vector<1x5x5xi32>
    %cst_277 = arith.constant dense<2147483647> : vector<1x5xi32>
    %936 = vector.multi_reduction <minsi>, %935, %cst_277 [2] : vector<1x5x5xi32> to vector<1x5xi32>
    %937 = vector.extract_strided_slice %895 {offsets = [3, 0], sizes = [1, 5], strides = [1, 1]} : vector<8x5xf32> to vector<1x5xf32>
    %938 = arith.addf %930, %937 : vector<1x5xf32>
    %939 = vector.shape_cast %938 : vector<1x5xf32> to vector<1x1x5xf32>
    %940 = vector.broadcast %939 : vector<1x1x5xf32> to vector<1x5x5xf32>
    %941 = arith.addf %940, %897 : vector<1x5x5xf32>
    %cst_278 = arith.constant dense<0xFF800000> : vector<1x5xf32>
    %942 = vector.multi_reduction <maximumf>, %941, %cst_278 [2] : vector<1x5x5xf32> to vector<1x5xf32>
    %943 = vector.shape_cast %942 : vector<1x5xf32> to vector<1x5x1xf32>
    %944 = vector.broadcast %943 : vector<1x5x1xf32> to vector<1x5x5xf32>
    %945 = arith.cmpf oeq, %941, %944 : vector<1x5x5xf32>
    %c5_i32_279 = arith.constant 5 : i32
    %946 = vector.broadcast %c5_i32_279 : i32 to vector<1x5x5xi32>
    %947 = arith.select %945, %898, %946 : vector<1x5x5xi1>, vector<1x5x5xi32>
    %cst_280 = arith.constant dense<2147483647> : vector<1x5xi32>
    %948 = vector.multi_reduction <minsi>, %947, %cst_280 [2] : vector<1x5x5xi32> to vector<1x5xi32>
    %949 = vector.extract_strided_slice %895 {offsets = [4, 0], sizes = [1, 5], strides = [1, 1]} : vector<8x5xf32> to vector<1x5xf32>
    %950 = arith.addf %942, %949 : vector<1x5xf32>
    %951 = vector.shape_cast %950 : vector<1x5xf32> to vector<1x1x5xf32>
    %952 = vector.broadcast %951 : vector<1x1x5xf32> to vector<1x5x5xf32>
    %953 = arith.addf %952, %897 : vector<1x5x5xf32>
    %cst_281 = arith.constant dense<0xFF800000> : vector<1x5xf32>
    %954 = vector.multi_reduction <maximumf>, %953, %cst_281 [2] : vector<1x5x5xf32> to vector<1x5xf32>
    %955 = vector.shape_cast %954 : vector<1x5xf32> to vector<1x5x1xf32>
    %956 = vector.broadcast %955 : vector<1x5x1xf32> to vector<1x5x5xf32>
    %957 = arith.cmpf oeq, %953, %956 : vector<1x5x5xf32>
    %c5_i32_282 = arith.constant 5 : i32
    %958 = vector.broadcast %c5_i32_282 : i32 to vector<1x5x5xi32>
    %959 = arith.select %957, %898, %958 : vector<1x5x5xi1>, vector<1x5x5xi32>
    %cst_283 = arith.constant dense<2147483647> : vector<1x5xi32>
    %960 = vector.multi_reduction <minsi>, %959, %cst_283 [2] : vector<1x5x5xi32> to vector<1x5xi32>
    %961 = vector.extract_strided_slice %895 {offsets = [5, 0], sizes = [1, 5], strides = [1, 1]} : vector<8x5xf32> to vector<1x5xf32>
    %962 = arith.addf %954, %961 : vector<1x5xf32>
    %963 = vector.shape_cast %962 : vector<1x5xf32> to vector<1x1x5xf32>
    %964 = vector.broadcast %963 : vector<1x1x5xf32> to vector<1x5x5xf32>
    %965 = arith.addf %964, %897 : vector<1x5x5xf32>
    %cst_284 = arith.constant dense<0xFF800000> : vector<1x5xf32>
    %966 = vector.multi_reduction <maximumf>, %965, %cst_284 [2] : vector<1x5x5xf32> to vector<1x5xf32>
    %967 = vector.shape_cast %966 : vector<1x5xf32> to vector<1x5x1xf32>
    %968 = vector.broadcast %967 : vector<1x5x1xf32> to vector<1x5x5xf32>
    %969 = arith.cmpf oeq, %965, %968 : vector<1x5x5xf32>
    %c5_i32_285 = arith.constant 5 : i32
    %970 = vector.broadcast %c5_i32_285 : i32 to vector<1x5x5xi32>
    %971 = arith.select %969, %898, %970 : vector<1x5x5xi1>, vector<1x5x5xi32>
    %cst_286 = arith.constant dense<2147483647> : vector<1x5xi32>
    %972 = vector.multi_reduction <minsi>, %971, %cst_286 [2] : vector<1x5x5xi32> to vector<1x5xi32>
    %973 = vector.extract_strided_slice %895 {offsets = [6, 0], sizes = [1, 5], strides = [1, 1]} : vector<8x5xf32> to vector<1x5xf32>
    %974 = arith.addf %966, %973 : vector<1x5xf32>
    %975 = vector.shape_cast %974 : vector<1x5xf32> to vector<1x1x5xf32>
    %976 = vector.broadcast %975 : vector<1x1x5xf32> to vector<1x5x5xf32>
    %977 = arith.addf %976, %897 : vector<1x5x5xf32>
    %cst_287 = arith.constant dense<0xFF800000> : vector<1x5xf32>
    %978 = vector.multi_reduction <maximumf>, %977, %cst_287 [2] : vector<1x5x5xf32> to vector<1x5xf32>
    %979 = vector.shape_cast %978 : vector<1x5xf32> to vector<1x5x1xf32>
    %980 = vector.broadcast %979 : vector<1x5x1xf32> to vector<1x5x5xf32>
    %981 = arith.cmpf oeq, %977, %980 : vector<1x5x5xf32>
    %c5_i32_288 = arith.constant 5 : i32
    %982 = vector.broadcast %c5_i32_288 : i32 to vector<1x5x5xi32>
    %983 = arith.select %981, %898, %982 : vector<1x5x5xi1>, vector<1x5x5xi32>
    %cst_289 = arith.constant dense<2147483647> : vector<1x5xi32>
    %984 = vector.multi_reduction <minsi>, %983, %cst_289 [2] : vector<1x5x5xi32> to vector<1x5xi32>
    %985 = vector.extract_strided_slice %895 {offsets = [7, 0], sizes = [1, 5], strides = [1, 1]} : vector<8x5xf32> to vector<1x5xf32>
    %986 = arith.addf %978, %985 : vector<1x5xf32>
    %c0_290 = arith.constant 0 : index
    %c0_291 = arith.constant 0 : index
    %987 = vector.load %arg25[%c0_290, %c0_291] : memref<1x5xf32, #tpu.memory_space<vmem>>, vector<1x5xf32>
    %988 = arith.addf %986, %987 : vector<1x5xf32>
    %cst_292 = arith.constant dense<0xFF800000> : vector<1xf32>
    %989 = vector.multi_reduction <maximumf>, %988, %cst_292 [1] : vector<1x5xf32> to vector<1xf32>
    %990 = vector.shape_cast %989 : vector<1xf32> to vector<1x1xf32>
    %991 = vector.broadcast %990 : vector<1x1xf32> to vector<1x5xf32>
    %992 = arith.cmpf oeq, %988, %991 : vector<1x5xf32>
    %c5_i32_293 = arith.constant 5 : i32
    %993 = vector.broadcast %c5_i32_293 : i32 to vector<1x5xi32>
    %994 = arith.select %992, %899, %993 : vector<1x5xi1>, vector<1x5xi32>
    %cst_294 = arith.constant dense<2147483647> : vector<1xi32>
    %995 = vector.multi_reduction <minsi>, %994, %cst_294 [1] : vector<1x5xi32> to vector<1xi32>
    %996 = vector.shape_cast %995 : vector<1xi32> to vector<1x1xi32>
    %997 = vector.broadcast %996 : vector<1x1xi32> to vector<1x5xi32>
    %998 = arith.cmpi eq, %899, %997 : vector<1x5xi32>
    %c0_i32 = arith.constant 0 : i32
    %999 = vector.broadcast %c0_i32 : i32 to vector<1x5xi32>
    %1000 = arith.select %998, %984, %999 : vector<1x5xi1>, vector<1x5xi32>
    %cst_295 = arith.constant dense<0> : vector<1xi32>
    %1001 = vector.multi_reduction <add>, %1000, %cst_295 [1] : vector<1x5xi32> to vector<1xi32>
    %1002 = vector.shape_cast %1001 : vector<1xi32> to vector<1x1xi32>
    %1003 = vector.broadcast %1002 : vector<1x1xi32> to vector<1x5xi32>
    %1004 = arith.cmpi eq, %899, %1003 : vector<1x5xi32>
    %c0_i32_296 = arith.constant 0 : i32
    %1005 = vector.broadcast %c0_i32_296 : i32 to vector<1x5xi32>
    %1006 = arith.select %1004, %972, %1005 : vector<1x5xi1>, vector<1x5xi32>
    %cst_297 = arith.constant dense<0> : vector<1xi32>
    %1007 = vector.multi_reduction <add>, %1006, %cst_297 [1] : vector<1x5xi32> to vector<1xi32>
    %1008 = vector.shape_cast %1007 : vector<1xi32> to vector<1x1xi32>
    %1009 = vector.broadcast %1008 : vector<1x1xi32> to vector<1x5xi32>
    %1010 = arith.cmpi eq, %899, %1009 : vector<1x5xi32>
    %c0_i32_298 = arith.constant 0 : i32
    %1011 = vector.broadcast %c0_i32_298 : i32 to vector<1x5xi32>
    %1012 = arith.select %1010, %960, %1011 : vector<1x5xi1>, vector<1x5xi32>
    %cst_299 = arith.constant dense<0> : vector<1xi32>
    %1013 = vector.multi_reduction <add>, %1012, %cst_299 [1] : vector<1x5xi32> to vector<1xi32>
    %1014 = vector.shape_cast %1013 : vector<1xi32> to vector<1x1xi32>
    %1015 = vector.broadcast %1014 : vector<1x1xi32> to vector<1x5xi32>
    %1016 = arith.cmpi eq, %899, %1015 : vector<1x5xi32>
    %c0_i32_300 = arith.constant 0 : i32
    %1017 = vector.broadcast %c0_i32_300 : i32 to vector<1x5xi32>
    %1018 = arith.select %1016, %948, %1017 : vector<1x5xi1>, vector<1x5xi32>
    %cst_301 = arith.constant dense<0> : vector<1xi32>
    %1019 = vector.multi_reduction <add>, %1018, %cst_301 [1] : vector<1x5xi32> to vector<1xi32>
    %1020 = vector.shape_cast %1019 : vector<1xi32> to vector<1x1xi32>
    %1021 = vector.broadcast %1020 : vector<1x1xi32> to vector<1x5xi32>
    %1022 = arith.cmpi eq, %899, %1021 : vector<1x5xi32>
    %c0_i32_302 = arith.constant 0 : i32
    %1023 = vector.broadcast %c0_i32_302 : i32 to vector<1x5xi32>
    %1024 = arith.select %1022, %936, %1023 : vector<1x5xi1>, vector<1x5xi32>
    %cst_303 = arith.constant dense<0> : vector<1xi32>
    %1025 = vector.multi_reduction <add>, %1024, %cst_303 [1] : vector<1x5xi32> to vector<1xi32>
    %1026 = vector.shape_cast %1025 : vector<1xi32> to vector<1x1xi32>
    %1027 = vector.broadcast %1026 : vector<1x1xi32> to vector<1x5xi32>
    %1028 = arith.cmpi eq, %899, %1027 : vector<1x5xi32>
    %c0_i32_304 = arith.constant 0 : i32
    %1029 = vector.broadcast %c0_i32_304 : i32 to vector<1x5xi32>
    %1030 = arith.select %1028, %924, %1029 : vector<1x5xi1>, vector<1x5xi32>
    %cst_305 = arith.constant dense<0> : vector<1xi32>
    %1031 = vector.multi_reduction <add>, %1030, %cst_305 [1] : vector<1x5xi32> to vector<1xi32>
    %1032 = vector.shape_cast %1031 : vector<1xi32> to vector<1x1xi32>
    %1033 = vector.broadcast %1032 : vector<1x1xi32> to vector<1x5xi32>
    %1034 = arith.cmpi eq, %899, %1033 : vector<1x5xi32>
    %c0_i32_306 = arith.constant 0 : i32
    %1035 = vector.broadcast %c0_i32_306 : i32 to vector<1x5xi32>
    %1036 = arith.select %1034, %912, %1035 : vector<1x5xi1>, vector<1x5xi32>
    %cst_307 = arith.constant dense<0> : vector<1xi32>
    %1037 = vector.multi_reduction <add>, %1036, %cst_307 [1] : vector<1x5xi32> to vector<1xi32>
    %1038 = vector.shape_cast %1037 : vector<1xi32> to vector<1x1xi32>
    %1039 = tpu.concatenate %1038, %1032, %1026, %1020, %1014, %1008, %1002, %996 in 1 : vector<1x1xi32>, vector<1x1xi32>, vector<1x1xi32>, vector<1x1xi32>, vector<1x1xi32>, vector<1x1xi32>, vector<1x1xi32>, vector<1x1xi32> -> vector<1x8xi32>
    %1040 = vector.shape_cast %1039 : vector<1x8xi32> to vector<1x1x8xi32>
    %c0_308 = arith.constant 0 : index
    %c0_309 = arith.constant 0 : index
    %c0_310 = arith.constant 0 : index
    %1041 = vector.load %arg26[%c0_308, %c0_309, %c0_310] : memref<1x1x8xi32, #tpu.memory_space<vmem>>, vector<1x1x8xi32>
    tpu.vector_store %arg26[%c0_308, %c0_309, %c0_310], %1040 {strides = array<i32>} : memref<1x1x8xi32, #tpu.memory_space<vmem>>, vector<1x1x8xi32>,
    return
  }
  func.func @transform_0(%arg0: i32) -> (i32, i32, i32) {
    %c0_i32 = arith.constant 0 : i32
    %c0_i32_0 = arith.constant 0 : i32
    %c0_i32_1 = arith.constant 0 : i32
    return %arg0, %c0_i32, %c0_i32_0 : i32, i32, i32
  }
  func.func @transform_1(%arg0: i32) -> (i32, i32, i32) {
    %c0_i32 = arith.constant 0 : i32
    %c0_i32_0 = arith.constant 0 : i32
    %c0_i32_1 = arith.constant 0 : i32
    return %arg0, %c0_i32, %c0_i32_0 : i32, i32, i32
  }
  func.func @transform_2(%arg0: i32) -> (i32, i32) {
    %c0_i32 = arith.constant 0 : i32
    %c0_i32_0 = arith.constant 0 : i32
    %c0_i32_1 = arith.constant 0 : i32
    return %c0_i32, %c0_i32_0 : i32, i32
  }
  func.func @transform_3(%arg0: i32) -> (i32, i32) {
    %c0_i32 = arith.constant 0 : i32
    %c0_i32_0 = arith.constant 0 : i32
    %c0_i32_1 = arith.constant 0 : i32
    return %c0_i32, %c0_i32_0 : i32, i32
  }
  func.func @transform_4(%arg0: i32) -> (i32, i32, i32) {
    %c0_i32 = arith.constant 0 : i32
    %c0_i32_0 = arith.constant 0 : i32
    %c0_i32_1 = arith.constant 0 : i32
    %c0_i32_2 = arith.constant 0 : i32
    return %c0_i32, %c0_i32_0, %c0_i32_1 : i32, i32, i32
  }
  func.func @transform_5(%arg0: i32) -> (i32, i32, i32) {
    %c0_i32 = arith.constant 0 : i32
    %c0_i32_0 = arith.constant 0 : i32
    %c0_i32_1 = arith.constant 0 : i32
    %c0_i32_2 = arith.constant 0 : i32
    return %c0_i32, %c0_i32_0, %c0_i32_1 : i32, i32, i32
  }
  func.func @transform_6(%arg0: i32) -> (i32, i32, i32) {
    %c0_i32 = arith.constant 0 : i32
    %c0_i32_0 = arith.constant 0 : i32
    %c0_i32_1 = arith.constant 0 : i32
    %c0_i32_2 = arith.constant 0 : i32
    return %c0_i32, %c0_i32_0, %c0_i32_1 : i32, i32, i32
  }
  func.func @transform_7(%arg0: i32) -> (i32, i32, i32) {
    %c0_i32 = arith.constant 0 : i32
    %c0_i32_0 = arith.constant 0 : i32
    %c0_i32_1 = arith.constant 0 : i32
    %c0_i32_2 = arith.constant 0 : i32
    return %c0_i32, %c0_i32_0, %c0_i32_1 : i32, i32, i32
  }
  func.func @transform_8(%arg0: i32) -> (i32, i32, i32) {
    %c0_i32 = arith.constant 0 : i32
    %c0_i32_0 = arith.constant 0 : i32
    %c0_i32_1 = arith.constant 0 : i32
    %c0_i32_2 = arith.constant 0 : i32
    return %c0_i32, %c0_i32_0, %c0_i32_1 : i32, i32, i32
  }
  func.func @transform_9(%arg0: i32) -> (i32, i32, i32) {
    %c0_i32 = arith.constant 0 : i32
    %c0_i32_0 = arith.constant 0 : i32
    %c0_i32_1 = arith.constant 0 : i32
    %c0_i32_2 = arith.constant 0 : i32
    return %c0_i32, %c0_i32_0, %c0_i32_1 : i32, i32, i32
  }
  func.func @transform_10(%arg0: i32) -> (i32, i32, i32) {
    %c0_i32 = arith.constant 0 : i32
    %c0_i32_0 = arith.constant 0 : i32
    %c0_i32_1 = arith.constant 0 : i32
    %c0_i32_2 = arith.constant 0 : i32
    return %c0_i32, %c0_i32_0, %c0_i32_1 : i32, i32, i32
  }
  func.func @transform_11(%arg0: i32) -> (i32, i32, i32) {
    %c0_i32 = arith.constant 0 : i32
    %c0_i32_0 = arith.constant 0 : i32
    %c0_i32_1 = arith.constant 0 : i32
    %c0_i32_2 = arith.constant 0 : i32
    return %c0_i32, %c0_i32_0, %c0_i32_1 : i32, i32, i32
  }
  func.func @transform_12(%arg0: i32) -> (i32, i32, i32) {
    %c0_i32 = arith.constant 0 : i32
    %c0_i32_0 = arith.constant 0 : i32
    %c0_i32_1 = arith.constant 0 : i32
    %c0_i32_2 = arith.constant 0 : i32
    return %c0_i32, %c0_i32_0, %c0_i32_1 : i32, i32, i32
  }
  func.func @transform_13(%arg0: i32) -> (i32, i32, i32) {
    %c0_i32 = arith.constant 0 : i32
    %c0_i32_0 = arith.constant 0 : i32
    %c0_i32_1 = arith.constant 0 : i32
    %c0_i32_2 = arith.constant 0 : i32
    return %c0_i32, %c0_i32_0, %c0_i32_1 : i32, i32, i32
  }
  func.func @transform_14(%arg0: i32) -> (i32, i32, i32) {
    %c0_i32 = arith.constant 0 : i32
    %c0_i32_0 = arith.constant 0 : i32
    %c0_i32_1 = arith.constant 0 : i32
    %c0_i32_2 = arith.constant 0 : i32
    return %c0_i32, %c0_i32_0, %c0_i32_1 : i32, i32, i32
  }
  func.func @transform_15(%arg0: i32) -> (i32, i32, i32) {
    %c0_i32 = arith.constant 0 : i32
    %c0_i32_0 = arith.constant 0 : i32
    %c0_i32_1 = arith.constant 0 : i32
    %c0_i32_2 = arith.constant 0 : i32
    return %c0_i32, %c0_i32_0, %c0_i32_1 : i32, i32, i32
  }
  func.func @transform_16(%arg0: i32) -> (i32, i32) {
    %c0_i32 = arith.constant 0 : i32
    %c0_i32_0 = arith.constant 0 : i32
    %c0_i32_1 = arith.constant 0 : i32
    return %c0_i32, %c0_i32_0 : i32, i32
  }
  func.func @transform_17(%arg0: i32) -> (i32, i32) {
    %c0_i32 = arith.constant 0 : i32
    %c0_i32_0 = arith.constant 0 : i32
    %c0_i32_1 = arith.constant 0 : i32
    return %c0_i32, %c0_i32_0 : i32, i32
  }
  func.func @transform_18(%arg0: i32) -> (i32, i32) {
    %c0_i32 = arith.constant 0 : i32
    %c0_i32_0 = arith.constant 0 : i32
    %c0_i32_1 = arith.constant 0 : i32
    return %c0_i32, %c0_i32_0 : i32, i32
  }
  func.func @transform_19(%arg0: i32) -> (i32, i32) {
    %c0_i32 = arith.constant 0 : i32
    %c0_i32_0 = arith.constant 0 : i32
    %c0_i32_1 = arith.constant 0 : i32
    return %c0_i32, %c0_i32_0 : i32, i32
  }
  func.func @transform_20(%arg0: i32) -> (i32, i32) {
    %c0_i32 = arith.constant 0 : i32
    %c0_i32_0 = arith.constant 0 : i32
    %c0_i32_1 = arith.constant 0 : i32
    return %c0_i32, %c0_i32_0 : i32, i32
  }
  func.func @transform_21(%arg0: i32) -> (i32, i32) {
    %c0_i32 = arith.constant 0 : i32
    %c0_i32_0 = arith.constant 0 : i32
    %c0_i32_1 = arith.constant 0 : i32
    return %c0_i32, %c0_i32_0 : i32, i32
  }
  func.func @transform_22(%arg0: i32) -> (i32, i32) {
    %c0_i32 = arith.constant 0 : i32
    %c0_i32_0 = arith.constant 0 : i32
    %c0_i32_1 = arith.constant 0 : i32
    return %c0_i32, %c0_i32_0 : i32, i32
  }
  func.func @transform_23(%arg0: i32) -> (i32, i32) {
    %c0_i32 = arith.constant 0 : i32
    %c0_i32_0 = arith.constant 0 : i32
    %c0_i32_1 = arith.constant 0 : i32
    return %c0_i32, %c0_i32_0 : i32, i32
  }
  func.func @transform_24(%arg0: i32) -> (i32, i32) {
    %c0_i32 = arith.constant 0 : i32
    %c0_i32_0 = arith.constant 0 : i32
    %c0_i32_1 = arith.constant 0 : i32
    return %c0_i32, %c0_i32_0 : i32, i32
  }
  func.func @transform_25(%arg0: i32) -> (i32, i32, i32) {
    %c0_i32 = arith.constant 0 : i32
    %c0_i32_0 = arith.constant 0 : i32
    %c0_i32_1 = arith.constant 0 : i32
    return %arg0, %c0_i32, %c0_i32_0 : i32, i32, i32
  }
}

</mosaic_0001>

<llo_original>
// kernel: forward.1
$region0: #{forward.1}
  #allocation0 [shape = 'u32[]', space=smem, size = 0x4, offset = 0x4, fixed_abs, tag = 'smem constant byte address 0x4 - core index']
  #allocation1 [shape = 'u32[144,128]{1,0:T(1,128)}', space=vmem, size = 0x12000, scoped, tag = 'internal scratch']
  %s0 = inlined_call_operand.vmem [shape: f32[2,8,64], index: 0, kind: input, shape index: {}]
  %s1 = inlined_call_operand.vmem [shape: f32[2,1,8], index: 1, kind: input, shape index: {}]
  %s2 = inlined_call_operand.vmem [shape: f32[1,64], index: 2, kind: input, shape index: {}]
  %s3 = inlined_call_operand.vmem [shape: f32[1,64], index: 3, kind: input, shape index: {}]
  %s4 = inlined_call_operand.vmem [shape: bf16[2,64,192], index: 4, kind: input, shape index: {}]
  %s5 = inlined_call_operand.vmem [shape: f32[2,1,192], index: 5, kind: input, shape index: {}]
  %s6 = inlined_call_operand.vmem [shape: bf16[2,64,64], index: 6, kind: input, shape index: {}]
  %s7 = inlined_call_operand.vmem [shape: f32[2,1,64], index: 7, kind: input, shape index: {}]
  %s8 = inlined_call_operand.vmem [shape: f32[2,1,64], index: 8, kind: input, shape index: {}]
  %s9 = inlined_call_operand.vmem [shape: f32[2,1,64], index: 9, kind: input, shape index: {}]
  %s10 = inlined_call_operand.vmem [shape: bf16[2,64,128], index: 10, kind: input, shape index: {}]
  %s11 = inlined_call_operand.vmem [shape: f32[2,1,128], index: 11, kind: input, shape index: {}]
  %s12 = inlined_call_operand.vmem [shape: bf16[2,128,64], index: 12, kind: input, shape index: {}]
  %s13 = inlined_call_operand.vmem [shape: f32[2,1,64], index: 13, kind: input, shape index: {}]
  %s14 = inlined_call_operand.vmem [shape: f32[2,1,64], index: 14, kind: input, shape index: {}]
  %s15 = inlined_call_operand.vmem [shape: f32[2,1,64], index: 15, kind: input, shape index: {}]
  %s16 = inlined_call_operand.vmem [shape: bf16[64,256], index: 16, kind: input, shape index: {}]
  %s17 = inlined_call_operand.vmem [shape: f32[1,256], index: 17, kind: input, shape index: {}]
  %s18 = inlined_call_operand.vmem [shape: f32[32,128], index: 18, kind: input, shape index: {}]
  %s19 = inlined_call_operand.vmem [shape: f32[32,128], index: 19, kind: input, shape index: {}]
  %s20 = inlined_call_operand.vmem [shape: f32[64,5], index: 20, kind: input, shape index: {}]
  %s21 = inlined_call_operand.vmem [shape: f32[1,5], index: 21, kind: input, shape index: {}]
  %s22 = inlined_call_operand.vmem [shape: f32[5,5], index: 22, kind: input, shape index: {}]
  %s23 = inlined_call_operand.vmem [shape: f32[1,5], index: 23, kind: input, shape index: {}]
  %s24 = inlined_call_operand.vmem [shape: f32[1,5], index: 24, kind: input, shape index: {}]
  %s25 = inlined_call_operand.hbm [shape: s32[2,1,8], index: 25, kind: output, shape index: {}]
  %s26 = sld [smem:[#allocation0]]
  $region133: #{forward.1} parent=0
    _
  %s28 = ssub.s32 1, %s26
  %s29 = scalar_select 0, %s28, %s26
  $region1: #{forward.1} parent=0
    #allocation2 [shape = 'u8[1024]{0}', space=vmem, size = 0x400, scoped, tag = 'output window, operand 0']
    #allocation3 [shape = 's32[2]{0}', space=sflag, size = 0x8, scoped, tag = 'scoped memory for forward.1']
    %30 = vsyncpa [#allocation3], 0
    %s31 = scalar_lea.sflag [#allocation3], 1
    %32 = vsyncpa %s31, 0
    loop: start=0, step=1, limit=4
    $region2: #{forward.1} parent=1 // loop_pre_header
      _
    $region3: #{forward.1} parent=1 // loop_header
      %s34 = sphi 0, %s38
      %p35 = scmp.ge.s32.totalorder %s34, 4
      %s44 = sphi 0, %s46
      %s47 = sphi 0, %s44
      %s48 = sphi 0, %s47
      %s64 = sphi 0, %s48
      %s70 = sphi 0, %s72
      %s73 = sphi 0, %s70
      %s74 = sphi 0, %s73
      %s90 = sphi 0, %s74
      %s94 = sphi 0, %s94
      %s96 = sphi 0, %s94
      %s97 = sphi 0, %s96
      %s111 = sphi 0, %s97
      %s115 = sphi 0, %s115
      %s117 = sphi 0, %s115
      %s118 = sphi 0, %s117
      %s132 = sphi 0, %s118
      %s136 = sphi 0, %s136
      %s138 = sphi 0, %s136
      %s139 = sphi 0, %s138
      %s153 = sphi 0, %s139
      %s157 = sphi 0, %s157
      %s159 = sphi 0, %s157
      %s160 = sphi 0, %s159
      %s174 = sphi 0, %s160
      %s178 = sphi 0, %s178
      %s180 = sphi 0, %s178
      %s181 = sphi 0, %s180
      %s195 = sphi 0, %s181
      %s199 = sphi 0, %s199
      %s201 = sphi 0, %s199
      %s202 = sphi 0, %s201
      %s216 = sphi 0, %s202
      %s220 = sphi 0, %s220
      %s222 = sphi 0, %s220
      %s223 = sphi 0, %s222
      %s237 = sphi 0, %s223
      %s241 = sphi 0, %s241
      %s243 = sphi 0, %s241
      %s244 = sphi 0, %s243
      %s258 = sphi 0, %s244
      %s262 = sphi 0, %s262
      %s264 = sphi 0, %s262
      %s265 = sphi 0, %s264
      %s279 = sphi 0, %s265
      %s283 = sphi 0, %s283
      %s285 = sphi 0, %s283
      %s286 = sphi 0, %s285
      %s300 = sphi 0, %s286
      %s304 = sphi 0, %s304
      %s306 = sphi 0, %s304
      %s307 = sphi 0, %s306
      %s321 = sphi 0, %s307
      %s325 = sphi 0, %s325
      %s327 = sphi 0, %s325
      %s328 = sphi 0, %s327
      %s342 = sphi 0, %s328
      %s346 = sphi 0, %s346
      %s348 = sphi 0, %s346
      %s349 = sphi 0, %s348
      %s363 = sphi 0, %s349
      %s367 = sphi 0, %s367
      %s369 = sphi 0, %s367
      %s370 = sphi 0, %s369
      %s384 = sphi 0, %s370
      %s388 = sphi 0, %s388
      %s390 = sphi 0, %s388
      %s391 = sphi 0, %s390
      %s405 = sphi 0, %s391
      %s409 = sphi 0, %s409
      %s411 = sphi 0, %s409
      %s412 = sphi 0, %s411
      %s426 = sphi 0, %s412
      %s430 = sphi 0, %s430
      %s432 = sphi 0, %s430
      %s433 = sphi 0, %s432
      %s447 = sphi 0, %s433
      %s451 = sphi 0, %s451
      %s453 = sphi 0, %s451
      %s454 = sphi 0, %s453
      %s468 = sphi 0, %s454
      %s472 = sphi 0, %s472
      %s474 = sphi 0, %s472
      %s475 = sphi 0, %s474
      %s489 = sphi 0, %s475
      %s493 = sphi 0, %s493
      %s495 = sphi 0, %s493
      %s496 = sphi 0, %s495
      %s510 = sphi 0, %s496
      %s514 = sphi 0, %s514
      %s516 = sphi 0, %s514
      %s517 = sphi 0, %s516
      %s531 = sphi 0, %s517
      %s535 = sphi 0, %s535
      %s537 = sphi 0, %s535
      %s538 = sphi 0, %s537
      %s552 = sphi 0, %s538
      %s556 = sphi 0, %s556
      %s558 = sphi 0, %s556
      %s559 = sphi 0, %s558
      %s573 = sphi 0, %s559
      %s579 = sphi 0, %s581
      %s582 = sphi 0, %s579
      %s583 = sphi 0, %s582
      %s599 = sphi 0, %s583
    $region4: #{forward.1} parent=1 // loop_header_branch
      %37 = sbr.rel (%p35) target = $region8
    $region5: #{forward.1} parent=1 // loop_body
      %s39 = ssub.s32 %s34, 1
      %s40 = ssub.s32 %s34, 2
      %s41 = sadd.s32 %s34, 1
      %s42 = ssub.s32 %s34, %s41
      %p43 = scmp.eq.s32.totalorder %s42, 0
      %s45 = sadd.s32 %s44, 1
      %s46 = scalar_select %p43, %s44, %s45
      %p49 = pneg %p43
      %p50 = scmp.eq.s32.totalorder %s34, 1
      %p51 = por %p49, %p50
      %p52 = scmp.ne.s32.totalorder %s44, %s47
      %p53 = scmp.eq.s32.totalorder %s34, 0
      %p54 = por %p52, %p53
      %p55 = scmp.ne.s32.totalorder %s44, %s47
      %p56 = scmp.eq.s32.totalorder %s39, 1
      %p57 = por %p55, %p56
      %p58 = scmp.ne.s32.totalorder %s47, %s48
      %p59 = scmp.eq.s32.totalorder %s39, 0
      %p60 = por %p58, %p59
      %p61 = scmp.ne.s32.totalorder %s47, %s48
      %p62 = scmp.eq.s32.totalorder %s40, 1
      %p63 = por %p61, %p62
      %p65 = scmp.ne.s32.totalorder %s48, %s64
      %p66 = scmp.eq.s32.totalorder %s40, 0
      %p67 = por %p65, %p66
      %s68 = ssub.s32 %s34, %s41
      %p69 = scmp.eq.s32.totalorder %s68, 0
      %s71 = sadd.s32 %s70, 1
      %s72 = scalar_select %p69, %s70, %s71
      %p75 = pneg %p69
      %p76 = scmp.eq.s32.totalorder %s34, 1
      %p77 = por %p75, %p76
      %p78 = scmp.ne.s32.totalorder %s70, %s73
      %p79 = scmp.eq.s32.totalorder %s34, 0
      %p80 = por %p78, %p79
      %p81 = scmp.ne.s32.totalorder %s70, %s73
      %p82 = scmp.eq.s32.totalorder %s39, 1
      %p83 = por %p81, %p82
      %p84 = scmp.ne.s32.totalorder %s73, %s74
      %p85 = scmp.eq.s32.totalorder %s39, 0
      %p86 = por %p84, %p85
      %p87 = scmp.ne.s32.totalorder %s73, %s74
      %p88 = scmp.eq.s32.totalorder %s40, 1
      %p89 = por %p87, %p88
      %p91 = scmp.ne.s32.totalorder %s74, %s90
      %p92 = scmp.eq.s32.totalorder %s40, 0
      %p93 = por %p91, %p92
      %s95 = sadd.s32 %s94, 1
      %p98 = scmp.eq.s32.totalorder %s34, 1
      %p99 = scmp.ne.s32.totalorder %s94, %s96
      %p100 = scmp.eq.s32.totalorder %s34, 0
      %p101 = por %p99, %p100
      %p102 = scmp.ne.s32.totalorder %s94, %s96
      %p103 = scmp.eq.s32.totalorder %s39, 1
      %p104 = por %p102, %p103
      %p105 = scmp.ne.s32.totalorder %s96, %s97
      %p106 = scmp.eq.s32.totalorder %s39, 0
      %p107 = por %p105, %p106
      %p108 = scmp.ne.s32.totalorder %s96, %s97
      %p109 = scmp.eq.s32.totalorder %s40, 1
      %p110 = por %p108, %p109
      %p112 = scmp.ne.s32.totalorder %s97, %s111
      %p113 = scmp.eq.s32.totalorder %s40, 0
      %p114 = por %p112, %p113
      %s116 = sadd.s32 %s115, 1
      %p119 = scmp.eq.s32.totalorder %s34, 1
      %p120 = scmp.ne.s32.totalorder %s115, %s117
      %p121 = scmp.eq.s32.totalorder %s34, 0
      %p122 = por %p120, %p121
      %p123 = scmp.ne.s32.totalorder %s115, %s117
      %p124 = scmp.eq.s32.totalorder %s39, 1
      %p125 = por %p123, %p124
      %p126 = scmp.ne.s32.totalorder %s117, %s118
      %p127 = scmp.eq.s32.totalorder %s39, 0
      %p128 = por %p126, %p127
      %p129 = scmp.ne.s32.totalorder %s117, %s118
      %p130 = scmp.eq.s32.totalorder %s40, 1
      %p131 = por %p129, %p130
      %p133 = scmp.ne.s32.totalorder %s118, %s132
      %p134 = scmp.eq.s32.totalorder %s40, 0
      %p135 = por %p133, %p134
      %s137 = sadd.s32 %s136, 1
      %p140 = scmp.eq.s32.totalorder %s34, 1
      %p141 = scmp.ne.s32.totalorder %s136, %s138
      %p142 = scmp.eq.s32.totalorder %s34, 0
      %p143 = por %p141, %p142
      %p144 = scmp.ne.s32.totalorder %s136, %s138
      %p145 = scmp.eq.s32.totalorder %s39, 1
      %p146 = por %p144, %p145
      %p147 = scmp.ne.s32.totalorder %s138, %s139
      %p148 = scmp.eq.s32.totalorder %s39, 0
      %p149 = por %p147, %p148
      %p150 = scmp.ne.s32.totalorder %s138, %s139
      %p151 = scmp.eq.s32.totalorder %s40, 1
      %p152 = por %p150, %p151
      %p154 = scmp.ne.s32.totalorder %s139, %s153
      %p155 = scmp.eq.s32.totalorder %s40, 0
      %p156 = por %p154, %p155
      %s158 = sadd.s32 %s157, 1
      %p161 = scmp.eq.s32.totalorder %s34, 1
      %p162 = scmp.ne.s32.totalorder %s157, %s159
      %p163 = scmp.eq.s32.totalorder %s34, 0
      %p164 = por %p162, %p163
      %p165 = scmp.ne.s32.totalorder %s157, %s159
      %p166 = scmp.eq.s32.totalorder %s39, 1
      %p167 = por %p165, %p166
      %p168 = scmp.ne.s32.totalorder %s159, %s160
      %p169 = scmp.eq.s32.totalorder %s39, 0
      %p170 = por %p168, %p169
      %p171 = scmp.ne.s32.totalorder %s159, %s160
      %p172 = scmp.eq.s32.totalorder %s40, 1
      %p173 = por %p171, %p172
      %p175 = scmp.ne.s32.totalorder %s160, %s174
      %p176 = scmp.eq.s32.totalorder %s40, 0
      %p177 = por %p175, %p176
      %s179 = sadd.s32 %s178, 1
      %p182 = scmp.eq.s32.totalorder %s34, 1
      %p183 = scmp.ne.s32.totalorder %s178, %s180
      %p184 = scmp.eq.s32.totalorder %s34, 0
      %p185 = por %p183, %p184
      %p186 = scmp.ne.s32.totalorder %s178, %s180
      %p187 = scmp.eq.s32.totalorder %s39, 1
      %p188 = por %p186, %p187
      %p189 = scmp.ne.s32.totalorder %s180, %s181
      %p190 = scmp.eq.s32.totalorder %s39, 0
      %p191 = por %p189, %p190
      %p192 = scmp.ne.s32.totalorder %s180, %s181
      %p193 = scmp.eq.s32.totalorder %s40, 1
      %p194 = por %p192, %p193
      %p196 = scmp.ne.s32.totalorder %s181, %s195
      %p197 = scmp.eq.s32.totalorder %s40, 0
      %p198 = por %p196, %p197
      %s200 = sadd.s32 %s199, 1
      %p203 = scmp.eq.s32.totalorder %s34, 1
      %p204 = scmp.ne.s32.totalorder %s199, %s201
      %p205 = scmp.eq.s32.totalorder %s34, 0
      %p206 = por %p204, %p205
      %p207 = scmp.ne.s32.totalorder %s199, %s201
      %p208 = scmp.eq.s32.totalorder %s39, 1
      %p209 = por %p207, %p208
      %p210 = scmp.ne.s32.totalorder %s201, %s202
      %p211 = scmp.eq.s32.totalorder %s39, 0
      %p212 = por %p210, %p211
      %p213 = scmp.ne.s32.totalorder %s201, %s202
      %p214 = scmp.eq.s32.totalorder %s40, 1
      %p215 = por %p213, %p214
      %p217 = scmp.ne.s32.totalorder %s202, %s216
      %p218 = scmp.eq.s32.totalorder %s40, 0
      %p219 = por %p217, %p218
      %s221 = sadd.s32 %s220, 1
      %p224 = scmp.eq.s32.totalorder %s34, 1
      %p225 = scmp.ne.s32.totalorder %s220, %s222
      %p226 = scmp.eq.s32.totalorder %s34, 0
      %p227 = por %p225, %p226
      %p228 = scmp.ne.s32.totalorder %s220, %s222
      %p229 = scmp.eq.s32.totalorder %s39, 1
      %p230 = por %p228, %p229
      %p231 = scmp.ne.s32.totalorder %s222, %s223
      %p232 = scmp.eq.s32.totalorder %s39, 0
      %p233 = por %p231, %p232
      %p234 = scmp.ne.s32.totalorder %s222, %s223
      %p235 = scmp.eq.s32.totalorder %s40, 1
      %p236 = por %p234, %p235
      %p238 = scmp.ne.s32.totalorder %s223, %s237
      %p239 = scmp.eq.s32.totalorder %s40, 0
      %p240 = por %p238, %p239
      %s242 = sadd.s32 %s241, 1
      %p245 = scmp.eq.s32.totalorder %s34, 1
      %p246 = scmp.ne.s32.totalorder %s241, %s243
      %p247 = scmp.eq.s32.totalorder %s34, 0
      %p248 = por %p246, %p247
      %p249 = scmp.ne.s32.totalorder %s241, %s243
      %p250 = scmp.eq.s32.totalorder %s39, 1
      %p251 = por %p249, %p250
      %p252 = scmp.ne.s32.totalorder %s243, %s244
      %p253 = scmp.eq.s32.totalorder %s39, 0
      %p254 = por %p252, %p253
      %p255 = scmp.ne.s32.totalorder %s243, %s244
      %p256 = scmp.eq.s32.totalorder %s40, 1
      %p257 = por %p255, %p256
      %p259 = scmp.ne.s32.totalorder %s244, %s258
      %p260 = scmp.eq.s32.totalorder %s40, 0
      %p261 = por %p259, %p260
      %s263 = sadd.s32 %s262, 1
      %p266 = scmp.eq.s32.totalorder %s34, 1
      %p267 = scmp.ne.s32.totalorder %s262, %s264
      %p268 = scmp.eq.s32.totalorder %s34, 0
      %p269 = por %p267, %p268
      %p270 = scmp.ne.s32.totalorder %s262, %s264
      %p271 = scmp.eq.s32.totalorder %s39, 1
      %p272 = por %p270, %p271
      %p273 = scmp.ne.s32.totalorder %s264, %s265
      %p274 = scmp.eq.s32.totalorder %s39, 0
      %p275 = por %p273, %p274
      %p276 = scmp.ne.s32.totalorder %s264, %s265
      %p277 = scmp.eq.s32.totalorder %s40, 1
      %p278 = por %p276, %p277
      %p280 = scmp.ne.s32.totalorder %s265, %s279
      %p281 = scmp.eq.s32.totalorder %s40, 0
      %p282 = por %p280, %p281
      %s284 = sadd.s32 %s283, 1
      %p287 = scmp.eq.s32.totalorder %s34, 1
      %p288 = scmp.ne.s32.totalorder %s283, %s285
      %p289 = scmp.eq.s32.totalorder %s34, 0
      %p290 = por %p288, %p289
      %p291 = scmp.ne.s32.totalorder %s283, %s285
      %p292 = scmp.eq.s32.totalorder %s39, 1
      %p293 = por %p291, %p292
      %p294 = scmp.ne.s32.totalorder %s285, %s286
      %p295 = scmp.eq.s32.totalorder %s39, 0
      %p296 = por %p294, %p295
      %p297 = scmp.ne.s32.totalorder %s285, %s286
      %p298 = scmp.eq.s32.totalorder %s40, 1
      %p299 = por %p297, %p298
      %p301 = scmp.ne.s32.totalorder %s286, %s300
      %p302 = scmp.eq.s32.totalorder %s40, 0
      %p303 = por %p301, %p302
      %s305 = sadd.s32 %s304, 1
      %p308 = scmp.eq.s32.totalorder %s34, 1
      %p309 = scmp.ne.s32.totalorder %s304, %s306
      %p310 = scmp.eq.s32.totalorder %s34, 0
      %p311 = por %p309, %p310
      %p312 = scmp.ne.s32.totalorder %s304, %s306
      %p313 = scmp.eq.s32.totalorder %s39, 1
      %p314 = por %p312, %p313
      %p315 = scmp.ne.s32.totalorder %s306, %s307
      %p316 = scmp.eq.s32.totalorder %s39, 0
      %p317 = por %p315, %p316
      %p318 = scmp.ne.s32.totalorder %s306, %s307
      %p319 = scmp.eq.s32.totalorder %s40, 1
      %p320 = por %p318, %p319
      %p322 = scmp.ne.s32.totalorder %s307, %s321
      %p323 = scmp.eq.s32.totalorder %s40, 0
      %p324 = por %p322, %p323
      %s326 = sadd.s32 %s325, 1
      %p329 = scmp.eq.s32.totalorder %s34, 1
      %p330 = scmp.ne.s32.totalorder %s325, %s327
      %p331 = scmp.eq.s32.totalorder %s34, 0
      %p332 = por %p330, %p331
      %p333 = scmp.ne.s32.totalorder %s325, %s327
      %p334 = scmp.eq.s32.totalorder %s39, 1
      %p335 = por %p333, %p334
      %p336 = scmp.ne.s32.totalorder %s327, %s328
      %p337 = scmp.eq.s32.totalorder %s39, 0
      %p338 = por %p336, %p337
      %p339 = scmp.ne.s32.totalorder %s327, %s328
      %p340 = scmp.eq.s32.totalorder %s40, 1
      %p341 = por %p339, %p340
      %p343 = scmp.ne.s32.totalorder %s328, %s342
      %p344 = scmp.eq.s32.totalorder %s40, 0
      %p345 = por %p343, %p344
      %s347 = sadd.s32 %s346, 1
      %p350 = scmp.eq.s32.totalorder %s34, 1
      %p351 = scmp.ne.s32.totalorder %s346, %s348
      %p352 = scmp.eq.s32.totalorder %s34, 0
      %p353 = por %p351, %p352
      %p354 = scmp.ne.s32.totalorder %s346, %s348
      %p355 = scmp.eq.s32.totalorder %s39, 1
      %p356 = por %p354, %p355
      %p357 = scmp.ne.s32.totalorder %s348, %s349
      %p358 = scmp.eq.s32.totalorder %s39, 0
      %p359 = por %p357, %p358
      %p360 = scmp.ne.s32.totalorder %s348, %s349
      %p361 = scmp.eq.s32.totalorder %s40, 1
      %p362 = por %p360, %p361
      %p364 = scmp.ne.s32.totalorder %s349, %s363
      %p365 = scmp.eq.s32.totalorder %s40, 0
      %p366 = por %p364, %p365
      %s368 = sadd.s32 %s367, 1
      %p371 = scmp.eq.s32.totalorder %s34, 1
      %p372 = scmp.ne.s32.totalorder %s367, %s369
      %p373 = scmp.eq.s32.totalorder %s34, 0
      %p374 = por %p372, %p373
      %p375 = scmp.ne.s32.totalorder %s367, %s369
      %p376 = scmp.eq.s32.totalorder %s39, 1
      %p377 = por %p375, %p376
      %p378 = scmp.ne.s32.totalorder %s369, %s370
      %p379 = scmp.eq.s32.totalorder %s39, 0
      %p380 = por %p378, %p379
      %p381 = scmp.ne.s32.totalorder %s369, %s370
      %p382 = scmp.eq.s32.totalorder %s40, 1
      %p383 = por %p381, %p382
      %p385 = scmp.ne.s32.totalorder %s370, %s384
      %p386 = scmp.eq.s32.totalorder %s40, 0
      %p387 = por %p385, %p386
      %s389 = sadd.s32 %s388, 1
      %p392 = scmp.eq.s32.totalorder %s34, 1
      %p393 = scmp.ne.s32.totalorder %s388, %s390
      %p394 = scmp.eq.s32.totalorder %s34, 0
      %p395 = por %p393, %p394
      %p396 = scmp.ne.s32.totalorder %s388, %s390
      %p397 = scmp.eq.s32.totalorder %s39, 1
      %p398 = por %p396, %p397
      %p399 = scmp.ne.s32.totalorder %s390, %s391
      %p400 = scmp.eq.s32.totalorder %s39, 0
      %p401 = por %p399, %p400
      %p402 = scmp.ne.s32.totalorder %s390, %s391
      %p403 = scmp.eq.s32.totalorder %s40, 1
      %p404 = por %p402, %p403
      %p406 = scmp.ne.s32.totalorder %s391, %s405
      %p407 = scmp.eq.s32.totalorder %s40, 0
      %p408 = por %p406, %p407
      %s410 = sadd.s32 %s409, 1
      %p413 = scmp.eq.s32.totalorder %s34, 1
      %p414 = scmp.ne.s32.totalorder %s409, %s411
      %p415 = scmp.eq.s32.totalorder %s34, 0
      %p416 = por %p414, %p415
      %p417 = scmp.ne.s32.totalorder %s409, %s411
      %p418 = scmp.eq.s32.totalorder %s39, 1
      %p419 = por %p417, %p418
      %p420 = scmp.ne.s32.totalorder %s411, %s412
      %p421 = scmp.eq.s32.totalorder %s39, 0
      %p422 = por %p420, %p421
      %p423 = scmp.ne.s32.totalorder %s411, %s412
      %p424 = scmp.eq.s32.totalorder %s40, 1
      %p425 = por %p423, %p424
      %p427 = scmp.ne.s32.totalorder %s412, %s426
      %p428 = scmp.eq.s32.totalorder %s40, 0
      %p429 = por %p427, %p428
      %s431 = sadd.s32 %s430, 1
      %p434 = scmp.eq.s32.totalorder %s34, 1
      %p435 = scmp.ne.s32.totalorder %s430, %s432
      %p436 = scmp.eq.s32.totalorder %s34, 0
      %p437 = por %p435, %p436
      %p438 = scmp.ne.s32.totalorder %s430, %s432
      %p439 = scmp.eq.s32.totalorder %s39, 1
      %p440 = por %p438, %p439
      %p441 = scmp.ne.s32.totalorder %s432, %s433
      %p442 = scmp.eq.s32.totalorder %s39, 0
      %p443 = por %p441, %p442
      %p444 = scmp.ne.s32.totalorder %s432, %s433
      %p445 = scmp.eq.s32.totalorder %s40, 1
      %p446 = por %p444, %p445
      %p448 = scmp.ne.s32.totalorder %s433, %s447
      %p449 = scmp.eq.s32.totalorder %s40, 0
      %p450 = por %p448, %p449
      %s452 = sadd.s32 %s451, 1
      %p455 = scmp.eq.s32.totalorder %s34, 1
      %p456 = scmp.ne.s32.totalorder %s451, %s453
      %p457 = scmp.eq.s32.totalorder %s34, 0
      %p458 = por %p456, %p457
      %p459 = scmp.ne.s32.totalorder %s451, %s453
      %p460 = scmp.eq.s32.totalorder %s39, 1
      %p461 = por %p459, %p460
      %p462 = scmp.ne.s32.totalorder %s453, %s454
      %p463 = scmp.eq.s32.totalorder %s39, 0
      %p464 = por %p462, %p463
      %p465 = scmp.ne.s32.totalorder %s453, %s454
      %p466 = scmp.eq.s32.totalorder %s40, 1
      %p467 = por %p465, %p466
      %p469 = scmp.ne.s32.totalorder %s454, %s468
      %p470 = scmp.eq.s32.totalorder %s40, 0
      %p471 = por %p469, %p470
      %s473 = sadd.s32 %s472, 1
      %p476 = scmp.eq.s32.totalorder %s34, 1
      %p477 = scmp.ne.s32.totalorder %s472, %s474
      %p478 = scmp.eq.s32.totalorder %s34, 0
      %p479 = por %p477, %p478
      %p480 = scmp.ne.s32.totalorder %s472, %s474
      %p481 = scmp.eq.s32.totalorder %s39, 1
      %p482 = por %p480, %p481
      %p483 = scmp.ne.s32.totalorder %s474, %s475
      %p484 = scmp.eq.s32.totalorder %s39, 0
      %p485 = por %p483, %p484
      %p486 = scmp.ne.s32.totalorder %s474, %s475
      %p487 = scmp.eq.s32.totalorder %s40, 1
      %p488 = por %p486, %p487
      %p490 = scmp.ne.s32.totalorder %s475, %s489
      %p491 = scmp.eq.s32.totalorder %s40, 0
      %p492 = por %p490, %p491
      %s494 = sadd.s32 %s493, 1
      %p497 = scmp.eq.s32.totalorder %s34, 1
      %p498 = scmp.ne.s32.totalorder %s493, %s495
      %p499 = scmp.eq.s32.totalorder %s34, 0
      %p500 = por %p498, %p499
      %p501 = scmp.ne.s32.totalorder %s493, %s495
      %p502 = scmp.eq.s32.totalorder %s39, 1
      %p503 = por %p501, %p502
      %p504 = scmp.ne.s32.totalorder %s495, %s496
      %p505 = scmp.eq.s32.totalorder %s39, 0
      %p506 = por %p504, %p505
      %p507 = scmp.ne.s32.totalorder %s495, %s496
      %p508 = scmp.eq.s32.totalorder %s40, 1
      %p509 = por %p507, %p508
      %p511 = scmp.ne.s32.totalorder %s496, %s510
      %p512 = scmp.eq.s32.totalorder %s40, 0
      %p513 = por %p511, %p512
      %s515 = sadd.s32 %s514, 1
      %p518 = scmp.eq.s32.totalorder %s34, 1
      %p519 = scmp.ne.s32.totalorder %s514, %s516
      %p520 = scmp.eq.s32.totalorder %s34, 0
      %p521 = por %p519, %p520
      %p522 = scmp.ne.s32.totalorder %s514, %s516
      %p523 = scmp.eq.s32.totalorder %s39, 1
      %p524 = por %p522, %p523
      %p525 = scmp.ne.s32.totalorder %s516, %s517
      %p526 = scmp.eq.s32.totalorder %s39, 0
      %p527 = por %p525, %p526
      %p528 = scmp.ne.s32.totalorder %s516, %s517
      %p529 = scmp.eq.s32.totalorder %s40, 1
      %p530 = por %p528, %p529
      %p532 = scmp.ne.s32.totalorder %s517, %s531
      %p533 = scmp.eq.s32.totalorder %s40, 0
      %p534 = por %p532, %p533
      %s536 = sadd.s32 %s535, 1
      %p539 = scmp.eq.s32.totalorder %s34, 1
      %p540 = scmp.ne.s32.totalorder %s535, %s537
      %p541 = scmp.eq.s32.totalorder %s34, 0
      %p542 = por %p540, %p541
      %p543 = scmp.ne.s32.totalorder %s535, %s537
      %p544 = scmp.eq.s32.totalorder %s39, 1
      %p545 = por %p543, %p544
      %p546 = scmp.ne.s32.totalorder %s537, %s538
      %p547 = scmp.eq.s32.totalorder %s39, 0
      %p548 = por %p546, %p547
      %p549 = scmp.ne.s32.totalorder %s537, %s538
      %p550 = scmp.eq.s32.totalorder %s40, 1
      %p551 = por %p549, %p550
      %p553 = scmp.ne.s32.totalorder %s538, %s552
      %p554 = scmp.eq.s32.totalorder %s40, 0
      %p555 = por %p553, %p554
      %s557 = sadd.s32 %s556, 1
      %p560 = scmp.eq.s32.totalorder %s34, 1
      %p561 = scmp.ne.s32.totalorder %s556, %s558
      %p562 = scmp.eq.s32.totalorder %s34, 0
      %p563 = por %p561, %p562
      %p564 = scmp.ne.s32.totalorder %s556, %s558
      %p565 = scmp.eq.s32.totalorder %s39, 1
      %p566 = por %p564, %p565
      %p567 = scmp.ne.s32.totalorder %s558, %s559
      %p568 = scmp.eq.s32.totalorder %s39, 0
      %p569 = por %p567, %p568
      %p570 = scmp.ne.s32.totalorder %s558, %s559
      %p571 = scmp.eq.s32.totalorder %s40, 1
      %p572 = por %p570, %p571
      %p574 = scmp.ne.s32.totalorder %s559, %s573
      %p575 = scmp.eq.s32.totalorder %s40, 0
      %p576 = por %p574, %p575
      %s577 = ssub.s32 %s34, %s41
      %p578 = scmp.eq.s32.totalorder %s577, 0
      %s580 = sadd.s32 %s579, 1
      %s581 = scalar_select %p578, %s579, %s580
      %p584 = pneg %p578
      %p585 = scmp.eq.s32.totalorder %s34, 1
      %p586 = por %p584, %p585
      %p587 = scmp.ne.s32.totalorder %s579, %s582
      %p588 = scmp.eq.s32.totalorder %s34, 0
      %p589 = por %p587, %p588
      %p590 = scmp.ne.s32.totalorder %s579, %s582
      %p591 = scmp.eq.s32.totalorder %s39, 1
      %p592 = por %p590, %p591
      %p593 = scmp.ne.s32.totalorder %s582, %s583
      %p594 = scmp.eq.s32.totalorder %s39, 0
      %p595 = por %p593, %p594
      %p596 = scmp.ne.s32.totalorder %s582, %s583
      %p597 = scmp.eq.s32.totalorder %s40, 1
      %p598 = por %p596, %p597
      %p600 = scmp.ne.s32.totalorder %s583, %s599
      %p601 = scmp.eq.s32.totalorder %s40, 0
      %p602 = por %p600, %p601
      %p603 = scmp.le.s32.totalorder 1, %s34
      %p604 = scmp.lt.s32.totalorder %s34, 3
      %p605 = pnand %p603, %p604
      %p606 = pneg %p605
      // Predicated region
      $region9: #{forward.1} parent=5 // pred_check
        _
      $region10: #{forward.1} parent=5 // pred_check_branch
        %608 = sbr.rel (%p605) target = $region12
      $region11: #{forward.1} parent=5 // pred_region
        %s609 = ssub.s32 %s34, 1
        // Predicated region
        $region13: #{forward.1} parent=11 // pred_check
          %p610 = pneg %p107
        $region14: #{forward.1} parent=11 // pred_check_branch
          %612 = sbr.rel (%p610) target = $region16
        $region15: #{forward.1} parent=11 // pred_region
          _
        $region16: #{forward.1} parent=11 // pred_fallthru
          _
        // Predicated region
        $region17: #{forward.1} parent=11 // pred_check
          %p613 = pneg %p128
        $region18: #{forward.1} parent=11 // pred_check_branch
          %615 = sbr.rel (%p613) target = $region20
        $region19: #{forward.1} parent=11 // pred_region
          _
        $region20: #{forward.1} parent=11 // pred_fallthru
          _
        // Predicated region
        $region21: #{forward.1} parent=11 // pred_check
          %p616 = pneg %p149
        $region22: #{forward.1} parent=11 // pred_check_branch
          %618 = sbr.rel (%p616) target = $region24
        $region23: #{forward.1} parent=11 // pred_region
          _
        $region24: #{forward.1} parent=11 // pred_fallthru
          _
        // Predicated region
        $region25: #{forward.1} parent=11 // pred_check
          %p619 = pneg %p170
        $region26: #{forward.1} parent=11 // pred_check_branch
          %621 = sbr.rel (%p619) target = $region28
        $region27: #{forward.1} parent=11 // pred_region
          _
        $region28: #{forward.1} parent=11 // pred_fallthru
          _
        // Predicated region
        $region29: #{forward.1} parent=11 // pred_check
          %p622 = pneg %p191
        $region30: #{forward.1} parent=11 // pred_check_branch
          %624 = sbr.rel (%p622) target = $region32
        $region31: #{forward.1} parent=11 // pred_region
          _
        $region32: #{forward.1} parent=11 // pred_fallthru
          _
        // Predicated region
        $region33: #{forward.1} parent=11 // pred_check
          %p625 = pneg %p212
        $region34: #{forward.1} parent=11 // pred_check_branch
          %627 = sbr.rel (%p625) target = $region36
        $region35: #{forward.1} parent=11 // pred_region
          _
        $region36: #{forward.1} parent=11 // pred_fallthru
          _
        // Predicated region
        $region37: #{forward.1} parent=11 // pred_check
          %p628 = pneg %p233
        $region38: #{forward.1} parent=11 // pred_check_branch
          %630 = sbr.rel (%p628) target = $region40
        $region39: #{forward.1} parent=11 // pred_region
          _
        $region40: #{forward.1} parent=11 // pred_fallthru
          _
        // Predicated region
        $region41: #{forward.1} parent=11 // pred_check
          %p631 = pneg %p254
        $region42: #{forward.1} parent=11 // pred_check_branch
          %633 = sbr.rel (%p631) target = $region44
        $region43: #{forward.1} parent=11 // pred_region
          _
        $region44: #{forward.1} parent=11 // pred_fallthru
          _
        // Predicated region
        $region45: #{forward.1} parent=11 // pred_check
          %p634 = pneg %p275
        $region46: #{forward.1} parent=11 // pred_check_branch
          %636 = sbr.rel (%p634) target = $region48
        $region47: #{forward.1} parent=11 // pred_region
          _
        $region48: #{forward.1} parent=11 // pred_fallthru
          _
        // Predicated region
        $region49: #{forward.1} parent=11 // pred_check
          %p637 = pneg %p296
        $region50: #{forward.1} parent=11 // pred_check_branch
          %639 = sbr.rel (%p637) target = $region52
        $region51: #{forward.1} parent=11 // pred_region
          _
        $region52: #{forward.1} parent=11 // pred_fallthru
          _
        // Predicated region
        $region53: #{forward.1} parent=11 // pred_check
          %p640 = pneg %p317
        $region54: #{forward.1} parent=11 // pred_check_branch
          %642 = sbr.rel (%p640) target = $region56
        $region55: #{forward.1} parent=11 // pred_region
          _
        $region56: #{forward.1} parent=11 // pred_fallthru
          _
        // Predicated region
        $region57: #{forward.1} parent=11 // pred_check
          %p643 = pneg %p338
        $region58: #{forward.1} parent=11 // pred_check_branch
          %645 = sbr.rel (%p643) target = $region60
        $region59: #{forward.1} parent=11 // pred_region
          _
        $region60: #{forward.1} parent=11 // pred_fallthru
          _
        // Predicated region
        $region61: #{forward.1} parent=11 // pred_check
          %p646 = pneg %p359
        $region62: #{forward.1} parent=11 // pred_check_branch
          %648 = sbr.rel (%p646) target = $region64
        $region63: #{forward.1} parent=11 // pred_region
          _
        $region64: #{forward.1} parent=11 // pred_fallthru
          _
        // Predicated region
        $region65: #{forward.1} parent=11 // pred_check
          %p649 = pneg %p380
        $region66: #{forward.1} parent=11 // pred_check_branch
          %651 = sbr.rel (%p649) target = $region68
        $region67: #{forward.1} parent=11 // pred_region
          _
        $region68: #{forward.1} parent=11 // pred_fallthru
          _
        // Predicated region
        $region69: #{forward.1} parent=11 // pred_check
          %p652 = pneg %p401
        $region70: #{forward.1} parent=11 // pred_check_branch
          %654 = sbr.rel (%p652) target = $region72
        $region71: #{forward.1} parent=11 // pred_region
          _
        $region72: #{forward.1} parent=11 // pred_fallthru
          _
        // Predicated region
        $region73: #{forward.1} parent=11 // pred_check
          %p655 = pneg %p422
        $region74: #{forward.1} parent=11 // pred_check_branch
          %657 = sbr.rel (%p655) target = $region76
        $region75: #{forward.1} parent=11 // pred_region
          _
        $region76: #{forward.1} parent=11 // pred_fallthru
          _
        // Predicated region
        $region77: #{forward.1} parent=11 // pred_check
          %p658 = pneg %p443
        $region78: #{forward.1} parent=11 // pred_check_branch
          %660 = sbr.rel (%p658) target = $region80
        $region79: #{forward.1} parent=11 // pred_region
          _
        $region80: #{forward.1} parent=11 // pred_fallthru
          _
        // Predicated region
        $region81: #{forward.1} parent=11 // pred_check
          %p661 = pneg %p464
        $region82: #{forward.1} parent=11 // pred_check_branch
          %663 = sbr.rel (%p661) target = $region84
        $region83: #{forward.1} parent=11 // pred_region
          _
        $region84: #{forward.1} parent=11 // pred_fallthru
          _
        // Predicated region
        $region85: #{forward.1} parent=11 // pred_check
          %p664 = pneg %p485
        $region86: #{forward.1} parent=11 // pred_check_branch
          %666 = sbr.rel (%p664) target = $region88
        $region87: #{forward.1} parent=11 // pred_region
          _
        $region88: #{forward.1} parent=11 // pred_fallthru
          _
        // Predicated region
        $region89: #{forward.1} parent=11 // pred_check
          %p667 = pneg %p506
        $region90: #{forward.1} parent=11 // pred_check_branch
          %669 = sbr.rel (%p667) target = $region92
        $region91: #{forward.1} parent=11 // pred_region
          _
        $region92: #{forward.1} parent=11 // pred_fallthru
          _
        // Predicated region
        $region93: #{forward.1} parent=11 // pred_check
          %p670 = pneg %p527
        $region94: #{forward.1} parent=11 // pred_check_branch
          %672 = sbr.rel (%p670) target = $region96
        $region95: #{forward.1} parent=11 // pred_region
          _
        $region96: #{forward.1} parent=11 // pred_fallthru
          _
        // Predicated region
        $region97: #{forward.1} parent=11 // pred_check
          %p673 = pneg %p548
        $region98: #{forward.1} parent=11 // pred_check_branch
          %675 = sbr.rel (%p673) target = $region100
        $region99: #{forward.1} parent=11 // pred_region
          _
        $region100: #{forward.1} parent=11 // pred_fallthru
          _
        // Predicated region
        $region101: #{forward.1} parent=11 // pred_check
          %p676 = pneg %p569
        $region102: #{forward.1} parent=11 // pred_check_branch
          %678 = sbr.rel (%p676) target = $region104
        $region103: #{forward.1} parent=11 // pred_region
          _
        $region104: #{forward.1} parent=11 // pred_fallthru
          _
      $region12: #{forward.1} parent=5 // pred_fallthru
        _
      %p679 = scmp.lt.s32.totalorder %s34, 2
      // Predicated region
      $region105: #{forward.1} parent=5 // pred_check
        %p680 = pneg %p679
      $region106: #{forward.1} parent=5 // pred_check_branch
        %682 = sbr.rel (%p680) target = $region108
      $region107: #{forward.1} parent=5 // pred_region
        // Predicated region
        $region109: #{forward.1} parent=107 // pred_check
          %p683 = pneg %p54
        $region110: #{forward.1} parent=107 // pred_check_branch
          %685 = sbr.rel (%p683) target = $region112
        $region111: #{forward.1} parent=107 // pred_region
          %p686 = scmp.lt.s32.totalorder %s34, 1
          %s687 = scalar_select %p686, %s34, 1
          %s688 = smul.addr %s687, 8
          %s689 = scalar_lea.vmem %s0, %s688
        $region112: #{forward.1} parent=107 // pred_fallthru
          _
        // Predicated region
        $region113: #{forward.1} parent=107 // pred_check
          %p690 = pneg %p80
        $region114: #{forward.1} parent=107 // pred_check_branch
          %692 = sbr.rel (%p690) target = $region116
        $region115: #{forward.1} parent=107 // pred_region
          %p693 = scmp.lt.s32.totalorder %s34, 1
          %s694 = scalar_select %p693, %s34, 1
          %s695 = scalar_lea.vmem %s1, %s694
        $region116: #{forward.1} parent=107 // pred_fallthru
          _
      $region108: #{forward.1} parent=5 // pred_fallthru
        _
      %p696 = scmp.le.s32.totalorder 1, %s34
      %p697 = scmp.lt.s32.totalorder %s34, 3
      %p698 = pnand %p696, %p697
      %p699 = pneg %p698
      // Predicated region
      $region117: #{forward.1} parent=5 // pred_check
        _
      $region118: #{forward.1} parent=5 // pred_check_branch
        %701 = sbr.rel (%p698) target = $region120
      $region119: #{forward.1} parent=5 // pred_region
        %s702 = ssub.s32 %s34, 1
        %p703 = scmp.lt.s32.totalorder %s39, 1
        %s704 = scalar_select %p703, %s39, 1
        %s705 = smul.addr %s704, 8
        %s706 = scalar_lea.vmem %s0, %s705
        %p707 = pneg %p60
        %p708 = pneg %p57
        %p709 = scmp.lt.s32.totalorder %s39, 1
        %s710 = scalar_select %p709, %s39, 1
        %s711 = scalar_lea.vmem %s1, %s710
        %p712 = pneg %p86
        %p713 = pneg %p83
        %p714 = pneg %p107
        %p715 = pneg %p104
        %p716 = pneg %p128
        %p717 = pneg %p125
        %p718 = pneg %p149
        %p719 = pneg %p146
        %p720 = pneg %p170
        %p721 = pneg %p167
        %p722 = pneg %p191
        %p723 = pneg %p188
        %p724 = pneg %p212
        %p725 = pneg %p209
        %p726 = pneg %p233
        %p727 = pneg %p230
        %p728 = pneg %p254
        %p729 = pneg %p251
        %p730 = pneg %p275
        %p731 = pneg %p272
        %p732 = pneg %p296
        %p733 = pneg %p293
        %p734 = pneg %p317
        %p735 = pneg %p314
        %p736 = pneg %p338
        %p737 = pneg %p335
        %p738 = pneg %p359
        %p739 = pneg %p356
        %p740 = pneg %p380
        %p741 = pneg %p377
        %p742 = pneg %p401
        %p743 = pneg %p398
        %p744 = pneg %p422
        %p745 = pneg %p419
        %p746 = pneg %p443
        %p747 = pneg %p440
        %p748 = pneg %p464
        %p749 = pneg %p461
        %p750 = pneg %p485
        %p751 = pneg %p482
        %p752 = pneg %p506
        %p753 = pneg %p503
        %p754 = pneg %p527
        %p755 = pneg %p524
        %p756 = pneg %p548
        %p757 = pneg %p545
        %p758 = pneg %p569
        %p759 = pneg %p566
        %p760 = pneg %p595
        %p761 = pneg %p592
        %s762 = sand.u32 %s582, 1
        %s763 = scalar_lea.sflag [#allocation3], %s762
        %s764 = sand.u32 %s582, 1
        %s765 = scalar_lea.vmem [#allocation2], %s764
        %p766 = scmp.lt.s32.totalorder %s39, 1
        %s767 = scalar_select %p766, %s39, 1
        %s768 = smul.addr %s767, 8
        %s769 = scalar_lea.vmem %s0, %s768
        %p770 = scmp.lt.s32.totalorder %s39, 1
        %s771 = scalar_select %p770, %s39, 1
        %s772 = scalar_lea.vmem %s1, %s771
        %v774 = vld [vmem:[%s769] sm:$0xff]
        %v775 = vld [vmem:[%s2] sm:$0x1]
        %v776 = vld [vmem:[%s3] sm:$0x1]
        %vm777 = vcmask 523264
        %v778 = vsel %vm777, %v774, 0.0
        %779 = vadd.xlane.f32.xlu0 %v778
        %v780 = vpop.xlane.xlu0 %779
        %v781 = vrcp.pop 64.0
        %v782 = vmul.f32 %v780, %v781
        %v783 = vsub.f32 %v774, %v782
        %v784 = vmul.f32 %v783, %v783
        %v785 = vsel %vm777, %v784, 0.0
        %786 = vadd.xlane.f32.xlu0 %v785
        %v787 = vpop.xlane.xlu0 %786
        %v788 = vmul.f32 %v787, %v781
        %v789 = vadd.f32 %v788, 1e-12
        %v790 = vrsqrt.pop %v789
        %v791 = vmul.f32 %v783, %v790
        %v793 = vlaneseq
        %v794 = vshrl.u32 %v793, 7
        %v795 = vsub.s32 0, %v794
        %v796 = vrot.slane %v775, %v795
        %v798 = vmul.f32 %v791, %v796
        %v800 = vlaneseq
        %v801 = vshrl.u32 %v800, 7
        %v802 = vsub.s32 0, %v801
        %v803 = vrot.slane %v776, %v802
        %v805 = vadd.f32 %v798, %v803
        %v806 = vld [vmem:[%s772] sm:$0x1]
        %v808 = vlaneseq
        %v809 = vshrl.u32 %v808, 7
        %v810 = vsub.s32 0, %v809
        %v811 = vrot.slane %v806, %v810
        %v813 = vpack.c.bf16 %v805, %v805
        %v814 = vld [vmem:[%s4] sm:$0xff]
        %v815 = vld [vmem:[%s4 + $0x8] sm:$0xff]
        %v816 = vld [vmem:[%s4 + $0x10] sm:$0xff]
        %v817 = vld [vmem:[%s4 + $0x18] sm:$0xff]
        %v818 = vld [vmem:[%s4 + $0x20] sm:$0xff]
        %v819 = vld [vmem:[%s4 + $0x28] sm:$0xff]
        %v820 = vld [vmem:[%s4 + $0x30] sm:$0xff]
        %v821 = vld [vmem:[%s4 + $0x38] sm:$0xff]
        %v822 = vld [vmem:[%s5] sm:$0x3]
        %v824 = vlaneseq
        %v825 = vshrl.u32 %v824, 7
        %v826 = vsub.s32 0, %v825
        %v827 = vrot.slane %v822, %v826
        %v828 = vlaneseq
        %v829 = vshrl.u32 %v828, 7
        %v830 = vsub.s32 1, %v829
        %v831 = vrot.slane %v822, %v830
        %v842 = vunpack.c.l.b16 %v814
        %v843 = vunpack.c.h.b16 %v814
        %v844 = vunpack.c.l.b16 %v815
        %v845 = vunpack.c.h.b16 %v815
        %v846 = vunpack.c.l.b16 %v816
        %v847 = vunpack.c.h.b16 %v816
        %v848 = vunpack.c.l.b16 %v817
        %v849 = vunpack.c.h.b16 %v817
        %v850 = vunpack.c.l.b16 %v818
        %v851 = vunpack.c.h.b16 %v818
        %v852 = vunpack.c.l.b16 %v819
        %v853 = vunpack.c.h.b16 %v819
        %v854 = vunpack.c.l.b16 %v820
        %v855 = vunpack.c.h.b16 %v820
        %v856 = vunpack.c.l.b16 %v821
        %v857 = vunpack.c.h.b16 %v821
        %v858 = vpack.c.b16 %v844, %v842
        %v859 = vpack.c.b16 %v845, %v843
        %v860 = vpack.c.b16 %v848, %v846
        %v861 = vpack.c.b16 %v849, %v847
        %v862 = vpack.c.b16 %v852, %v850
        %v863 = vpack.c.b16 %v853, %v851
        %v864 = vpack.c.b16 %v856, %v854
        %v865 = vpack.c.b16 %v857, %v855
        %v875 = vsel %vm777, %v813, 0
        %877 = vmatprep.subr.bf16.mxu0 %v859
        %878 = vmatpush1.bf16.msra.mxu0 %v858
        %879 = vmatprep.subr.bf16.mxu0 %v861
        %880 = vmatpush1.bf16.msra.mxu0 %v860
        %881 = vmatprep.subr.bf16.mxu0 %v863
        %882 = vmatpush1.bf16.msra.mxu0 %v862
        %883 = vmatprep.subr.bf16.mxu0 %v865
        %884 = vmatpush1.bf16.msra.mxu0 %v864
        %885 = vmatprep.subr.bf16.mxu0 0
        %886 = vmatpush1.bf16.msra.mxu0 0
        %887 = vmatprep.subr.bf16.mxu0 0
        %888 = vmatpush1.bf16.msra.mxu0 0
        %889 = vmatprep.subr.bf16.mxu0 0
        %890 = vmatpush1.bf16.msra.mxu0 0
        %891 = vmatprep.subr.bf16.mxu0 0
        %892 = vmatpush1.bf16.msra.mxu0 0
        %893 = vmatprep.subr.bf16.mxu0 0
        %894 = vmatpush1.bf16.msra.mxu0 0
        %895 = vmatprep.subr.bf16.mxu0 0
        %896 = vmatpush1.bf16.msra.mxu0 0
        %897 = vmatprep.subr.bf16.mxu0 0
        %898 = vmatpush1.bf16.msra.mxu0 0
        %899 = vmatprep.subr.bf16.mxu0 0
        %900 = vmatpush1.bf16.msra.mxu0 0
        %901 = vmatprep.subr.bf16.mxu0 0
        %902 = vmatpush1.bf16.msra.mxu0 0
        %903 = vmatprep.subr.bf16.mxu0 0
        %904 = vmatpush1.bf16.msra.mxu0 0
        %905 = vmatprep.subr.bf16.mxu0 0
        %906 = vmatpush1.bf16.msra.mxu0 0
        %907 = vmatprep.subr.bf16.mxu0 0
        %908 = vmatpush1.bf16.msra.mxu0 0
        %909 = vmatprep.mubr.bf16.mxu0 0
        %910 = vmatmul.mubr.bf16.gmra.mrb[0].mxu0 %v875
        %v911 = vpop.f32.mrb[0].mxu0
        %v912 = vadd.f32 %v827, %v911
        %v913 = vpop.f32.mrb[0].mxu0
        %v914 = vadd.f32 %v831, %v913
        %v915 = vpop.f32.mrb[0].mxu0
        %v916 = vpop.f32.mrb[0].mxu0
        %917 = vdwg.mxu0
        %919 = vrot.lane.b32.xlu0 %v912, 64
        %v920 = vpop.permute.xlu0 %919
        %vm921 = vcmask 130048
        %v922 = vsel %vm921, %v912, 0
        %v924 = vsel %vm921, %v920, 0
        %926 = vmatprep.subr.mxu0 0.0
        %927 = vmatpush1.xpose.msra.mxu0 %v924
        %928 = vmatprep.subr.mxu0 0.0
        %929 = vmatpush1.xpose.msra.mxu0 0.0
        %930 = vmatprep.subr.mxu0 0.0
        %931 = vmatpush1.xpose.msra.mxu0 0.0
        %932 = vmatprep.subr.mxu0 0.0
        %933 = vmatpush1.xpose.msra.mxu0 0.0
        %934 = vmatprep.subr.mxu0 0.0
        %935 = vmatpush1.xpose.msra.mxu0 0.0
        %936 = vmatprep.subr.mxu0 0.0
        %937 = vmatpush1.xpose.msra.mxu0 0.0
        %938 = vmatprep.subr.mxu0 0.0
        %939 = vmatpush1.xpose.msra.mxu0 0.0
        %940 = vmatprep.subr.mxu0 0.0
        %941 = vmatpush1.xpose.msra.mxu0 0.0
        %942 = vmatprep.subr.mxu0 0.0
        %943 = vmatpush1.xpose.msra.mxu0 0.0
        %944 = vmatprep.subr.mxu0 0.0
        %945 = vmatpush1.xpose.msra.mxu0 0.0
        %946 = vmatprep.subr.mxu0 0.0
        %947 = vmatpush1.xpose.msra.mxu0 0.0
        %948 = vmatprep.subr.mxu0 0.0
        %949 = vmatpush1.xpose.msra.mxu0 0.0
        %950 = vmatprep.subr.mxu0 0.0
        %951 = vmatpush1.xpose.msra.mxu0 0.0
        %952 = vmatprep.subr.mxu0 0.0
        %953 = vmatpush1.xpose.msra.mxu0 0.0
        %954 = vmatprep.subr.mxu0 0.0
        %955 = vmatpush1.xpose.msra.mxu0 0.0
        %956 = vmatprep.subr.mxu0 0.0
        %957 = vmatpush1.xpose.msra.mxu0 0.0
        %958 = vmatprep.subr.mxu0 0.0
        %959 = vmatpush1.xpose.msra.mxu0 0.0
        %960 = vmatprep.subr.mxu0 0.0
        %961 = vmatpush1.xpose.msra.mxu0 0.0
        %962 = vmatprep.subr.mxu0 0.0
        %963 = vmatpush1.xpose.msra.mxu0 0.0
        %964 = vmatprep.subr.mxu0 0.0
        %965 = vmatpush1.xpose.msra.mxu0 0.0
        %966 = vmatprep.subr.mxu0 0.0
        %967 = vmatpush1.xpose.msra.mxu0 0.0
        %968 = vmatprep.subr.mxu0 0.0
        %969 = vmatpush1.xpose.msra.mxu0 0.0
        %970 = vmatprep.subr.mxu0 0.0
        %971 = vmatpush1.xpose.msra.mxu0 0.0
        %972 = vmatprep.subr.mxu0 0.0
        %973 = vmatpush1.xpose.msra.mxu0 0.0
        %974 = vmatprep.subr.mxu0 0.0
        %975 = vmatpush1.xpose.msra.mxu0 0.0
        %976 = vmatprep.subr.mxu0 0.0
        %977 = vmatpush1.xpose.msra.mxu0 0.0
        %978 = vmatprep.subr.mxu0 0.0
        %979 = vmatpush1.xpose.msra.mxu0 0.0
        %980 = vmatprep.subr.mxu0 0.0
        %981 = vmatpush1.xpose.msra.mxu0 0.0
        %982 = vmatprep.subr.mxu0 0.0
        %983 = vmatpush1.xpose.msra.mxu0 0.0
        %984 = vmatprep.subr.mxu0 0.0
        %985 = vmatpush1.xpose.msra.mxu0 0.0
        %986 = vmatprep.subr.mxu0 0.0
        %987 = vmatpush1.xpose.msra.mxu0 0.0
        %988 = vmatprep.subr.mxu0 0.0
        %989 = vmatpush1.xpose.msra.mxu0 0.0
        %990 = vmatprep.mubr.f32.mxu0 0.0
        %991 = vmatmul.mubr.f32.gmra.mrb[0].mxu0 %v922
        %v992 = vpop.f32.mrb[0].mxu0
        %v993 = vadd.f32 0.0, %v992
        %v994 = vpop.f32.mrb[0].mxu0
        %995 = vdwg.mxu0
        %v996 = vmul.f32 %v993, 0.25
        %v997 = vadd.f32 %v996, %v811
        %vm998 = vcmask 64512
        %v999 = vsel %vm998, %v997, -inf
        %1000 = vmax.xlane.f32.xlu0 %v999
        %v1001 = vpop.xlane.xlu0 %1000
        %v1002 = vsub.f32 %v997, %v1001
        %v1003 = vmul.f32 %v1002, 1.442695
        %v1004 = vpow.pop %v1003
        %v1005 = vsel %vm998, %v1004, 0.0
        %1006 = vadd.xlane.f32.xlu0 %v1005
        %v1007 = vpop.xlane.xlu0 %1006
        %v1008 = vrcp.pop %v1007
        %v1009 = vmul.f32 %v1004, %v1008
        %v1011 = vsel %vm998, %v1009, 0
        %1013 = vmatprep.subr.mxu0 0.0
        %1014 = vmatpush1.msra.mxu0 %v914
        %1015 = vmatprep.subr.mxu0 0.0
        %1016 = vmatpush1.msra.mxu0 0.0
        %1017 = vmatprep.subr.mxu0 0.0
        %1018 = vmatpush1.msra.mxu0 0.0
        %1019 = vmatprep.subr.mxu0 0.0
        %1020 = vmatpush1.msra.mxu0 0.0
        %1021 = vmatprep.subr.mxu0 0.0
        %1022 = vmatpush1.msra.mxu0 0.0
        %1023 = vmatprep.subr.mxu0 0.0
        %1024 = vmatpush1.msra.mxu0 0.0
        %1025 = vmatprep.subr.mxu0 0.0
        %1026 = vmatpush1.msra.mxu0 0.0
        %1027 = vmatprep.subr.mxu0 0.0
        %1028 = vmatpush1.msra.mxu0 0.0
        %1029 = vmatprep.subr.mxu0 0.0
        %1030 = vmatpush1.msra.mxu0 0.0
        %1031 = vmatprep.subr.mxu0 0.0
        %1032 = vmatpush1.msra.mxu0 0.0
        %1033 = vmatprep.subr.mxu0 0.0
        %1034 = vmatpush1.msra.mxu0 0.0
        %1035 = vmatprep.subr.mxu0 0.0
        %1036 = vmatpush1.msra.mxu0 0.0
        %1037 = vmatprep.subr.mxu0 0.0
        %1038 = vmatpush1.msra.mxu0 0.0
        %1039 = vmatprep.subr.mxu0 0.0
        %1040 = vmatpush1.msra.mxu0 0.0
        %1041 = vmatprep.subr.mxu0 0.0
        %1042 = vmatpush1.msra.mxu0 0.0
        %1043 = vmatprep.subr.mxu0 0.0
        %1044 = vmatpush1.msra.mxu0 0.0
        %1045 = vmatprep.subr.mxu0 0.0
        %1046 = vmatpush1.msra.mxu0 0.0
        %1047 = vmatprep.subr.mxu0 0.0
        %1048 = vmatpush1.msra.mxu0 0.0
        %1049 = vmatprep.subr.mxu0 0.0
        %1050 = vmatpush1.msra.mxu0 0.0
        %1051 = vmatprep.subr.mxu0 0.0
        %1052 = vmatpush1.msra.mxu0 0.0
        %1053 = vmatprep.subr.mxu0 0.0
        %1054 = vmatpush1.msra.mxu0 0.0
        %1055 = vmatprep.subr.mxu0 0.0
        %1056 = vmatpush1.msra.mxu0 0.0
        %1057 = vmatprep.subr.mxu0 0.0
        %1058 = vmatpush1.msra.mxu0 0.0
        %1059 = vmatprep.subr.mxu0 0.0
        %1060 = vmatpush1.msra.mxu0 0.0
        %1061 = vmatprep.subr.mxu0 0.0
        %1062 = vmatpush1.msra.mxu0 0.0
        %1063 = vmatprep.subr.mxu0 0.0
        %1064 = vmatpush1.msra.mxu0 0.0
        %1065 = vmatprep.subr.mxu0 0.0
        %1066 = vmatpush1.msra.mxu0 0.0
        %1067 = vmatprep.subr.mxu0 0.0
        %1068 = vmatpush1.msra.mxu0 0.0
        %1069 = vmatprep.subr.mxu0 0.0
        %1070 = vmatpush1.msra.mxu0 0.0
        %1071 = vmatprep.subr.mxu0 0.0
        %1072 = vmatpush1.msra.mxu0 0.0
        %1073 = vmatprep.subr.mxu0 0.0
        %1074 = vmatpush1.msra.mxu0 0.0
        %1075 = vmatprep.subr.mxu0 0.0
        %1076 = vmatpush1.msra.mxu0 0.0
        %1077 = vmatprep.mubr.f32.mxu0 0.0
        %1078 = vmatmul.mubr.f32.gmra.mrb[0].mxu0 %v1011
        %v1079 = vpop.f32.mrb[0].mxu0
        %v1080 = vadd.f32 0.0, %v1079
        %v1081 = vpop.f32.mrb[0].mxu0
        %1082 = vdwg.mxu0
        %1083 = vrot.lane.b32.xlu0 %v912, 112
        %v1084 = vpop.permute.xlu0 %1083
        %1085 = vrot.lane.b32.xlu0 %v912, 48
        %v1086 = vpop.permute.xlu0 %1085
        %v1087 = vsel %vm921, %v1084, 0
        %v1089 = vsel %vm921, %v1086, 0
        %1091 = vmatprep.subr.mxu0 0.0
        %1092 = vmatpush1.xpose.msra.mxu0 %v1089
        %1093 = vmatprep.subr.mxu0 0.0
        %1094 = vmatpush1.xpose.msra.mxu0 0.0
        %1095 = vmatprep.subr.mxu0 0.0
        %1096 = vmatpush1.xpose.msra.mxu0 0.0
        %1097 = vmatprep.subr.mxu0 0.0
        %1098 = vmatpush1.xpose.msra.mxu0 0.0
        %1099 = vmatprep.subr.mxu0 0.0
        %1100 = vmatpush1.xpose.msra.mxu0 0.0
        %1101 = vmatprep.subr.mxu0 0.0
        %1102 = vmatpush1.xpose.msra.mxu0 0.0
        %1103 = vmatprep.subr.mxu0 0.0
        %1104 = vmatpush1.xpose.msra.mxu0 0.0
        %1105 = vmatprep.subr.mxu0 0.0
        %1106 = vmatpush1.xpose.msra.mxu0 0.0
        %1107 = vmatprep.subr.mxu0 0.0
        %1108 = vmatpush1.xpose.msra.mxu0 0.0
        %1109 = vmatprep.subr.mxu0 0.0
        %1110 = vmatpush1.xpose.msra.mxu0 0.0
        %1111 = vmatprep.subr.mxu0 0.0
        %1112 = vmatpush1.xpose.msra.mxu0 0.0
        %1113 = vmatprep.subr.mxu0 0.0
        %1114 = vmatpush1.xpose.msra.mxu0 0.0
        %1115 = vmatprep.subr.mxu0 0.0
        %1116 = vmatpush1.xpose.msra.mxu0 0.0
        %1117 = vmatprep.subr.mxu0 0.0
        %1118 = vmatpush1.xpose.msra.mxu0 0.0
        %1119 = vmatprep.subr.mxu0 0.0
        %1120 = vmatpush1.xpose.msra.mxu0 0.0
        %1121 = vmatprep.subr.mxu0 0.0
        %1122 = vmatpush1.xpose.msra.mxu0 0.0
        %1123 = vmatprep.subr.mxu0 0.0
        %1124 = vmatpush1.xpose.msra.mxu0 0.0
        %1125 = vmatprep.subr.mxu0 0.0
        %1126 = vmatpush1.xpose.msra.mxu0 0.0
        %1127 = vmatprep.subr.mxu0 0.0
        %1128 = vmatpush1.xpose.msra.mxu0 0.0
        %1129 = vmatprep.subr.mxu0 0.0
        %1130 = vmatpush1.xpose.msra.mxu0 0.0
        %1131 = vmatprep.subr.mxu0 0.0
        %1132 = vmatpush1.xpose.msra.mxu0 0.0
        %1133 = vmatprep.subr.mxu0 0.0
        %1134 = vmatpush1.xpose.msra.mxu0 0.0
        %1135 = vmatprep.subr.mxu0 0.0
        %1136 = vmatpush1.xpose.msra.mxu0 0.0
        %1137 = vmatprep.subr.mxu0 0.0
        %1138 = vmatpush1.xpose.msra.mxu0 0.0
        %1139 = vmatprep.subr.mxu0 0.0
        %1140 = vmatpush1.xpose.msra.mxu0 0.0
        %1141 = vmatprep.subr.mxu0 0.0
        %1142 = vmatpush1.xpose.msra.mxu0 0.0
        %1143 = vmatprep.subr.mxu0 0.0
        %1144 = vmatpush1.xpose.msra.mxu0 0.0
        %1145 = vmatprep.subr.mxu0 0.0
        %1146 = vmatpush1.xpose.msra.mxu0 0.0
        %1147 = vmatprep.subr.mxu0 0.0
        %1148 = vmatpush1.xpose.msra.mxu0 0.0
        %1149 = vmatprep.subr.mxu0 0.0
        %1150 = vmatpush1.xpose.msra.mxu0 0.0
        %1151 = vmatprep.subr.mxu0 0.0
        %1152 = vmatpush1.xpose.msra.mxu0 0.0
        %1153 = vmatprep.subr.mxu0 0.0
        %1154 = vmatpush1.xpose.msra.mxu0 0.0
        %1155 = vmatprep.mubr.f32.mxu0 0.0
        %1156 = vmatmul.mubr.f32.gmra.mrb[0].mxu0 %v1087
        %v1157 = vpop.f32.mrb[0].mxu0
        %v1158 = vadd.f32 0.0, %v1157
        %v1159 = vpop.f32.mrb[0].mxu0
        %1160 = vdwg.mxu0
        %v1161 = vmul.f32 %v1158, 0.25
        %v1162 = vadd.f32 %v1161, %v811
        %v1163 = vsel %vm998, %v1162, -inf
        %1164 = vmax.xlane.f32.xlu0 %v1163
        %v1165 = vpop.xlane.xlu0 %1164
        %v1166 = vsub.f32 %v1162, %v1165
        %v1167 = vmul.f32 %v1166, 1.442695
        %v1168 = vpow.pop %v1167
        %v1169 = vsel %vm998, %v1168, 0.0
        %1170 = vadd.xlane.f32.xlu0 %v1169
        %v1171 = vpop.xlane.xlu0 %1170
        %v1172 = vrcp.pop %v1171
        %v1173 = vmul.f32 %v1168, %v1172
        %1175 = vrot.lane.b32.xlu0 %v914, 112
        %v1176 = vpop.permute.xlu0 %1175
        %v1179 = vsel %vm998, %v1173, 0
        %1181 = vmatprep.subr.mxu0 0.0
        %1182 = vmatpush1.msra.mxu0 %v1176
        %1183 = vmatprep.subr.mxu0 0.0
        %1184 = vmatpush1.msra.mxu0 0.0
        %1185 = vmatprep.subr.mxu0 0.0
        %1186 = vmatpush1.msra.mxu0 0.0
        %1187 = vmatprep.subr.mxu0 0.0
        %1188 = vmatpush1.msra.mxu0 0.0
        %1189 = vmatprep.subr.mxu0 0.0
        %1190 = vmatpush1.msra.mxu0 0.0
        %1191 = vmatprep.subr.mxu0 0.0
        %1192 = vmatpush1.msra.mxu0 0.0
        %1193 = vmatprep.subr.mxu0 0.0
        %1194 = vmatpush1.msra.mxu0 0.0
        %1195 = vmatprep.subr.mxu0 0.0
        %1196 = vmatpush1.msra.mxu0 0.0
        %1197 = vmatprep.subr.mxu0 0.0
        %1198 = vmatpush1.msra.mxu0 0.0
        %1199 = vmatprep.subr.mxu0 0.0
        %1200 = vmatpush1.msra.mxu0 0.0
        %1201 = vmatprep.subr.mxu0 0.0
        %1202 = vmatpush1.msra.mxu0 0.0
        %1203 = vmatprep.subr.mxu0 0.0
        %1204 = vmatpush1.msra.mxu0 0.0
        %1205 = vmatprep.subr.mxu0 0.0
        %1206 = vmatpush1.msra.mxu0 0.0
        %1207 = vmatprep.subr.mxu0 0.0
        %1208 = vmatpush1.msra.mxu0 0.0
        %1209 = vmatprep.subr.mxu0 0.0
        %1210 = vmatpush1.msra.mxu0 0.0
        %1211 = vmatprep.subr.mxu0 0.0
        %1212 = vmatpush1.msra.mxu0 0.0
        %1213 = vmatprep.subr.mxu0 0.0
        %1214 = vmatpush1.msra.mxu0 0.0
        %1215 = vmatprep.subr.mxu0 0.0
        %1216 = vmatpush1.msra.mxu0 0.0
        %1217 = vmatprep.subr.mxu0 0.0
        %1218 = vmatpush1.msra.mxu0 0.0
        %1219 = vmatprep.subr.mxu0 0.0
        %1220 = vmatpush1.msra.mxu0 0.0
        %1221 = vmatprep.subr.mxu0 0.0
        %1222 = vmatpush1.msra.mxu0 0.0
        %1223 = vmatprep.subr.mxu0 0.0
        %1224 = vmatpush1.msra.mxu0 0.0
        %1225 = vmatprep.subr.mxu0 0.0
        %1226 = vmatpush1.msra.mxu0 0.0
        %1227 = vmatprep.subr.mxu0 0.0
        %1228 = vmatpush1.msra.mxu0 0.0
        %1229 = vmatprep.subr.mxu0 0.0
        %1230 = vmatpush1.msra.mxu0 0.0
        %1231 = vmatprep.subr.mxu0 0.0
        %1232 = vmatpush1.msra.mxu0 0.0
        %1233 = vmatprep.subr.mxu0 0.0
        %1234 = vmatpush1.msra.mxu0 0.0
        %1235 = vmatprep.subr.mxu0 0.0
        %1236 = vmatpush1.msra.mxu0 0.0
        %1237 = vmatprep.subr.mxu0 0.0
        %1238 = vmatpush1.msra.mxu0 0.0
        %1239 = vmatprep.subr.mxu0 0.0
        %1240 = vmatpush1.msra.mxu0 0.0
        %1241 = vmatprep.subr.mxu0 0.0
        %1242 = vmatpush1.msra.mxu0 0.0
        %1243 = vmatprep.subr.mxu0 0.0
        %1244 = vmatpush1.msra.mxu0 0.0
        %1245 = vmatprep.mubr.f32.mxu0 0.0
        %1246 = vmatmul.mubr.f32.gmra.mrb[0].mxu0 %v1179
        %v1247 = vpop.f32.mrb[0].mxu0
        %v1248 = vadd.f32 0.0, %v1247
        %v1249 = vpop.f32.mrb[0].mxu0
        %1250 = vdwg.mxu0
        %1251 = vrot.lane.b32.xlu0 %v912, 96
        %v1252 = vpop.permute.xlu0 %1251
        %1253 = vrot.lane.b32.xlu0 %v912, 32
        %v1254 = vpop.permute.xlu0 %1253
        %v1255 = vsel %vm921, %v1252, 0
        %v1257 = vsel %vm921, %v1254, 0
        %1259 = vmatprep.subr.mxu0 0.0
        %1260 = vmatpush1.xpose.msra.mxu0 %v1257
        %1261 = vmatprep.subr.mxu0 0.0
        %1262 = vmatpush1.xpose.msra.mxu0 0.0
        %1263 = vmatprep.subr.mxu0 0.0
        %1264 = vmatpush1.xpose.msra.mxu0 0.0
        %1265 = vmatprep.subr.mxu0 0.0
        %1266 = vmatpush1.xpose.msra.mxu0 0.0
        %1267 = vmatprep.subr.mxu0 0.0
        %1268 = vmatpush1.xpose.msra.mxu0 0.0
        %1269 = vmatprep.subr.mxu0 0.0
        %1270 = vmatpush1.xpose.msra.mxu0 0.0
        %1271 = vmatprep.subr.mxu0 0.0
        %1272 = vmatpush1.xpose.msra.mxu0 0.0
        %1273 = vmatprep.subr.mxu0 0.0
        %1274 = vmatpush1.xpose.msra.mxu0 0.0
        %1275 = vmatprep.subr.mxu0 0.0
        %1276 = vmatpush1.xpose.msra.mxu0 0.0
        %1277 = vmatprep.subr.mxu0 0.0
        %1278 = vmatpush1.xpose.msra.mxu0 0.0
        %1279 = vmatprep.subr.mxu0 0.0
        %1280 = vmatpush1.xpose.msra.mxu0 0.0
        %1281 = vmatprep.subr.mxu0 0.0
        %1282 = vmatpush1.xpose.msra.mxu0 0.0
        %1283 = vmatprep.subr.mxu0 0.0
        %1284 = vmatpush1.xpose.msra.mxu0 0.0
        %1285 = vmatprep.subr.mxu0 0.0
        %1286 = vmatpush1.xpose.msra.mxu0 0.0
        %1287 = vmatprep.subr.mxu0 0.0
        %1288 = vmatpush1.xpose.msra.mxu0 0.0
        %1289 = vmatprep.subr.mxu0 0.0
        %1290 = vmatpush1.xpose.msra.mxu0 0.0
        %1291 = vmatprep.subr.mxu0 0.0
        %1292 = vmatpush1.xpose.msra.mxu0 0.0
        %1293 = vmatprep.subr.mxu0 0.0
        %1294 = vmatpush1.xpose.msra.mxu0 0.0
        %1295 = vmatprep.subr.mxu0 0.0
        %1296 = vmatpush1.xpose.msra.mxu0 0.0
        %1297 = vmatprep.subr.mxu0 0.0
        %1298 = vmatpush1.xpose.msra.mxu0 0.0
        %1299 = vmatprep.subr.mxu0 0.0
        %1300 = vmatpush1.xpose.msra.mxu0 0.0
        %1301 = vmatprep.subr.mxu0 0.0
        %1302 = vmatpush1.xpose.msra.mxu0 0.0
        %1303 = vmatprep.subr.mxu0 0.0
        %1304 = vmatpush1.xpose.msra.mxu0 0.0
        %1305 = vmatprep.subr.mxu0 0.0
        %1306 = vmatpush1.xpose.msra.mxu0 0.0
        %1307 = vmatprep.subr.mxu0 0.0
        %1308 = vmatpush1.xpose.msra.mxu0 0.0
        %1309 = vmatprep.subr.mxu0 0.0
        %1310 = vmatpush1.xpose.msra.mxu0 0.0
        %1311 = vmatprep.subr.mxu0 0.0
        %1312 = vmatpush1.xpose.msra.mxu0 0.0
        %1313 = vmatprep.subr.mxu0 0.0
        %1314 = vmatpush1.xpose.msra.mxu0 0.0
        %1315 = vmatprep.subr.mxu0 0.0
        %1316 = vmatpush1.xpose.msra.mxu0 0.0
        %1317 = vmatprep.subr.mxu0 0.0
        %1318 = vmatpush1.xpose.msra.mxu0 0.0
        %1319 = vmatprep.subr.mxu0 0.0
        %1320 = vmatpush1.xpose.msra.mxu0 0.0
        %1321 = vmatprep.subr.mxu0 0.0
        %1322 = vmatpush1.xpose.msra.mxu0 0.0
        %1323 = vmatprep.mubr.f32.mxu0 0.0
        %1324 = vmatmul.mubr.f32.gmra.mrb[0].mxu0 %v1255
        %v1325 = vpop.f32.mrb[0].mxu0
        %v1326 = vadd.f32 0.0, %v1325
        %v1327 = vpop.f32.mrb[0].mxu0
        %1328 = vdwg.mxu0
        %v1329 = vmul.f32 %v1326, 0.25
        %v1330 = vadd.f32 %v1329, %v811
        %v1331 = vsel %vm998, %v1330, -inf
        %1332 = vmax.xlane.f32.xlu0 %v1331
        %v1333 = vpop.xlane.xlu0 %1332
        %v1334 = vsub.f32 %v1330, %v1333
        %v1335 = vmul.f32 %v1334, 1.442695
        %v1336 = vpow.pop %v1335
        %v1337 = vsel %vm998, %v1336, 0.0
        %1338 = vadd.xlane.f32.xlu0 %v1337
        %v1339 = vpop.xlane.xlu0 %1338
        %v1340 = vrcp.pop %v1339
        %v1341 = vmul.f32 %v1336, %v1340
        %1342 = vrot.lane.b32.xlu0 %v914, 96
        %v1343 = vpop.permute.xlu0 %1342
        %v1346 = vsel %vm998, %v1341, 0
        %1348 = vmatprep.subr.mxu0 0.0
        %1349 = vmatpush1.msra.mxu0 %v1343
        %1350 = vmatprep.subr.mxu0 0.0
        %1351 = vmatpush1.msra.mxu0 0.0
        %1352 = vmatprep.subr.mxu0 0.0
        %1353 = vmatpush1.msra.mxu0 0.0
        %1354 = vmatprep.subr.mxu0 0.0
        %1355 = vmatpush1.msra.mxu0 0.0
        %1356 = vmatprep.subr.mxu0 0.0
        %1357 = vmatpush1.msra.mxu0 0.0
        %1358 = vmatprep.subr.mxu0 0.0
        %1359 = vmatpush1.msra.mxu0 0.0
        %1360 = vmatprep.subr.mxu0 0.0
        %1361 = vmatpush1.msra.mxu0 0.0
        %1362 = vmatprep.subr.mxu0 0.0
        %1363 = vmatpush1.msra.mxu0 0.0
        %1364 = vmatprep.subr.mxu0 0.0
        %1365 = vmatpush1.msra.mxu0 0.0
        %1366 = vmatprep.subr.mxu0 0.0
        %1367 = vmatpush1.msra.mxu0 0.0
        %1368 = vmatprep.subr.mxu0 0.0
        %1369 = vmatpush1.msra.mxu0 0.0
        %1370 = vmatprep.subr.mxu0 0.0
        %1371 = vmatpush1.msra.mxu0 0.0
        %1372 = vmatprep.subr.mxu0 0.0
        %1373 = vmatpush1.msra.mxu0 0.0
        %1374 = vmatprep.subr.mxu0 0.0
        %1375 = vmatpush1.msra.mxu0 0.0
        %1376 = vmatprep.subr.mxu0 0.0
        %1377 = vmatpush1.msra.mxu0 0.0
        %1378 = vmatprep.subr.mxu0 0.0
        %1379 = vmatpush1.msra.mxu0 0.0
        %1380 = vmatprep.subr.mxu0 0.0
        %1381 = vmatpush1.msra.mxu0 0.0
        %1382 = vmatprep.subr.mxu0 0.0
        %1383 = vmatpush1.msra.mxu0 0.0
        %1384 = vmatprep.subr.mxu0 0.0
        %1385 = vmatpush1.msra.mxu0 0.0
        %1386 = vmatprep.subr.mxu0 0.0
        %1387 = vmatpush1.msra.mxu0 0.0
        %1388 = vmatprep.subr.mxu0 0.0
        %1389 = vmatpush1.msra.mxu0 0.0
        %1390 = vmatprep.subr.mxu0 0.0
        %1391 = vmatpush1.msra.mxu0 0.0
        %1392 = vmatprep.subr.mxu0 0.0
        %1393 = vmatpush1.msra.mxu0 0.0
        %1394 = vmatprep.subr.mxu0 0.0
        %1395 = vmatpush1.msra.mxu0 0.0
        %1396 = vmatprep.subr.mxu0 0.0
        %1397 = vmatpush1.msra.mxu0 0.0
        %1398 = vmatprep.subr.mxu0 0.0
        %1399 = vmatpush1.msra.mxu0 0.0
        %1400 = vmatprep.subr.mxu0 0.0
        %1401 = vmatpush1.msra.mxu0 0.0
        %1402 = vmatprep.subr.mxu0 0.0
        %1403 = vmatpush1.msra.mxu0 0.0
        %1404 = vmatprep.subr.mxu0 0.0
        %1405 = vmatpush1.msra.mxu0 0.0
        %1406 = vmatprep.subr.mxu0 0.0
        %1407 = vmatpush1.msra.mxu0 0.0
        %1408 = vmatprep.subr.mxu0 0.0
        %1409 = vmatpush1.msra.mxu0 0.0
        %1410 = vmatprep.subr.mxu0 0.0
        %1411 = vmatpush1.msra.mxu0 0.0
        %1412 = vmatprep.mubr.f32.mxu0 0.0
        %1413 = vmatmul.mubr.f32.gmra.mrb[0].mxu0 %v1346
        %v1414 = vpop.f32.mrb[0].mxu0
        %v1415 = vadd.f32 0.0, %v1414
        %v1416 = vpop.f32.mrb[0].mxu0
        %1417 = vdwg.mxu0
        %1418 = vrot.lane.b32.xlu0 %v912, 80
        %v1419 = vpop.permute.xlu0 %1418
        %1420 = vrot.lane.b32.xlu0 %v912, 16
        %v1421 = vpop.permute.xlu0 %1420
        %v1422 = vsel %vm921, %v1419, 0
        %v1424 = vsel %vm921, %v1421, 0
        %1426 = vmatprep.subr.mxu0 0.0
        %1427 = vmatpush1.xpose.msra.mxu0 %v1424
        %1428 = vmatprep.subr.mxu0 0.0
        %1429 = vmatpush1.xpose.msra.mxu0 0.0
        %1430 = vmatprep.subr.mxu0 0.0
        %1431 = vmatpush1.xpose.msra.mxu0 0.0
        %1432 = vmatprep.subr.mxu0 0.0
        %1433 = vmatpush1.xpose.msra.mxu0 0.0
        %1434 = vmatprep.subr.mxu0 0.0
        %1435 = vmatpush1.xpose.msra.mxu0 0.0
        %1436 = vmatprep.subr.mxu0 0.0
        %1437 = vmatpush1.xpose.msra.mxu0 0.0
        %1438 = vmatprep.subr.mxu0 0.0
        %1439 = vmatpush1.xpose.msra.mxu0 0.0
        %1440 = vmatprep.subr.mxu0 0.0
        %1441 = vmatpush1.xpose.msra.mxu0 0.0
        %1442 = vmatprep.subr.mxu0 0.0
        %1443 = vmatpush1.xpose.msra.mxu0 0.0
        %1444 = vmatprep.subr.mxu0 0.0
        %1445 = vmatpush1.xpose.msra.mxu0 0.0
        %1446 = vmatprep.subr.mxu0 0.0
        %1447 = vmatpush1.xpose.msra.mxu0 0.0
        %1448 = vmatprep.subr.mxu0 0.0
        %1449 = vmatpush1.xpose.msra.mxu0 0.0
        %1450 = vmatprep.subr.mxu0 0.0
        %1451 = vmatpush1.xpose.msra.mxu0 0.0
        %1452 = vmatprep.subr.mxu0 0.0
        %1453 = vmatpush1.xpose.msra.mxu0 0.0
        %1454 = vmatprep.subr.mxu0 0.0
        %1455 = vmatpush1.xpose.msra.mxu0 0.0
        %1456 = vmatprep.subr.mxu0 0.0
        %1457 = vmatpush1.xpose.msra.mxu0 0.0
        %1458 = vmatprep.subr.mxu0 0.0
        %1459 = vmatpush1.xpose.msra.mxu0 0.0
        %1460 = vmatprep.subr.mxu0 0.0
        %1461 = vmatpush1.xpose.msra.mxu0 0.0
        %1462 = vmatprep.subr.mxu0 0.0
        %1463 = vmatpush1.xpose.msra.mxu0 0.0
        %1464 = vmatprep.subr.mxu0 0.0
        %1465 = vmatpush1.xpose.msra.mxu0 0.0
        %1466 = vmatprep.subr.mxu0 0.0
        %1467 = vmatpush1.xpose.msra.mxu0 0.0
        %1468 = vmatprep.subr.mxu0 0.0
        %1469 = vmatpush1.xpose.msra.mxu0 0.0
        %1470 = vmatprep.subr.mxu0 0.0
        %1471 = vmatpush1.xpose.msra.mxu0 0.0
        %1472 = vmatprep.subr.mxu0 0.0
        %1473 = vmatpush1.xpose.msra.mxu0 0.0
        %1474 = vmatprep.subr.mxu0 0.0
        %1475 = vmatpush1.xpose.msra.mxu0 0.0
        %1476 = vmatprep.subr.mxu0 0.0
        %1477 = vmatpush1.xpose.msra.mxu0 0.0
        %1478 = vmatprep.subr.mxu0 0.0
        %1479 = vmatpush1.xpose.msra.mxu0 0.0
        %1480 = vmatprep.subr.mxu0 0.0
        %1481 = vmatpush1.xpose.msra.mxu0 0.0
        %1482 = vmatprep.subr.mxu0 0.0
        %1483 = vmatpush1.xpose.msra.mxu0 0.0
        %1484 = vmatprep.subr.mxu0 0.0
        %1485 = vmatpush1.xpose.msra.mxu0 0.0
        %1486 = vmatprep.subr.mxu0 0.0
        %1487 = vmatpush1.xpose.msra.mxu0 0.0
        %1488 = vmatprep.subr.mxu0 0.0
        %1489 = vmatpush1.xpose.msra.mxu0 0.0
        %1490 = vmatprep.mubr.f32.mxu0 0.0
        %1491 = vmatmul.mubr.f32.gmra.mrb[0].mxu0 %v1422
        %v1492 = vpop.f32.mrb[0].mxu0
        %v1493 = vadd.f32 0.0, %v1492
        %v1494 = vpop.f32.mrb[0].mxu0
        %1495 = vdwg.mxu0
        %v1496 = vmul.f32 %v1493, 0.25
        %v1497 = vadd.f32 %v1496, %v811
        %v1498 = vsel %vm998, %v1497, -inf
        %1499 = vmax.xlane.f32.xlu0 %v1498
        %v1500 = vpop.xlane.xlu0 %1499
        %v1501 = vsub.f32 %v1497, %v1500
        %v1502 = vmul.f32 %v1501, 1.442695
        %v1503 = vpow.pop %v1502
        %v1504 = vsel %vm998, %v1503, 0.0
        %1505 = vadd.xlane.f32.xlu0 %v1504
        %v1506 = vpop.xlane.xlu0 %1505
        %v1507 = vrcp.pop %v1506
        %v1508 = vmul.f32 %v1503, %v1507
        %1509 = vrot.lane.b32.xlu0 %v914, 80
        %v1510 = vpop.permute.xlu0 %1509
        %v1513 = vsel %vm998, %v1508, 0
        %1515 = vmatprep.subr.mxu0 0.0
        %1516 = vmatpush1.msra.mxu0 %v1510
        %1517 = vmatprep.subr.mxu0 0.0
        %1518 = vmatpush1.msra.mxu0 0.0
        %1519 = vmatprep.subr.mxu0 0.0
        %1520 = vmatpush1.msra.mxu0 0.0
        %1521 = vmatprep.subr.mxu0 0.0
        %1522 = vmatpush1.msra.mxu0 0.0
        %1523 = vmatprep.subr.mxu0 0.0
        %1524 = vmatpush1.msra.mxu0 0.0
        %1525 = vmatprep.subr.mxu0 0.0
        %1526 = vmatpush1.msra.mxu0 0.0
        %1527 = vmatprep.subr.mxu0 0.0
        %1528 = vmatpush1.msra.mxu0 0.0
        %1529 = vmatprep.subr.mxu0 0.0
        %1530 = vmatpush1.msra.mxu0 0.0
        %1531 = vmatprep.subr.mxu0 0.0
        %1532 = vmatpush1.msra.mxu0 0.0
        %1533 = vmatprep.subr.mxu0 0.0
        %1534 = vmatpush1.msra.mxu0 0.0
        %1535 = vmatprep.subr.mxu0 0.0
        %1536 = vmatpush1.msra.mxu0 0.0
        %1537 = vmatprep.subr.mxu0 0.0
        %1538 = vmatpush1.msra.mxu0 0.0
        %1539 = vmatprep.subr.mxu0 0.0
        %1540 = vmatpush1.msra.mxu0 0.0
        %1541 = vmatprep.subr.mxu0 0.0
        %1542 = vmatpush1.msra.mxu0 0.0
        %1543 = vmatprep.subr.mxu0 0.0
        %1544 = vmatpush1.msra.mxu0 0.0
        %1545 = vmatprep.subr.mxu0 0.0
        %1546 = vmatpush1.msra.mxu0 0.0
        %1547 = vmatprep.subr.mxu0 0.0
        %1548 = vmatpush1.msra.mxu0 0.0
        %1549 = vmatprep.subr.mxu0 0.0
        %1550 = vmatpush1.msra.mxu0 0.0
        %1551 = vmatprep.subr.mxu0 0.0
        %1552 = vmatpush1.msra.mxu0 0.0
        %1553 = vmatprep.subr.mxu0 0.0
        %1554 = vmatpush1.msra.mxu0 0.0
        %1555 = vmatprep.subr.mxu0 0.0
        %1556 = vmatpush1.msra.mxu0 0.0
        %1557 = vmatprep.subr.mxu0 0.0
        %1558 = vmatpush1.msra.mxu0 0.0
        %1559 = vmatprep.subr.mxu0 0.0
        %1560 = vmatpush1.msra.mxu0 0.0
        %1561 = vmatprep.subr.mxu0 0.0
        %1562 = vmatpush1.msra.mxu0 0.0
        %1563 = vmatprep.subr.mxu0 0.0
        %1564 = vmatpush1.msra.mxu0 0.0
        %1565 = vmatprep.subr.mxu0 0.0
        %1566 = vmatpush1.msra.mxu0 0.0
        %1567 = vmatprep.subr.mxu0 0.0
        %1568 = vmatpush1.msra.mxu0 0.0
        %1569 = vmatprep.subr.mxu0 0.0
        %1570 = vmatpush1.msra.mxu0 0.0
        %1571 = vmatprep.subr.mxu0 0.0
        %1572 = vmatpush1.msra.mxu0 0.0
        %1573 = vmatprep.subr.mxu0 0.0
        %1574 = vmatpush1.msra.mxu0 0.0
        %1575 = vmatprep.subr.mxu0 0.0
        %1576 = vmatpush1.msra.mxu0 0.0
        %1577 = vmatprep.subr.mxu0 0.0
        %1578 = vmatpush1.msra.mxu0 0.0
        %1579 = vmatprep.mubr.f32.mxu0 0.0
        %1580 = vmatmul.mubr.f32.gmra.mrb[0].mxu0 %v1513
        %v1581 = vpop.f32.mrb[0].mxu0
        %v1582 = vadd.f32 0.0, %v1581
        %v1583 = vpop.f32.mrb[0].mxu0
        %1584 = vdwg.mxu0
        %1586 = vrot.lane.b32.xlu0 %v1248, 16
        %v1587 = vpop.permute.xlu0 %1586
        %1590 = vrot.lane.b32.xlu0 %v1415, 32
        %v1591 = vpop.permute.xlu0 %1590
        %1594 = vrot.lane.b32.xlu0 %v1582, 48
        %v1595 = vpop.permute.xlu0 %1594
        %v1597 = vsel %vm921, %v1080, %v1587
        %vm1598 = vcmask 261120
        %v1599 = vsel %vm1598, %v1597, %v1591
        %vm1600 = vcmask 392192
        %v1601 = vsel %vm1600, %v1599, %v1595
        %v1602 = vpack.c.bf16 %v1601, %v1601
        %v1603 = vld [vmem:[%s6] sm:$0xf]
        %v1604 = vld [vmem:[%s6 + $0x4] sm:$0xf]
        %v1605 = vld [vmem:[%s6 + $0x8] sm:$0xf]
        %v1606 = vld [vmem:[%s6 + $0xc] sm:$0xf]
        %v1607 = vld [vmem:[%s6 + $0x10] sm:$0xf]
        %v1608 = vld [vmem:[%s6 + $0x14] sm:$0xf]
        %v1609 = vld [vmem:[%s6 + $0x18] sm:$0xf]
        %v1610 = vld [vmem:[%s6 + $0x1c] sm:$0xf]
        %v1611 = vld [vmem:[%s7] sm:$0x1]
        %v1613 = vlaneseq
        %v1614 = vshrl.u32 %v1613, 7
        %v1615 = vsub.s32 0, %v1614
        %v1616 = vrot.slane %v1611, %v1615
        %v1626 = vunpack.c.l.b16 %v1603
        %v1627 = vunpack.c.l.b16 %v1604
        %v1628 = vunpack.c.l.b16 %v1605
        %v1629 = vunpack.c.l.b16 %v1606
        %v1630 = vunpack.c.l.b16 %v1607
        %v1631 = vunpack.c.l.b16 %v1608
        %v1632 = vunpack.c.l.b16 %v1609
        %v1633 = vunpack.c.l.b16 %v1610
        %v1634 = vpack.c.b16 %v1627, %v1626
        %v1635 = vpack.c.b16 %v1629, %v1628
        %v1636 = vpack.c.b16 %v1631, %v1630
        %v1637 = vpack.c.b16 %v1633, %v1632
        %v1643 = vsel %vm777, %v1602, 0
        %1645 = vmatprep.subr.bf16.mxu0 0
        %1646 = vmatpush1.bf16.msra.mxu0 %v1634
        %1647 = vmatprep.subr.bf16.mxu0 0
        %1648 = vmatpush1.bf16.msra.mxu0 %v1635
        %1649 = vmatprep.subr.bf16.mxu0 0
        %1650 = vmatpush1.bf16.msra.mxu0 %v1636
        %1651 = vmatprep.subr.bf16.mxu0 0
        %1652 = vmatpush1.bf16.msra.mxu0 %v1637
        %1653 = vmatprep.subr.bf16.mxu0 0
        %1654 = vmatpush1.bf16.msra.mxu0 0
        %1655 = vmatprep.subr.bf16.mxu0 0
        %1656 = vmatpush1.bf16.msra.mxu0 0
        %1657 = vmatprep.subr.bf16.mxu0 0
        %1658 = vmatpush1.bf16.msra.mxu0 0
        %1659 = vmatprep.subr.bf16.mxu0 0
        %1660 = vmatpush1.bf16.msra.mxu0 0
        %1661 = vmatprep.subr.bf16.mxu0 0
        %1662 = vmatpush1.bf16.msra.mxu0 0
        %1663 = vmatprep.subr.bf16.mxu0 0
        %1664 = vmatpush1.bf16.msra.mxu0 0
        %1665 = vmatprep.subr.bf16.mxu0 0
        %1666 = vmatpush1.bf16.msra.mxu0 0
        %1667 = vmatprep.subr.bf16.mxu0 0
        %1668 = vmatpush1.bf16.msra.mxu0 0
        %1669 = vmatprep.subr.bf16.mxu0 0
        %1670 = vmatpush1.bf16.msra.mxu0 0
        %1671 = vmatprep.subr.bf16.mxu0 0
        %1672 = vmatpush1.bf16.msra.mxu0 0
        %1673 = vmatprep.subr.bf16.mxu0 0
        %1674 = vmatpush1.bf16.msra.mxu0 0
        %1675 = vmatprep.subr.bf16.mxu0 0
        %1676 = vmatpush1.bf16.msra.mxu0 0
        %1677 = vmatprep.mubr.bf16.mxu0 0
        %1678 = vmatmul.mubr.bf16.gmra.mrb[0].mxu0 %v1643
        %v1679 = vpop.f32.mrb[0].mxu0
        %v1680 = vadd.f32 %v1616, %v1679
        %v1681 = vpop.f32.mrb[0].mxu0
        %v1682 = vpop.f32.mrb[0].mxu0
        %v1683 = vpop.f32.mrb[0].mxu0
        %1684 = vdwg.mxu0
        %v1685 = vadd.f32 %v805, %v1680
        %v1686 = vld [vmem:[%s8] sm:$0x1]
        %v1687 = vld [vmem:[%s9] sm:$0x1]
        %v1688 = vsel %vm777, %v1685, 0.0
        %1689 = vadd.xlane.f32.xlu0 %v1688
        %v1690 = vpop.xlane.xlu0 %1689
        %v1691 = vmul.f32 %v1690, %v781
        %v1692 = vsub.f32 %v1685, %v1691
        %v1693 = vmul.f32 %v1692, %v1692
        %v1694 = vsel %vm777, %v1693, 0.0
        %1695 = vadd.xlane.f32.xlu0 %v1694
        %v1696 = vpop.xlane.xlu0 %1695
        %v1697 = vmul.f32 %v1696, %v781
        %v1698 = vadd.f32 %v1697, 1e-12
        %v1699 = vrsqrt.pop %v1698
        %v1700 = vmul.f32 %v1692, %v1699
        %v1702 = vlaneseq
        %v1703 = vshrl.u32 %v1702, 7
        %v1704 = vsub.s32 0, %v1703
        %v1705 = vrot.slane %v1686, %v1704
        %v1707 = vmul.f32 %v1700, %v1705
        %v1709 = vlaneseq
        %v1710 = vshrl.u32 %v1709, 7
        %v1711 = vsub.s32 0, %v1710
        %v1712 = vrot.slane %v1687, %v1711
        %v1714 = vadd.f32 %v1707, %v1712
        %v1715 = vpack.c.bf16 %v1714, %v1714
        %v1716 = vld [vmem:[%s10] sm:$0xf]
        %v1717 = vld [vmem:[%s10 + $0x4] sm:$0xf]
        %v1718 = vld [vmem:[%s10 + $0x8] sm:$0xf]
        %v1719 = vld [vmem:[%s10 + $0xc] sm:$0xf]
        %v1720 = vld [vmem:[%s10 + $0x10] sm:$0xf]
        %v1721 = vld [vmem:[%s10 + $0x14] sm:$0xf]
        %v1722 = vld [vmem:[%s10 + $0x18] sm:$0xf]
        %v1723 = vld [vmem:[%s10 + $0x1c] sm:$0xf]
        %v1724 = vld [vmem:[%s11] sm:$0x1]
        %v1726 = vlaneseq
        %v1727 = vshrl.u32 %v1726, 7
        %v1728 = vsub.s32 0, %v1727
        %v1729 = vrot.slane %v1724, %v1728
        %v1739 = vunpack.c.l.b16 %v1716
        %v1740 = vunpack.c.l.b16 %v1717
        %v1741 = vunpack.c.l.b16 %v1718
        %v1742 = vunpack.c.l.b16 %v1719
        %v1743 = vunpack.c.l.b16 %v1720
        %v1744 = vunpack.c.l.b16 %v1721
        %v1745 = vunpack.c.l.b16 %v1722
        %v1746 = vunpack.c.l.b16 %v1723
        %v1747 = vpack.c.b16 %v1740, %v1739
        %v1748 = vpack.c.b16 %v1742, %v1741
        %v1749 = vpack.c.b16 %v1744, %v1743
        %v1750 = vpack.c.b16 %v1746, %v1745
        %v1756 = vsel %vm777, %v1715, 0
        %1758 = vmatprep.subr.bf16.mxu0 0
        %1759 = vmatpush1.bf16.msra.mxu0 %v1747
        %1760 = vmatprep.subr.bf16.mxu0 0
        %1761 = vmatpush1.bf16.msra.mxu0 %v1748
        %1762 = vmatprep.subr.bf16.mxu0 0
        %1763 = vmatpush1.bf16.msra.mxu0 %v1749
        %1764 = vmatprep.subr.bf16.mxu0 0
        %1765 = vmatpush1.bf16.msra.mxu0 %v1750
        %1766 = vmatprep.subr.bf16.mxu0 0
        %1767 = vmatpush1.bf16.msra.mxu0 0
        %1768 = vmatprep.subr.bf16.mxu0 0
        %1769 = vmatpush1.bf16.msra.mxu0 0
        %1770 = vmatprep.subr.bf16.mxu0 0
        %1771 = vmatpush1.bf16.msra.mxu0 0
        %1772 = vmatprep.subr.bf16.mxu0 0
        %1773 = vmatpush1.bf16.msra.mxu0 0
        %1774 = vmatprep.subr.bf16.mxu0 0
        %1775 = vmatpush1.bf16.msra.mxu0 0
        %1776 = vmatprep.subr.bf16.mxu0 0
        %1777 = vmatpush1.bf16.msra.mxu0 0
        %1778 = vmatprep.subr.bf16.mxu0 0
        %1779 = vmatpush1.bf16.msra.mxu0 0
        %1780 = vmatprep.subr.bf16.mxu0 0
        %1781 = vmatpush1.bf16.msra.mxu0 0
        %1782 = vmatprep.subr.bf16.mxu0 0
        %1783 = vmatpush1.bf16.msra.mxu0 0
        %1784 = vmatprep.subr.bf16.mxu0 0
        %1785 = vmatpush1.bf16.msra.mxu0 0
        %1786 = vmatprep.subr.bf16.mxu0 0
        %1787 = vmatpush1.bf16.msra.mxu0 0
        %1788 = vmatprep.subr.bf16.mxu0 0
        %1789 = vmatpush1.bf16.msra.mxu0 0
        %1790 = vmatprep.mubr.bf16.mxu0 0
        %1791 = vmatmul.mubr.bf16.gmra.mrb[0].mxu0 %v1756
        %v1792 = vpop.f32.mrb[0].mxu0
        %v1793 = vadd.f32 %v1729, %v1792
        %v1794 = vpop.f32.mrb[0].mxu0
        %v1795 = vpop.f32.mrb[0].mxu0
        %v1796 = vpop.f32.mrb[0].mxu0
        %1797 = vdwg.mxu0
        %v1798 = vmul.f32 %v1793, 0.5
        %v1799 = vmul.f32 %v1793, 0.70710677
        %vm1800 = vcmp.ge.f32.partialorder %v1799, 0.0
        %v1801 = vsel %vm1800, 1.0, -1.0
        %v1802 = vand.u32 2147483647, %v1799
        %v1803 = vmul.f32 %v1802, 0.3275911
        %v1804 = vadd.f32 %v1803, 1.0
        %v1805 = vrcp.pop %v1804
        %v1806 = vmul.f32 1.0, %v1805
        %v1807 = vmul.f32 %v1806, 1.0614054
        %v1808 = vadd.f32 %v1807, -1.4531521
        %v1809 = vmul.f32 %v1806, %v1808
        %v1810 = vadd.f32 %v1809, 1.4214138
        %v1811 = vmul.f32 %v1806, %v1810
        %v1812 = vadd.f32 %v1811, -0.28449672
        %v1813 = vmul.f32 %v1806, %v1812
        %v1814 = vadd.f32 %v1813, 0.2548296
        %v1815 = vmul.f32 %v1806, %v1814
        %v1816 = vsub.f32 0.0, %v1802
        %v1817 = vmul.f32 %v1816, %v1802
        %v1818 = vmul.f32 %v1817, 1.442695
        %v1819 = vpow.pop %v1818
        %v1820 = vmul.f32 %v1815, %v1819
        %v1821 = vsub.f32 1.0, %v1820
        %v1822 = vmul.f32 %v1801, %v1821
        %v1823 = vadd.f32 %v1822, 1.0
        %v1824 = vmul.f32 %v1798, %v1823
        %v1825 = vpack.c.bf16 %v1824, %v1824
        %v1826 = vld [vmem:[%s12] sm:$0xf]
        %v1827 = vld [vmem:[%s12 + $0x4] sm:$0xf]
        %v1828 = vld [vmem:[%s12 + $0x8] sm:$0xf]
        %v1829 = vld [vmem:[%s12 + $0xc] sm:$0xf]
        %v1830 = vld [vmem:[%s12 + $0x10] sm:$0xf]
        %v1831 = vld [vmem:[%s12 + $0x14] sm:$0xf]
        %v1832 = vld [vmem:[%s12 + $0x18] sm:$0xf]
        %v1833 = vld [vmem:[%s12 + $0x1c] sm:$0xf]
        %v1834 = vld [vmem:[%s12 + $0x20] sm:$0xf]
        %v1835 = vld [vmem:[%s12 + $0x24] sm:$0xf]
        %v1836 = vld [vmem:[%s12 + $0x28] sm:$0xf]
        %v1837 = vld [vmem:[%s12 + $0x2c] sm:$0xf]
        %v1838 = vld [vmem:[%s12 + $0x30] sm:$0xf]
        %v1839 = vld [vmem:[%s12 + $0x34] sm:$0xf]
        %v1840 = vld [vmem:[%s12 + $0x38] sm:$0xf]
        %v1841 = vld [vmem:[%s12 + $0x3c] sm:$0xf]
        %v1842 = vld [vmem:[%s13] sm:$0x1]
        %v1844 = vlaneseq
        %v1845 = vshrl.u32 %v1844, 7
        %v1846 = vsub.s32 0, %v1845
        %v1847 = vrot.slane %v1842, %v1846
        %v1865 = vunpack.c.l.b16 %v1826
        %v1866 = vunpack.c.l.b16 %v1827
        %v1867 = vunpack.c.l.b16 %v1828
        %v1868 = vunpack.c.l.b16 %v1829
        %v1869 = vunpack.c.l.b16 %v1830
        %v1870 = vunpack.c.l.b16 %v1831
        %v1871 = vunpack.c.l.b16 %v1832
        %v1872 = vunpack.c.l.b16 %v1833
        %v1873 = vunpack.c.l.b16 %v1834
        %v1874 = vunpack.c.l.b16 %v1835
        %v1875 = vunpack.c.l.b16 %v1836
        %v1876 = vunpack.c.l.b16 %v1837
        %v1877 = vunpack.c.l.b16 %v1838
        %v1878 = vunpack.c.l.b16 %v1839
        %v1879 = vunpack.c.l.b16 %v1840
        %v1880 = vunpack.c.l.b16 %v1841
        %v1881 = vpack.c.b16 %v1866, %v1865
        %v1882 = vpack.c.b16 %v1868, %v1867
        %v1883 = vpack.c.b16 %v1870, %v1869
        %v1884 = vpack.c.b16 %v1872, %v1871
        %v1885 = vpack.c.b16 %v1874, %v1873
        %v1886 = vpack.c.b16 %v1876, %v1875
        %v1887 = vpack.c.b16 %v1878, %v1877
        %v1888 = vpack.c.b16 %v1880, %v1879
        %1897 = vmatprep.subr.bf16.mxu0 0
        %1898 = vmatpush1.bf16.msra.mxu0 %v1881
        %1899 = vmatprep.subr.bf16.mxu0 0
        %1900 = vmatpush1.bf16.msra.mxu0 %v1882
        %1901 = vmatprep.subr.bf16.mxu0 0
        %1902 = vmatpush1.bf16.msra.mxu0 %v1883
        %1903 = vmatprep.subr.bf16.mxu0 0
        %1904 = vmatpush1.bf16.msra.mxu0 %v1884
        %1905 = vmatprep.subr.bf16.mxu0 0
        %1906 = vmatpush1.bf16.msra.mxu0 %v1885
        %1907 = vmatprep.subr.bf16.mxu0 0
        %1908 = vmatpush1.bf16.msra.mxu0 %v1886
        %1909 = vmatprep.subr.bf16.mxu0 0
        %1910 = vmatpush1.bf16.msra.mxu0 %v1887
        %1911 = vmatprep.subr.bf16.mxu0 0
        %1912 = vmatpush1.bf16.msra.mxu0 %v1888
        %1913 = vmatprep.subr.bf16.mxu0 0
        %1914 = vmatpush1.bf16.msra.mxu0 0
        %1915 = vmatprep.subr.bf16.mxu0 0
        %1916 = vmatpush1.bf16.msra.mxu0 0
        %1917 = vmatprep.subr.bf16.mxu0 0
        %1918 = vmatpush1.bf16.msra.mxu0 0
        %1919 = vmatprep.subr.bf16.mxu0 0
        %1920 = vmatpush1.bf16.msra.mxu0 0
        %1921 = vmatprep.subr.bf16.mxu0 0
        %1922 = vmatpush1.bf16.msra.mxu0 0
        %1923 = vmatprep.subr.bf16.mxu0 0
        %1924 = vmatpush1.bf16.msra.mxu0 0
        %1925 = vmatprep.subr.bf16.mxu0 0
        %1926 = vmatpush1.bf16.msra.mxu0 0
        %1927 = vmatprep.subr.bf16.mxu0 0
        %1928 = vmatpush1.bf16.msra.mxu0 0
        %1929 = vmatprep.mubr.bf16.mxu0 0
        %1930 = vmatmul.mubr.bf16.gmra.mrb[0].mxu0 %v1825
        %v1931 = vpop.f32.mrb[0].mxu0
        %v1932 = vadd.f32 %v1847, %v1931
        %v1933 = vpop.f32.mrb[0].mxu0
        %v1934 = vpop.f32.mrb[0].mxu0
        %v1935 = vpop.f32.mrb[0].mxu0
        %1936 = vdwg.mxu0
        %v1937 = vadd.f32 %v1714, %v1932
        %v1938 = vld [vmem:[%s14] sm:$0x1]
        %v1939 = vld [vmem:[%s15] sm:$0x1]
        %v1940 = vsel %vm777, %v1937, 0.0
        %1941 = vadd.xlane.f32.xlu0 %v1940
        %v1942 = vpop.xlane.xlu0 %1941
        %v1943 = vmul.f32 %v1942, %v781
        %v1944 = vsub.f32 %v1937, %v1943
        %v1945 = vmul.f32 %v1944, %v1944
        %v1946 = vsel %vm777, %v1945, 0.0
        %1947 = vadd.xlane.f32.xlu0 %v1946
        %v1948 = vpop.xlane.xlu0 %1947
        %v1949 = vmul.f32 %v1948, %v781
        %v1950 = vadd.f32 %v1949, 1e-12
        %v1951 = vrsqrt.pop %v1950
        %v1952 = vmul.f32 %v1944, %v1951
        %v1954 = vlaneseq
        %v1955 = vshrl.u32 %v1954, 7
        %v1956 = vsub.s32 0, %v1955
        %v1957 = vrot.slane %v1938, %v1956
        %v1959 = vmul.f32 %v1952, %v1957
        %v1961 = vlaneseq
        %v1962 = vshrl.u32 %v1961, 7
        %v1963 = vsub.s32 0, %v1962
        %v1964 = vrot.slane %v1939, %v1963
        %v1966 = vadd.f32 %v1959, %v1964
        %v1967 = vpack.c.bf16 %v1966, %v1966
        %s1968 = scalar_lea.vmem %s4, 64
        %v1969 = vld [vmem:[%s1968] sm:$0xff]
        %v1970 = vld [vmem:[%s1968 + $0x8] sm:$0xff]
        %v1971 = vld [vmem:[%s1968 + $0x10] sm:$0xff]
        %v1972 = vld [vmem:[%s1968 + $0x18] sm:$0xff]
        %v1973 = vld [vmem:[%s1968 + $0x20] sm:$0xff]
        %v1974 = vld [vmem:[%s1968 + $0x28] sm:$0xff]
        %v1975 = vld [vmem:[%s1968 + $0x30] sm:$0xff]
        %v1976 = vld [vmem:[%s1968 + $0x38] sm:$0xff]
        %s1977 = scalar_lea.vmem %s5, 2
        %v1978 = vld [vmem:[%s1977] sm:$0x3]
        %v1980 = vlaneseq
        %v1981 = vshrl.u32 %v1980, 7
        %v1982 = vsub.s32 0, %v1981
        %v1983 = vrot.slane %v1978, %v1982
        %v1984 = vlaneseq
        %v1985 = vshrl.u32 %v1984, 7
        %v1986 = vsub.s32 1, %v1985
        %v1987 = vrot.slane %v1978, %v1986
        %v1998 = vunpack.c.l.b16 %v1969
        %v1999 = vunpack.c.h.b16 %v1969
        %v2000 = vunpack.c.l.b16 %v1970
        %v2001 = vunpack.c.h.b16 %v1970
        %v2002 = vunpack.c.l.b16 %v1971
        %v2003 = vunpack.c.h.b16 %v1971
        %v2004 = vunpack.c.l.b16 %v1972
        %v2005 = vunpack.c.h.b16 %v1972
        %v2006 = vunpack.c.l.b16 %v1973
        %v2007 = vunpack.c.h.b16 %v1973
        %v2008 = vunpack.c.l.b16 %v1974
        %v2009 = vunpack.c.h.b16 %v1974
        %v2010 = vunpack.c.l.b16 %v1975
        %v2011 = vunpack.c.h.b16 %v1975
        %v2012 = vunpack.c.l.b16 %v1976
        %v2013 = vunpack.c.h.b16 %v1976
        %v2014 = vpack.c.b16 %v2000, %v1998
        %v2015 = vpack.c.b16 %v2001, %v1999
        %v2016 = vpack.c.b16 %v2004, %v2002
        %v2017 = vpack.c.b16 %v2005, %v2003
        %v2018 = vpack.c.b16 %v2008, %v2006
        %v2019 = vpack.c.b16 %v2009, %v2007
        %v2020 = vpack.c.b16 %v2012, %v2010
        %v2021 = vpack.c.b16 %v2013, %v2011
        %v2031 = vsel %vm777, %v1967, 0
        %2033 = vmatprep.subr.bf16.mxu0 %v2015
        %2034 = vmatpush1.bf16.msra.mxu0 %v2014
        %2035 = vmatprep.subr.bf16.mxu0 %v2017
        %2036 = vmatpush1.bf16.msra.mxu0 %v2016
        %2037 = vmatprep.subr.bf16.mxu0 %v2019
        %2038 = vmatpush1.bf16.msra.mxu0 %v2018
        %2039 = vmatprep.subr.bf16.mxu0 %v2021
        %2040 = vmatpush1.bf16.msra.mxu0 %v2020
        %2041 = vmatprep.subr.bf16.mxu0 0
        %2042 = vmatpush1.bf16.msra.mxu0 0
        %2043 = vmatprep.subr.bf16.mxu0 0
        %2044 = vmatpush1.bf16.msra.mxu0 0
        %2045 = vmatprep.subr.bf16.mxu0 0
        %2046 = vmatpush1.bf16.msra.mxu0 0
        %2047 = vmatprep.subr.bf16.mxu0 0
        %2048 = vmatpush1.bf16.msra.mxu0 0
        %2049 = vmatprep.subr.bf16.mxu0 0
        %2050 = vmatpush1.bf16.msra.mxu0 0
        %2051 = vmatprep.subr.bf16.mxu0 0
        %2052 = vmatpush1.bf16.msra.mxu0 0
        %2053 = vmatprep.subr.bf16.mxu0 0
        %2054 = vmatpush1.bf16.msra.mxu0 0
        %2055 = vmatprep.subr.bf16.mxu0 0
        %2056 = vmatpush1.bf16.msra.mxu0 0
        %2057 = vmatprep.subr.bf16.mxu0 0
        %2058 = vmatpush1.bf16.msra.mxu0 0
        %2059 = vmatprep.subr.bf16.mxu0 0
        %2060 = vmatpush1.bf16.msra.mxu0 0
        %2061 = vmatprep.subr.bf16.mxu0 0
        %2062 = vmatpush1.bf16.msra.mxu0 0
        %2063 = vmatprep.subr.bf16.mxu0 0
        %2064 = vmatpush1.bf16.msra.mxu0 0
        %2065 = vmatprep.mubr.bf16.mxu0 0
        %2066 = vmatmul.mubr.bf16.gmra.mrb[0].mxu0 %v2031
        %v2067 = vpop.f32.mrb[0].mxu0
        %v2068 = vadd.f32 %v1983, %v2067
        %v2069 = vpop.f32.mrb[0].mxu0
        %v2070 = vadd.f32 %v1987, %v2069
        %v2071 = vpop.f32.mrb[0].mxu0
        %v2072 = vpop.f32.mrb[0].mxu0
        %2073 = vdwg.mxu0
        %2075 = vrot.lane.b32.xlu0 %v2068, 64
        %v2076 = vpop.permute.xlu0 %2075
        %v2077 = vsel %vm921, %v2068, 0
        %v2079 = vsel %vm921, %v2076, 0
        %2081 = vmatprep.subr.mxu0 0.0
        %2082 = vmatpush1.xpose.msra.mxu0 %v2079
        %2083 = vmatprep.subr.mxu0 0.0
        %2084 = vmatpush1.xpose.msra.mxu0 0.0
        %2085 = vmatprep.subr.mxu0 0.0
        %2086 = vmatpush1.xpose.msra.mxu0 0.0
        %2087 = vmatprep.subr.mxu0 0.0
        %2088 = vmatpush1.xpose.msra.mxu0 0.0
        %2089 = vmatprep.subr.mxu0 0.0
        %2090 = vmatpush1.xpose.msra.mxu0 0.0
        %2091 = vmatprep.subr.mxu0 0.0
        %2092 = vmatpush1.xpose.msra.mxu0 0.0
        %2093 = vmatprep.subr.mxu0 0.0
        %2094 = vmatpush1.xpose.msra.mxu0 0.0
        %2095 = vmatprep.subr.mxu0 0.0
        %2096 = vmatpush1.xpose.msra.mxu0 0.0
        %2097 = vmatprep.subr.mxu0 0.0
        %2098 = vmatpush1.xpose.msra.mxu0 0.0
        %2099 = vmatprep.subr.mxu0 0.0
        %2100 = vmatpush1.xpose.msra.mxu0 0.0
        %2101 = vmatprep.subr.mxu0 0.0
        %2102 = vmatpush1.xpose.msra.mxu0 0.0
        %2103 = vmatprep.subr.mxu0 0.0
        %2104 = vmatpush1.xpose.msra.mxu0 0.0
        %2105 = vmatprep.subr.mxu0 0.0
        %2106 = vmatpush1.xpose.msra.mxu0 0.0
        %2107 = vmatprep.subr.mxu0 0.0
        %2108 = vmatpush1.xpose.msra.mxu0 0.0
        %2109 = vmatprep.subr.mxu0 0.0
        %2110 = vmatpush1.xpose.msra.mxu0 0.0
        %2111 = vmatprep.subr.mxu0 0.0
        %2112 = vmatpush1.xpose.msra.mxu0 0.0
        %2113 = vmatprep.subr.mxu0 0.0
        %2114 = vmatpush1.xpose.msra.mxu0 0.0
        %2115 = vmatprep.subr.mxu0 0.0
        %2116 = vmatpush1.xpose.msra.mxu0 0.0
        %2117 = vmatprep.subr.mxu0 0.0
        %2118 = vmatpush1.xpose.msra.mxu0 0.0
        %2119 = vmatprep.subr.mxu0 0.0
        %2120 = vmatpush1.xpose.msra.mxu0 0.0
        %2121 = vmatprep.subr.mxu0 0.0
        %2122 = vmatpush1.xpose.msra.mxu0 0.0
        %2123 = vmatprep.subr.mxu0 0.0
        %2124 = vmatpush1.xpose.msra.mxu0 0.0
        %2125 = vmatprep.subr.mxu0 0.0
        %2126 = vmatpush1.xpose.msra.mxu0 0.0
        %2127 = vmatprep.subr.mxu0 0.0
        %2128 = vmatpush1.xpose.msra.mxu0 0.0
        %2129 = vmatprep.subr.mxu0 0.0
        %2130 = vmatpush1.xpose.msra.mxu0 0.0
        %2131 = vmatprep.subr.mxu0 0.0
        %2132 = vmatpush1.xpose.msra.mxu0 0.0
        %2133 = vmatprep.subr.mxu0 0.0
        %2134 = vmatpush1.xpose.msra.mxu0 0.0
        %2135 = vmatprep.subr.mxu0 0.0
        %2136 = vmatpush1.xpose.msra.mxu0 0.0
        %2137 = vmatprep.subr.mxu0 0.0
        %2138 = vmatpush1.xpose.msra.mxu0 0.0
        %2139 = vmatprep.subr.mxu0 0.0
        %2140 = vmatpush1.xpose.msra.mxu0 0.0
        %2141 = vmatprep.subr.mxu0 0.0
        %2142 = vmatpush1.xpose.msra.mxu0 0.0
        %2143 = vmatprep.subr.mxu0 0.0
        %2144 = vmatpush1.xpose.msra.mxu0 0.0
        %2145 = vmatprep.mubr.f32.mxu0 0.0
        %2146 = vmatmul.mubr.f32.gmra.mrb[0].mxu0 %v2077
        %v2147 = vpop.f32.mrb[0].mxu0
        %v2148 = vadd.f32 0.0, %v2147
        %v2149 = vpop.f32.mrb[0].mxu0
        %2150 = vdwg.mxu0
        %v2151 = vmul.f32 %v2148, 0.25
        %v2152 = vadd.f32 %v2151, %v811
        %v2153 = vsel %vm998, %v2152, -inf
        %2154 = vmax.xlane.f32.xlu0 %v2153
        %v2155 = vpop.xlane.xlu0 %2154
        %v2156 = vsub.f32 %v2152, %v2155
        %v2157 = vmul.f32 %v2156, 1.442695
        %v2158 = vpow.pop %v2157
        %v2159 = vsel %vm998, %v2158, 0.0
        %2160 = vadd.xlane.f32.xlu0 %v2159
        %v2161 = vpop.xlane.xlu0 %2160
        %v2162 = vrcp.pop %v2161
        %v2163 = vmul.f32 %v2158, %v2162
        %v2165 = vsel %vm998, %v2163, 0
        %2167 = vmatprep.subr.mxu0 0.0
        %2168 = vmatpush1.msra.mxu0 %v2070
        %2169 = vmatprep.subr.mxu0 0.0
        %2170 = vmatpush1.msra.mxu0 0.0
        %2171 = vmatprep.subr.mxu0 0.0
        %2172 = vmatpush1.msra.mxu0 0.0
        %2173 = vmatprep.subr.mxu0 0.0
        %2174 = vmatpush1.msra.mxu0 0.0
        %2175 = vmatprep.subr.mxu0 0.0
        %2176 = vmatpush1.msra.mxu0 0.0
        %2177 = vmatprep.subr.mxu0 0.0
        %2178 = vmatpush1.msra.mxu0 0.0
        %2179 = vmatprep.subr.mxu0 0.0
        %2180 = vmatpush1.msra.mxu0 0.0
        %2181 = vmatprep.subr.mxu0 0.0
        %2182 = vmatpush1.msra.mxu0 0.0
        %2183 = vmatprep.subr.mxu0 0.0
        %2184 = vmatpush1.msra.mxu0 0.0
        %2185 = vmatprep.subr.mxu0 0.0
        %2186 = vmatpush1.msra.mxu0 0.0
        %2187 = vmatprep.subr.mxu0 0.0
        %2188 = vmatpush1.msra.mxu0 0.0
        %2189 = vmatprep.subr.mxu0 0.0
        %2190 = vmatpush1.msra.mxu0 0.0
        %2191 = vmatprep.subr.mxu0 0.0
        %2192 = vmatpush1.msra.mxu0 0.0
        %2193 = vmatprep.subr.mxu0 0.0
        %2194 = vmatpush1.msra.mxu0 0.0
        %2195 = vmatprep.subr.mxu0 0.0
        %2196 = vmatpush1.msra.mxu0 0.0
        %2197 = vmatprep.subr.mxu0 0.0
        %2198 = vmatpush1.msra.mxu0 0.0
        %2199 = vmatprep.subr.mxu0 0.0
        %2200 = vmatpush1.msra.mxu0 0.0
        %2201 = vmatprep.subr.mxu0 0.0
        %2202 = vmatpush1.msra.mxu0 0.0
        %2203 = vmatprep.subr.mxu0 0.0
        %2204 = vmatpush1.msra.mxu0 0.0
        %2205 = vmatprep.subr.mxu0 0.0
        %2206 = vmatpush1.msra.mxu0 0.0
        %2207 = vmatprep.subr.mxu0 0.0
        %2208 = vmatpush1.msra.mxu0 0.0
        %2209 = vmatprep.subr.mxu0 0.0
        %2210 = vmatpush1.msra.mxu0 0.0
        %2211 = vmatprep.subr.mxu0 0.0
        %2212 = vmatpush1.msra.mxu0 0.0
        %2213 = vmatprep.subr.mxu0 0.0
        %2214 = vmatpush1.msra.mxu0 0.0
        %2215 = vmatprep.subr.mxu0 0.0
        %2216 = vmatpush1.msra.mxu0 0.0
        %2217 = vmatprep.subr.mxu0 0.0
        %2218 = vmatpush1.msra.mxu0 0.0
        %2219 = vmatprep.subr.mxu0 0.0
        %2220 = vmatpush1.msra.mxu0 0.0
        %2221 = vmatprep.subr.mxu0 0.0
        %2222 = vmatpush1.msra.mxu0 0.0
        %2223 = vmatprep.subr.mxu0 0.0
        %2224 = vmatpush1.msra.mxu0 0.0
        %2225 = vmatprep.subr.mxu0 0.0
        %2226 = vmatpush1.msra.mxu0 0.0
        %2227 = vmatprep.subr.mxu0 0.0
        %2228 = vmatpush1.msra.mxu0 0.0
        %2229 = vmatprep.subr.mxu0 0.0
        %2230 = vmatpush1.msra.mxu0 0.0
        %2231 = vmatprep.mubr.f32.mxu0 0.0
        %2232 = vmatmul.mubr.f32.gmra.mrb[0].mxu0 %v2165
        %v2233 = vpop.f32.mrb[0].mxu0
        %v2234 = vadd.f32 0.0, %v2233
        %v2235 = vpop.f32.mrb[0].mxu0
        %2236 = vdwg.mxu0
        %2237 = vrot.lane.b32.xlu0 %v2068, 112
        %v2238 = vpop.permute.xlu0 %2237
        %2239 = vrot.lane.b32.xlu0 %v2068, 48
        %v2240 = vpop.permute.xlu0 %2239
        %v2241 = vsel %vm921, %v2238, 0
        %v2243 = vsel %vm921, %v2240, 0
        %2245 = vmatprep.subr.mxu0 0.0
        %2246 = vmatpush1.xpose.msra.mxu0 %v2243
        %2247 = vmatprep.subr.mxu0 0.0
        %2248 = vmatpush1.xpose.msra.mxu0 0.0
        %2249 = vmatprep.subr.mxu0 0.0
        %2250 = vmatpush1.xpose.msra.mxu0 0.0
        %2251 = vmatprep.subr.mxu0 0.0
        %2252 = vmatpush1.xpose.msra.mxu0 0.0
        %2253 = vmatprep.subr.mxu0 0.0
        %2254 = vmatpush1.xpose.msra.mxu0 0.0
        %2255 = vmatprep.subr.mxu0 0.0
        %2256 = vmatpush1.xpose.msra.mxu0 0.0
        %2257 = vmatprep.subr.mxu0 0.0
        %2258 = vmatpush1.xpose.msra.mxu0 0.0
        %2259 = vmatprep.subr.mxu0 0.0
        %2260 = vmatpush1.xpose.msra.mxu0 0.0
        %2261 = vmatprep.subr.mxu0 0.0
        %2262 = vmatpush1.xpose.msra.mxu0 0.0
        %2263 = vmatprep.subr.mxu0 0.0
        %2264 = vmatpush1.xpose.msra.mxu0 0.0
        %2265 = vmatprep.subr.mxu0 0.0
        %2266 = vmatpush1.xpose.msra.mxu0 0.0
        %2267 = vmatprep.subr.mxu0 0.0
        %2268 = vmatpush1.xpose.msra.mxu0 0.0
        %2269 = vmatprep.subr.mxu0 0.0
        %2270 = vmatpush1.xpose.msra.mxu0 0.0
        %2271 = vmatprep.subr.mxu0 0.0
        %2272 = vmatpush1.xpose.msra.mxu0 0.0
        %2273 = vmatprep.subr.mxu0 0.0
        %2274 = vmatpush1.xpose.msra.mxu0 0.0
        %2275 = vmatprep.subr.mxu0 0.0
        %2276 = vmatpush1.xpose.msra.mxu0 0.0
        %2277 = vmatprep.subr.mxu0 0.0
        %2278 = vmatpush1.xpose.msra.mxu0 0.0
        %2279 = vmatprep.subr.mxu0 0.0
        %2280 = vmatpush1.xpose.msra.mxu0 0.0
        %2281 = vmatprep.subr.mxu0 0.0
        %2282 = vmatpush1.xpose.msra.mxu0 0.0
        %2283 = vmatprep.subr.mxu0 0.0
        %2284 = vmatpush1.xpose.msra.mxu0 0.0
        %2285 = vmatprep.subr.mxu0 0.0
        %2286 = vmatpush1.xpose.msra.mxu0 0.0
        %2287 = vmatprep.subr.mxu0 0.0
        %2288 = vmatpush1.xpose.msra.mxu0 0.0
        %2289 = vmatprep.subr.mxu0 0.0
        %2290 = vmatpush1.xpose.msra.mxu0 0.0
        %2291 = vmatprep.subr.mxu0 0.0
        %2292 = vmatpush1.xpose.msra.mxu0 0.0
        %2293 = vmatprep.subr.mxu0 0.0
        %2294 = vmatpush1.xpose.msra.mxu0 0.0
        %2295 = vmatprep.subr.mxu0 0.0
        %2296 = vmatpush1.xpose.msra.mxu0 0.0
        %2297 = vmatprep.subr.mxu0 0.0
        %2298 = vmatpush1.xpose.msra.mxu0 0.0
        %2299 = vmatprep.subr.mxu0 0.0
        %2300 = vmatpush1.xpose.msra.mxu0 0.0
        %2301 = vmatprep.subr.mxu0 0.0
        %2302 = vmatpush1.xpose.msra.mxu0 0.0
        %2303 = vmatprep.subr.mxu0 0.0
        %2304 = vmatpush1.xpose.msra.mxu0 0.0
        %2305 = vmatprep.subr.mxu0 0.0
        %2306 = vmatpush1.xpose.msra.mxu0 0.0
        %2307 = vmatprep.subr.mxu0 0.0
        %2308 = vmatpush1.xpose.msra.mxu0 0.0
        %2309 = vmatprep.mubr.f32.mxu0 0.0
        %2310 = vmatmul.mubr.f32.gmra.mrb[0].mxu0 %v2241
        %v2311 = vpop.f32.mrb[0].mxu0
        %v2312 = vadd.f32 0.0, %v2311
        %v2313 = vpop.f32.mrb[0].mxu0
        %2314 = vdwg.mxu0
        %v2315 = vmul.f32 %v2312, 0.25
        %v2316 = vadd.f32 %v2315, %v811
        %v2317 = vsel %vm998, %v2316, -inf
        %2318 = vmax.xlane.f32.xlu0 %v2317
        %v2319 = vpop.xlane.xlu0 %2318
        %v2320 = vsub.f32 %v2316, %v2319
        %v2321 = vmul.f32 %v2320, 1.442695
        %v2322 = vpow.pop %v2321
        %v2323 = vsel %vm998, %v2322, 0.0
        %2324 = vadd.xlane.f32.xlu0 %v2323
        %v2325 = vpop.xlane.xlu0 %2324
        %v2326 = vrcp.pop %v2325
        %v2327 = vmul.f32 %v2322, %v2326
        %2329 = vrot.lane.b32.xlu0 %v2070, 112
        %v2330 = vpop.permute.xlu0 %2329
        %v2333 = vsel %vm998, %v2327, 0
        %2335 = vmatprep.subr.mxu0 0.0
        %2336 = vmatpush1.msra.mxu0 %v2330
        %2337 = vmatprep.subr.mxu0 0.0
        %2338 = vmatpush1.msra.mxu0 0.0
        %2339 = vmatprep.subr.mxu0 0.0
        %2340 = vmatpush1.msra.mxu0 0.0
        %2341 = vmatprep.subr.mxu0 0.0
        %2342 = vmatpush1.msra.mxu0 0.0
        %2343 = vmatprep.subr.mxu0 0.0
        %2344 = vmatpush1.msra.mxu0 0.0
        %2345 = vmatprep.subr.mxu0 0.0
        %2346 = vmatpush1.msra.mxu0 0.0
        %2347 = vmatprep.subr.mxu0 0.0
        %2348 = vmatpush1.msra.mxu0 0.0
        %2349 = vmatprep.subr.mxu0 0.0
        %2350 = vmatpush1.msra.mxu0 0.0
        %2351 = vmatprep.subr.mxu0 0.0
        %2352 = vmatpush1.msra.mxu0 0.0
        %2353 = vmatprep.subr.mxu0 0.0
        %2354 = vmatpush1.msra.mxu0 0.0
        %2355 = vmatprep.subr.mxu0 0.0
        %2356 = vmatpush1.msra.mxu0 0.0
        %2357 = vmatprep.subr.mxu0 0.0
        %2358 = vmatpush1.msra.mxu0 0.0
        %2359 = vmatprep.subr.mxu0 0.0
        %2360 = vmatpush1.msra.mxu0 0.0
        %2361 = vmatprep.subr.mxu0 0.0
        %2362 = vmatpush1.msra.mxu0 0.0
        %2363 = vmatprep.subr.mxu0 0.0
        %2364 = vmatpush1.msra.mxu0 0.0
        %2365 = vmatprep.subr.mxu0 0.0
        %2366 = vmatpush1.msra.mxu0 0.0
        %2367 = vmatprep.subr.mxu0 0.0
        %2368 = vmatpush1.msra.mxu0 0.0
        %2369 = vmatprep.subr.mxu0 0.0
        %2370 = vmatpush1.msra.mxu0 0.0
        %2371 = vmatprep.subr.mxu0 0.0
        %2372 = vmatpush1.msra.mxu0 0.0
        %2373 = vmatprep.subr.mxu0 0.0
        %2374 = vmatpush1.msra.mxu0 0.0
        %2375 = vmatprep.subr.mxu0 0.0
        %2376 = vmatpush1.msra.mxu0 0.0
        %2377 = vmatprep.subr.mxu0 0.0
        %2378 = vmatpush1.msra.mxu0 0.0
        %2379 = vmatprep.subr.mxu0 0.0
        %2380 = vmatpush1.msra.mxu0 0.0
        %2381 = vmatprep.subr.mxu0 0.0
        %2382 = vmatpush1.msra.mxu0 0.0
        %2383 = vmatprep.subr.mxu0 0.0
        %2384 = vmatpush1.msra.mxu0 0.0
        %2385 = vmatprep.subr.mxu0 0.0
        %2386 = vmatpush1.msra.mxu0 0.0
        %2387 = vmatprep.subr.mxu0 0.0
        %2388 = vmatpush1.msra.mxu0 0.0
        %2389 = vmatprep.subr.mxu0 0.0
        %2390 = vmatpush1.msra.mxu0 0.0
        %2391 = vmatprep.subr.mxu0 0.0
        %2392 = vmatpush1.msra.mxu0 0.0
        %2393 = vmatprep.subr.mxu0 0.0
        %2394 = vmatpush1.msra.mxu0 0.0
        %2395 = vmatprep.subr.mxu0 0.0
        %2396 = vmatpush1.msra.mxu0 0.0
        %2397 = vmatprep.subr.mxu0 0.0
        %2398 = vmatpush1.msra.mxu0 0.0
        %2399 = vmatprep.mubr.f32.mxu0 0.0
        %2400 = vmatmul.mubr.f32.gmra.mrb[0].mxu0 %v2333
        %v2401 = vpop.f32.mrb[0].mxu0
        %v2402 = vadd.f32 0.0, %v2401
        %v2403 = vpop.f32.mrb[0].mxu0
        %2404 = vdwg.mxu0
        %2405 = vrot.lane.b32.xlu0 %v2068, 96
        %v2406 = vpop.permute.xlu0 %2405
        %2407 = vrot.lane.b32.xlu0 %v2068, 32
        %v2408 = vpop.permute.xlu0 %2407
        %v2409 = vsel %vm921, %v2406, 0
        %v2411 = vsel %vm921, %v2408, 0
        %2413 = vmatprep.subr.mxu0 0.0
        %2414 = vmatpush1.xpose.msra.mxu0 %v2411
        %2415 = vmatprep.subr.mxu0 0.0
        %2416 = vmatpush1.xpose.msra.mxu0 0.0
        %2417 = vmatprep.subr.mxu0 0.0
        %2418 = vmatpush1.xpose.msra.mxu0 0.0
        %2419 = vmatprep.subr.mxu0 0.0
        %2420 = vmatpush1.xpose.msra.mxu0 0.0
        %2421 = vmatprep.subr.mxu0 0.0
        %2422 = vmatpush1.xpose.msra.mxu0 0.0
        %2423 = vmatprep.subr.mxu0 0.0
        %2424 = vmatpush1.xpose.msra.mxu0 0.0
        %2425 = vmatprep.subr.mxu0 0.0
        %2426 = vmatpush1.xpose.msra.mxu0 0.0
        %2427 = vmatprep.subr.mxu0 0.0
        %2428 = vmatpush1.xpose.msra.mxu0 0.0
        %2429 = vmatprep.subr.mxu0 0.0
        %2430 = vmatpush1.xpose.msra.mxu0 0.0
        %2431 = vmatprep.subr.mxu0 0.0
        %2432 = vmatpush1.xpose.msra.mxu0 0.0
        %2433 = vmatprep.subr.mxu0 0.0
        %2434 = vmatpush1.xpose.msra.mxu0 0.0
        %2435 = vmatprep.subr.mxu0 0.0
        %2436 = vmatpush1.xpose.msra.mxu0 0.0
        %2437 = vmatprep.subr.mxu0 0.0
        %2438 = vmatpush1.xpose.msra.mxu0 0.0
        %2439 = vmatprep.subr.mxu0 0.0
        %2440 = vmatpush1.xpose.msra.mxu0 0.0
        %2441 = vmatprep.subr.mxu0 0.0
        %2442 = vmatpush1.xpose.msra.mxu0 0.0
        %2443 = vmatprep.subr.mxu0 0.0
        %2444 = vmatpush1.xpose.msra.mxu0 0.0
        %2445 = vmatprep.subr.mxu0 0.0
        %2446 = vmatpush1.xpose.msra.mxu0 0.0
        %2447 = vmatprep.subr.mxu0 0.0
        %2448 = vmatpush1.xpose.msra.mxu0 0.0
        %2449 = vmatprep.subr.mxu0 0.0
        %2450 = vmatpush1.xpose.msra.mxu0 0.0
        %2451 = vmatprep.subr.mxu0 0.0
        %2452 = vmatpush1.xpose.msra.mxu0 0.0
        %2453 = vmatprep.subr.mxu0 0.0
        %2454 = vmatpush1.xpose.msra.mxu0 0.0
        %2455 = vmatprep.subr.mxu0 0.0
        %2456 = vmatpush1.xpose.msra.mxu0 0.0
        %2457 = vmatprep.subr.mxu0 0.0
        %2458 = vmatpush1.xpose.msra.mxu0 0.0
        %2459 = vmatprep.subr.mxu0 0.0
        %2460 = vmatpush1.xpose.msra.mxu0 0.0
        %2461 = vmatprep.subr.mxu0 0.0
        %2462 = vmatpush1.xpose.msra.mxu0 0.0
        %2463 = vmatprep.subr.mxu0 0.0
        %2464 = vmatpush1.xpose.msra.mxu0 0.0
        %2465 = vmatprep.subr.mxu0 0.0
        %2466 = vmatpush1.xpose.msra.mxu0 0.0
        %2467 = vmatprep.subr.mxu0 0.0
        %2468 = vmatpush1.xpose.msra.mxu0 0.0
        %2469 = vmatprep.subr.mxu0 0.0
        %2470 = vmatpush1.xpose.msra.mxu0 0.0
        %2471 = vmatprep.subr.mxu0 0.0
        %2472 = vmatpush1.xpose.msra.mxu0 0.0
        %2473 = vmatprep.subr.mxu0 0.0
        %2474 = vmatpush1.xpose.msra.mxu0 0.0
        %2475 = vmatprep.subr.mxu0 0.0
        %2476 = vmatpush1.xpose.msra.mxu0 0.0
        %2477 = vmatprep.mubr.f32.mxu0 0.0
        %2478 = vmatmul.mubr.f32.gmra.mrb[0].mxu0 %v2409
        %v2479 = vpop.f32.mrb[0].mxu0
        %v2480 = vadd.f32 0.0, %v2479
        %v2481 = vpop.f32.mrb[0].mxu0
        %2482 = vdwg.mxu0
        %v2483 = vmul.f32 %v2480, 0.25
        %v2484 = vadd.f32 %v2483, %v811
        %v2485 = vsel %vm998, %v2484, -inf
        %2486 = vmax.xlane.f32.xlu0 %v2485
        %v2487 = vpop.xlane.xlu0 %2486
        %v2488 = vsub.f32 %v2484, %v2487
        %v2489 = vmul.f32 %v2488, 1.442695
        %v2490 = vpow.pop %v2489
        %v2491 = vsel %vm998, %v2490, 0.0
        %2492 = vadd.xlane.f32.xlu0 %v2491
        %v2493 = vpop.xlane.xlu0 %2492
        %v2494 = vrcp.pop %v2493
        %v2495 = vmul.f32 %v2490, %v2494
        %2496 = vrot.lane.b32.xlu0 %v2070, 96
        %v2497 = vpop.permute.xlu0 %2496
        %v2500 = vsel %vm998, %v2495, 0
        %2502 = vmatprep.subr.mxu0 0.0
        %2503 = vmatpush1.msra.mxu0 %v2497
        %2504 = vmatprep.subr.mxu0 0.0
        %2505 = vmatpush1.msra.mxu0 0.0
        %2506 = vmatprep.subr.mxu0 0.0
        %2507 = vmatpush1.msra.mxu0 0.0
        %2508 = vmatprep.subr.mxu0 0.0
        %2509 = vmatpush1.msra.mxu0 0.0
        %2510 = vmatprep.subr.mxu0 0.0
        %2511 = vmatpush1.msra.mxu0 0.0
        %2512 = vmatprep.subr.mxu0 0.0
        %2513 = vmatpush1.msra.mxu0 0.0
        %2514 = vmatprep.subr.mxu0 0.0
        %2515 = vmatpush1.msra.mxu0 0.0
        %2516 = vmatprep.subr.mxu0 0.0
        %2517 = vmatpush1.msra.mxu0 0.0
        %2518 = vmatprep.subr.mxu0 0.0
        %2519 = vmatpush1.msra.mxu0 0.0
        %2520 = vmatprep.subr.mxu0 0.0
        %2521 = vmatpush1.msra.mxu0 0.0
        %2522 = vmatprep.subr.mxu0 0.0
        %2523 = vmatpush1.msra.mxu0 0.0
        %2524 = vmatprep.subr.mxu0 0.0
        %2525 = vmatpush1.msra.mxu0 0.0
        %2526 = vmatprep.subr.mxu0 0.0
        %2527 = vmatpush1.msra.mxu0 0.0
        %2528 = vmatprep.subr.mxu0 0.0
        %2529 = vmatpush1.msra.mxu0 0.0
        %2530 = vmatprep.subr.mxu0 0.0
        %2531 = vmatpush1.msra.mxu0 0.0
        %2532 = vmatprep.subr.mxu0 0.0
        %2533 = vmatpush1.msra.mxu0 0.0
        %2534 = vmatprep.subr.mxu0 0.0
        %2535 = vmatpush1.msra.mxu0 0.0
        %2536 = vmatprep.subr.mxu0 0.0
        %2537 = vmatpush1.msra.mxu0 0.0
        %2538 = vmatprep.subr.mxu0 0.0
        %2539 = vmatpush1.msra.mxu0 0.0
        %2540 = vmatprep.subr.mxu0 0.0
        %2541 = vmatpush1.msra.mxu0 0.0
        %2542 = vmatprep.subr.mxu0 0.0
        %2543 = vmatpush1.msra.mxu0 0.0
        %2544 = vmatprep.subr.mxu0 0.0
        %2545 = vmatpush1.msra.mxu0 0.0
        %2546 = vmatprep.subr.mxu0 0.0
        %2547 = vmatpush1.msra.mxu0 0.0
        %2548 = vmatprep.subr.mxu0 0.0
        %2549 = vmatpush1.msra.mxu0 0.0
        %2550 = vmatprep.subr.mxu0 0.0
        %2551 = vmatpush1.msra.mxu0 0.0
        %2552 = vmatprep.subr.mxu0 0.0
        %2553 = vmatpush1.msra.mxu0 0.0
        %2554 = vmatprep.subr.mxu0 0.0
        %2555 = vmatpush1.msra.mxu0 0.0
        %2556 = vmatprep.subr.mxu0 0.0
        %2557 = vmatpush1.msra.mxu0 0.0
        %2558 = vmatprep.subr.mxu0 0.0
        %2559 = vmatpush1.msra.mxu0 0.0
        %2560 = vmatprep.subr.mxu0 0.0
        %2561 = vmatpush1.msra.mxu0 0.0
        %2562 = vmatprep.subr.mxu0 0.0
        %2563 = vmatpush1.msra.mxu0 0.0
        %2564 = vmatprep.subr.mxu0 0.0
        %2565 = vmatpush1.msra.mxu0 0.0
        %2566 = vmatprep.mubr.f32.mxu0 0.0
        %2567 = vmatmul.mubr.f32.gmra.mrb[0].mxu0 %v2500
        %v2568 = vpop.f32.mrb[0].mxu0
        %v2569 = vadd.f32 0.0, %v2568
        %v2570 = vpop.f32.mrb[0].mxu0
        %2571 = vdwg.mxu0
        %2572 = vrot.lane.b32.xlu0 %v2068, 80
        %v2573 = vpop.permute.xlu0 %2572
        %2574 = vrot.lane.b32.xlu0 %v2068, 16
        %v2575 = vpop.permute.xlu0 %2574
        %v2576 = vsel %vm921, %v2573, 0
        %v2578 = vsel %vm921, %v2575, 0
        %2580 = vmatprep.subr.mxu0 0.0
        %2581 = vmatpush1.xpose.msra.mxu0 %v2578
        %2582 = vmatprep.subr.mxu0 0.0
        %2583 = vmatpush1.xpose.msra.mxu0 0.0
        %2584 = vmatprep.subr.mxu0 0.0
        %2585 = vmatpush1.xpose.msra.mxu0 0.0
        %2586 = vmatprep.subr.mxu0 0.0
        %2587 = vmatpush1.xpose.msra.mxu0 0.0
        %2588 = vmatprep.subr.mxu0 0.0
        %2589 = vmatpush1.xpose.msra.mxu0 0.0
        %2590 = vmatprep.subr.mxu0 0.0
        %2591 = vmatpush1.xpose.msra.mxu0 0.0
        %2592 = vmatprep.subr.mxu0 0.0
        %2593 = vmatpush1.xpose.msra.mxu0 0.0
        %2594 = vmatprep.subr.mxu0 0.0
        %2595 = vmatpush1.xpose.msra.mxu0 0.0
        %2596 = vmatprep.subr.mxu0 0.0
        %2597 = vmatpush1.xpose.msra.mxu0 0.0
        %2598 = vmatprep.subr.mxu0 0.0
        %2599 = vmatpush1.xpose.msra.mxu0 0.0
        %2600 = vmatprep.subr.mxu0 0.0
        %2601 = vmatpush1.xpose.msra.mxu0 0.0
        %2602 = vmatprep.subr.mxu0 0.0
        %2603 = vmatpush1.xpose.msra.mxu0 0.0
        %2604 = vmatprep.subr.mxu0 0.0
        %2605 = vmatpush1.xpose.msra.mxu0 0.0
        %2606 = vmatprep.subr.mxu0 0.0
        %2607 = vmatpush1.xpose.msra.mxu0 0.0
        %2608 = vmatprep.subr.mxu0 0.0
        %2609 = vmatpush1.xpose.msra.mxu0 0.0
        %2610 = vmatprep.subr.mxu0 0.0
        %2611 = vmatpush1.xpose.msra.mxu0 0.0
        %2612 = vmatprep.subr.mxu0 0.0
        %2613 = vmatpush1.xpose.msra.mxu0 0.0
        %2614 = vmatprep.subr.mxu0 0.0
        %2615 = vmatpush1.xpose.msra.mxu0 0.0
        %2616 = vmatprep.subr.mxu0 0.0
        %2617 = vmatpush1.xpose.msra.mxu0 0.0
        %2618 = vmatprep.subr.mxu0 0.0
        %2619 = vmatpush1.xpose.msra.mxu0 0.0
        %2620 = vmatprep.subr.mxu0 0.0
        %2621 = vmatpush1.xpose.msra.mxu0 0.0
        %2622 = vmatprep.subr.mxu0 0.0
        %2623 = vmatpush1.xpose.msra.mxu0 0.0
        %2624 = vmatprep.subr.mxu0 0.0
        %2625 = vmatpush1.xpose.msra.mxu0 0.0
        %2626 = vmatprep.subr.mxu0 0.0
        %2627 = vmatpush1.xpose.msra.mxu0 0.0
        %2628 = vmatprep.subr.mxu0 0.0
        %2629 = vmatpush1.xpose.msra.mxu0 0.0
        %2630 = vmatprep.subr.mxu0 0.0
        %2631 = vmatpush1.xpose.msra.mxu0 0.0
        %2632 = vmatprep.subr.mxu0 0.0
        %2633 = vmatpush1.xpose.msra.mxu0 0.0
        %2634 = vmatprep.subr.mxu0 0.0
        %2635 = vmatpush1.xpose.msra.mxu0 0.0
        %2636 = vmatprep.subr.mxu0 0.0
        %2637 = vmatpush1.xpose.msra.mxu0 0.0
        %2638 = vmatprep.subr.mxu0 0.0
        %2639 = vmatpush1.xpose.msra.mxu0 0.0
        %2640 = vmatprep.subr.mxu0 0.0
        %2641 = vmatpush1.xpose.msra.mxu0 0.0
        %2642 = vmatprep.subr.mxu0 0.0
        %2643 = vmatpush1.xpose.msra.mxu0 0.0
        %2644 = vmatprep.mubr.f32.mxu0 0.0
        %2645 = vmatmul.mubr.f32.gmra.mrb[0].mxu0 %v2576
        %v2646 = vpop.f32.mrb[0].mxu0
        %v2647 = vadd.f32 0.0, %v2646
        %v2648 = vpop.f32.mrb[0].mxu0
        %2649 = vdwg.mxu0
        %v2650 = vmul.f32 %v2647, 0.25
        %v2651 = vadd.f32 %v2650, %v811
        %v2652 = vsel %vm998, %v2651, -inf
        %2653 = vmax.xlane.f32.xlu0 %v2652
        %v2654 = vpop.xlane.xlu0 %2653
        %v2655 = vsub.f32 %v2651, %v2654
        %v2656 = vmul.f32 %v2655, 1.442695
        %v2657 = vpow.pop %v2656
        %v2658 = vsel %vm998, %v2657, 0.0
        %2659 = vadd.xlane.f32.xlu0 %v2658
        %v2660 = vpop.xlane.xlu0 %2659
        %v2661 = vrcp.pop %v2660
        %v2662 = vmul.f32 %v2657, %v2661
        %2663 = vrot.lane.b32.xlu0 %v2070, 80
        %v2664 = vpop.permute.xlu0 %2663
        %v2667 = vsel %vm998, %v2662, 0
        %2669 = vmatprep.subr.mxu0 0.0
        %2670 = vmatpush1.msra.mxu0 %v2664
        %2671 = vmatprep.subr.mxu0 0.0
        %2672 = vmatpush1.msra.mxu0 0.0
        %2673 = vmatprep.subr.mxu0 0.0
        %2674 = vmatpush1.msra.mxu0 0.0
        %2675 = vmatprep.subr.mxu0 0.0
        %2676 = vmatpush1.msra.mxu0 0.0
        %2677 = vmatprep.subr.mxu0 0.0
        %2678 = vmatpush1.msra.mxu0 0.0
        %2679 = vmatprep.subr.mxu0 0.0
        %2680 = vmatpush1.msra.mxu0 0.0
        %2681 = vmatprep.subr.mxu0 0.0
        %2682 = vmatpush1.msra.mxu0 0.0
        %2683 = vmatprep.subr.mxu0 0.0
        %2684 = vmatpush1.msra.mxu0 0.0
        %2685 = vmatprep.subr.mxu0 0.0
        %2686 = vmatpush1.msra.mxu0 0.0
        %2687 = vmatprep.subr.mxu0 0.0
        %2688 = vmatpush1.msra.mxu0 0.0
        %2689 = vmatprep.subr.mxu0 0.0
        %2690 = vmatpush1.msra.mxu0 0.0
        %2691 = vmatprep.subr.mxu0 0.0
        %2692 = vmatpush1.msra.mxu0 0.0
        %2693 = vmatprep.subr.mxu0 0.0
        %2694 = vmatpush1.msra.mxu0 0.0
        %2695 = vmatprep.subr.mxu0 0.0
        %2696 = vmatpush1.msra.mxu0 0.0
        %2697 = vmatprep.subr.mxu0 0.0
        %2698 = vmatpush1.msra.mxu0 0.0
        %2699 = vmatprep.subr.mxu0 0.0
        %2700 = vmatpush1.msra.mxu0 0.0
        %2701 = vmatprep.subr.mxu0 0.0
        %2702 = vmatpush1.msra.mxu0 0.0
        %2703 = vmatprep.subr.mxu0 0.0
        %2704 = vmatpush1.msra.mxu0 0.0
        %2705 = vmatprep.subr.mxu0 0.0
        %2706 = vmatpush1.msra.mxu0 0.0
        %2707 = vmatprep.subr.mxu0 0.0
        %2708 = vmatpush1.msra.mxu0 0.0
        %2709 = vmatprep.subr.mxu0 0.0
        %2710 = vmatpush1.msra.mxu0 0.0
        %2711 = vmatprep.subr.mxu0 0.0
        %2712 = vmatpush1.msra.mxu0 0.0
        %2713 = vmatprep.subr.mxu0 0.0
        %2714 = vmatpush1.msra.mxu0 0.0
        %2715 = vmatprep.subr.mxu0 0.0
        %2716 = vmatpush1.msra.mxu0 0.0
        %2717 = vmatprep.subr.mxu0 0.0
        %2718 = vmatpush1.msra.mxu0 0.0
        %2719 = vmatprep.subr.mxu0 0.0
        %2720 = vmatpush1.msra.mxu0 0.0
        %2721 = vmatprep.subr.mxu0 0.0
        %2722 = vmatpush1.msra.mxu0 0.0
        %2723 = vmatprep.subr.mxu0 0.0
        %2724 = vmatpush1.msra.mxu0 0.0
        %2725 = vmatprep.subr.mxu0 0.0
        %2726 = vmatpush1.msra.mxu0 0.0
        %2727 = vmatprep.subr.mxu0 0.0
        %2728 = vmatpush1.msra.mxu0 0.0
        %2729 = vmatprep.subr.mxu0 0.0
        %2730 = vmatpush1.msra.mxu0 0.0
        %2731 = vmatprep.subr.mxu0 0.0
        %2732 = vmatpush1.msra.mxu0 0.0
        %2733 = vmatprep.mubr.f32.mxu0 0.0
        %2734 = vmatmul.mubr.f32.gmra.mrb[0].mxu0 %v2667
        %v2735 = vpop.f32.mrb[0].mxu0
        %v2736 = vadd.f32 0.0, %v2735
        %v2737 = vpop.f32.mrb[0].mxu0
        %2738 = vdwg.mxu0
        %2740 = vrot.lane.b32.xlu0 %v2402, 16
        %v2741 = vpop.permute.xlu0 %2740
        %2744 = vrot.lane.b32.xlu0 %v2569, 32
        %v2745 = vpop.permute.xlu0 %2744
        %2748 = vrot.lane.b32.xlu0 %v2736, 48
        %v2749 = vpop.permute.xlu0 %2748
        %v2751 = vsel %vm921, %v2234, %v2741
        %v2752 = vsel %vm1598, %v2751, %v2745
        %v2753 = vsel %vm1600, %v2752, %v2749
        %v2754 = vpack.c.bf16 %v2753, %v2753
        %s2755 = scalar_lea.vmem %s6, 32
        %v2756 = vld [vmem:[%s2755] sm:$0xf]
        %v2757 = vld [vmem:[%s2755 + $0x4] sm:$0xf]
        %v2758 = vld [vmem:[%s2755 + $0x8] sm:$0xf]
        %v2759 = vld [vmem:[%s2755 + $0xc] sm:$0xf]
        %v2760 = vld [vmem:[%s2755 + $0x10] sm:$0xf]
        %v2761 = vld [vmem:[%s2755 + $0x14] sm:$0xf]
        %v2762 = vld [vmem:[%s2755 + $0x18] sm:$0xf]
        %v2763 = vld [vmem:[%s2755 + $0x1c] sm:$0xf]
        %s2764 = scalar_lea.vmem %s7, 1
        %v2765 = vld [vmem:[%s2764] sm:$0x1]
        %v2767 = vlaneseq
        %v2768 = vshrl.u32 %v2767, 7
        %v2769 = vsub.s32 0, %v2768
        %v2770 = vrot.slane %v2765, %v2769
        %v2780 = vunpack.c.l.b16 %v2756
        %v2781 = vunpack.c.l.b16 %v2757
        %v2782 = vunpack.c.l.b16 %v2758
        %v2783 = vunpack.c.l.b16 %v2759
        %v2784 = vunpack.c.l.b16 %v2760
        %v2785 = vunpack.c.l.b16 %v2761
        %v2786 = vunpack.c.l.b16 %v2762
        %v2787 = vunpack.c.l.b16 %v2763
        %v2788 = vpack.c.b16 %v2781, %v2780
        %v2789 = vpack.c.b16 %v2783, %v2782
        %v2790 = vpack.c.b16 %v2785, %v2784
        %v2791 = vpack.c.b16 %v2787, %v2786
        %v2797 = vsel %vm777, %v2754, 0
        %2799 = vmatprep.subr.bf16.mxu0 0
        %2800 = vmatpush1.bf16.msra.mxu0 %v2788
        %2801 = vmatprep.subr.bf16.mxu0 0
        %2802 = vmatpush1.bf16.msra.mxu0 %v2789
        %2803 = vmatprep.subr.bf16.mxu0 0
        %2804 = vmatpush1.bf16.msra.mxu0 %v2790
        %2805 = vmatprep.subr.bf16.mxu0 0
        %2806 = vmatpush1.bf16.msra.mxu0 %v2791
        %2807 = vmatprep.subr.bf16.mxu0 0
        %2808 = vmatpush1.bf16.msra.mxu0 0
        %2809 = vmatprep.subr.bf16.mxu0 0
        %2810 = vmatpush1.bf16.msra.mxu0 0
        %2811 = vmatprep.subr.bf16.mxu0 0
        %2812 = vmatpush1.bf16.msra.mxu0 0
        %2813 = vmatprep.subr.bf16.mxu0 0
        %2814 = vmatpush1.bf16.msra.mxu0 0
        %2815 = vmatprep.subr.bf16.mxu0 0
        %2816 = vmatpush1.bf16.msra.mxu0 0
        %2817 = vmatprep.subr.bf16.mxu0 0
        %2818 = vmatpush1.bf16.msra.mxu0 0
        %2819 = vmatprep.subr.bf16.mxu0 0
        %2820 = vmatpush1.bf16.msra.mxu0 0
        %2821 = vmatprep.subr.bf16.mxu0 0
        %2822 = vmatpush1.bf16.msra.mxu0 0
        %2823 = vmatprep.subr.bf16.mxu0 0
        %2824 = vmatpush1.bf16.msra.mxu0 0
        %2825 = vmatprep.subr.bf16.mxu0 0
        %2826 = vmatpush1.bf16.msra.mxu0 0
        %2827 = vmatprep.subr.bf16.mxu0 0
        %2828 = vmatpush1.bf16.msra.mxu0 0
        %2829 = vmatprep.subr.bf16.mxu0 0
        %2830 = vmatpush1.bf16.msra.mxu0 0
        %2831 = vmatprep.mubr.bf16.mxu0 0
        %2832 = vmatmul.mubr.bf16.gmra.mrb[0].mxu0 %v2797
        %v2833 = vpop.f32.mrb[0].mxu0
        %v2834 = vadd.f32 %v2770, %v2833
        %v2835 = vpop.f32.mrb[0].mxu0
        %v2836 = vpop.f32.mrb[0].mxu0
        %v2837 = vpop.f32.mrb[0].mxu0
        %2838 = vdwg.mxu0
        %v2839 = vadd.f32 %v1966, %v2834
        %s2840 = scalar_lea.vmem %s8, 1
        %v2841 = vld [vmem:[%s2840] sm:$0x1]
        %s2842 = scalar_lea.vmem %s9, 1
        %v2843 = vld [vmem:[%s2842] sm:$0x1]
        %v2844 = vsel %vm777, %v2839, 0.0
        %2845 = vadd.xlane.f32.xlu0 %v2844
        %v2846 = vpop.xlane.xlu0 %2845
        %v2847 = vmul.f32 %v2846, %v781
        %v2848 = vsub.f32 %v2839, %v2847
        %v2849 = vmul.f32 %v2848, %v2848
        %v2850 = vsel %vm777, %v2849, 0.0
        %2851 = vadd.xlane.f32.xlu0 %v2850
        %v2852 = vpop.xlane.xlu0 %2851
        %v2853 = vmul.f32 %v2852, %v781
        %v2854 = vadd.f32 %v2853, 1e-12
        %v2855 = vrsqrt.pop %v2854
        %v2856 = vmul.f32 %v2848, %v2855
        %v2858 = vlaneseq
        %v2859 = vshrl.u32 %v2858, 7
        %v2860 = vsub.s32 0, %v2859
        %v2861 = vrot.slane %v2841, %v2860
        %v2863 = vmul.f32 %v2856, %v2861
        %v2865 = vlaneseq
        %v2866 = vshrl.u32 %v2865, 7
        %v2867 = vsub.s32 0, %v2866
        %v2868 = vrot.slane %v2843, %v2867
        %v2870 = vadd.f32 %v2863, %v2868
        %v2871 = vpack.c.bf16 %v2870, %v2870
        %s2872 = scalar_lea.vmem %s10, 32
        %v2873 = vld [vmem:[%s2872] sm:$0xf]
        %v2874 = vld [vmem:[%s2872 + $0x4] sm:$0xf]
        %v2875 = vld [vmem:[%s2872 + $0x8] sm:$0xf]
        %v2876 = vld [vmem:[%s2872 + $0xc] sm:$0xf]
        %v2877 = vld [vmem:[%s2872 + $0x10] sm:$0xf]
        %v2878 = vld [vmem:[%s2872 + $0x14] sm:$0xf]
        %v2879 = vld [vmem:[%s2872 + $0x18] sm:$0xf]
        %v2880 = vld [vmem:[%s2872 + $0x1c] sm:$0xf]
        %s2881 = scalar_lea.vmem %s11, 1
        %v2882 = vld [vmem:[%s2881] sm:$0x1]
        %v2884 = vlaneseq
        %v2885 = vshrl.u32 %v2884, 7
        %v2886 = vsub.s32 0, %v2885
        %v2887 = vrot.slane %v2882, %v2886
        %v2897 = vunpack.c.l.b16 %v2873
        %v2898 = vunpack.c.l.b16 %v2874
        %v2899 = vunpack.c.l.b16 %v2875
        %v2900 = vunpack.c.l.b16 %v2876
        %v2901 = vunpack.c.l.b16 %v2877
        %v2902 = vunpack.c.l.b16 %v2878
        %v2903 = vunpack.c.l.b16 %v2879
        %v2904 = vunpack.c.l.b16 %v2880
        %v2905 = vpack.c.b16 %v2898, %v2897
        %v2906 = vpack.c.b16 %v2900, %v2899
        %v2907 = vpack.c.b16 %v2902, %v2901
        %v2908 = vpack.c.b16 %v2904, %v2903
        %v2914 = vsel %vm777, %v2871, 0
        %2916 = vmatprep.subr.bf16.mxu0 0
        %2917 = vmatpush1.bf16.msra.mxu0 %v2905
        %2918 = vmatprep.subr.bf16.mxu0 0
        %2919 = vmatpush1.bf16.msra.mxu0 %v2906
        %2920 = vmatprep.subr.bf16.mxu0 0
        %2921 = vmatpush1.bf16.msra.mxu0 %v2907
        %2922 = vmatprep.subr.bf16.mxu0 0
        %2923 = vmatpush1.bf16.msra.mxu0 %v2908
        %2924 = vmatprep.subr.bf16.mxu0 0
        %2925 = vmatpush1.bf16.msra.mxu0 0
        %2926 = vmatprep.subr.bf16.mxu0 0
        %2927 = vmatpush1.bf16.msra.mxu0 0
        %2928 = vmatprep.subr.bf16.mxu0 0
        %2929 = vmatpush1.bf16.msra.mxu0 0
        %2930 = vmatprep.subr.bf16.mxu0 0
        %2931 = vmatpush1.bf16.msra.mxu0 0
        %2932 = vmatprep.subr.bf16.mxu0 0
        %2933 = vmatpush1.bf16.msra.mxu0 0
        %2934 = vmatprep.subr.bf16.mxu0 0
        %2935 = vmatpush1.bf16.msra.mxu0 0
        %2936 = vmatprep.subr.bf16.mxu0 0
        %2937 = vmatpush1.bf16.msra.mxu0 0
        %2938 = vmatprep.subr.bf16.mxu0 0
        %2939 = vmatpush1.bf16.msra.mxu0 0
        %2940 = vmatprep.subr.bf16.mxu0 0
        %2941 = vmatpush1.bf16.msra.mxu0 0
        %2942 = vmatprep.subr.bf16.mxu0 0
        %2943 = vmatpush1.bf16.msra.mxu0 0
        %2944 = vmatprep.subr.bf16.mxu0 0
        %2945 = vmatpush1.bf16.msra.mxu0 0
        %2946 = vmatprep.subr.bf16.mxu0 0
        %2947 = vmatpush1.bf16.msra.mxu0 0
        %2948 = vmatprep.mubr.bf16.mxu0 0
        %2949 = vmatmul.mubr.bf16.gmra.mrb[0].mxu0 %v2914
        %v2950 = vpop.f32.mrb[0].mxu0
        %v2951 = vadd.f32 %v2887, %v2950
        %v2952 = vpop.f32.mrb[0].mxu0
        %v2953 = vpop.f32.mrb[0].mxu0
        %v2954 = vpop.f32.mrb[0].mxu0
        %2955 = vdwg.mxu0
        %v2956 = vmul.f32 %v2951, 0.5
        %v2957 = vmul.f32 %v2951, 0.70710677
        %vm2958 = vcmp.ge.f32.partialorder %v2957, 0.0
        %v2959 = vsel %vm2958, 1.0, -1.0
        %v2960 = vand.u32 2147483647, %v2957
        %v2961 = vmul.f32 %v2960, 0.3275911
        %v2962 = vadd.f32 %v2961, 1.0
        %v2963 = vrcp.pop %v2962
        %v2964 = vmul.f32 1.0, %v2963
        %v2965 = vmul.f32 %v2964, 1.0614054
        %v2966 = vadd.f32 %v2965, -1.4531521
        %v2967 = vmul.f32 %v2964, %v2966
        %v2968 = vadd.f32 %v2967, 1.4214138
        %v2969 = vmul.f32 %v2964, %v2968
        %v2970 = vadd.f32 %v2969, -0.28449672
        %v2971 = vmul.f32 %v2964, %v2970
        %v2972 = vadd.f32 %v2971, 0.2548296
        %v2973 = vmul.f32 %v2964, %v2972
        %v2974 = vsub.f32 0.0, %v2960
        %v2975 = vmul.f32 %v2974, %v2960
        %v2976 = vmul.f32 %v2975, 1.442695
        %v2977 = vpow.pop %v2976
        %v2978 = vmul.f32 %v2973, %v2977
        %v2979 = vsub.f32 1.0, %v2978
        %v2980 = vmul.f32 %v2959, %v2979
        %v2981 = vadd.f32 %v2980, 1.0
        %v2982 = vmul.f32 %v2956, %v2981
        %v2983 = vpack.c.bf16 %v2982, %v2982
        %s2984 = scalar_lea.vmem %s12, 64
        %v2985 = vld [vmem:[%s2984] sm:$0xf]
        %v2986 = vld [vmem:[%s2984 + $0x4] sm:$0xf]
        %v2987 = vld [vmem:[%s2984 + $0x8] sm:$0xf]
        %v2988 = vld [vmem:[%s2984 + $0xc] sm:$0xf]
        %v2989 = vld [vmem:[%s2984 + $0x10] sm:$0xf]
        %v2990 = vld [vmem:[%s2984 + $0x14] sm:$0xf]
        %v2991 = vld [vmem:[%s2984 + $0x18] sm:$0xf]
        %v2992 = vld [vmem:[%s2984 + $0x1c] sm:$0xf]
        %v2993 = vld [vmem:[%s2984 + $0x20] sm:$0xf]
        %v2994 = vld [vmem:[%s2984 + $0x24] sm:$0xf]
        %v2995 = vld [vmem:[%s2984 + $0x28] sm:$0xf]
        %v2996 = vld [vmem:[%s2984 + $0x2c] sm:$0xf]
        %v2997 = vld [vmem:[%s2984 + $0x30] sm:$0xf]
        %v2998 = vld [vmem:[%s2984 + $0x34] sm:$0xf]
        %v2999 = vld [vmem:[%s2984 + $0x38] sm:$0xf]
        %v3000 = vld [vmem:[%s2984 + $0x3c] sm:$0xf]
        %s3001 = scalar_lea.vmem %s13, 1
        %v3002 = vld [vmem:[%s3001] sm:$0x1]
        %v3004 = vlaneseq
        %v3005 = vshrl.u32 %v3004, 7
        %v3006 = vsub.s32 0, %v3005
        %v3007 = vrot.slane %v3002, %v3006
        %v3025 = vunpack.c.l.b16 %v2985
        %v3026 = vunpack.c.l.b16 %v2986
        %v3027 = vunpack.c.l.b16 %v2987
        %v3028 = vunpack.c.l.b16 %v2988
        %v3029 = vunpack.c.l.b16 %v2989
        %v3030 = vunpack.c.l.b16 %v2990
        %v3031 = vunpack.c.l.b16 %v2991
        %v3032 = vunpack.c.l.b16 %v2992
        %v3033 = vunpack.c.l.b16 %v2993
        %v3034 = vunpack.c.l.b16 %v2994
        %v3035 = vunpack.c.l.b16 %v2995
        %v3036 = vunpack.c.l.b16 %v2996
        %v3037 = vunpack.c.l.b16 %v2997
        %v3038 = vunpack.c.l.b16 %v2998
        %v3039 = vunpack.c.l.b16 %v2999
        %v3040 = vunpack.c.l.b16 %v3000
        %v3041 = vpack.c.b16 %v3026, %v3025
        %v3042 = vpack.c.b16 %v3028, %v3027
        %v3043 = vpack.c.b16 %v3030, %v3029
        %v3044 = vpack.c.b16 %v3032, %v3031
        %v3045 = vpack.c.b16 %v3034, %v3033
        %v3046 = vpack.c.b16 %v3036, %v3035
        %v3047 = vpack.c.b16 %v3038, %v3037
        %v3048 = vpack.c.b16 %v3040, %v3039
        %3057 = vmatprep.subr.bf16.mxu0 0
        %3058 = vmatpush1.bf16.msra.mxu0 %v3041
        %3059 = vmatprep.subr.bf16.mxu0 0
        %3060 = vmatpush1.bf16.msra.mxu0 %v3042
        %3061 = vmatprep.subr.bf16.mxu0 0
        %3062 = vmatpush1.bf16.msra.mxu0 %v3043
        %3063 = vmatprep.subr.bf16.mxu0 0
        %3064 = vmatpush1.bf16.msra.mxu0 %v3044
        %3065 = vmatprep.subr.bf16.mxu0 0
        %3066 = vmatpush1.bf16.msra.mxu0 %v3045
        %3067 = vmatprep.subr.bf16.mxu0 0
        %3068 = vmatpush1.bf16.msra.mxu0 %v3046
        %3069 = vmatprep.subr.bf16.mxu0 0
        %3070 = vmatpush1.bf16.msra.mxu0 %v3047
        %3071 = vmatprep.subr.bf16.mxu0 0
        %3072 = vmatpush1.bf16.msra.mxu0 %v3048
        %3073 = vmatprep.subr.bf16.mxu0 0
        %3074 = vmatpush1.bf16.msra.mxu0 0
        %3075 = vmatprep.subr.bf16.mxu0 0
        %3076 = vmatpush1.bf16.msra.mxu0 0
        %3077 = vmatprep.subr.bf16.mxu0 0
        %3078 = vmatpush1.bf16.msra.mxu0 0
        %3079 = vmatprep.subr.bf16.mxu0 0
        %3080 = vmatpush1.bf16.msra.mxu0 0
        %3081 = vmatprep.subr.bf16.mxu0 0
        %3082 = vmatpush1.bf16.msra.mxu0 0
        %3083 = vmatprep.subr.bf16.mxu0 0
        %3084 = vmatpush1.bf16.msra.mxu0 0
        %3085 = vmatprep.subr.bf16.mxu0 0
        %3086 = vmatpush1.bf16.msra.mxu0 0
        %3087 = vmatprep.subr.bf16.mxu0 0
        %3088 = vmatpush1.bf16.msra.mxu0 0
        %3089 = vmatprep.mubr.bf16.mxu0 0
        %3090 = vmatmul.mubr.bf16.gmra.mrb[0].mxu0 %v2983
        %v3091 = vpop.f32.mrb[0].mxu0
        %v3092 = vadd.f32 %v3007, %v3091
        %v3093 = vpop.f32.mrb[0].mxu0
        %v3094 = vpop.f32.mrb[0].mxu0
        %v3095 = vpop.f32.mrb[0].mxu0
        %3096 = vdwg.mxu0
        %v3097 = vadd.f32 %v2870, %v3092
        %s3098 = scalar_lea.vmem %s14, 1
        %v3099 = vld [vmem:[%s3098] sm:$0x1]
        %s3100 = scalar_lea.vmem %s15, 1
        %v3101 = vld [vmem:[%s3100] sm:$0x1]
        %v3102 = vsel %vm777, %v3097, 0.0
        %3103 = vadd.xlane.f32.xlu0 %v3102
        %v3104 = vpop.xlane.xlu0 %3103
        %v3105 = vmul.f32 %v3104, %v781
        %v3106 = vsub.f32 %v3097, %v3105
        %v3107 = vmul.f32 %v3106, %v3106
        %v3108 = vsel %vm777, %v3107, 0.0
        %3109 = vadd.xlane.f32.xlu0 %v3108
        %v3110 = vpop.xlane.xlu0 %3109
        %v3111 = vmul.f32 %v3110, %v781
        %v3112 = vadd.f32 %v3111, 1e-12
        %v3113 = vrsqrt.pop %v3112
        %v3114 = vmul.f32 %v3106, %v3113
        %v3116 = vlaneseq
        %v3117 = vshrl.u32 %v3116, 7
        %v3118 = vsub.s32 0, %v3117
        %v3119 = vrot.slane %v3099, %v3118
        %v3121 = vmul.f32 %v3114, %v3119
        %v3123 = vlaneseq
        %v3124 = vshrl.u32 %v3123, 7
        %v3125 = vsub.s32 0, %v3124
        %v3126 = vrot.slane %v3101, %v3125
        %v3128 = vadd.f32 %v3121, %v3126
        %v3129 = vpack.c.bf16 %v3128, %v3128
        %v3130 = vld [vmem:[%s16] sm:$0xff]
        %v3131 = vld [vmem:[%s16 + $0x8] sm:$0xff]
        %v3132 = vld [vmem:[%s16 + $0x10] sm:$0xff]
        %v3133 = vld [vmem:[%s16 + $0x18] sm:$0xff]
        %v3134 = vld [vmem:[%s16 + $0x20] sm:$0xff]
        %v3135 = vld [vmem:[%s16 + $0x28] sm:$0xff]
        %v3136 = vld [vmem:[%s16 + $0x30] sm:$0xff]
        %v3137 = vld [vmem:[%s16 + $0x38] sm:$0xff]
        %v3138 = vld [vmem:[%s17] sm:$0x3]
        %v3140 = vlaneseq
        %v3141 = vshrl.u32 %v3140, 7
        %v3142 = vsub.s32 0, %v3141
        %v3143 = vrot.slane %v3138, %v3142
        %v3144 = vlaneseq
        %v3145 = vshrl.u32 %v3144, 7
        %v3146 = vsub.s32 1, %v3145
        %v3147 = vrot.slane %v3138, %v3146
        %v3158 = vunpack.c.l.b16 %v3130
        %v3159 = vunpack.c.h.b16 %v3130
        %v3160 = vunpack.c.l.b16 %v3131
        %v3161 = vunpack.c.h.b16 %v3131
        %v3162 = vunpack.c.l.b16 %v3132
        %v3163 = vunpack.c.h.b16 %v3132
        %v3164 = vunpack.c.l.b16 %v3133
        %v3165 = vunpack.c.h.b16 %v3133
        %v3166 = vunpack.c.l.b16 %v3134
        %v3167 = vunpack.c.h.b16 %v3134
        %v3168 = vunpack.c.l.b16 %v3135
        %v3169 = vunpack.c.h.b16 %v3135
        %v3170 = vunpack.c.l.b16 %v3136
        %v3171 = vunpack.c.h.b16 %v3136
        %v3172 = vunpack.c.l.b16 %v3137
        %v3173 = vunpack.c.h.b16 %v3137
        %v3174 = vpack.c.b16 %v3160, %v3158
        %v3175 = vpack.c.b16 %v3161, %v3159
        %v3176 = vpack.c.b16 %v3164, %v3162
        %v3177 = vpack.c.b16 %v3165, %v3163
        %v3178 = vpack.c.b16 %v3168, %v3166
        %v3179 = vpack.c.b16 %v3169, %v3167
        %v3180 = vpack.c.b16 %v3172, %v3170
        %v3181 = vpack.c.b16 %v3173, %v3171
        %v3191 = vsel %vm777, %v3129, 0
        %3193 = vmatprep.subr.bf16.mxu0 %v3175
        %3194 = vmatpush1.bf16.msra.mxu0 %v3174
        %3195 = vmatprep.subr.bf16.mxu0 %v3177
        %3196 = vmatpush1.bf16.msra.mxu0 %v3176
        %3197 = vmatprep.subr.bf16.mxu0 %v3179
        %3198 = vmatpush1.bf16.msra.mxu0 %v3178
        %3199 = vmatprep.subr.bf16.mxu0 %v3181
        %3200 = vmatpush1.bf16.msra.mxu0 %v3180
        %3201 = vmatprep.subr.bf16.mxu0 0
        %3202 = vmatpush1.bf16.msra.mxu0 0
        %3203 = vmatprep.subr.bf16.mxu0 0
        %3204 = vmatpush1.bf16.msra.mxu0 0
        %3205 = vmatprep.subr.bf16.mxu0 0
        %3206 = vmatpush1.bf16.msra.mxu0 0
        %3207 = vmatprep.subr.bf16.mxu0 0
        %3208 = vmatpush1.bf16.msra.mxu0 0
        %3209 = vmatprep.subr.bf16.mxu0 0
        %3210 = vmatpush1.bf16.msra.mxu0 0
        %3211 = vmatprep.subr.bf16.mxu0 0
        %3212 = vmatpush1.bf16.msra.mxu0 0
        %3213 = vmatprep.subr.bf16.mxu0 0
        %3214 = vmatpush1.bf16.msra.mxu0 0
        %3215 = vmatprep.subr.bf16.mxu0 0
        %3216 = vmatpush1.bf16.msra.mxu0 0
        %3217 = vmatprep.subr.bf16.mxu0 0
        %3218 = vmatpush1.bf16.msra.mxu0 0
        %3219 = vmatprep.subr.bf16.mxu0 0
        %3220 = vmatpush1.bf16.msra.mxu0 0
        %3221 = vmatprep.subr.bf16.mxu0 0
        %3222 = vmatpush1.bf16.msra.mxu0 0
        %3223 = vmatprep.subr.bf16.mxu0 0
        %3224 = vmatpush1.bf16.msra.mxu0 0
        %3225 = vmatprep.mubr.bf16.mxu0 0
        %3226 = vmatmul.mubr.bf16.gmra.mrb[0].mxu0 %v3191
        %v3227 = vpop.f32.mrb[0].mxu0
        %v3228 = vadd.f32 %v3143, %v3227
        %v3229 = vpop.f32.mrb[0].mxu0
        %v3230 = vadd.f32 %v3147, %v3229
        %v3231 = vpop.f32.mrb[0].mxu0
        %v3232 = vpop.f32.mrb[0].mxu0
        %3233 = vdwg.mxu0
        %v3234 = vld [vmem:[%s18] sm:$0xff]
        %v3235 = vld [vmem:[%s18 + $0x8] sm:$0xff]
        %v3236 = vld [vmem:[%s18 + $0x10] sm:$0xff]
        %v3237 = vld [vmem:[%s18 + $0x18] sm:$0xff]
        %v3238 = vld [vmem:[%s19] sm:$0xff]
        %v3239 = vld [vmem:[%s19 + $0x8] sm:$0xff]
        %v3240 = vld [vmem:[%s19 + $0x10] sm:$0xff]
        %v3241 = vld [vmem:[%s19 + $0x18] sm:$0xff]
        %v3243 = vsel %vm1598, 0.0, 0
        %3245 = vmatprep.subr.mxu0 0.0
        %3246 = vmatpush1.msra.mxu0 %v3234
        %3247 = vmatprep.subr.mxu0 0.0
        %3248 = vmatpush1.msra.mxu0 %v3235
        %3249 = vmatprep.subr.mxu0 0.0
        %3250 = vmatpush1.msra.mxu0 %v3236
        %3251 = vmatprep.subr.mxu0 0.0
        %3252 = vmatpush1.msra.mxu0 %v3237
        %3253 = vmatprep.subr.mxu0 0.0
        %3254 = vmatpush1.msra.mxu0 0.0
        %3255 = vmatprep.subr.mxu0 0.0
        %3256 = vmatpush1.msra.mxu0 0.0
        %3257 = vmatprep.subr.mxu0 0.0
        %3258 = vmatpush1.msra.mxu0 0.0
        %3259 = vmatprep.subr.mxu0 0.0
        %3260 = vmatpush1.msra.mxu0 0.0
        %3261 = vmatprep.subr.mxu0 0.0
        %3262 = vmatpush1.msra.mxu0 0.0
        %3263 = vmatprep.subr.mxu0 0.0
        %3264 = vmatpush1.msra.mxu0 0.0
        %3265 = vmatprep.subr.mxu0 0.0
        %3266 = vmatpush1.msra.mxu0 0.0
        %3267 = vmatprep.subr.mxu0 0.0
        %3268 = vmatpush1.msra.mxu0 0.0
        %3269 = vmatprep.subr.mxu0 0.0
        %3270 = vmatpush1.msra.mxu0 0.0
        %3271 = vmatprep.subr.mxu0 0.0
        %3272 = vmatpush1.msra.mxu0 0.0
        %3273 = vmatprep.subr.mxu0 0.0
        %3274 = vmatpush1.msra.mxu0 0.0
        %3275 = vmatprep.subr.mxu0 0.0
        %3276 = vmatpush1.msra.mxu0 0.0
        %3277 = vmatprep.subr.mxu0 0.0
        %3278 = vmatpush1.msra.mxu0 0.0
        %3279 = vmatprep.subr.mxu0 0.0
        %3280 = vmatpush1.msra.mxu0 0.0
        %3281 = vmatprep.subr.mxu0 0.0
        %3282 = vmatpush1.msra.mxu0 0.0
        %3283 = vmatprep.subr.mxu0 0.0
        %3284 = vmatpush1.msra.mxu0 0.0
        %3285 = vmatprep.subr.mxu0 0.0
        %3286 = vmatpush1.msra.mxu0 0.0
        %3287 = vmatprep.subr.mxu0 0.0
        %3288 = vmatpush1.msra.mxu0 0.0
        %3289 = vmatprep.subr.mxu0 0.0
        %3290 = vmatpush1.msra.mxu0 0.0
        %3291 = vmatprep.subr.mxu0 0.0
        %3292 = vmatpush1.msra.mxu0 0.0
        %3293 = vmatprep.subr.mxu0 0.0
        %3294 = vmatpush1.msra.mxu0 0.0
        %3295 = vmatprep.subr.mxu0 0.0
        %3296 = vmatpush1.msra.mxu0 0.0
        %3297 = vmatprep.subr.mxu0 0.0
        %3298 = vmatpush1.msra.mxu0 0.0
        %3299 = vmatprep.subr.mxu0 0.0
        %3300 = vmatpush1.msra.mxu0 0.0
        %3301 = vmatprep.subr.mxu0 0.0
        %3302 = vmatpush1.msra.mxu0 0.0
        %3303 = vmatprep.subr.mxu0 0.0
        %3304 = vmatpush1.msra.mxu0 0.0
        %3305 = vmatprep.subr.mxu0 0.0
        %3306 = vmatpush1.msra.mxu0 0.0
        %3307 = vmatprep.subr.mxu0 0.0
        %3308 = vmatpush1.msra.mxu0 0.0
        %3309 = vmatprep.mubr.f32.mxu0 0.0
        %3310 = vmatmul.mubr.f32.gmra.mrb[0].mxu0 %v3243
        %v3311 = vpop.f32.mrb[0].mxu0
        %v3312 = vadd.f32 0.0, %v3311
        %v3313 = vpop.f32.mrb[0].mxu0
        %3314 = vdwg.mxu0
        %v3315 = vadd.f32 %v3228, %v3312
        %3316 = vmatprep.subr.mxu0 0.0
        %3317 = vmatpush1.msra.mxu0 %v3238
        %3318 = vmatprep.subr.mxu0 0.0
        %3319 = vmatpush1.msra.mxu0 %v3239
        %3320 = vmatprep.subr.mxu0 0.0
        %3321 = vmatpush1.msra.mxu0 %v3240
        %3322 = vmatprep.subr.mxu0 0.0
        %3323 = vmatpush1.msra.mxu0 %v3241
        %3324 = vmatprep.subr.mxu0 0.0
        %3325 = vmatpush1.msra.mxu0 0.0
        %3326 = vmatprep.subr.mxu0 0.0
        %3327 = vmatpush1.msra.mxu0 0.0
        %3328 = vmatprep.subr.mxu0 0.0
        %3329 = vmatpush1.msra.mxu0 0.0
        %3330 = vmatprep.subr.mxu0 0.0
        %3331 = vmatpush1.msra.mxu0 0.0
        %3332 = vmatprep.subr.mxu0 0.0
        %3333 = vmatpush1.msra.mxu0 0.0
        %3334 = vmatprep.subr.mxu0 0.0
        %3335 = vmatpush1.msra.mxu0 0.0
        %3336 = vmatprep.subr.mxu0 0.0
        %3337 = vmatpush1.msra.mxu0 0.0
        %3338 = vmatprep.subr.mxu0 0.0
        %3339 = vmatpush1.msra.mxu0 0.0
        %3340 = vmatprep.subr.mxu0 0.0
        %3341 = vmatpush1.msra.mxu0 0.0
        %3342 = vmatprep.subr.mxu0 0.0
        %3343 = vmatpush1.msra.mxu0 0.0
        %3344 = vmatprep.subr.mxu0 0.0
        %3345 = vmatpush1.msra.mxu0 0.0
        %3346 = vmatprep.subr.mxu0 0.0
        %3347 = vmatpush1.msra.mxu0 0.0
        %3348 = vmatprep.subr.mxu0 0.0
        %3349 = vmatpush1.msra.mxu0 0.0
        %3350 = vmatprep.subr.mxu0 0.0
        %3351 = vmatpush1.msra.mxu0 0.0
        %3352 = vmatprep.subr.mxu0 0.0
        %3353 = vmatpush1.msra.mxu0 0.0
        %3354 = vmatprep.subr.mxu0 0.0
        %3355 = vmatpush1.msra.mxu0 0.0
        %3356 = vmatprep.subr.mxu0 0.0
        %3357 = vmatpush1.msra.mxu0 0.0
        %3358 = vmatprep.subr.mxu0 0.0
        %3359 = vmatpush1.msra.mxu0 0.0
        %3360 = vmatprep.subr.mxu0 0.0
        %3361 = vmatpush1.msra.mxu0 0.0
        %3362 = vmatprep.subr.mxu0 0.0
        %3363 = vmatpush1.msra.mxu0 0.0
        %3364 = vmatprep.subr.mxu0 0.0
        %3365 = vmatpush1.msra.mxu0 0.0
        %3366 = vmatprep.subr.mxu0 0.0
        %3367 = vmatpush1.msra.mxu0 0.0
        %3368 = vmatprep.subr.mxu0 0.0
        %3369 = vmatpush1.msra.mxu0 0.0
        %3370 = vmatprep.subr.mxu0 0.0
        %3371 = vmatpush1.msra.mxu0 0.0
        %3372 = vmatprep.subr.mxu0 0.0
        %3373 = vmatpush1.msra.mxu0 0.0
        %3374 = vmatprep.subr.mxu0 0.0
        %3375 = vmatpush1.msra.mxu0 0.0
        %3376 = vmatprep.subr.mxu0 0.0
        %3377 = vmatpush1.msra.mxu0 0.0
        %3378 = vmatprep.subr.mxu0 0.0
        %3379 = vmatpush1.msra.mxu0 0.0
        %3380 = vmatprep.mubr.f32.mxu0 0.0
        %3381 = vmatmul.mubr.f32.gmra.mrb[0].mxu0 %v3243
        %v3382 = vpop.f32.mrb[0].mxu0
        %v3383 = vadd.f32 0.0, %v3382
        %v3384 = vpop.f32.mrb[0].mxu0
        %3385 = vdwg.mxu0
        %v3387 = vrot.slane %v3383, 1
        %v3389 = vadd.f32 %v3230, %v3387
        %v3390 = vxor.u32 %v3315, 2147483648
        %v3391 = vmul.f32 %v3390, 1.442695
        %v3392 = vpow.pop %v3391
        %v3393 = vadd.f32 %v3392, 1.0
        %v3394 = vrcp.pop %v3393
        %v3395 = vmul.f32 1.0, %v3394
        %v3396 = vtanh.pop %v3315
        %v3397 = vmul.f32 %v3395, 0.0
        %3399 = vrot.lane.b32.xlu0 %v3396, 64
        %v3400 = vpop.permute.xlu0 %3399
        %v3402 = vmul.f32 %v3395, %v3400
        %3404 = vrot.lane.b32.xlu0 %v3402, 32
        %v3405 = vpop.permute.xlu0 %3404
        %v3407 = vadd.f32 %v3397, %v3405
        %v3408 = vtanh.pop %v3407
        %3410 = vrot.lane.b32.xlu0 %v3408, 64
        %v3411 = vpop.permute.xlu0 %3410
        %v3413 = vmul.f32 %v3395, %v3411
        %v3414 = vxor.u32 %v3389, 2147483648
        %v3415 = vmul.f32 %v3414, 1.442695
        %v3416 = vpow.pop %v3415
        %v3417 = vadd.f32 %v3416, 1.0
        %v3418 = vrcp.pop %v3417
        %v3419 = vmul.f32 1.0, %v3418
        %v3420 = vtanh.pop %v3389
        %v3421 = vmul.f32 %v3419, 0.0
        %3423 = vrot.lane.b32.xlu0 %v3420, 64
        %v3424 = vpop.permute.xlu0 %3423
        %v3426 = vmul.f32 %v3419, %v3424
        %3428 = vrot.lane.b32.xlu0 %v3426, 32
        %v3429 = vpop.permute.xlu0 %3428
        %v3431 = vadd.f32 %v3421, %v3429
        %v3432 = vtanh.pop %v3431
        %3434 = vrot.lane.b32.xlu0 %v3432, 64
        %v3435 = vpop.permute.xlu0 %3434
        %v3437 = vmul.f32 %v3419, %v3435
        %3439 = vrot.lane.b32.xlu0 %v3413, 32
        %v3440 = vpop.permute.xlu0 %3439
        %v3441 = vsel %vm1598, %v3440, 0
        %3443 = vmatprep.subr.mxu0 0.0
        %3444 = vmatpush1.msra.mxu0 %v3234
        %3445 = vmatprep.subr.mxu0 0.0
        %3446 = vmatpush1.msra.mxu0 %v3235
        %3447 = vmatprep.subr.mxu0 0.0
        %3448 = vmatpush1.msra.mxu0 %v3236
        %3449 = vmatprep.subr.mxu0 0.0
        %3450 = vmatpush1.msra.mxu0 %v3237
        %3451 = vmatprep.subr.mxu0 0.0
        %3452 = vmatpush1.msra.mxu0 0.0
        %3453 = vmatprep.subr.mxu0 0.0
        %3454 = vmatpush1.msra.mxu0 0.0
        %3455 = vmatprep.subr.mxu0 0.0
        %3456 = vmatpush1.msra.mxu0 0.0
        %3457 = vmatprep.subr.mxu0 0.0
        %3458 = vmatpush1.msra.mxu0 0.0
        %3459 = vmatprep.subr.mxu0 0.0
        %3460 = vmatpush1.msra.mxu0 0.0
        %3461 = vmatprep.subr.mxu0 0.0
        %3462 = vmatpush1.msra.mxu0 0.0
        %3463 = vmatprep.subr.mxu0 0.0
        %3464 = vmatpush1.msra.mxu0 0.0
        %3465 = vmatprep.subr.mxu0 0.0
        %3466 = vmatpush1.msra.mxu0 0.0
        %3467 = vmatprep.subr.mxu0 0.0
        %3468 = vmatpush1.msra.mxu0 0.0
        %3469 = vmatprep.subr.mxu0 0.0
        %3470 = vmatpush1.msra.mxu0 0.0
        %3471 = vmatprep.subr.mxu0 0.0
        %3472 = vmatpush1.msra.mxu0 0.0
        %3473 = vmatprep.subr.mxu0 0.0
        %3474 = vmatpush1.msra.mxu0 0.0
        %3475 = vmatprep.subr.mxu0 0.0
        %3476 = vmatpush1.msra.mxu0 0.0
        %3477 = vmatprep.subr.mxu0 0.0
        %3478 = vmatpush1.msra.mxu0 0.0
        %3479 = vmatprep.subr.mxu0 0.0
        %3480 = vmatpush1.msra.mxu0 0.0
        %3481 = vmatprep.subr.mxu0 0.0
        %3482 = vmatpush1.msra.mxu0 0.0
        %3483 = vmatprep.subr.mxu0 0.0
        %3484 = vmatpush1.msra.mxu0 0.0
        %3485 = vmatprep.subr.mxu0 0.0
        %3486 = vmatpush1.msra.mxu0 0.0
        %3487 = vmatprep.subr.mxu0 0.0
        %3488 = vmatpush1.msra.mxu0 0.0
        %3489 = vmatprep.subr.mxu0 0.0
        %3490 = vmatpush1.msra.mxu0 0.0
        %3491 = vmatprep.subr.mxu0 0.0
        %3492 = vmatpush1.msra.mxu0 0.0
        %3493 = vmatprep.subr.mxu0 0.0
        %3494 = vmatpush1.msra.mxu0 0.0
        %3495 = vmatprep.subr.mxu0 0.0
        %3496 = vmatpush1.msra.mxu0 0.0
        %3497 = vmatprep.subr.mxu0 0.0
        %3498 = vmatpush1.msra.mxu0 0.0
        %3499 = vmatprep.subr.mxu0 0.0
        %3500 = vmatpush1.msra.mxu0 0.0
        %3501 = vmatprep.subr.mxu0 0.0
        %3502 = vmatpush1.msra.mxu0 0.0
        %3503 = vmatprep.subr.mxu0 0.0
        %3504 = vmatpush1.msra.mxu0 0.0
        %3505 = vmatprep.subr.mxu0 0.0
        %3506 = vmatpush1.msra.mxu0 0.0
        %3507 = vmatprep.mubr.f32.mxu0 0.0
        %3508 = vmatmul.mubr.f32.gmra.mrb[0].mxu0 %v3441
        %v3509 = vpop.f32.mrb[0].mxu0
        %v3510 = vadd.f32 0.0, %v3509
        %v3511 = vpop.f32.mrb[0].mxu0
        %3512 = vdwg.mxu0
        %v3514 = vrot.slane %v3510, 7
        %v3516 = vadd.f32 %v3228, %v3514
        %v3518 = vrot.slane %v3437, 7
        %3519 = vrot.lane.b32.xlu0 %v3518, 32
        %v3520 = vpop.permute.xlu0 %3519
        %v3521 = vsel %vm1598, %v3520, 0
        %3523 = vmatprep.subr.mxu0 0.0
        %3524 = vmatpush1.msra.mxu0 %v3238
        %3525 = vmatprep.subr.mxu0 0.0
        %3526 = vmatpush1.msra.mxu0 %v3239
        %3527 = vmatprep.subr.mxu0 0.0
        %3528 = vmatpush1.msra.mxu0 %v3240
        %3529 = vmatprep.subr.mxu0 0.0
        %3530 = vmatpush1.msra.mxu0 %v3241
        %3531 = vmatprep.subr.mxu0 0.0
        %3532 = vmatpush1.msra.mxu0 0.0
        %3533 = vmatprep.subr.mxu0 0.0
        %3534 = vmatpush1.msra.mxu0 0.0
        %3535 = vmatprep.subr.mxu0 0.0
        %3536 = vmatpush1.msra.mxu0 0.0
        %3537 = vmatprep.subr.mxu0 0.0
        %3538 = vmatpush1.msra.mxu0 0.0
        %3539 = vmatprep.subr.mxu0 0.0
        %3540 = vmatpush1.msra.mxu0 0.0
        %3541 = vmatprep.subr.mxu0 0.0
        %3542 = vmatpush1.msra.mxu0 0.0
        %3543 = vmatprep.subr.mxu0 0.0
        %3544 = vmatpush1.msra.mxu0 0.0
        %3545 = vmatprep.subr.mxu0 0.0
        %3546 = vmatpush1.msra.mxu0 0.0
        %3547 = vmatprep.subr.mxu0 0.0
        %3548 = vmatpush1.msra.mxu0 0.0
        %3549 = vmatprep.subr.mxu0 0.0
        %3550 = vmatpush1.msra.mxu0 0.0
        %3551 = vmatprep.subr.mxu0 0.0
        %3552 = vmatpush1.msra.mxu0 0.0
        %3553 = vmatprep.subr.mxu0 0.0
        %3554 = vmatpush1.msra.mxu0 0.0
        %3555 = vmatprep.subr.mxu0 0.0
        %3556 = vmatpush1.msra.mxu0 0.0
        %3557 = vmatprep.subr.mxu0 0.0
        %3558 = vmatpush1.msra.mxu0 0.0
        %3559 = vmatprep.subr.mxu0 0.0
        %3560 = vmatpush1.msra.mxu0 0.0
        %3561 = vmatprep.subr.mxu0 0.0
        %3562 = vmatpush1.msra.mxu0 0.0
        %3563 = vmatprep.subr.mxu0 0.0
        %3564 = vmatpush1.msra.mxu0 0.0
        %3565 = vmatprep.subr.mxu0 0.0
        %3566 = vmatpush1.msra.mxu0 0.0
        %3567 = vmatprep.subr.mxu0 0.0
        %3568 = vmatpush1.msra.mxu0 0.0
        %3569 = vmatprep.subr.mxu0 0.0
        %3570 = vmatpush1.msra.mxu0 0.0
        %3571 = vmatprep.subr.mxu0 0.0
        %3572 = vmatpush1.msra.mxu0 0.0
        %3573 = vmatprep.subr.mxu0 0.0
        %3574 = vmatpush1.msra.mxu0 0.0
        %3575 = vmatprep.subr.mxu0 0.0
        %3576 = vmatpush1.msra.mxu0 0.0
        %3577 = vmatprep.subr.mxu0 0.0
        %3578 = vmatpush1.msra.mxu0 0.0
        %3579 = vmatprep.subr.mxu0 0.0
        %3580 = vmatpush1.msra.mxu0 0.0
        %3581 = vmatprep.subr.mxu0 0.0
        %3582 = vmatpush1.msra.mxu0 0.0
        %3583 = vmatprep.subr.mxu0 0.0
        %3584 = vmatpush1.msra.mxu0 0.0
        %3585 = vmatprep.subr.mxu0 0.0
        %3586 = vmatpush1.msra.mxu0 0.0
        %3587 = vmatprep.mubr.f32.mxu0 0.0
        %3588 = vmatmul.mubr.f32.gmra.mrb[0].mxu0 %v3521
        %v3589 = vpop.f32.mrb[0].mxu0
        %v3590 = vadd.f32 0.0, %v3589
        %v3591 = vpop.f32.mrb[0].mxu0
        %3592 = vdwg.mxu0
        %v3594 = vrot.slane %v3590, 2
        %v3596 = vadd.f32 %v3230, %v3594
        %v3597 = vxor.u32 %v3516, 2147483648
        %v3598 = vmul.f32 %v3597, 1.442695
        %v3599 = vpow.pop %v3598
        %v3600 = vadd.f32 %v3599, 1.0
        %v3601 = vrcp.pop %v3600
        %v3602 = vmul.f32 1.0, %v3601
        %v3603 = vtanh.pop %v3516
        %v3605 = vrot.slane %v3407, 7
        %v3607 = vmul.f32 %v3602, %v3605
        %3609 = vrot.lane.b32.xlu0 %v3603, 64
        %v3610 = vpop.permute.xlu0 %3609
        %v3612 = vmul.f32 %v3602, %v3610
        %3614 = vrot.lane.b32.xlu0 %v3612, 32
        %v3615 = vpop.permute.xlu0 %3614
        %v3617 = vadd.f32 %v3607, %v3615
        %v3618 = vtanh.pop %v3617
        %3620 = vrot.lane.b32.xlu0 %v3618, 64
        %v3621 = vpop.permute.xlu0 %3620
        %v3623 = vmul.f32 %v3602, %v3621
        %v3624 = vxor.u32 %v3596, 2147483648
        %v3625 = vmul.f32 %v3624, 1.442695
        %v3626 = vpow.pop %v3625
        %v3627 = vadd.f32 %v3626, 1.0
        %v3628 = vrcp.pop %v3627
        %v3629 = vmul.f32 1.0, %v3628
        %v3630 = vtanh.pop %v3596
        %v3632 = vrot.slane %v3431, 1
        %v3634 = vmul.f32 %v3629, %v3632
        %3636 = vrot.lane.b32.xlu0 %v3630, 64
        %v3637 = vpop.permute.xlu0 %3636
        %v3639 = vmul.f32 %v3629, %v3637
        %3641 = vrot.lane.b32.xlu0 %v3639, 32
        %v3642 = vpop.permute.xlu0 %3641
        %v3644 = vadd.f32 %v3634, %v3642
        %v3645 = vtanh.pop %v3644
        %3647 = vrot.lane.b32.xlu0 %v3645, 64
        %v3648 = vpop.permute.xlu0 %3647
        %v3650 = vmul.f32 %v3629, %v3648
        %v3652 = vrot.slane %v3623, 1
        %3653 = vrot.lane.b32.xlu0 %v3652, 32
        %v3654 = vpop.permute.xlu0 %3653
        %v3655 = vsel %vm1598, %v3654, 0
        %3657 = vmatprep.subr.mxu0 0.0
        %3658 = vmatpush1.msra.mxu0 %v3234
        %3659 = vmatprep.subr.mxu0 0.0
        %3660 = vmatpush1.msra.mxu0 %v3235
        %3661 = vmatprep.subr.mxu0 0.0
        %3662 = vmatpush1.msra.mxu0 %v3236
        %3663 = vmatprep.subr.mxu0 0.0
        %3664 = vmatpush1.msra.mxu0 %v3237
        %3665 = vmatprep.subr.mxu0 0.0
        %3666 = vmatpush1.msra.mxu0 0.0
        %3667 = vmatprep.subr.mxu0 0.0
        %3668 = vmatpush1.msra.mxu0 0.0
        %3669 = vmatprep.subr.mxu0 0.0
        %3670 = vmatpush1.msra.mxu0 0.0
        %3671 = vmatprep.subr.mxu0 0.0
        %3672 = vmatpush1.msra.mxu0 0.0
        %3673 = vmatprep.subr.mxu0 0.0
        %3674 = vmatpush1.msra.mxu0 0.0
        %3675 = vmatprep.subr.mxu0 0.0
        %3676 = vmatpush1.msra.mxu0 0.0
        %3677 = vmatprep.subr.mxu0 0.0
        %3678 = vmatpush1.msra.mxu0 0.0
        %3679 = vmatprep.subr.mxu0 0.0
        %3680 = vmatpush1.msra.mxu0 0.0
        %3681 = vmatprep.subr.mxu0 0.0
        %3682 = vmatpush1.msra.mxu0 0.0
        %3683 = vmatprep.subr.mxu0 0.0
        %3684 = vmatpush1.msra.mxu0 0.0
        %3685 = vmatprep.subr.mxu0 0.0
        %3686 = vmatpush1.msra.mxu0 0.0
        %3687 = vmatprep.subr.mxu0 0.0
        %3688 = vmatpush1.msra.mxu0 0.0
        %3689 = vmatprep.subr.mxu0 0.0
        %3690 = vmatpush1.msra.mxu0 0.0
        %3691 = vmatprep.subr.mxu0 0.0
        %3692 = vmatpush1.msra.mxu0 0.0
        %3693 = vmatprep.subr.mxu0 0.0
        %3694 = vmatpush1.msra.mxu0 0.0
        %3695 = vmatprep.subr.mxu0 0.0
        %3696 = vmatpush1.msra.mxu0 0.0
        %3697 = vmatprep.subr.mxu0 0.0
        %3698 = vmatpush1.msra.mxu0 0.0
        %3699 = vmatprep.subr.mxu0 0.0
        %3700 = vmatpush1.msra.mxu0 0.0
        %3701 = vmatprep.subr.mxu0 0.0
        %3702 = vmatpush1.msra.mxu0 0.0
        %3703 = vmatprep.subr.mxu0 0.0
        %3704 = vmatpush1.msra.mxu0 0.0
        %3705 = vmatprep.subr.mxu0 0.0
        %3706 = vmatpush1.msra.mxu0 0.0
        %3707 = vmatprep.subr.mxu0 0.0
        %3708 = vmatpush1.msra.mxu0 0.0
        %3709 = vmatprep.subr.mxu0 0.0
        %3710 = vmatpush1.msra.mxu0 0.0
        %3711 = vmatprep.subr.mxu0 0.0
        %3712 = vmatpush1.msra.mxu0 0.0
        %3713 = vmatprep.subr.mxu0 0.0
        %3714 = vmatpush1.msra.mxu0 0.0
        %3715 = vmatprep.subr.mxu0 0.0
        %3716 = vmatpush1.msra.mxu0 0.0
        %3717 = vmatprep.subr.mxu0 0.0
        %3718 = vmatpush1.msra.mxu0 0.0
        %3719 = vmatprep.subr.mxu0 0.0
        %3720 = vmatpush1.msra.mxu0 0.0
        %3721 = vmatprep.mubr.f32.mxu0 0.0
        %3722 = vmatmul.mubr.f32.gmra.mrb[0].mxu0 %v3655
        %v3723 = vpop.f32.mrb[0].mxu0
        %v3724 = vadd.f32 0.0, %v3723
        %v3725 = vpop.f32.mrb[0].mxu0
        %3726 = vdwg.mxu0
        %v3728 = vrot.slane %v3724, 6
        %v3730 = vadd.f32 %v3228, %v3728
        %v3732 = vrot.slane %v3650, 6
        %3733 = vrot.lane.b32.xlu0 %v3732, 32
        %v3734 = vpop.permute.xlu0 %3733
        %v3735 = vsel %vm1598, %v3734, 0
        %3737 = vmatprep.subr.mxu0 0.0
        %3738 = vmatpush1.msra.mxu0 %v3238
        %3739 = vmatprep.subr.mxu0 0.0
        %3740 = vmatpush1.msra.mxu0 %v3239
        %3741 = vmatprep.subr.mxu0 0.0
        %3742 = vmatpush1.msra.mxu0 %v3240
        %3743 = vmatprep.subr.mxu0 0.0
        %3744 = vmatpush1.msra.mxu0 %v3241
        %3745 = vmatprep.subr.mxu0 0.0
        %3746 = vmatpush1.msra.mxu0 0.0
        %3747 = vmatprep.subr.mxu0 0.0
        %3748 = vmatpush1.msra.mxu0 0.0
        %3749 = vmatprep.subr.mxu0 0.0
        %3750 = vmatpush1.msra.mxu0 0.0
        %3751 = vmatprep.subr.mxu0 0.0
        %3752 = vmatpush1.msra.mxu0 0.0
        %3753 = vmatprep.subr.mxu0 0.0
        %3754 = vmatpush1.msra.mxu0 0.0
        %3755 = vmatprep.subr.mxu0 0.0
        %3756 = vmatpush1.msra.mxu0 0.0
        %3757 = vmatprep.subr.mxu0 0.0
        %3758 = vmatpush1.msra.mxu0 0.0
        %3759 = vmatprep.subr.mxu0 0.0
        %3760 = vmatpush1.msra.mxu0 0.0
        %3761 = vmatprep.subr.mxu0 0.0
        %3762 = vmatpush1.msra.mxu0 0.0
        %3763 = vmatprep.subr.mxu0 0.0
        %3764 = vmatpush1.msra.mxu0 0.0
        %3765 = vmatprep.subr.mxu0 0.0
        %3766 = vmatpush1.msra.mxu0 0.0
        %3767 = vmatprep.subr.mxu0 0.0
        %3768 = vmatpush1.msra.mxu0 0.0
        %3769 = vmatprep.subr.mxu0 0.0
        %3770 = vmatpush1.msra.mxu0 0.0
        %3771 = vmatprep.subr.mxu0 0.0
        %3772 = vmatpush1.msra.mxu0 0.0
        %3773 = vmatprep.subr.mxu0 0.0
        %3774 = vmatpush1.msra.mxu0 0.0
        %3775 = vmatprep.subr.mxu0 0.0
        %3776 = vmatpush1.msra.mxu0 0.0
        %3777 = vmatprep.subr.mxu0 0.0
        %3778 = vmatpush1.msra.mxu0 0.0
        %3779 = vmatprep.subr.mxu0 0.0
        %3780 = vmatpush1.msra.mxu0 0.0
        %3781 = vmatprep.subr.mxu0 0.0
        %3782 = vmatpush1.msra.mxu0 0.0
        %3783 = vmatprep.subr.mxu0 0.0
        %3784 = vmatpush1.msra.mxu0 0.0
        %3785 = vmatprep.subr.mxu0 0.0
        %3786 = vmatpush1.msra.mxu0 0.0
        %3787 = vmatprep.subr.mxu0 0.0
        %3788 = vmatpush1.msra.mxu0 0.0
        %3789 = vmatprep.subr.mxu0 0.0
        %3790 = vmatpush1.msra.mxu0 0.0
        %3791 = vmatprep.subr.mxu0 0.0
        %3792 = vmatpush1.msra.mxu0 0.0
        %3793 = vmatprep.subr.mxu0 0.0
        %3794 = vmatpush1.msra.mxu0 0.0
        %3795 = vmatprep.subr.mxu0 0.0
        %3796 = vmatpush1.msra.mxu0 0.0
        %3797 = vmatprep.subr.mxu0 0.0
        %3798 = vmatpush1.msra.mxu0 0.0
        %3799 = vmatprep.subr.mxu0 0.0
        %3800 = vmatpush1.msra.mxu0 0.0
        %3801 = vmatprep.mubr.f32.mxu0 0.0
        %3802 = vmatmul.mubr.f32.gmra.mrb[0].mxu0 %v3735
        %v3803 = vpop.f32.mrb[0].mxu0
        %v3804 = vadd.f32 0.0, %v3803
        %v3805 = vpop.f32.mrb[0].mxu0
        %3806 = vdwg.mxu0
        %v3808 = vrot.slane %v3804, 3
        %v3810 = vadd.f32 %v3230, %v3808
        %v3811 = vxor.u32 %v3730, 2147483648
        %v3812 = vmul.f32 %v3811, 1.442695
        %v3813 = vpow.pop %v3812
        %v3814 = vadd.f32 %v3813, 1.0
        %v3815 = vrcp.pop %v3814
        %v3816 = vmul.f32 1.0, %v3815
        %v3817 = vtanh.pop %v3730
        %v3819 = vrot.slane %v3617, 7
        %v3821 = vmul.f32 %v3816, %v3819
        %3823 = vrot.lane.b32.xlu0 %v3817, 64
        %v3824 = vpop.permute.xlu0 %3823
        %v3826 = vmul.f32 %v3816, %v3824
        %3828 = vrot.lane.b32.xlu0 %v3826, 32
        %v3829 = vpop.permute.xlu0 %3828
        %v3831 = vadd.f32 %v3821, %v3829
        %v3832 = vtanh.pop %v3831
        %3834 = vrot.lane.b32.xlu0 %v3832, 64
        %v3835 = vpop.permute.xlu0 %3834
        %v3837 = vmul.f32 %v3816, %v3835
        %v3838 = vxor.u32 %v3810, 2147483648
        %v3839 = vmul.f32 %v3838, 1.442695
        %v3840 = vpow.pop %v3839
        %v3841 = vadd.f32 %v3840, 1.0
        %v3842 = vrcp.pop %v3841
        %v3843 = vmul.f32 1.0, %v3842
        %v3844 = vtanh.pop %v3810
        %v3846 = vrot.slane %v3644, 1
        %v3848 = vmul.f32 %v3843, %v3846
        %3850 = vrot.lane.b32.xlu0 %v3844, 64
        %v3851 = vpop.permute.xlu0 %3850
        %v3853 = vmul.f32 %v3843, %v3851
        %3855 = vrot.lane.b32.xlu0 %v3853, 32
        %v3856 = vpop.permute.xlu0 %3855
        %v3858 = vadd.f32 %v3848, %v3856
        %v3859 = vtanh.pop %v3858
        %3861 = vrot.lane.b32.xlu0 %v3859, 64
        %v3862 = vpop.permute.xlu0 %3861
        %v3864 = vmul.f32 %v3843, %v3862
        %v3866 = vrot.slane %v3837, 2
        %3867 = vrot.lane.b32.xlu0 %v3866, 32
        %v3868 = vpop.permute.xlu0 %3867
        %v3869 = vsel %vm1598, %v3868, 0
        %3871 = vmatprep.subr.mxu0 0.0
        %3872 = vmatpush1.msra.mxu0 %v3234
        %3873 = vmatprep.subr.mxu0 0.0
        %3874 = vmatpush1.msra.mxu0 %v3235
        %3875 = vmatprep.subr.mxu0 0.0
        %3876 = vmatpush1.msra.mxu0 %v3236
        %3877 = vmatprep.subr.mxu0 0.0
        %3878 = vmatpush1.msra.mxu0 %v3237
        %3879 = vmatprep.subr.mxu0 0.0
        %3880 = vmatpush1.msra.mxu0 0.0
        %3881 = vmatprep.subr.mxu0 0.0
        %3882 = vmatpush1.msra.mxu0 0.0
        %3883 = vmatprep.subr.mxu0 0.0
        %3884 = vmatpush1.msra.mxu0 0.0
        %3885 = vmatprep.subr.mxu0 0.0
        %3886 = vmatpush1.msra.mxu0 0.0
        %3887 = vmatprep.subr.mxu0 0.0
        %3888 = vmatpush1.msra.mxu0 0.0
        %3889 = vmatprep.subr.mxu0 0.0
        %3890 = vmatpush1.msra.mxu0 0.0
        %3891 = vmatprep.subr.mxu0 0.0
        %3892 = vmatpush1.msra.mxu0 0.0
        %3893 = vmatprep.subr.mxu0 0.0
        %3894 = vmatpush1.msra.mxu0 0.0
        %3895 = vmatprep.subr.mxu0 0.0
        %3896 = vmatpush1.msra.mxu0 0.0
        %3897 = vmatprep.subr.mxu0 0.0
        %3898 = vmatpush1.msra.mxu0 0.0
        %3899 = vmatprep.subr.mxu0 0.0
        %3900 = vmatpush1.msra.mxu0 0.0
        %3901 = vmatprep.subr.mxu0 0.0
        %3902 = vmatpush1.msra.mxu0 0.0
        %3903 = vmatprep.subr.mxu0 0.0
        %3904 = vmatpush1.msra.mxu0 0.0
        %3905 = vmatprep.subr.mxu0 0.0
        %3906 = vmatpush1.msra.mxu0 0.0
        %3907 = vmatprep.subr.mxu0 0.0
        %3908 = vmatpush1.msra.mxu0 0.0
        %3909 = vmatprep.subr.mxu0 0.0
        %3910 = vmatpush1.msra.mxu0 0.0
        %3911 = vmatprep.subr.mxu0 0.0
        %3912 = vmatpush1.msra.mxu0 0.0
        %3913 = vmatprep.subr.mxu0 0.0
        %3914 = vmatpush1.msra.mxu0 0.0
        %3915 = vmatprep.subr.mxu0 0.0
        %3916 = vmatpush1.msra.mxu0 0.0
        %3917 = vmatprep.subr.mxu0 0.0
        %3918 = vmatpush1.msra.mxu0 0.0
        %3919 = vmatprep.subr.mxu0 0.0
        %3920 = vmatpush1.msra.mxu0 0.0
        %3921 = vmatprep.subr.mxu0 0.0
        %3922 = vmatpush1.msra.mxu0 0.0
        %3923 = vmatprep.subr.mxu0 0.0
        %3924 = vmatpush1.msra.mxu0 0.0
        %3925 = vmatprep.subr.mxu0 0.0
        %3926 = vmatpush1.msra.mxu0 0.0
        %3927 = vmatprep.subr.mxu0 0.0
        %3928 = vmatpush1.msra.mxu0 0.0
        %3929 = vmatprep.subr.mxu0 0.0
        %3930 = vmatpush1.msra.mxu0 0.0
        %3931 = vmatprep.subr.mxu0 0.0
        %3932 = vmatpush1.msra.mxu0 0.0
        %3933 = vmatprep.subr.mxu0 0.0
        %3934 = vmatpush1.msra.mxu0 0.0
        %3935 = vmatprep.mubr.f32.mxu0 0.0
        %3936 = vmatmul.mubr.f32.gmra.mrb[0].mxu0 %v3869
        %v3937 = vpop.f32.mrb[0].mxu0
        %v3938 = vadd.f32 0.0, %v3937
        %v3939 = vpop.f32.mrb[0].mxu0
        %3940 = vdwg.mxu0
        %v3942 = vrot.slane %v3938, 5
        %v3944 = vadd.f32 %v3228, %v3942
        %v3946 = vrot.slane %v3864, 5
        %3947 = vrot.lane.b32.xlu0 %v3946, 32
        %v3948 = vpop.permute.xlu0 %3947
        %v3949 = vsel %vm1598, %v3948, 0
        %3951 = vmatprep.subr.mxu0 0.0
        %3952 = vmatpush1.msra.mxu0 %v3238
        %3953 = vmatprep.subr.mxu0 0.0
        %3954 = vmatpush1.msra.mxu0 %v3239
        %3955 = vmatprep.subr.mxu0 0.0
        %3956 = vmatpush1.msra.mxu0 %v3240
        %3957 = vmatprep.subr.mxu0 0.0
        %3958 = vmatpush1.msra.mxu0 %v3241
        %3959 = vmatprep.subr.mxu0 0.0
        %3960 = vmatpush1.msra.mxu0 0.0
        %3961 = vmatprep.subr.mxu0 0.0
        %3962 = vmatpush1.msra.mxu0 0.0
        %3963 = vmatprep.subr.mxu0 0.0
        %3964 = vmatpush1.msra.mxu0 0.0
        %3965 = vmatprep.subr.mxu0 0.0
        %3966 = vmatpush1.msra.mxu0 0.0
        %3967 = vmatprep.subr.mxu0 0.0
        %3968 = vmatpush1.msra.mxu0 0.0
        %3969 = vmatprep.subr.mxu0 0.0
        %3970 = vmatpush1.msra.mxu0 0.0
        %3971 = vmatprep.subr.mxu0 0.0
        %3972 = vmatpush1.msra.mxu0 0.0
        %3973 = vmatprep.subr.mxu0 0.0
        %3974 = vmatpush1.msra.mxu0 0.0
        %3975 = vmatprep.subr.mxu0 0.0
        %3976 = vmatpush1.msra.mxu0 0.0
        %3977 = vmatprep.subr.mxu0 0.0
        %3978 = vmatpush1.msra.mxu0 0.0
        %3979 = vmatprep.subr.mxu0 0.0
        %3980 = vmatpush1.msra.mxu0 0.0
        %3981 = vmatprep.subr.mxu0 0.0
        %3982 = vmatpush1.msra.mxu0 0.0
        %3983 = vmatprep.subr.mxu0 0.0
        %3984 = vmatpush1.msra.mxu0 0.0
        %3985 = vmatprep.subr.mxu0 0.0
        %3986 = vmatpush1.msra.mxu0 0.0
        %3987 = vmatprep.subr.mxu0 0.0
        %3988 = vmatpush1.msra.mxu0 0.0
        %3989 = vmatprep.subr.mxu0 0.0
        %3990 = vmatpush1.msra.mxu0 0.0
        %3991 = vmatprep.subr.mxu0 0.0
        %3992 = vmatpush1.msra.mxu0 0.0
        %3993 = vmatprep.subr.mxu0 0.0
        %3994 = vmatpush1.msra.mxu0 0.0
        %3995 = vmatprep.subr.mxu0 0.0
        %3996 = vmatpush1.msra.mxu0 0.0
        %3997 = vmatprep.subr.mxu0 0.0
        %3998 = vmatpush1.msra.mxu0 0.0
        %3999 = vmatprep.subr.mxu0 0.0
        %4000 = vmatpush1.msra.mxu0 0.0
        %4001 = vmatprep.subr.mxu0 0.0
        %4002 = vmatpush1.msra.mxu0 0.0
        %4003 = vmatprep.subr.mxu0 0.0
        %4004 = vmatpush1.msra.mxu0 0.0
        %4005 = vmatprep.subr.mxu0 0.0
        %4006 = vmatpush1.msra.mxu0 0.0
        %4007 = vmatprep.subr.mxu0 0.0
        %4008 = vmatpush1.msra.mxu0 0.0
        %4009 = vmatprep.subr.mxu0 0.0
        %4010 = vmatpush1.msra.mxu0 0.0
        %4011 = vmatprep.subr.mxu0 0.0
        %4012 = vmatpush1.msra.mxu0 0.0
        %4013 = vmatprep.subr.mxu0 0.0
        %4014 = vmatpush1.msra.mxu0 0.0
        %4015 = vmatprep.mubr.f32.mxu0 0.0
        %4016 = vmatmul.mubr.f32.gmra.mrb[0].mxu0 %v3949
        %v4017 = vpop.f32.mrb[0].mxu0
        %v4018 = vadd.f32 0.0, %v4017
        %v4019 = vpop.f32.mrb[0].mxu0
        %4020 = vdwg.mxu0
        %v4022 = vrot.slane %v4018, 4
        %v4024 = vadd.f32 %v3230, %v4022
        %v4025 = vxor.u32 %v3944, 2147483648
        %v4026 = vmul.f32 %v4025, 1.442695
        %v4027 = vpow.pop %v4026
        %v4028 = vadd.f32 %v4027, 1.0
        %v4029 = vrcp.pop %v4028
        %v4030 = vmul.f32 1.0, %v4029
        %v4031 = vtanh.pop %v3944
        %v4033 = vrot.slane %v3831, 7
        %v4035 = vmul.f32 %v4030, %v4033
        %4037 = vrot.lane.b32.xlu0 %v4031, 64
        %v4038 = vpop.permute.xlu0 %4037
        %v4040 = vmul.f32 %v4030, %v4038
        %4042 = vrot.lane.b32.xlu0 %v4040, 32
        %v4043 = vpop.permute.xlu0 %4042
        %v4045 = vadd.f32 %v4035, %v4043
        %v4046 = vtanh.pop %v4045
        %4048 = vrot.lane.b32.xlu0 %v4046, 64
        %v4049 = vpop.permute.xlu0 %4048
        %v4051 = vmul.f32 %v4030, %v4049
        %v4052 = vxor.u32 %v4024, 2147483648
        %v4053 = vmul.f32 %v4052, 1.442695
        %v4054 = vpow.pop %v4053
        %v4055 = vadd.f32 %v4054, 1.0
        %v4056 = vrcp.pop %v4055
        %v4057 = vmul.f32 1.0, %v4056
        %v4058 = vtanh.pop %v4024
        %v4060 = vrot.slane %v3858, 1
        %v4062 = vmul.f32 %v4057, %v4060
        %4064 = vrot.lane.b32.xlu0 %v4058, 64
        %v4065 = vpop.permute.xlu0 %4064
        %v4067 = vmul.f32 %v4057, %v4065
        %4069 = vrot.lane.b32.xlu0 %v4067, 32
        %v4070 = vpop.permute.xlu0 %4069
        %v4072 = vadd.f32 %v4062, %v4070
        %v4073 = vtanh.pop %v4072
        %4075 = vrot.lane.b32.xlu0 %v4073, 64
        %v4076 = vpop.permute.xlu0 %4075
        %v4078 = vmul.f32 %v4057, %v4076
        %v4080 = vrot.slane %v4051, 3
        %4081 = vrot.lane.b32.xlu0 %v4080, 32
        %v4082 = vpop.permute.xlu0 %4081
        %v4083 = vsel %vm1598, %v4082, 0
        %4085 = vmatprep.subr.mxu0 0.0
        %4086 = vmatpush1.msra.mxu0 %v3234
        %4087 = vmatprep.subr.mxu0 0.0
        %4088 = vmatpush1.msra.mxu0 %v3235
        %4089 = vmatprep.subr.mxu0 0.0
        %4090 = vmatpush1.msra.mxu0 %v3236
        %4091 = vmatprep.subr.mxu0 0.0
        %4092 = vmatpush1.msra.mxu0 %v3237
        %4093 = vmatprep.subr.mxu0 0.0
        %4094 = vmatpush1.msra.mxu0 0.0
        %4095 = vmatprep.subr.mxu0 0.0
        %4096 = vmatpush1.msra.mxu0 0.0
        %4097 = vmatprep.subr.mxu0 0.0
        %4098 = vmatpush1.msra.mxu0 0.0
        %4099 = vmatprep.subr.mxu0 0.0
        %4100 = vmatpush1.msra.mxu0 0.0
        %4101 = vmatprep.subr.mxu0 0.0
        %4102 = vmatpush1.msra.mxu0 0.0
        %4103 = vmatprep.subr.mxu0 0.0
        %4104 = vmatpush1.msra.mxu0 0.0
        %4105 = vmatprep.subr.mxu0 0.0
        %4106 = vmatpush1.msra.mxu0 0.0
        %4107 = vmatprep.subr.mxu0 0.0
        %4108 = vmatpush1.msra.mxu0 0.0
        %4109 = vmatprep.subr.mxu0 0.0
        %4110 = vmatpush1.msra.mxu0 0.0
        %4111 = vmatprep.subr.mxu0 0.0
        %4112 = vmatpush1.msra.mxu0 0.0
        %4113 = vmatprep.subr.mxu0 0.0
        %4114 = vmatpush1.msra.mxu0 0.0
        %4115 = vmatprep.subr.mxu0 0.0
        %4116 = vmatpush1.msra.mxu0 0.0
        %4117 = vmatprep.subr.mxu0 0.0
        %4118 = vmatpush1.msra.mxu0 0.0
        %4119 = vmatprep.subr.mxu0 0.0
        %4120 = vmatpush1.msra.mxu0 0.0
        %4121 = vmatprep.subr.mxu0 0.0
        %4122 = vmatpush1.msra.mxu0 0.0
        %4123 = vmatprep.subr.mxu0 0.0
        %4124 = vmatpush1.msra.mxu0 0.0
        %4125 = vmatprep.subr.mxu0 0.0
        %4126 = vmatpush1.msra.mxu0 0.0
        %4127 = vmatprep.subr.mxu0 0.0
        %4128 = vmatpush1.msra.mxu0 0.0
        %4129 = vmatprep.subr.mxu0 0.0
        %4130 = vmatpush1.msra.mxu0 0.0
        %4131 = vmatprep.subr.mxu0 0.0
        %4132 = vmatpush1.msra.mxu0 0.0
        %4133 = vmatprep.subr.mxu0 0.0
        %4134 = vmatpush1.msra.mxu0 0.0
        %4135 = vmatprep.subr.mxu0 0.0
        %4136 = vmatpush1.msra.mxu0 0.0
        %4137 = vmatprep.subr.mxu0 0.0
        %4138 = vmatpush1.msra.mxu0 0.0
        %4139 = vmatprep.subr.mxu0 0.0
        %4140 = vmatpush1.msra.mxu0 0.0
        %4141 = vmatprep.subr.mxu0 0.0
        %4142 = vmatpush1.msra.mxu0 0.0
        %4143 = vmatprep.subr.mxu0 0.0
        %4144 = vmatpush1.msra.mxu0 0.0
        %4145 = vmatprep.subr.mxu0 0.0
        %4146 = vmatpush1.msra.mxu0 0.0
        %4147 = vmatprep.subr.mxu0 0.0
        %4148 = vmatpush1.msra.mxu0 0.0
        %4149 = vmatprep.mubr.f32.mxu0 0.0
        %4150 = vmatmul.mubr.f32.gmra.mrb[0].mxu0 %v4083
        %v4151 = vpop.f32.mrb[0].mxu0
        %v4152 = vadd.f32 0.0, %v4151
        %v4153 = vpop.f32.mrb[0].mxu0
        %4154 = vdwg.mxu0
        %v4156 = vrot.slane %v4152, 4
        %v4158 = vadd.f32 %v3228, %v4156
        %v4160 = vrot.slane %v4078, 4
        %4161 = vrot.lane.b32.xlu0 %v4160, 32
        %v4162 = vpop.permute.xlu0 %4161
        %v4163 = vsel %vm1598, %v4162, 0
        %4165 = vmatprep.subr.mxu0 0.0
        %4166 = vmatpush1.msra.mxu0 %v3238
        %4167 = vmatprep.subr.mxu0 0.0
        %4168 = vmatpush1.msra.mxu0 %v3239
        %4169 = vmatprep.subr.mxu0 0.0
        %4170 = vmatpush1.msra.mxu0 %v3240
        %4171 = vmatprep.subr.mxu0 0.0
        %4172 = vmatpush1.msra.mxu0 %v3241
        %4173 = vmatprep.subr.mxu0 0.0
        %4174 = vmatpush1.msra.mxu0 0.0
        %4175 = vmatprep.subr.mxu0 0.0
        %4176 = vmatpush1.msra.mxu0 0.0
        %4177 = vmatprep.subr.mxu0 0.0
        %4178 = vmatpush1.msra.mxu0 0.0
        %4179 = vmatprep.subr.mxu0 0.0
        %4180 = vmatpush1.msra.mxu0 0.0
        %4181 = vmatprep.subr.mxu0 0.0
        %4182 = vmatpush1.msra.mxu0 0.0
        %4183 = vmatprep.subr.mxu0 0.0
        %4184 = vmatpush1.msra.mxu0 0.0
        %4185 = vmatprep.subr.mxu0 0.0
        %4186 = vmatpush1.msra.mxu0 0.0
        %4187 = vmatprep.subr.mxu0 0.0
        %4188 = vmatpush1.msra.mxu0 0.0
        %4189 = vmatprep.subr.mxu0 0.0
        %4190 = vmatpush1.msra.mxu0 0.0
        %4191 = vmatprep.subr.mxu0 0.0
        %4192 = vmatpush1.msra.mxu0 0.0
        %4193 = vmatprep.subr.mxu0 0.0
        %4194 = vmatpush1.msra.mxu0 0.0
        %4195 = vmatprep.subr.mxu0 0.0
        %4196 = vmatpush1.msra.mxu0 0.0
        %4197 = vmatprep.subr.mxu0 0.0
        %4198 = vmatpush1.msra.mxu0 0.0
        %4199 = vmatprep.subr.mxu0 0.0
        %4200 = vmatpush1.msra.mxu0 0.0
        %4201 = vmatprep.subr.mxu0 0.0
        %4202 = vmatpush1.msra.mxu0 0.0
        %4203 = vmatprep.subr.mxu0 0.0
        %4204 = vmatpush1.msra.mxu0 0.0
        %4205 = vmatprep.subr.mxu0 0.0
        %4206 = vmatpush1.msra.mxu0 0.0
        %4207 = vmatprep.subr.mxu0 0.0
        %4208 = vmatpush1.msra.mxu0 0.0
        %4209 = vmatprep.subr.mxu0 0.0
        %4210 = vmatpush1.msra.mxu0 0.0
        %4211 = vmatprep.subr.mxu0 0.0
        %4212 = vmatpush1.msra.mxu0 0.0
        %4213 = vmatprep.subr.mxu0 0.0
        %4214 = vmatpush1.msra.mxu0 0.0
        %4215 = vmatprep.subr.mxu0 0.0
        %4216 = vmatpush1.msra.mxu0 0.0
        %4217 = vmatprep.subr.mxu0 0.0
        %4218 = vmatpush1.msra.mxu0 0.0
        %4219 = vmatprep.subr.mxu0 0.0
        %4220 = vmatpush1.msra.mxu0 0.0
        %4221 = vmatprep.subr.mxu0 0.0
        %4222 = vmatpush1.msra.mxu0 0.0
        %4223 = vmatprep.subr.mxu0 0.0
        %4224 = vmatpush1.msra.mxu0 0.0
        %4225 = vmatprep.subr.mxu0 0.0
        %4226 = vmatpush1.msra.mxu0 0.0
        %4227 = vmatprep.subr.mxu0 0.0
        %4228 = vmatpush1.msra.mxu0 0.0
        %4229 = vmatprep.mubr.f32.mxu0 0.0
        %4230 = vmatmul.mubr.f32.gmra.mrb[0].mxu0 %v4163
        %v4231 = vpop.f32.mrb[0].mxu0
        %v4232 = vadd.f32 0.0, %v4231
        %v4233 = vpop.f32.mrb[0].mxu0
        %4234 = vdwg.mxu0
        %v4236 = vrot.slane %v4232, 5
        %v4238 = vadd.f32 %v3230, %v4236
        %v4239 = vxor.u32 %v4158, 2147483648
        %v4240 = vmul.f32 %v4239, 1.442695
        %v4241 = vpow.pop %v4240
        %v4242 = vadd.f32 %v4241, 1.0
        %v4243 = vrcp.pop %v4242
        %v4244 = vmul.f32 1.0, %v4243
        %v4245 = vtanh.pop %v4158
        %v4247 = vrot.slane %v4045, 7
        %v4249 = vmul.f32 %v4244, %v4247
        %4251 = vrot.lane.b32.xlu0 %v4245, 64
        %v4252 = vpop.permute.xlu0 %4251
        %v4254 = vmul.f32 %v4244, %v4252
        %4256 = vrot.lane.b32.xlu0 %v4254, 32
        %v4257 = vpop.permute.xlu0 %4256
        %v4259 = vadd.f32 %v4249, %v4257
        %v4260 = vtanh.pop %v4259
        %4262 = vrot.lane.b32.xlu0 %v4260, 64
        %v4263 = vpop.permute.xlu0 %4262
        %v4265 = vmul.f32 %v4244, %v4263
        %v4266 = vxor.u32 %v4238, 2147483648
        %v4267 = vmul.f32 %v4266, 1.442695
        %v4268 = vpow.pop %v4267
        %v4269 = vadd.f32 %v4268, 1.0
        %v4270 = vrcp.pop %v4269
        %v4271 = vmul.f32 1.0, %v4270
        %v4272 = vtanh.pop %v4238
        %v4274 = vrot.slane %v4072, 1
        %v4276 = vmul.f32 %v4271, %v4274
        %4278 = vrot.lane.b32.xlu0 %v4272, 64
        %v4279 = vpop.permute.xlu0 %4278
        %v4281 = vmul.f32 %v4271, %v4279
        %4283 = vrot.lane.b32.xlu0 %v4281, 32
        %v4284 = vpop.permute.xlu0 %4283
        %v4286 = vadd.f32 %v4276, %v4284
        %v4287 = vtanh.pop %v4286
        %4289 = vrot.lane.b32.xlu0 %v4287, 64
        %v4290 = vpop.permute.xlu0 %4289
        %v4292 = vmul.f32 %v4271, %v4290
        %v4294 = vrot.slane %v4265, 4
        %4295 = vrot.lane.b32.xlu0 %v4294, 32
        %v4296 = vpop.permute.xlu0 %4295
        %v4297 = vsel %vm1598, %v4296, 0
        %4299 = vmatprep.subr.mxu0 0.0
        %4300 = vmatpush1.msra.mxu0 %v3234
        %4301 = vmatprep.subr.mxu0 0.0
        %4302 = vmatpush1.msra.mxu0 %v3235
        %4303 = vmatprep.subr.mxu0 0.0
        %4304 = vmatpush1.msra.mxu0 %v3236
        %4305 = vmatprep.subr.mxu0 0.0
        %4306 = vmatpush1.msra.mxu0 %v3237
        %4307 = vmatprep.subr.mxu0 0.0
        %4308 = vmatpush1.msra.mxu0 0.0
        %4309 = vmatprep.subr.mxu0 0.0
        %4310 = vmatpush1.msra.mxu0 0.0
        %4311 = vmatprep.subr.mxu0 0.0
        %4312 = vmatpush1.msra.mxu0 0.0
        %4313 = vmatprep.subr.mxu0 0.0
        %4314 = vmatpush1.msra.mxu0 0.0
        %4315 = vmatprep.subr.mxu0 0.0
        %4316 = vmatpush1.msra.mxu0 0.0
        %4317 = vmatprep.subr.mxu0 0.0
        %4318 = vmatpush1.msra.mxu0 0.0
        %4319 = vmatprep.subr.mxu0 0.0
        %4320 = vmatpush1.msra.mxu0 0.0
        %4321 = vmatprep.subr.mxu0 0.0
        %4322 = vmatpush1.msra.mxu0 0.0
        %4323 = vmatprep.subr.mxu0 0.0
        %4324 = vmatpush1.msra.mxu0 0.0
        %4325 = vmatprep.subr.mxu0 0.0
        %4326 = vmatpush1.msra.mxu0 0.0
        %4327 = vmatprep.subr.mxu0 0.0
        %4328 = vmatpush1.msra.mxu0 0.0
        %4329 = vmatprep.subr.mxu0 0.0
        %4330 = vmatpush1.msra.mxu0 0.0
        %4331 = vmatprep.subr.mxu0 0.0
        %4332 = vmatpush1.msra.mxu0 0.0
        %4333 = vmatprep.subr.mxu0 0.0
        %4334 = vmatpush1.msra.mxu0 0.0
        %4335 = vmatprep.subr.mxu0 0.0
        %4336 = vmatpush1.msra.mxu0 0.0
        %4337 = vmatprep.subr.mxu0 0.0
        %4338 = vmatpush1.msra.mxu0 0.0
        %4339 = vmatprep.subr.mxu0 0.0
        %4340 = vmatpush1.msra.mxu0 0.0
        %4341 = vmatprep.subr.mxu0 0.0
        %4342 = vmatpush1.msra.mxu0 0.0
        %4343 = vmatprep.subr.mxu0 0.0
        %4344 = vmatpush1.msra.mxu0 0.0
        %4345 = vmatprep.subr.mxu0 0.0
        %4346 = vmatpush1.msra.mxu0 0.0
        %4347 = vmatprep.subr.mxu0 0.0
        %4348 = vmatpush1.msra.mxu0 0.0
        %4349 = vmatprep.subr.mxu0 0.0
        %4350 = vmatpush1.msra.mxu0 0.0
        %4351 = vmatprep.subr.mxu0 0.0
        %4352 = vmatpush1.msra.mxu0 0.0
        %4353 = vmatprep.subr.mxu0 0.0
        %4354 = vmatpush1.msra.mxu0 0.0
        %4355 = vmatprep.subr.mxu0 0.0
        %4356 = vmatpush1.msra.mxu0 0.0
        %4357 = vmatprep.subr.mxu0 0.0
        %4358 = vmatpush1.msra.mxu0 0.0
        %4359 = vmatprep.subr.mxu0 0.0
        %4360 = vmatpush1.msra.mxu0 0.0
        %4361 = vmatprep.subr.mxu0 0.0
        %4362 = vmatpush1.msra.mxu0 0.0
        %4363 = vmatprep.mubr.f32.mxu0 0.0
        %4364 = vmatmul.mubr.f32.gmra.mrb[0].mxu0 %v4297
        %v4365 = vpop.f32.mrb[0].mxu0
        %v4366 = vadd.f32 0.0, %v4365
        %v4367 = vpop.f32.mrb[0].mxu0
        %4368 = vdwg.mxu0
        %v4370 = vrot.slane %v4366, 3
        %v4372 = vadd.f32 %v3228, %v4370
        %v4374 = vrot.slane %v4292, 3
        %4375 = vrot.lane.b32.xlu0 %v4374, 32
        %v4376 = vpop.permute.xlu0 %4375
        %v4377 = vsel %vm1598, %v4376, 0
        %4379 = vmatprep.subr.mxu0 0.0
        %4380 = vmatpush1.msra.mxu0 %v3238
        %4381 = vmatprep.subr.mxu0 0.0
        %4382 = vmatpush1.msra.mxu0 %v3239
        %4383 = vmatprep.subr.mxu0 0.0
        %4384 = vmatpush1.msra.mxu0 %v3240
        %4385 = vmatprep.subr.mxu0 0.0
        %4386 = vmatpush1.msra.mxu0 %v3241
        %4387 = vmatprep.subr.mxu0 0.0
        %4388 = vmatpush1.msra.mxu0 0.0
        %4389 = vmatprep.subr.mxu0 0.0
        %4390 = vmatpush1.msra.mxu0 0.0
        %4391 = vmatprep.subr.mxu0 0.0
        %4392 = vmatpush1.msra.mxu0 0.0
        %4393 = vmatprep.subr.mxu0 0.0
        %4394 = vmatpush1.msra.mxu0 0.0
        %4395 = vmatprep.subr.mxu0 0.0
        %4396 = vmatpush1.msra.mxu0 0.0
        %4397 = vmatprep.subr.mxu0 0.0
        %4398 = vmatpush1.msra.mxu0 0.0
        %4399 = vmatprep.subr.mxu0 0.0
        %4400 = vmatpush1.msra.mxu0 0.0
        %4401 = vmatprep.subr.mxu0 0.0
        %4402 = vmatpush1.msra.mxu0 0.0
        %4403 = vmatprep.subr.mxu0 0.0
        %4404 = vmatpush1.msra.mxu0 0.0
        %4405 = vmatprep.subr.mxu0 0.0
        %4406 = vmatpush1.msra.mxu0 0.0
        %4407 = vmatprep.subr.mxu0 0.0
        %4408 = vmatpush1.msra.mxu0 0.0
        %4409 = vmatprep.subr.mxu0 0.0
        %4410 = vmatpush1.msra.mxu0 0.0
        %4411 = vmatprep.subr.mxu0 0.0
        %4412 = vmatpush1.msra.mxu0 0.0
        %4413 = vmatprep.subr.mxu0 0.0
        %4414 = vmatpush1.msra.mxu0 0.0
        %4415 = vmatprep.subr.mxu0 0.0
        %4416 = vmatpush1.msra.mxu0 0.0
        %4417 = vmatprep.subr.mxu0 0.0
        %4418 = vmatpush1.msra.mxu0 0.0
        %4419 = vmatprep.subr.mxu0 0.0
        %4420 = vmatpush1.msra.mxu0 0.0
        %4421 = vmatprep.subr.mxu0 0.0
        %4422 = vmatpush1.msra.mxu0 0.0
        %4423 = vmatprep.subr.mxu0 0.0
        %4424 = vmatpush1.msra.mxu0 0.0
        %4425 = vmatprep.subr.mxu0 0.0
        %4426 = vmatpush1.msra.mxu0 0.0
        %4427 = vmatprep.subr.mxu0 0.0
        %4428 = vmatpush1.msra.mxu0 0.0
        %4429 = vmatprep.subr.mxu0 0.0
        %4430 = vmatpush1.msra.mxu0 0.0
        %4431 = vmatprep.subr.mxu0 0.0
        %4432 = vmatpush1.msra.mxu0 0.0
        %4433 = vmatprep.subr.mxu0 0.0
        %4434 = vmatpush1.msra.mxu0 0.0
        %4435 = vmatprep.subr.mxu0 0.0
        %4436 = vmatpush1.msra.mxu0 0.0
        %4437 = vmatprep.subr.mxu0 0.0
        %4438 = vmatpush1.msra.mxu0 0.0
        %4439 = vmatprep.subr.mxu0 0.0
        %4440 = vmatpush1.msra.mxu0 0.0
        %4441 = vmatprep.subr.mxu0 0.0
        %4442 = vmatpush1.msra.mxu0 0.0
        %4443 = vmatprep.mubr.f32.mxu0 0.0
        %4444 = vmatmul.mubr.f32.gmra.mrb[0].mxu0 %v4377
        %v4445 = vpop.f32.mrb[0].mxu0
        %v4446 = vadd.f32 0.0, %v4445
        %v4447 = vpop.f32.mrb[0].mxu0
        %4448 = vdwg.mxu0
        %v4450 = vrot.slane %v4446, 6
        %v4452 = vadd.f32 %v3230, %v4450
        %v4453 = vxor.u32 %v4372, 2147483648
        %v4454 = vmul.f32 %v4453, 1.442695
        %v4455 = vpow.pop %v4454
        %v4456 = vadd.f32 %v4455, 1.0
        %v4457 = vrcp.pop %v4456
        %v4458 = vmul.f32 1.0, %v4457
        %v4459 = vtanh.pop %v4372
        %v4461 = vrot.slane %v4259, 7
        %v4463 = vmul.f32 %v4458, %v4461
        %4465 = vrot.lane.b32.xlu0 %v4459, 64
        %v4466 = vpop.permute.xlu0 %4465
        %v4468 = vmul.f32 %v4458, %v4466
        %4470 = vrot.lane.b32.xlu0 %v4468, 32
        %v4471 = vpop.permute.xlu0 %4470
        %v4473 = vadd.f32 %v4463, %v4471
        %v4474 = vtanh.pop %v4473
        %4476 = vrot.lane.b32.xlu0 %v4474, 64
        %v4477 = vpop.permute.xlu0 %4476
        %v4479 = vmul.f32 %v4458, %v4477
        %v4480 = vxor.u32 %v4452, 2147483648
        %v4481 = vmul.f32 %v4480, 1.442695
        %v4482 = vpow.pop %v4481
        %v4483 = vadd.f32 %v4482, 1.0
        %v4484 = vrcp.pop %v4483
        %v4485 = vmul.f32 1.0, %v4484
        %v4486 = vtanh.pop %v4452
        %v4488 = vrot.slane %v4286, 1
        %v4490 = vmul.f32 %v4485, %v4488
        %4492 = vrot.lane.b32.xlu0 %v4486, 64
        %v4493 = vpop.permute.xlu0 %4492
        %v4495 = vmul.f32 %v4485, %v4493
        %4497 = vrot.lane.b32.xlu0 %v4495, 32
        %v4498 = vpop.permute.xlu0 %4497
        %v4500 = vadd.f32 %v4490, %v4498
        %v4501 = vtanh.pop %v4500
        %4503 = vrot.lane.b32.xlu0 %v4501, 64
        %v4504 = vpop.permute.xlu0 %4503
        %v4506 = vmul.f32 %v4485, %v4504
        %v4508 = vrot.slane %v4479, 5
        %4509 = vrot.lane.b32.xlu0 %v4508, 32
        %v4510 = vpop.permute.xlu0 %4509
        %v4511 = vsel %vm1598, %v4510, 0
        %4513 = vmatprep.subr.mxu0 0.0
        %4514 = vmatpush1.msra.mxu0 %v3234
        %4515 = vmatprep.subr.mxu0 0.0
        %4516 = vmatpush1.msra.mxu0 %v3235
        %4517 = vmatprep.subr.mxu0 0.0
        %4518 = vmatpush1.msra.mxu0 %v3236
        %4519 = vmatprep.subr.mxu0 0.0
        %4520 = vmatpush1.msra.mxu0 %v3237
        %4521 = vmatprep.subr.mxu0 0.0
        %4522 = vmatpush1.msra.mxu0 0.0
        %4523 = vmatprep.subr.mxu0 0.0
        %4524 = vmatpush1.msra.mxu0 0.0
        %4525 = vmatprep.subr.mxu0 0.0
        %4526 = vmatpush1.msra.mxu0 0.0
        %4527 = vmatprep.subr.mxu0 0.0
        %4528 = vmatpush1.msra.mxu0 0.0
        %4529 = vmatprep.subr.mxu0 0.0
        %4530 = vmatpush1.msra.mxu0 0.0
        %4531 = vmatprep.subr.mxu0 0.0
        %4532 = vmatpush1.msra.mxu0 0.0
        %4533 = vmatprep.subr.mxu0 0.0
        %4534 = vmatpush1.msra.mxu0 0.0
        %4535 = vmatprep.subr.mxu0 0.0
        %4536 = vmatpush1.msra.mxu0 0.0
        %4537 = vmatprep.subr.mxu0 0.0
        %4538 = vmatpush1.msra.mxu0 0.0
        %4539 = vmatprep.subr.mxu0 0.0
        %4540 = vmatpush1.msra.mxu0 0.0
        %4541 = vmatprep.subr.mxu0 0.0
        %4542 = vmatpush1.msra.mxu0 0.0
        %4543 = vmatprep.subr.mxu0 0.0
        %4544 = vmatpush1.msra.mxu0 0.0
        %4545 = vmatprep.subr.mxu0 0.0
        %4546 = vmatpush1.msra.mxu0 0.0
        %4547 = vmatprep.subr.mxu0 0.0
        %4548 = vmatpush1.msra.mxu0 0.0
        %4549 = vmatprep.subr.mxu0 0.0
        %4550 = vmatpush1.msra.mxu0 0.0
        %4551 = vmatprep.subr.mxu0 0.0
        %4552 = vmatpush1.msra.mxu0 0.0
        %4553 = vmatprep.subr.mxu0 0.0
        %4554 = vmatpush1.msra.mxu0 0.0
        %4555 = vmatprep.subr.mxu0 0.0
        %4556 = vmatpush1.msra.mxu0 0.0
        %4557 = vmatprep.subr.mxu0 0.0
        %4558 = vmatpush1.msra.mxu0 0.0
        %4559 = vmatprep.subr.mxu0 0.0
        %4560 = vmatpush1.msra.mxu0 0.0
        %4561 = vmatprep.subr.mxu0 0.0
        %4562 = vmatpush1.msra.mxu0 0.0
        %4563 = vmatprep.subr.mxu0 0.0
        %4564 = vmatpush1.msra.mxu0 0.0
        %4565 = vmatprep.subr.mxu0 0.0
        %4566 = vmatpush1.msra.mxu0 0.0
        %4567 = vmatprep.subr.mxu0 0.0
        %4568 = vmatpush1.msra.mxu0 0.0
        %4569 = vmatprep.subr.mxu0 0.0
        %4570 = vmatpush1.msra.mxu0 0.0
        %4571 = vmatprep.subr.mxu0 0.0
        %4572 = vmatpush1.msra.mxu0 0.0
        %4573 = vmatprep.subr.mxu0 0.0
        %4574 = vmatpush1.msra.mxu0 0.0
        %4575 = vmatprep.subr.mxu0 0.0
        %4576 = vmatpush1.msra.mxu0 0.0
        %4577 = vmatprep.mubr.f32.mxu0 0.0
        %4578 = vmatmul.mubr.f32.gmra.mrb[0].mxu0 %v4511
        %v4579 = vpop.f32.mrb[0].mxu0
        %v4580 = vadd.f32 0.0, %v4579
        %v4581 = vpop.f32.mrb[0].mxu0
        %4582 = vdwg.mxu0
        %v4584 = vrot.slane %v4580, 2
        %v4586 = vadd.f32 %v3228, %v4584
        %v4588 = vrot.slane %v4506, 2
        %4589 = vrot.lane.b32.xlu0 %v4588, 32
        %v4590 = vpop.permute.xlu0 %4589
        %v4591 = vsel %vm1598, %v4590, 0
        %4593 = vmatprep.subr.mxu0 0.0
        %4594 = vmatpush1.msra.mxu0 %v3238
        %4595 = vmatprep.subr.mxu0 0.0
        %4596 = vmatpush1.msra.mxu0 %v3239
        %4597 = vmatprep.subr.mxu0 0.0
        %4598 = vmatpush1.msra.mxu0 %v3240
        %4599 = vmatprep.subr.mxu0 0.0
        %4600 = vmatpush1.msra.mxu0 %v3241
        %4601 = vmatprep.subr.mxu0 0.0
        %4602 = vmatpush1.msra.mxu0 0.0
        %4603 = vmatprep.subr.mxu0 0.0
        %4604 = vmatpush1.msra.mxu0 0.0
        %4605 = vmatprep.subr.mxu0 0.0
        %4606 = vmatpush1.msra.mxu0 0.0
        %4607 = vmatprep.subr.mxu0 0.0
        %4608 = vmatpush1.msra.mxu0 0.0
        %4609 = vmatprep.subr.mxu0 0.0
        %4610 = vmatpush1.msra.mxu0 0.0
        %4611 = vmatprep.subr.mxu0 0.0
        %4612 = vmatpush1.msra.mxu0 0.0
        %4613 = vmatprep.subr.mxu0 0.0
        %4614 = vmatpush1.msra.mxu0 0.0
        %4615 = vmatprep.subr.mxu0 0.0
        %4616 = vmatpush1.msra.mxu0 0.0
        %4617 = vmatprep.subr.mxu0 0.0
        %4618 = vmatpush1.msra.mxu0 0.0
        %4619 = vmatprep.subr.mxu0 0.0
        %4620 = vmatpush1.msra.mxu0 0.0
        %4621 = vmatprep.subr.mxu0 0.0
        %4622 = vmatpush1.msra.mxu0 0.0
        %4623 = vmatprep.subr.mxu0 0.0
        %4624 = vmatpush1.msra.mxu0 0.0
        %4625 = vmatprep.subr.mxu0 0.0
        %4626 = vmatpush1.msra.mxu0 0.0
        %4627 = vmatprep.subr.mxu0 0.0
        %4628 = vmatpush1.msra.mxu0 0.0
        %4629 = vmatprep.subr.mxu0 0.0
        %4630 = vmatpush1.msra.mxu0 0.0
        %4631 = vmatprep.subr.mxu0 0.0
        %4632 = vmatpush1.msra.mxu0 0.0
        %4633 = vmatprep.subr.mxu0 0.0
        %4634 = vmatpush1.msra.mxu0 0.0
        %4635 = vmatprep.subr.mxu0 0.0
        %4636 = vmatpush1.msra.mxu0 0.0
        %4637 = vmatprep.subr.mxu0 0.0
        %4638 = vmatpush1.msra.mxu0 0.0
        %4639 = vmatprep.subr.mxu0 0.0
        %4640 = vmatpush1.msra.mxu0 0.0
        %4641 = vmatprep.subr.mxu0 0.0
        %4642 = vmatpush1.msra.mxu0 0.0
        %4643 = vmatprep.subr.mxu0 0.0
        %4644 = vmatpush1.msra.mxu0 0.0
        %4645 = vmatprep.subr.mxu0 0.0
        %4646 = vmatpush1.msra.mxu0 0.0
        %4647 = vmatprep.subr.mxu0 0.0
        %4648 = vmatpush1.msra.mxu0 0.0
        %4649 = vmatprep.subr.mxu0 0.0
        %4650 = vmatpush1.msra.mxu0 0.0
        %4651 = vmatprep.subr.mxu0 0.0
        %4652 = vmatpush1.msra.mxu0 0.0
        %4653 = vmatprep.subr.mxu0 0.0
        %4654 = vmatpush1.msra.mxu0 0.0
        %4655 = vmatprep.subr.mxu0 0.0
        %4656 = vmatpush1.msra.mxu0 0.0
        %4657 = vmatprep.mubr.f32.mxu0 0.0
        %4658 = vmatmul.mubr.f32.gmra.mrb[0].mxu0 %v4591
        %v4659 = vpop.f32.mrb[0].mxu0
        %v4660 = vadd.f32 0.0, %v4659
        %v4661 = vpop.f32.mrb[0].mxu0
        %4662 = vdwg.mxu0
        %v4664 = vrot.slane %v4660, 7
        %v4666 = vadd.f32 %v3230, %v4664
        %v4667 = vxor.u32 %v4586, 2147483648
        %v4668 = vmul.f32 %v4667, 1.442695
        %v4669 = vpow.pop %v4668
        %v4670 = vadd.f32 %v4669, 1.0
        %v4671 = vrcp.pop %v4670
        %v4672 = vmul.f32 1.0, %v4671
        %v4673 = vtanh.pop %v4586
        %v4675 = vrot.slane %v4473, 7
        %v4677 = vmul.f32 %v4672, %v4675
        %4679 = vrot.lane.b32.xlu0 %v4673, 64
        %v4680 = vpop.permute.xlu0 %4679
        %v4682 = vmul.f32 %v4672, %v4680
        %4684 = vrot.lane.b32.xlu0 %v4682, 32
        %v4685 = vpop.permute.xlu0 %4684
        %v4687 = vadd.f32 %v4677, %v4685
        %v4688 = vtanh.pop %v4687
        %4690 = vrot.lane.b32.xlu0 %v4688, 64
        %v4691 = vpop.permute.xlu0 %4690
        %v4693 = vmul.f32 %v4672, %v4691
        %v4694 = vxor.u32 %v4666, 2147483648
        %v4695 = vmul.f32 %v4694, 1.442695
        %v4696 = vpow.pop %v4695
        %v4697 = vadd.f32 %v4696, 1.0
        %v4698 = vrcp.pop %v4697
        %v4699 = vmul.f32 1.0, %v4698
        %v4700 = vtanh.pop %v4666
        %v4702 = vrot.slane %v4500, 1
        %v4704 = vmul.f32 %v4699, %v4702
        %4706 = vrot.lane.b32.xlu0 %v4700, 64
        %v4707 = vpop.permute.xlu0 %4706
        %v4709 = vmul.f32 %v4699, %v4707
        %4711 = vrot.lane.b32.xlu0 %v4709, 32
        %v4712 = vpop.permute.xlu0 %4711
        %v4714 = vadd.f32 %v4704, %v4712
        %v4715 = vtanh.pop %v4714
        %4717 = vrot.lane.b32.xlu0 %v4715, 64
        %v4718 = vpop.permute.xlu0 %4717
        %v4720 = vmul.f32 %v4699, %v4718
        %v4722 = vrot.slane %v4693, 6
        %4723 = vrot.lane.b32.xlu0 %v4722, 32
        %v4724 = vpop.permute.xlu0 %4723
        %v4725 = vsel %vm1598, %v4724, 0
        %4727 = vmatprep.subr.mxu0 0.0
        %4728 = vmatpush1.msra.mxu0 %v3234
        %4729 = vmatprep.subr.mxu0 0.0
        %4730 = vmatpush1.msra.mxu0 %v3235
        %4731 = vmatprep.subr.mxu0 0.0
        %4732 = vmatpush1.msra.mxu0 %v3236
        %4733 = vmatprep.subr.mxu0 0.0
        %4734 = vmatpush1.msra.mxu0 %v3237
        %4735 = vmatprep.subr.mxu0 0.0
        %4736 = vmatpush1.msra.mxu0 0.0
        %4737 = vmatprep.subr.mxu0 0.0
        %4738 = vmatpush1.msra.mxu0 0.0
        %4739 = vmatprep.subr.mxu0 0.0
        %4740 = vmatpush1.msra.mxu0 0.0
        %4741 = vmatprep.subr.mxu0 0.0
        %4742 = vmatpush1.msra.mxu0 0.0
        %4743 = vmatprep.subr.mxu0 0.0
        %4744 = vmatpush1.msra.mxu0 0.0
        %4745 = vmatprep.subr.mxu0 0.0
        %4746 = vmatpush1.msra.mxu0 0.0
        %4747 = vmatprep.subr.mxu0 0.0
        %4748 = vmatpush1.msra.mxu0 0.0
        %4749 = vmatprep.subr.mxu0 0.0
        %4750 = vmatpush1.msra.mxu0 0.0
        %4751 = vmatprep.subr.mxu0 0.0
        %4752 = vmatpush1.msra.mxu0 0.0
        %4753 = vmatprep.subr.mxu0 0.0
        %4754 = vmatpush1.msra.mxu0 0.0
        %4755 = vmatprep.subr.mxu0 0.0
        %4756 = vmatpush1.msra.mxu0 0.0
        %4757 = vmatprep.subr.mxu0 0.0
        %4758 = vmatpush1.msra.mxu0 0.0
        %4759 = vmatprep.subr.mxu0 0.0
        %4760 = vmatpush1.msra.mxu0 0.0
        %4761 = vmatprep.subr.mxu0 0.0
        %4762 = vmatpush1.msra.mxu0 0.0
        %4763 = vmatprep.subr.mxu0 0.0
        %4764 = vmatpush1.msra.mxu0 0.0
        %4765 = vmatprep.subr.mxu0 0.0
        %4766 = vmatpush1.msra.mxu0 0.0
        %4767 = vmatprep.subr.mxu0 0.0
        %4768 = vmatpush1.msra.mxu0 0.0
        %4769 = vmatprep.subr.mxu0 0.0
        %4770 = vmatpush1.msra.mxu0 0.0
        %4771 = vmatprep.subr.mxu0 0.0
        %4772 = vmatpush1.msra.mxu0 0.0
        %4773 = vmatprep.subr.mxu0 0.0
        %4774 = vmatpush1.msra.mxu0 0.0
        %4775 = vmatprep.subr.mxu0 0.0
        %4776 = vmatpush1.msra.mxu0 0.0
        %4777 = vmatprep.subr.mxu0 0.0
        %4778 = vmatpush1.msra.mxu0 0.0
        %4779 = vmatprep.subr.mxu0 0.0
        %4780 = vmatpush1.msra.mxu0 0.0
        %4781 = vmatprep.subr.mxu0 0.0
        %4782 = vmatpush1.msra.mxu0 0.0
        %4783 = vmatprep.subr.mxu0 0.0
        %4784 = vmatpush1.msra.mxu0 0.0
        %4785 = vmatprep.subr.mxu0 0.0
        %4786 = vmatpush1.msra.mxu0 0.0
        %4787 = vmatprep.subr.mxu0 0.0
        %4788 = vmatpush1.msra.mxu0 0.0
        %4789 = vmatprep.subr.mxu0 0.0
        %4790 = vmatpush1.msra.mxu0 0.0
        %4791 = vmatprep.mubr.f32.mxu0 0.0
        %4792 = vmatmul.mubr.f32.gmra.mrb[0].mxu0 %v4725
        %v4793 = vpop.f32.mrb[0].mxu0
        %v4794 = vadd.f32 0.0, %v4793
        %v4795 = vpop.f32.mrb[0].mxu0
        %4796 = vdwg.mxu0
        %v4798 = vrot.slane %v4794, 1
        %v4800 = vadd.f32 %v3228, %v4798
        %v4802 = vrot.slane %v4720, 1
        %4803 = vrot.lane.b32.xlu0 %v4802, 32
        %v4804 = vpop.permute.xlu0 %4803
        %v4805 = vsel %vm1598, %v4804, 0
        %4807 = vmatprep.subr.mxu0 0.0
        %4808 = vmatpush1.msra.mxu0 %v3238
        %4809 = vmatprep.subr.mxu0 0.0
        %4810 = vmatpush1.msra.mxu0 %v3239
        %4811 = vmatprep.subr.mxu0 0.0
        %4812 = vmatpush1.msra.mxu0 %v3240
        %4813 = vmatprep.subr.mxu0 0.0
        %4814 = vmatpush1.msra.mxu0 %v3241
        %4815 = vmatprep.subr.mxu0 0.0
        %4816 = vmatpush1.msra.mxu0 0.0
        %4817 = vmatprep.subr.mxu0 0.0
        %4818 = vmatpush1.msra.mxu0 0.0
        %4819 = vmatprep.subr.mxu0 0.0
        %4820 = vmatpush1.msra.mxu0 0.0
        %4821 = vmatprep.subr.mxu0 0.0
        %4822 = vmatpush1.msra.mxu0 0.0
        %4823 = vmatprep.subr.mxu0 0.0
        %4824 = vmatpush1.msra.mxu0 0.0
        %4825 = vmatprep.subr.mxu0 0.0
        %4826 = vmatpush1.msra.mxu0 0.0
        %4827 = vmatprep.subr.mxu0 0.0
        %4828 = vmatpush1.msra.mxu0 0.0
        %4829 = vmatprep.subr.mxu0 0.0
        %4830 = vmatpush1.msra.mxu0 0.0
        %4831 = vmatprep.subr.mxu0 0.0
        %4832 = vmatpush1.msra.mxu0 0.0
        %4833 = vmatprep.subr.mxu0 0.0
        %4834 = vmatpush1.msra.mxu0 0.0
        %4835 = vmatprep.subr.mxu0 0.0
        %4836 = vmatpush1.msra.mxu0 0.0
        %4837 = vmatprep.subr.mxu0 0.0
        %4838 = vmatpush1.msra.mxu0 0.0
        %4839 = vmatprep.subr.mxu0 0.0
        %4840 = vmatpush1.msra.mxu0 0.0
        %4841 = vmatprep.subr.mxu0 0.0
        %4842 = vmatpush1.msra.mxu0 0.0
        %4843 = vmatprep.subr.mxu0 0.0
        %4844 = vmatpush1.msra.mxu0 0.0
        %4845 = vmatprep.subr.mxu0 0.0
        %4846 = vmatpush1.msra.mxu0 0.0
        %4847 = vmatprep.subr.mxu0 0.0
        %4848 = vmatpush1.msra.mxu0 0.0
        %4849 = vmatprep.subr.mxu0 0.0
        %4850 = vmatpush1.msra.mxu0 0.0
        %4851 = vmatprep.subr.mxu0 0.0
        %4852 = vmatpush1.msra.mxu0 0.0
        %4853 = vmatprep.subr.mxu0 0.0
        %4854 = vmatpush1.msra.mxu0 0.0
        %4855 = vmatprep.subr.mxu0 0.0
        %4856 = vmatpush1.msra.mxu0 0.0
        %4857 = vmatprep.subr.mxu0 0.0
        %4858 = vmatpush1.msra.mxu0 0.0
        %4859 = vmatprep.subr.mxu0 0.0
        %4860 = vmatpush1.msra.mxu0 0.0
        %4861 = vmatprep.subr.mxu0 0.0
        %4862 = vmatpush1.msra.mxu0 0.0
        %4863 = vmatprep.subr.mxu0 0.0
        %4864 = vmatpush1.msra.mxu0 0.0
        %4865 = vmatprep.subr.mxu0 0.0
        %4866 = vmatpush1.msra.mxu0 0.0
        %4867 = vmatprep.subr.mxu0 0.0
        %4868 = vmatpush1.msra.mxu0 0.0
        %4869 = vmatprep.subr.mxu0 0.0
        %4870 = vmatpush1.msra.mxu0 0.0
        %4871 = vmatprep.mubr.f32.mxu0 0.0
        %4872 = vmatmul.mubr.f32.gmra.mrb[0].mxu0 %v4805
        %v4873 = vpop.f32.mrb[0].mxu0
        %v4874 = vadd.f32 0.0, %v4873
        %v4875 = vpop.f32.mrb[0].mxu0
        %4876 = vdwg.mxu0
        %v4877 = vadd.f32 %v3230, %v4874
        %v4878 = vxor.u32 %v4800, 2147483648
        %v4879 = vmul.f32 %v4878, 1.442695
        %v4880 = vpow.pop %v4879
        %v4881 = vadd.f32 %v4880, 1.0
        %v4882 = vrcp.pop %v4881
        %v4883 = vmul.f32 1.0, %v4882
        %v4884 = vtanh.pop %v4800
        %v4886 = vrot.slane %v4687, 7
        %v4888 = vmul.f32 %v4883, %v4886
        %4890 = vrot.lane.b32.xlu0 %v4884, 64
        %v4891 = vpop.permute.xlu0 %4890
        %v4893 = vmul.f32 %v4883, %v4891
        %4895 = vrot.lane.b32.xlu0 %v4893, 32
        %v4896 = vpop.permute.xlu0 %4895
        %v4898 = vadd.f32 %v4888, %v4896
        %v4899 = vtanh.pop %v4898
        %4901 = vrot.lane.b32.xlu0 %v4899, 64
        %v4902 = vpop.permute.xlu0 %4901
        %v4904 = vmul.f32 %v4883, %v4902
        %v4905 = vxor.u32 %v4877, 2147483648
        %v4906 = vmul.f32 %v4905, 1.442695
        %v4907 = vpow.pop %v4906
        %v4908 = vadd.f32 %v4907, 1.0
        %v4909 = vrcp.pop %v4908
        %v4910 = vmul.f32 1.0, %v4909
        %v4911 = vtanh.pop %v4877
        %v4913 = vrot.slane %v4714, 1
        %v4915 = vmul.f32 %v4910, %v4913
        %4917 = vrot.lane.b32.xlu0 %v4911, 64
        %v4918 = vpop.permute.xlu0 %4917
        %v4920 = vmul.f32 %v4910, %v4918
        %4922 = vrot.lane.b32.xlu0 %v4920, 32
        %v4923 = vpop.permute.xlu0 %4922
        %v4925 = vadd.f32 %v4915, %v4923
        %v4926 = vtanh.pop %v4925
        %4928 = vrot.lane.b32.xlu0 %v4926, 64
        %v4929 = vpop.permute.xlu0 %4928
        %v4931 = vmul.f32 %v4910, %v4929
        %vm4932 = vcmask 1040384
        %v4933 = vsel %vm4932, %v3413, %v3623
        %vm4934 = vcmask 1041408
        %v4935 = vsel %vm4934, %v4933, %v3837
        %vm4936 = vcmask 1042432
        %v4937 = vsel %vm4936, %v4935, %v4051
        %vm4938 = vcmask 1043456
        %v4939 = vsel %vm4938, %v4937, %v4265
        %vm4940 = vcmask 1044480
        %v4941 = vsel %vm4940, %v4939, %v4479
        %vm4942 = vcmask 1045504
        %v4943 = vsel %vm4942, %v4941, %v4693
        %vm4944 = vcmask 1046528
        %v4945 = vsel %vm4944, %v4943, %v4904
        %v4946 = vsel %vm4932, %v4931, %v4720
        %v4947 = vsel %vm4934, %v4946, %v4506
        %v4948 = vsel %vm4936, %v4947, %v4292
        %v4949 = vsel %vm4938, %v4948, %v4078
        %v4950 = vsel %vm4940, %v4949, %v3864
        %v4951 = vsel %vm4942, %v4950, %v3650
        %v4952 = vsel %vm4944, %v4951, %v3437
        %4954 = vrot.lane.b32.xlu0 %v4945, 32
        %v4955 = vpop.permute.xlu0 %4954
        %4958 = vrot.lane.b32.xlu0 %v4952, 64
        %v4959 = vpop.permute.xlu0 %4958
        %v4961 = vsel %vm1598, %v4955, %v4959
        %v4962 = vld [vmem:[%s20] sm:$0xff]
        %v4963 = vld [vmem:[%s20 + $0x8] sm:$0xff]
        %v4964 = vld [vmem:[%s20 + $0x10] sm:$0xff]
        %v4965 = vld [vmem:[%s20 + $0x18] sm:$0xff]
        %v4966 = vld [vmem:[%s20 + $0x20] sm:$0xff]
        %v4967 = vld [vmem:[%s20 + $0x28] sm:$0xff]
        %v4968 = vld [vmem:[%s20 + $0x30] sm:$0xff]
        %v4969 = vld [vmem:[%s20 + $0x38] sm:$0xff]
        %v4970 = vld [vmem:[%s21] sm:$0x1]
        %v4972 = vlaneseq
        %v4973 = vshrl.u32 %v4972, 7
        %v4974 = vsub.s32 0, %v4973
        %v4975 = vrot.slane %v4970, %v4974
        %v4978 = vsel %vm777, %v4961, 0
        %4980 = vmatprep.subr.mxu0 0.0
        %4981 = vmatpush1.msra.mxu0 %v4962
        %4982 = vmatprep.subr.mxu0 0.0
        %4983 = vmatpush1.msra.mxu0 %v4963
        %4984 = vmatprep.subr.mxu0 0.0
        %4985 = vmatpush1.msra.mxu0 %v4964
        %4986 = vmatprep.subr.mxu0 0.0
        %4987 = vmatpush1.msra.mxu0 %v4965
        %4988 = vmatprep.subr.mxu0 0.0
        %4989 = vmatpush1.msra.mxu0 %v4966
        %4990 = vmatprep.subr.mxu0 0.0
        %4991 = vmatpush1.msra.mxu0 %v4967
        %4992 = vmatprep.subr.mxu0 0.0
        %4993 = vmatpush1.msra.mxu0 %v4968
        %4994 = vmatprep.subr.mxu0 0.0
        %4995 = vmatpush1.msra.mxu0 %v4969
        %4996 = vmatprep.subr.mxu0 0.0
        %4997 = vmatpush1.msra.mxu0 0.0
        %4998 = vmatprep.subr.mxu0 0.0
        %4999 = vmatpush1.msra.mxu0 0.0
        %5000 = vmatprep.subr.mxu0 0.0
        %5001 = vmatpush1.msra.mxu0 0.0
        %5002 = vmatprep.subr.mxu0 0.0
        %5003 = vmatpush1.msra.mxu0 0.0
        %5004 = vmatprep.subr.mxu0 0.0
        %5005 = vmatpush1.msra.mxu0 0.0
        %5006 = vmatprep.subr.mxu0 0.0
        %5007 = vmatpush1.msra.mxu0 0.0
        %5008 = vmatprep.subr.mxu0 0.0
        %5009 = vmatpush1.msra.mxu0 0.0
        %5010 = vmatprep.subr.mxu0 0.0
        %5011 = vmatpush1.msra.mxu0 0.0
        %5012 = vmatprep.subr.mxu0 0.0
        %5013 = vmatpush1.msra.mxu0 0.0
        %5014 = vmatprep.subr.mxu0 0.0
        %5015 = vmatpush1.msra.mxu0 0.0
        %5016 = vmatprep.subr.mxu0 0.0
        %5017 = vmatpush1.msra.mxu0 0.0
        %5018 = vmatprep.subr.mxu0 0.0
        %5019 = vmatpush1.msra.mxu0 0.0
        %5020 = vmatprep.subr.mxu0 0.0
        %5021 = vmatpush1.msra.mxu0 0.0
        %5022 = vmatprep.subr.mxu0 0.0
        %5023 = vmatpush1.msra.mxu0 0.0
        %5024 = vmatprep.subr.mxu0 0.0
        %5025 = vmatpush1.msra.mxu0 0.0
        %5026 = vmatprep.subr.mxu0 0.0
        %5027 = vmatpush1.msra.mxu0 0.0
        %5028 = vmatprep.subr.mxu0 0.0
        %5029 = vmatpush1.msra.mxu0 0.0
        %5030 = vmatprep.subr.mxu0 0.0
        %5031 = vmatpush1.msra.mxu0 0.0
        %5032 = vmatprep.subr.mxu0 0.0
        %5033 = vmatpush1.msra.mxu0 0.0
        %5034 = vmatprep.subr.mxu0 0.0
        %5035 = vmatpush1.msra.mxu0 0.0
        %5036 = vmatprep.subr.mxu0 0.0
        %5037 = vmatpush1.msra.mxu0 0.0
        %5038 = vmatprep.subr.mxu0 0.0
        %5039 = vmatpush1.msra.mxu0 0.0
        %5040 = vmatprep.subr.mxu0 0.0
        %5041 = vmatpush1.msra.mxu0 0.0
        %5042 = vmatprep.subr.mxu0 0.0
        %5043 = vmatpush1.msra.mxu0 0.0
        %5044 = vmatprep.mubr.f32.mxu0 0.0
        %5045 = vmatmul.mubr.f32.gmra.mrb[0].mxu0 %v4978
        %v5046 = vpop.f32.mrb[0].mxu0
        %v5047 = vadd.f32 %v4975, %v5046
        %v5048 = vpop.f32.mrb[0].mxu0
        %5049 = vdwg.mxu0
        %v5050 = vld [vmem:[%s22] sm:$0x1f]
        %v5051 = vlaneseq
        %v5052 = vand.u32 %v5051, 127
        %v5053 = vld [vmem:[%s23] sm:$0x1]
        %v5054 = vadd.f32 %v5053, %v5047
        %v5056 = vlaneseq
        %v5057 = vshrl.u32 %v5056, 7
        %v5058 = vsub.s32 0, %v5057
        %v5059 = vrot.slane %v5054, %v5058
        %v5061 = vadd.f32 %v5059, %v5050
        %vm5062 = vcmask 36864
        %v5063 = vsel %vm5062, %v5061, -inf
        %5064 = vmax.xlane.f32.xlu0 %v5063
        %v5065 = vpop.xlane.xlu0 %5064
        %vm5066 = vcmp.eq.f32.partialorder %v5061, %v5065
        %v5067 = vsel %vm5066, %v5052, 5
        %v5068 = vsel %vm5062, %v5067, 2147483647
        %v5069 = vand.u32 %v5068, 65535
        %v5070 = vshra.s32 %v5068, 16
        %v5071 = vcvt.s32.f32 %v5069
        %v5072 = vcvt.s32.f32 %v5070
        %5073 = vmin.xlane.f32.xlu0 %v5072
        %v5074 = vpop.xlane.xlu0 %5073
        %vm5075 = vcmp.eq.f32.partialorder %v5072, %v5074
        %v5076 = vsel %vm5075, %v5071, inf
        %5077 = vmin.xlane.f32.xlu0 %v5076
        %v5078 = vpop.xlane.xlu0 %5077
        %v5079 = vcvt.f32.s32 %v5078
        %v5080 = vcvt.f32.s32 %v5074
        %v5081 = vshll.u32 %v5080, 16
        %v5082 = vadd.s32 %v5081, %v5079
        %v5084 = vlaneseq
        %v5085 = vshrl.u32 %v5084, 7
        %v5086 = vsub.s32 1, %v5085
        %v5087 = vrot.slane %v5047, %v5086
        %5089 = vbcast.lane.b32.xlu0 %v5087, 256
        %v5090 = vpop.permute.xlu0 %5089
        %v5092 = vadd.f32 %v5065, %v5090
        %v5094 = vlaneseq
        %v5095 = vshrl.u32 %v5094, 7
        %v5096 = vsub.s32 0, %v5095
        %v5097 = vrot.slane %v5050, %v5096
        %5099 = vbcast.lane.b32.xlu0 %v5097, 256
        %v5100 = vpop.permute.xlu0 %5099
        %v5101 = vlaneseq
        %v5102 = vshrl.u32 %v5101, 7
        %v5103 = vsub.s32 1, %v5102
        %v5104 = vrot.slane %v5050, %v5103
        %5106 = vbcast.lane.b32.xlu0 %v5104, 256
        %v5107 = vpop.permute.xlu0 %5106
        %v5108 = vlaneseq
        %v5109 = vshrl.u32 %v5108, 7
        %v5110 = vsub.s32 2, %v5109
        %v5111 = vrot.slane %v5050, %v5110
        %5113 = vbcast.lane.b32.xlu0 %v5111, 256
        %v5114 = vpop.permute.xlu0 %5113
        %v5115 = vlaneseq
        %v5116 = vshrl.u32 %v5115, 7
        %v5117 = vsub.s32 3, %v5116
        %v5118 = vrot.slane %v5050, %v5117
        %5120 = vbcast.lane.b32.xlu0 %v5118, 256
        %v5121 = vpop.permute.xlu0 %5120
        %v5122 = vlaneseq
        %v5123 = vshrl.u32 %v5122, 7
        %v5124 = vsub.s32 4, %v5123
        %v5125 = vrot.slane %v5050, %v5124
        %5127 = vbcast.lane.b32.xlu0 %v5125, 256
        %v5128 = vpop.permute.xlu0 %5127
        %v5134 = vadd.f32 %v5092, %v5100
        %v5135 = vadd.f32 %v5092, %v5107
        %v5136 = vadd.f32 %v5092, %v5114
        %v5137 = vadd.f32 %v5092, %v5121
        %v5138 = vadd.f32 %v5092, %v5128
        %5144 = vset.pattern.permute.xlu0 0
        %5145 = vperm.xlu0 %5144, %v5134
        %v5146 = vpop.permute.xlu0 %5145
        %5147 = vset.pattern.permute.xlu0 0
        %5148 = vperm.xlu0 %5147, %v5135
        %v5149 = vpop.permute.xlu0 %5148
        %5150 = vset.pattern.permute.xlu0 0
        %5151 = vperm.xlu0 %5150, %v5136
        %v5152 = vpop.permute.xlu0 %5151
        %5153 = vset.pattern.permute.xlu0 0
        %5154 = vperm.xlu0 %5153, %v5137
        %v5155 = vpop.permute.xlu0 %5154
        %5156 = vset.pattern.permute.xlu0 0
        %5157 = vperm.xlu0 %5156, %v5138
        %v5158 = vpop.permute.xlu0 %5157
        %v5159 = vlaneseq
        %v5160 = vshrl.u32 %v5159, 7
        %v5161 = vsub.s32 %v5052, %v5160
        %v5162 = vrot.slane %v5146, %v5161
        %v5163 = vlaneseq
        %v5164 = vshrl.u32 %v5163, 7
        %v5165 = vsub.s32 %v5052, %v5164
        %v5166 = vrot.slane %v5149, %v5165
        %v5167 = vlaneseq
        %v5168 = vshrl.u32 %v5167, 7
        %v5169 = vsub.s32 %v5052, %v5168
        %v5170 = vrot.slane %v5152, %v5169
        %v5171 = vlaneseq
        %v5172 = vshrl.u32 %v5171, 7
        %v5173 = vsub.s32 %v5052, %v5172
        %v5174 = vrot.slane %v5155, %v5173
        %v5175 = vlaneseq
        %v5176 = vshrl.u32 %v5175, 7
        %v5177 = vsub.s32 %v5052, %v5176
        %v5178 = vrot.slane %v5158, %v5177
        %vm5179 = vcmask 1041409
        %v5180 = vsel %vm5179, %v5166, %v5162
        %vm5181 = vcmask 1042434
        %v5182 = vsel %vm5181, %v5170, %v5180
        %vm5183 = vcmask 1043459
        %v5184 = vsel %vm5183, %v5174, %v5182
        %vm5185 = vcmask 1044484
        %v5186 = vsel %vm5185, %v5178, %v5184
        %v5188 = vsel %vm5062, %v5186, -inf
        %5189 = vmax.xlane.f32.xlu0 %v5188
        %v5190 = vpop.xlane.xlu0 %5189
        %v5192 = vlaneseq
        %v5193 = vshrl.u32 %v5192, 7
        %v5194 = vsub.s32 0, %v5193
        %v5195 = vrot.slane %v5190, %v5194
        %v5196 = vlaneseq
        %v5197 = vshrl.u32 %v5196, 7
        %v5198 = vsub.s32 1, %v5197
        %v5199 = vrot.slane %v5190, %v5198
        %v5200 = vlaneseq
        %v5201 = vshrl.u32 %v5200, 7
        %v5202 = vsub.s32 2, %v5201
        %v5203 = vrot.slane %v5190, %v5202
        %v5204 = vlaneseq
        %v5205 = vshrl.u32 %v5204, 7
        %v5206 = vsub.s32 3, %v5205
        %v5207 = vrot.slane %v5190, %v5206
        %v5208 = vlaneseq
        %v5209 = vshrl.u32 %v5208, 7
        %v5210 = vsub.s32 4, %v5209
        %v5211 = vrot.slane %v5190, %v5210
        %vm5217 = vcmp.eq.f32.partialorder %v5134, %v5195
        %vm5218 = vcmp.eq.f32.partialorder %v5135, %v5199
        %vm5219 = vcmp.eq.f32.partialorder %v5136, %v5203
        %vm5220 = vcmp.eq.f32.partialorder %v5137, %v5207
        %vm5221 = vcmp.eq.f32.partialorder %v5138, %v5211
        %5223 = vbcast.lane.b32.xlu0 %v5052, 256
        %v5224 = vpop.permute.xlu0 %5223
        %v5225 = vsel %vm5217, %v5224, 5
        %v5226 = vsel %vm5218, %v5224, 5
        %v5227 = vsel %vm5219, %v5224, 5
        %v5228 = vsel %vm5220, %v5224, 5
        %v5229 = vsel %vm5221, %v5224, 5
        %5230 = vset.pattern.permute.xlu0 0
        %5231 = vperm.xlu0 %5230, %v5225
        %v5232 = vpop.permute.xlu0 %5231
        %5233 = vset.pattern.permute.xlu0 0
        %5234 = vperm.xlu0 %5233, %v5226
        %v5235 = vpop.permute.xlu0 %5234
        %5236 = vset.pattern.permute.xlu0 0
        %5237 = vperm.xlu0 %5236, %v5227
        %v5238 = vpop.permute.xlu0 %5237
        %5239 = vset.pattern.permute.xlu0 0
        %5240 = vperm.xlu0 %5239, %v5228
        %v5241 = vpop.permute.xlu0 %5240
        %5242 = vset.pattern.permute.xlu0 0
        %5243 = vperm.xlu0 %5242, %v5229
        %v5244 = vpop.permute.xlu0 %5243
        %v5245 = vlaneseq
        %v5246 = vshrl.u32 %v5245, 7
        %v5247 = vsub.s32 %v5052, %v5246
        %v5248 = vrot.slane %v5232, %v5247
        %v5249 = vlaneseq
        %v5250 = vshrl.u32 %v5249, 7
        %v5251 = vsub.s32 %v5052, %v5250
        %v5252 = vrot.slane %v5235, %v5251
        %v5253 = vlaneseq
        %v5254 = vshrl.u32 %v5253, 7
        %v5255 = vsub.s32 %v5052, %v5254
        %v5256 = vrot.slane %v5238, %v5255
        %v5257 = vlaneseq
        %v5258 = vshrl.u32 %v5257, 7
        %v5259 = vsub.s32 %v5052, %v5258
        %v5260 = vrot.slane %v5241, %v5259
        %v5261 = vlaneseq
        %v5262 = vshrl.u32 %v5261, 7
        %v5263 = vsub.s32 %v5052, %v5262
        %v5264 = vrot.slane %v5244, %v5263
        %v5265 = vsel %vm5179, %v5252, %v5248
        %v5266 = vsel %vm5181, %v5256, %v5265
        %v5267 = vsel %vm5183, %v5260, %v5266
        %v5268 = vsel %vm5185, %v5264, %v5267
        %v5269 = vsel %vm5062, %v5268, 2147483647
        %v5270 = vand.u32 %v5269, 65535
        %v5271 = vshra.s32 %v5269, 16
        %v5272 = vcvt.s32.f32 %v5270
        %v5273 = vcvt.s32.f32 %v5271
        %5274 = vmin.xlane.f32.xlu0 %v5273
        %v5275 = vpop.xlane.xlu0 %5274
        %vm5276 = vcmp.eq.f32.partialorder %v5273, %v5275
        %v5277 = vsel %vm5276, %v5272, inf
        %5278 = vmin.xlane.f32.xlu0 %v5277
        %v5279 = vpop.xlane.xlu0 %5278
        %v5280 = vcvt.f32.s32 %v5279
        %v5281 = vcvt.f32.s32 %v5275
        %v5282 = vshll.u32 %v5281, 16
        %v5283 = vadd.s32 %v5282, %v5280
        %v5284 = vlaneseq
        %v5285 = vshrl.u32 %v5284, 7
        %v5286 = vsub.s32 2, %v5285
        %v5287 = vrot.slane %v5047, %v5286
        %5289 = vbcast.lane.b32.xlu0 %v5287, 256
        %v5290 = vpop.permute.xlu0 %5289
        %v5292 = vadd.f32 %v5190, %v5290
        %v5293 = vadd.f32 %v5292, %v5100
        %v5294 = vadd.f32 %v5292, %v5107
        %v5295 = vadd.f32 %v5292, %v5114
        %v5296 = vadd.f32 %v5292, %v5121
        %v5297 = vadd.f32 %v5292, %v5128
        %5303 = vset.pattern.permute.xlu0 0
        %5304 = vperm.xlu0 %5303, %v5293
        %v5305 = vpop.permute.xlu0 %5304
        %5306 = vset.pattern.permute.xlu0 0
        %5307 = vperm.xlu0 %5306, %v5294
        %v5308 = vpop.permute.xlu0 %5307
        %5309 = vset.pattern.permute.xlu0 0
        %5310 = vperm.xlu0 %5309, %v5295
        %v5311 = vpop.permute.xlu0 %5310
        %5312 = vset.pattern.permute.xlu0 0
        %5313 = vperm.xlu0 %5312, %v5296
        %v5314 = vpop.permute.xlu0 %5313
        %5315 = vset.pattern.permute.xlu0 0
        %5316 = vperm.xlu0 %5315, %v5297
        %v5317 = vpop.permute.xlu0 %5316
        %v5318 = vlaneseq
        %v5319 = vshrl.u32 %v5318, 7
        %v5320 = vsub.s32 %v5052, %v5319
        %v5321 = vrot.slane %v5305, %v5320
        %v5322 = vlaneseq
        %v5323 = vshrl.u32 %v5322, 7
        %v5324 = vsub.s32 %v5052, %v5323
        %v5325 = vrot.slane %v5308, %v5324
        %v5326 = vlaneseq
        %v5327 = vshrl.u32 %v5326, 7
        %v5328 = vsub.s32 %v5052, %v5327
        %v5329 = vrot.slane %v5311, %v5328
        %v5330 = vlaneseq
        %v5331 = vshrl.u32 %v5330, 7
        %v5332 = vsub.s32 %v5052, %v5331
        %v5333 = vrot.slane %v5314, %v5332
        %v5334 = vlaneseq
        %v5335 = vshrl.u32 %v5334, 7
        %v5336 = vsub.s32 %v5052, %v5335
        %v5337 = vrot.slane %v5317, %v5336
        %v5338 = vsel %vm5179, %v5325, %v5321
        %v5339 = vsel %vm5181, %v5329, %v5338
        %v5340 = vsel %vm5183, %v5333, %v5339
        %v5341 = vsel %vm5185, %v5337, %v5340
        %v5343 = vsel %vm5062, %v5341, -inf
        %5344 = vmax.xlane.f32.xlu0 %v5343
        %v5345 = vpop.xlane.xlu0 %5344
        %v5347 = vlaneseq
        %v5348 = vshrl.u32 %v5347, 7
        %v5349 = vsub.s32 0, %v5348
        %v5350 = vrot.slane %v5345, %v5349
        %v5351 = vlaneseq
        %v5352 = vshrl.u32 %v5351, 7
        %v5353 = vsub.s32 1, %v5352
        %v5354 = vrot.slane %v5345, %v5353
        %v5355 = vlaneseq
        %v5356 = vshrl.u32 %v5355, 7
        %v5357 = vsub.s32 2, %v5356
        %v5358 = vrot.slane %v5345, %v5357
        %v5359 = vlaneseq
        %v5360 = vshrl.u32 %v5359, 7
        %v5361 = vsub.s32 3, %v5360
        %v5362 = vrot.slane %v5345, %v5361
        %v5363 = vlaneseq
        %v5364 = vshrl.u32 %v5363, 7
        %v5365 = vsub.s32 4, %v5364
        %v5366 = vrot.slane %v5345, %v5365
        %vm5372 = vcmp.eq.f32.partialorder %v5293, %v5350
        %vm5373 = vcmp.eq.f32.partialorder %v5294, %v5354
        %vm5374 = vcmp.eq.f32.partialorder %v5295, %v5358
        %vm5375 = vcmp.eq.f32.partialorder %v5296, %v5362
        %vm5376 = vcmp.eq.f32.partialorder %v5297, %v5366
        %v5377 = vsel %vm5372, %v5224, 5
        %v5378 = vsel %vm5373, %v5224, 5
        %v5379 = vsel %vm5374, %v5224, 5
        %v5380 = vsel %vm5375, %v5224, 5
        %v5381 = vsel %vm5376, %v5224, 5
        %5382 = vset.pattern.permute.xlu0 0
        %5383 = vperm.xlu0 %5382, %v5377
        %v5384 = vpop.permute.xlu0 %5383
        %5385 = vset.pattern.permute.xlu0 0
        %5386 = vperm.xlu0 %5385, %v5378
        %v5387 = vpop.permute.xlu0 %5386
        %5388 = vset.pattern.permute.xlu0 0
        %5389 = vperm.xlu0 %5388, %v5379
        %v5390 = vpop.permute.xlu0 %5389
        %5391 = vset.pattern.permute.xlu0 0
        %5392 = vperm.xlu0 %5391, %v5380
        %v5393 = vpop.permute.xlu0 %5392
        %5394 = vset.pattern.permute.xlu0 0
        %5395 = vperm.xlu0 %5394, %v5381
        %v5396 = vpop.permute.xlu0 %5395
        %v5397 = vlaneseq
        %v5398 = vshrl.u32 %v5397, 7
        %v5399 = vsub.s32 %v5052, %v5398
        %v5400 = vrot.slane %v5384, %v5399
        %v5401 = vlaneseq
        %v5402 = vshrl.u32 %v5401, 7
        %v5403 = vsub.s32 %v5052, %v5402
        %v5404 = vrot.slane %v5387, %v5403
        %v5405 = vlaneseq
        %v5406 = vshrl.u32 %v5405, 7
        %v5407 = vsub.s32 %v5052, %v5406
        %v5408 = vrot.slane %v5390, %v5407
        %v5409 = vlaneseq
        %v5410 = vshrl.u32 %v5409, 7
        %v5411 = vsub.s32 %v5052, %v5410
        %v5412 = vrot.slane %v5393, %v5411
        %v5413 = vlaneseq
        %v5414 = vshrl.u32 %v5413, 7
        %v5415 = vsub.s32 %v5052, %v5414
        %v5416 = vrot.slane %v5396, %v5415
        %v5417 = vsel %vm5179, %v5404, %v5400
        %v5418 = vsel %vm5181, %v5408, %v5417
        %v5419 = vsel %vm5183, %v5412, %v5418
        %v5420 = vsel %vm5185, %v5416, %v5419
        %v5421 = vsel %vm5062, %v5420, 2147483647
        %v5422 = vand.u32 %v5421, 65535
        %v5423 = vshra.s32 %v5421, 16
        %v5424 = vcvt.s32.f32 %v5422
        %v5425 = vcvt.s32.f32 %v5423
        %5426 = vmin.xlane.f32.xlu0 %v5425
        %v5427 = vpop.xlane.xlu0 %5426
        %vm5428 = vcmp.eq.f32.partialorder %v5425, %v5427
        %v5429 = vsel %vm5428, %v5424, inf
        %5430 = vmin.xlane.f32.xlu0 %v5429
        %v5431 = vpop.xlane.xlu0 %5430
        %v5432 = vcvt.f32.s32 %v5431
        %v5433 = vcvt.f32.s32 %v5427
        %v5434 = vshll.u32 %v5433, 16
        %v5435 = vadd.s32 %v5434, %v5432
        %v5436 = vlaneseq
        %v5437 = vshrl.u32 %v5436, 7
        %v5438 = vsub.s32 3, %v5437
        %v5439 = vrot.slane %v5047, %v5438
        %5441 = vbcast.lane.b32.xlu0 %v5439, 256
        %v5442 = vpop.permute.xlu0 %5441
        %v5444 = vadd.f32 %v5345, %v5442
        %v5445 = vadd.f32 %v5444, %v5100
        %v5446 = vadd.f32 %v5444, %v5107
        %v5447 = vadd.f32 %v5444, %v5114
        %v5448 = vadd.f32 %v5444, %v5121
        %v5449 = vadd.f32 %v5444, %v5128
        %5455 = vset.pattern.permute.xlu0 0
        %5456 = vperm.xlu0 %5455, %v5445
        %v5457 = vpop.permute.xlu0 %5456
        %5458 = vset.pattern.permute.xlu0 0
        %5459 = vperm.xlu0 %5458, %v5446
        %v5460 = vpop.permute.xlu0 %5459
        %5461 = vset.pattern.permute.xlu0 0
        %5462 = vperm.xlu0 %5461, %v5447
        %v5463 = vpop.permute.xlu0 %5462
        %5464 = vset.pattern.permute.xlu0 0
        %5465 = vperm.xlu0 %5464, %v5448
        %v5466 = vpop.permute.xlu0 %5465
        %5467 = vset.pattern.permute.xlu0 0
        %5468 = vperm.xlu0 %5467, %v5449
        %v5469 = vpop.permute.xlu0 %5468
        %v5470 = vlaneseq
        %v5471 = vshrl.u32 %v5470, 7
        %v5472 = vsub.s32 %v5052, %v5471
        %v5473 = vrot.slane %v5457, %v5472
        %v5474 = vlaneseq
        %v5475 = vshrl.u32 %v5474, 7
        %v5476 = vsub.s32 %v5052, %v5475
        %v5477 = vrot.slane %v5460, %v5476
        %v5478 = vlaneseq
        %v5479 = vshrl.u32 %v5478, 7
        %v5480 = vsub.s32 %v5052, %v5479
        %v5481 = vrot.slane %v5463, %v5480
        %v5482 = vlaneseq
        %v5483 = vshrl.u32 %v5482, 7
        %v5484 = vsub.s32 %v5052, %v5483
        %v5485 = vrot.slane %v5466, %v5484
        %v5486 = vlaneseq
        %v5487 = vshrl.u32 %v5486, 7
        %v5488 = vsub.s32 %v5052, %v5487
        %v5489 = vrot.slane %v5469, %v5488
        %v5490 = vsel %vm5179, %v5477, %v5473
        %v5491 = vsel %vm5181, %v5481, %v5490
        %v5492 = vsel %vm5183, %v5485, %v5491
        %v5493 = vsel %vm5185, %v5489, %v5492
        %v5495 = vsel %vm5062, %v5493, -inf
        %5496 = vmax.xlane.f32.xlu0 %v5495
        %v5497 = vpop.xlane.xlu0 %5496
        %v5499 = vlaneseq
        %v5500 = vshrl.u32 %v5499, 7
        %v5501 = vsub.s32 0, %v5500
        %v5502 = vrot.slane %v5497, %v5501
        %v5503 = vlaneseq
        %v5504 = vshrl.u32 %v5503, 7
        %v5505 = vsub.s32 1, %v5504
        %v5506 = vrot.slane %v5497, %v5505
        %v5507 = vlaneseq
        %v5508 = vshrl.u32 %v5507, 7
        %v5509 = vsub.s32 2, %v5508
        %v5510 = vrot.slane %v5497, %v5509
        %v5511 = vlaneseq
        %v5512 = vshrl.u32 %v5511, 7
        %v5513 = vsub.s32 3, %v5512
        %v5514 = vrot.slane %v5497, %v5513
        %v5515 = vlaneseq
        %v5516 = vshrl.u32 %v5515, 7
        %v5517 = vsub.s32 4, %v5516
        %v5518 = vrot.slane %v5497, %v5517
        %vm5524 = vcmp.eq.f32.partialorder %v5445, %v5502
        %vm5525 = vcmp.eq.f32.partialorder %v5446, %v5506
        %vm5526 = vcmp.eq.f32.partialorder %v5447, %v5510
        %vm5527 = vcmp.eq.f32.partialorder %v5448, %v5514
        %vm5528 = vcmp.eq.f32.partialorder %v5449, %v5518
        %v5529 = vsel %vm5524, %v5224, 5
        %v5530 = vsel %vm5525, %v5224, 5
        %v5531 = vsel %vm5526, %v5224, 5
        %v5532 = vsel %vm5527, %v5224, 5
        %v5533 = vsel %vm5528, %v5224, 5
        %5534 = vset.pattern.permute.xlu0 0
        %5535 = vperm.xlu0 %5534, %v5529
        %v5536 = vpop.permute.xlu0 %5535
        %5537 = vset.pattern.permute.xlu0 0
        %5538 = vperm.xlu0 %5537, %v5530
        %v5539 = vpop.permute.xlu0 %5538
        %5540 = vset.pattern.permute.xlu0 0
        %5541 = vperm.xlu0 %5540, %v5531
        %v5542 = vpop.permute.xlu0 %5541
        %5543 = vset.pattern.permute.xlu0 0
        %5544 = vperm.xlu0 %5543, %v5532
        %v5545 = vpop.permute.xlu0 %5544
        %5546 = vset.pattern.permute.xlu0 0
        %5547 = vperm.xlu0 %5546, %v5533
        %v5548 = vpop.permute.xlu0 %5547
        %v5549 = vlaneseq
        %v5550 = vshrl.u32 %v5549, 7
        %v5551 = vsub.s32 %v5052, %v5550
        %v5552 = vrot.slane %v5536, %v5551
        %v5553 = vlaneseq
        %v5554 = vshrl.u32 %v5553, 7
        %v5555 = vsub.s32 %v5052, %v5554
        %v5556 = vrot.slane %v5539, %v5555
        %v5557 = vlaneseq
        %v5558 = vshrl.u32 %v5557, 7
        %v5559 = vsub.s32 %v5052, %v5558
        %v5560 = vrot.slane %v5542, %v5559
        %v5561 = vlaneseq
        %v5562 = vshrl.u32 %v5561, 7
        %v5563 = vsub.s32 %v5052, %v5562
        %v5564 = vrot.slane %v5545, %v5563
        %v5565 = vlaneseq
        %v5566 = vshrl.u32 %v5565, 7
        %v5567 = vsub.s32 %v5052, %v5566
        %v5568 = vrot.slane %v5548, %v5567
        %v5569 = vsel %vm5179, %v5556, %v5552
        %v5570 = vsel %vm5181, %v5560, %v5569
        %v5571 = vsel %vm5183, %v5564, %v5570
        %v5572 = vsel %vm5185, %v5568, %v5571
        %v5573 = vsel %vm5062, %v5572, 2147483647
        %v5574 = vand.u32 %v5573, 65535
        %v5575 = vshra.s32 %v5573, 16
        %v5576 = vcvt.s32.f32 %v5574
        %v5577 = vcvt.s32.f32 %v5575
        %5578 = vmin.xlane.f32.xlu0 %v5577
        %v5579 = vpop.xlane.xlu0 %5578
        %vm5580 = vcmp.eq.f32.partialorder %v5577, %v5579
        %v5581 = vsel %vm5580, %v5576, inf
        %5582 = vmin.xlane.f32.xlu0 %v5581
        %v5583 = vpop.xlane.xlu0 %5582
        %v5584 = vcvt.f32.s32 %v5583
        %v5585 = vcvt.f32.s32 %v5579
        %v5586 = vshll.u32 %v5585, 16
        %v5587 = vadd.s32 %v5586, %v5584
        %v5588 = vlaneseq
        %v5589 = vshrl.u32 %v5588, 7
        %v5590 = vsub.s32 4, %v5589
        %v5591 = vrot.slane %v5047, %v5590
        %5593 = vbcast.lane.b32.xlu0 %v5591, 256
        %v5594 = vpop.permute.xlu0 %5593
        %v5596 = vadd.f32 %v5497, %v5594
        %v5597 = vadd.f32 %v5596, %v5100
        %v5598 = vadd.f32 %v5596, %v5107
        %v5599 = vadd.f32 %v5596, %v5114
        %v5600 = vadd.f32 %v5596, %v5121
        %v5601 = vadd.f32 %v5596, %v5128
        %5607 = vset.pattern.permute.xlu0 0
        %5608 = vperm.xlu0 %5607, %v5597
        %v5609 = vpop.permute.xlu0 %5608
        %5610 = vset.pattern.permute.xlu0 0
        %5611 = vperm.xlu0 %5610, %v5598
        %v5612 = vpop.permute.xlu0 %5611
        %5613 = vset.pattern.permute.xlu0 0
        %5614 = vperm.xlu0 %5613, %v5599
        %v5615 = vpop.permute.xlu0 %5614
        %5616 = vset.pattern.permute.xlu0 0
        %5617 = vperm.xlu0 %5616, %v5600
        %v5618 = vpop.permute.xlu0 %5617
        %5619 = vset.pattern.permute.xlu0 0
        %5620 = vperm.xlu0 %5619, %v5601
        %v5621 = vpop.permute.xlu0 %5620
        %v5622 = vlaneseq
        %v5623 = vshrl.u32 %v5622, 7
        %v5624 = vsub.s32 %v5052, %v5623
        %v5625 = vrot.slane %v5609, %v5624
        %v5626 = vlaneseq
        %v5627 = vshrl.u32 %v5626, 7
        %v5628 = vsub.s32 %v5052, %v5627
        %v5629 = vrot.slane %v5612, %v5628
        %v5630 = vlaneseq
        %v5631 = vshrl.u32 %v5630, 7
        %v5632 = vsub.s32 %v5052, %v5631
        %v5633 = vrot.slane %v5615, %v5632
        %v5634 = vlaneseq
        %v5635 = vshrl.u32 %v5634, 7
        %v5636 = vsub.s32 %v5052, %v5635
        %v5637 = vrot.slane %v5618, %v5636
        %v5638 = vlaneseq
        %v5639 = vshrl.u32 %v5638, 7
        %v5640 = vsub.s32 %v5052, %v5639
        %v5641 = vrot.slane %v5621, %v5640
        %v5642 = vsel %vm5179, %v5629, %v5625
        %v5643 = vsel %vm5181, %v5633, %v5642
        %v5644 = vsel %vm5183, %v5637, %v5643
        %v5645 = vsel %vm5185, %v5641, %v5644
        %v5647 = vsel %vm5062, %v5645, -inf
        %5648 = vmax.xlane.f32.xlu0 %v5647
        %v5649 = vpop.xlane.xlu0 %5648
        %v5651 = vlaneseq
        %v5652 = vshrl.u32 %v5651, 7
        %v5653 = vsub.s32 0, %v5652
        %v5654 = vrot.slane %v5649, %v5653
        %v5655 = vlaneseq
        %v5656 = vshrl.u32 %v5655, 7
        %v5657 = vsub.s32 1, %v5656
        %v5658 = vrot.slane %v5649, %v5657
        %v5659 = vlaneseq
        %v5660 = vshrl.u32 %v5659, 7
        %v5661 = vsub.s32 2, %v5660
        %v5662 = vrot.slane %v5649, %v5661
        %v5663 = vlaneseq
        %v5664 = vshrl.u32 %v5663, 7
        %v5665 = vsub.s32 3, %v5664
        %v5666 = vrot.slane %v5649, %v5665
        %v5667 = vlaneseq
        %v5668 = vshrl.u32 %v5667, 7
        %v5669 = vsub.s32 4, %v5668
        %v5670 = vrot.slane %v5649, %v5669
        %vm5676 = vcmp.eq.f32.partialorder %v5597, %v5654
        %vm5677 = vcmp.eq.f32.partialorder %v5598, %v5658
        %vm5678 = vcmp.eq.f32.partialorder %v5599, %v5662
        %vm5679 = vcmp.eq.f32.partialorder %v5600, %v5666
        %vm5680 = vcmp.eq.f32.partialorder %v5601, %v5670
        %v5681 = vsel %vm5676, %v5224, 5
        %v5682 = vsel %vm5677, %v5224, 5
        %v5683 = vsel %vm5678, %v5224, 5
        %v5684 = vsel %vm5679, %v5224, 5
        %v5685 = vsel %vm5680, %v5224, 5
        %5686 = vset.pattern.permute.xlu0 0
        %5687 = vperm.xlu0 %5686, %v5681
        %v5688 = vpop.permute.xlu0 %5687
        %5689 = vset.pattern.permute.xlu0 0
        %5690 = vperm.xlu0 %5689, %v5682
        %v5691 = vpop.permute.xlu0 %5690
        %5692 = vset.pattern.permute.xlu0 0
        %5693 = vperm.xlu0 %5692, %v5683
        %v5694 = vpop.permute.xlu0 %5693
        %5695 = vset.pattern.permute.xlu0 0
        %5696 = vperm.xlu0 %5695, %v5684
        %v5697 = vpop.permute.xlu0 %5696
        %5698 = vset.pattern.permute.xlu0 0
        %5699 = vperm.xlu0 %5698, %v5685
        %v5700 = vpop.permute.xlu0 %5699
        %v5701 = vlaneseq
        %v5702 = vshrl.u32 %v5701, 7
        %v5703 = vsub.s32 %v5052, %v5702
        %v5704 = vrot.slane %v5688, %v5703
        %v5705 = vlaneseq
        %v5706 = vshrl.u32 %v5705, 7
        %v5707 = vsub.s32 %v5052, %v5706
        %v5708 = vrot.slane %v5691, %v5707
        %v5709 = vlaneseq
        %v5710 = vshrl.u32 %v5709, 7
        %v5711 = vsub.s32 %v5052, %v5710
        %v5712 = vrot.slane %v5694, %v5711
        %v5713 = vlaneseq
        %v5714 = vshrl.u32 %v5713, 7
        %v5715 = vsub.s32 %v5052, %v5714
        %v5716 = vrot.slane %v5697, %v5715
        %v5717 = vlaneseq
        %v5718 = vshrl.u32 %v5717, 7
        %v5719 = vsub.s32 %v5052, %v5718
        %v5720 = vrot.slane %v5700, %v5719
        %v5721 = vsel %vm5179, %v5708, %v5704
        %v5722 = vsel %vm5181, %v5712, %v5721
        %v5723 = vsel %vm5183, %v5716, %v5722
        %v5724 = vsel %vm5185, %v5720, %v5723
        %v5725 = vsel %vm5062, %v5724, 2147483647
        %v5726 = vand.u32 %v5725, 65535
        %v5727 = vshra.s32 %v5725, 16
        %v5728 = vcvt.s32.f32 %v5726
        %v5729 = vcvt.s32.f32 %v5727
        %5730 = vmin.xlane.f32.xlu0 %v5729
        %v5731 = vpop.xlane.xlu0 %5730
        %vm5732 = vcmp.eq.f32.partialorder %v5729, %v5731
        %v5733 = vsel %vm5732, %v5728, inf
        %5734 = vmin.xlane.f32.xlu0 %v5733
        %v5735 = vpop.xlane.xlu0 %5734
        %v5736 = vcvt.f32.s32 %v5735
        %v5737 = vcvt.f32.s32 %v5731
        %v5738 = vshll.u32 %v5737, 16
        %v5739 = vadd.s32 %v5738, %v5736
        %v5740 = vlaneseq
        %v5741 = vshrl.u32 %v5740, 7
        %v5742 = vsub.s32 5, %v5741
        %v5743 = vrot.slane %v5047, %v5742
        %5745 = vbcast.lane.b32.xlu0 %v5743, 256
        %v5746 = vpop.permute.xlu0 %5745
        %v5748 = vadd.f32 %v5649, %v5746
        %v5749 = vadd.f32 %v5748, %v5100
        %v5750 = vadd.f32 %v5748, %v5107
        %v5751 = vadd.f32 %v5748, %v5114
        %v5752 = vadd.f32 %v5748, %v5121
        %v5753 = vadd.f32 %v5748, %v5128
        %5759 = vset.pattern.permute.xlu0 0
        %5760 = vperm.xlu0 %5759, %v5749
        %v5761 = vpop.permute.xlu0 %5760
        %5762 = vset.pattern.permute.xlu0 0
        %5763 = vperm.xlu0 %5762, %v5750
        %v5764 = vpop.permute.xlu0 %5763
        %5765 = vset.pattern.permute.xlu0 0
        %5766 = vperm.xlu0 %5765, %v5751
        %v5767 = vpop.permute.xlu0 %5766
        %5768 = vset.pattern.permute.xlu0 0
        %5769 = vperm.xlu0 %5768, %v5752
        %v5770 = vpop.permute.xlu0 %5769
        %5771 = vset.pattern.permute.xlu0 0
        %5772 = vperm.xlu0 %5771, %v5753
        %v5773 = vpop.permute.xlu0 %5772
        %v5774 = vlaneseq
        %v5775 = vshrl.u32 %v5774, 7
        %v5776 = vsub.s32 %v5052, %v5775
        %v5777 = vrot.slane %v5761, %v5776
        %v5778 = vlaneseq
        %v5779 = vshrl.u32 %v5778, 7
        %v5780 = vsub.s32 %v5052, %v5779
        %v5781 = vrot.slane %v5764, %v5780
        %v5782 = vlaneseq
        %v5783 = vshrl.u32 %v5782, 7
        %v5784 = vsub.s32 %v5052, %v5783
        %v5785 = vrot.slane %v5767, %v5784
        %v5786 = vlaneseq
        %v5787 = vshrl.u32 %v5786, 7
        %v5788 = vsub.s32 %v5052, %v5787
        %v5789 = vrot.slane %v5770, %v5788
        %v5790 = vlaneseq
        %v5791 = vshrl.u32 %v5790, 7
        %v5792 = vsub.s32 %v5052, %v5791
        %v5793 = vrot.slane %v5773, %v5792
        %v5794 = vsel %vm5179, %v5781, %v5777
        %v5795 = vsel %vm5181, %v5785, %v5794
        %v5796 = vsel %vm5183, %v5789, %v5795
        %v5797 = vsel %vm5185, %v5793, %v5796
        %v5799 = vsel %vm5062, %v5797, -inf
        %5800 = vmax.xlane.f32.xlu0 %v5799
        %v5801 = vpop.xlane.xlu0 %5800
        %v5803 = vlaneseq
        %v5804 = vshrl.u32 %v5803, 7
        %v5805 = vsub.s32 0, %v5804
        %v5806 = vrot.slane %v5801, %v5805
        %v5807 = vlaneseq
        %v5808 = vshrl.u32 %v5807, 7
        %v5809 = vsub.s32 1, %v5808
        %v5810 = vrot.slane %v5801, %v5809
        %v5811 = vlaneseq
        %v5812 = vshrl.u32 %v5811, 7
        %v5813 = vsub.s32 2, %v5812
        %v5814 = vrot.slane %v5801, %v5813
        %v5815 = vlaneseq
        %v5816 = vshrl.u32 %v5815, 7
        %v5817 = vsub.s32 3, %v5816
        %v5818 = vrot.slane %v5801, %v5817
        %v5819 = vlaneseq
        %v5820 = vshrl.u32 %v5819, 7
        %v5821 = vsub.s32 4, %v5820
        %v5822 = vrot.slane %v5801, %v5821
        %vm5828 = vcmp.eq.f32.partialorder %v5749, %v5806
        %vm5829 = vcmp.eq.f32.partialorder %v5750, %v5810
        %vm5830 = vcmp.eq.f32.partialorder %v5751, %v5814
        %vm5831 = vcmp.eq.f32.partialorder %v5752, %v5818
        %vm5832 = vcmp.eq.f32.partialorder %v5753, %v5822
        %v5833 = vsel %vm5828, %v5224, 5
        %v5834 = vsel %vm5829, %v5224, 5
        %v5835 = vsel %vm5830, %v5224, 5
        %v5836 = vsel %vm5831, %v5224, 5
        %v5837 = vsel %vm5832, %v5224, 5
        %5838 = vset.pattern.permute.xlu0 0
        %5839 = vperm.xlu0 %5838, %v5833
        %v5840 = vpop.permute.xlu0 %5839
        %5841 = vset.pattern.permute.xlu0 0
        %5842 = vperm.xlu0 %5841, %v5834
        %v5843 = vpop.permute.xlu0 %5842
        %5844 = vset.pattern.permute.xlu0 0
        %5845 = vperm.xlu0 %5844, %v5835
        %v5846 = vpop.permute.xlu0 %5845
        %5847 = vset.pattern.permute.xlu0 0
        %5848 = vperm.xlu0 %5847, %v5836
        %v5849 = vpop.permute.xlu0 %5848
        %5850 = vset.pattern.permute.xlu0 0
        %5851 = vperm.xlu0 %5850, %v5837
        %v5852 = vpop.permute.xlu0 %5851
        %v5853 = vlaneseq
        %v5854 = vshrl.u32 %v5853, 7
        %v5855 = vsub.s32 %v5052, %v5854
        %v5856 = vrot.slane %v5840, %v5855
        %v5857 = vlaneseq
        %v5858 = vshrl.u32 %v5857, 7
        %v5859 = vsub.s32 %v5052, %v5858
        %v5860 = vrot.slane %v5843, %v5859
        %v5861 = vlaneseq
        %v5862 = vshrl.u32 %v5861, 7
        %v5863 = vsub.s32 %v5052, %v5862
        %v5864 = vrot.slane %v5846, %v5863
        %v5865 = vlaneseq
        %v5866 = vshrl.u32 %v5865, 7
        %v5867 = vsub.s32 %v5052, %v5866
        %v5868 = vrot.slane %v5849, %v5867
        %v5869 = vlaneseq
        %v5870 = vshrl.u32 %v5869, 7
        %v5871 = vsub.s32 %v5052, %v5870
        %v5872 = vrot.slane %v5852, %v5871
        %v5873 = vsel %vm5179, %v5860, %v5856
        %v5874 = vsel %vm5181, %v5864, %v5873
        %v5875 = vsel %vm5183, %v5868, %v5874
        %v5876 = vsel %vm5185, %v5872, %v5875
        %v5877 = vsel %vm5062, %v5876, 2147483647
        %v5878 = vand.u32 %v5877, 65535
        %v5879 = vshra.s32 %v5877, 16
        %v5880 = vcvt.s32.f32 %v5878
        %v5881 = vcvt.s32.f32 %v5879
        %5882 = vmin.xlane.f32.xlu0 %v5881
        %v5883 = vpop.xlane.xlu0 %5882
        %vm5884 = vcmp.eq.f32.partialorder %v5881, %v5883
        %v5885 = vsel %vm5884, %v5880, inf
        %5886 = vmin.xlane.f32.xlu0 %v5885
        %v5887 = vpop.xlane.xlu0 %5886
        %v5888 = vcvt.f32.s32 %v5887
        %v5889 = vcvt.f32.s32 %v5883
        %v5890 = vshll.u32 %v5889, 16
        %v5891 = vadd.s32 %v5890, %v5888
        %v5892 = vlaneseq
        %v5893 = vshrl.u32 %v5892, 7
        %v5894 = vsub.s32 6, %v5893
        %v5895 = vrot.slane %v5047, %v5894
        %5897 = vbcast.lane.b32.xlu0 %v5895, 256
        %v5898 = vpop.permute.xlu0 %5897
        %v5900 = vadd.f32 %v5801, %v5898
        %v5901 = vadd.f32 %v5900, %v5100
        %v5902 = vadd.f32 %v5900, %v5107
        %v5903 = vadd.f32 %v5900, %v5114
        %v5904 = vadd.f32 %v5900, %v5121
        %v5905 = vadd.f32 %v5900, %v5128
        %5911 = vset.pattern.permute.xlu0 0
        %5912 = vperm.xlu0 %5911, %v5901
        %v5913 = vpop.permute.xlu0 %5912
        %5914 = vset.pattern.permute.xlu0 0
        %5915 = vperm.xlu0 %5914, %v5902
        %v5916 = vpop.permute.xlu0 %5915
        %5917 = vset.pattern.permute.xlu0 0
        %5918 = vperm.xlu0 %5917, %v5903
        %v5919 = vpop.permute.xlu0 %5918
        %5920 = vset.pattern.permute.xlu0 0
        %5921 = vperm.xlu0 %5920, %v5904
        %v5922 = vpop.permute.xlu0 %5921
        %5923 = vset.pattern.permute.xlu0 0
        %5924 = vperm.xlu0 %5923, %v5905
        %v5925 = vpop.permute.xlu0 %5924
        %v5926 = vlaneseq
        %v5927 = vshrl.u32 %v5926, 7
        %v5928 = vsub.s32 %v5052, %v5927
        %v5929 = vrot.slane %v5913, %v5928
        %v5930 = vlaneseq
        %v5931 = vshrl.u32 %v5930, 7
        %v5932 = vsub.s32 %v5052, %v5931
        %v5933 = vrot.slane %v5916, %v5932
        %v5934 = vlaneseq
        %v5935 = vshrl.u32 %v5934, 7
        %v5936 = vsub.s32 %v5052, %v5935
        %v5937 = vrot.slane %v5919, %v5936
        %v5938 = vlaneseq
        %v5939 = vshrl.u32 %v5938, 7
        %v5940 = vsub.s32 %v5052, %v5939
        %v5941 = vrot.slane %v5922, %v5940
        %v5942 = vlaneseq
        %v5943 = vshrl.u32 %v5942, 7
        %v5944 = vsub.s32 %v5052, %v5943
        %v5945 = vrot.slane %v5925, %v5944
        %v5946 = vsel %vm5179, %v5933, %v5929
        %v5947 = vsel %vm5181, %v5937, %v5946
        %v5948 = vsel %vm5183, %v5941, %v5947
        %v5949 = vsel %vm5185, %v5945, %v5948
        %v5951 = vsel %vm5062, %v5949, -inf
        %5952 = vmax.xlane.f32.xlu0 %v5951
        %v5953 = vpop.xlane.xlu0 %5952
        %v5955 = vlaneseq
        %v5956 = vshrl.u32 %v5955, 7
        %v5957 = vsub.s32 0, %v5956
        %v5958 = vrot.slane %v5953, %v5957
        %v5959 = vlaneseq
        %v5960 = vshrl.u32 %v5959, 7
        %v5961 = vsub.s32 1, %v5960
        %v5962 = vrot.slane %v5953, %v5961
        %v5963 = vlaneseq
        %v5964 = vshrl.u32 %v5963, 7
        %v5965 = vsub.s32 2, %v5964
        %v5966 = vrot.slane %v5953, %v5965
        %v5967 = vlaneseq
        %v5968 = vshrl.u32 %v5967, 7
        %v5969 = vsub.s32 3, %v5968
        %v5970 = vrot.slane %v5953, %v5969
        %v5971 = vlaneseq
        %v5972 = vshrl.u32 %v5971, 7
        %v5973 = vsub.s32 4, %v5972
        %v5974 = vrot.slane %v5953, %v5973
        %vm5980 = vcmp.eq.f32.partialorder %v5901, %v5958
        %vm5981 = vcmp.eq.f32.partialorder %v5902, %v5962
        %vm5982 = vcmp.eq.f32.partialorder %v5903, %v5966
        %vm5983 = vcmp.eq.f32.partialorder %v5904, %v5970
        %vm5984 = vcmp.eq.f32.partialorder %v5905, %v5974
        %v5985 = vsel %vm5980, %v5224, 5
        %v5986 = vsel %vm5981, %v5224, 5
        %v5987 = vsel %vm5982, %v5224, 5
        %v5988 = vsel %vm5983, %v5224, 5
        %v5989 = vsel %vm5984, %v5224, 5
        %5990 = vset.pattern.permute.xlu0 0
        %5991 = vperm.xlu0 %5990, %v5985
        %v5992 = vpop.permute.xlu0 %5991
        %5993 = vset.pattern.permute.xlu0 0
        %5994 = vperm.xlu0 %5993, %v5986
        %v5995 = vpop.permute.xlu0 %5994
        %5996 = vset.pattern.permute.xlu0 0
        %5997 = vperm.xlu0 %5996, %v5987
        %v5998 = vpop.permute.xlu0 %5997
        %5999 = vset.pattern.permute.xlu0 0
        %6000 = vperm.xlu0 %5999, %v5988
        %v6001 = vpop.permute.xlu0 %6000
        %6002 = vset.pattern.permute.xlu0 0
        %6003 = vperm.xlu0 %6002, %v5989
        %v6004 = vpop.permute.xlu0 %6003
        %v6005 = vlaneseq
        %v6006 = vshrl.u32 %v6005, 7
        %v6007 = vsub.s32 %v5052, %v6006
        %v6008 = vrot.slane %v5992, %v6007
        %v6009 = vlaneseq
        %v6010 = vshrl.u32 %v6009, 7
        %v6011 = vsub.s32 %v5052, %v6010
        %v6012 = vrot.slane %v5995, %v6011
        %v6013 = vlaneseq
        %v6014 = vshrl.u32 %v6013, 7
        %v6015 = vsub.s32 %v5052, %v6014
        %v6016 = vrot.slane %v5998, %v6015
        %v6017 = vlaneseq
        %v6018 = vshrl.u32 %v6017, 7
        %v6019 = vsub.s32 %v5052, %v6018
        %v6020 = vrot.slane %v6001, %v6019
        %v6021 = vlaneseq
        %v6022 = vshrl.u32 %v6021, 7
        %v6023 = vsub.s32 %v5052, %v6022
        %v6024 = vrot.slane %v6004, %v6023
        %v6025 = vsel %vm5179, %v6012, %v6008
        %v6026 = vsel %vm5181, %v6016, %v6025
        %v6027 = vsel %vm5183, %v6020, %v6026
        %v6028 = vsel %vm5185, %v6024, %v6027
        %v6029 = vsel %vm5062, %v6028, 2147483647
        %v6030 = vand.u32 %v6029, 65535
        %v6031 = vshra.s32 %v6029, 16
        %v6032 = vcvt.s32.f32 %v6030
        %v6033 = vcvt.s32.f32 %v6031
        %6034 = vmin.xlane.f32.xlu0 %v6033
        %v6035 = vpop.xlane.xlu0 %6034
        %vm6036 = vcmp.eq.f32.partialorder %v6033, %v6035
        %v6037 = vsel %vm6036, %v6032, inf
        %6038 = vmin.xlane.f32.xlu0 %v6037
        %v6039 = vpop.xlane.xlu0 %6038
        %v6040 = vcvt.f32.s32 %v6039
        %v6041 = vcvt.f32.s32 %v6035
        %v6042 = vshll.u32 %v6041, 16
        %v6043 = vadd.s32 %v6042, %v6040
        %v6044 = vlaneseq
        %v6045 = vshrl.u32 %v6044, 7
        %v6046 = vsub.s32 7, %v6045
        %v6047 = vrot.slane %v5047, %v6046
        %6049 = vbcast.lane.b32.xlu0 %v6047, 256
        %v6050 = vpop.permute.xlu0 %6049
        %v6052 = vadd.f32 %v5953, %v6050
        %v6053 = vld [vmem:[%s24] sm:$0x1]
        %v6055 = vlaneseq
        %v6056 = vshrl.u32 %v6055, 7
        %v6057 = vsub.s32 0, %v6056
        %v6058 = vrot.slane %v6053, %v6057
        %6060 = vbcast.lane.b32.xlu0 %v6058, 256
        %v6061 = vpop.permute.xlu0 %6060
        %v6063 = vadd.f32 %v6052, %v6061
        %vm6064 = vcmask 4096
        %v6065 = vsel %vm6064, %v6063, -inf
        %v6066 = vrot.slane %v6065, 4
        %v6067 = vmax.f32 %v6065, %v6066
        %v6068 = vrot.slane %v6067, 2
        %v6069 = vmax.f32 %v6067, %v6068
        %v6070 = vrot.slane %v6069, 1
        %v6071 = vmax.f32 %v6069, %v6070
        %6073 = vset.pattern.permute.xlu0 0
        %6074 = vperm.xlu0 %6073, %v6071
        %v6075 = vpop.permute.xlu0 %6074
        %vm6077 = vcmp.eq.f32.partialorder %v6063, %v6075
        %v6078 = vsel %vm6077, %v5224, 5
        %v6079 = vsel %vm6064, %v6078, 2147483647
        %v6080 = vrot.slane %v6079, 4
        %vm6081 = vcmp.lt.s32.totalorder %v6079, %v6080
        %v6082 = vsel %vm6081, %v6079, %v6080
        %v6083 = vrot.slane %v6082, 2
        %vm6084 = vcmp.lt.s32.totalorder %v6082, %v6083
        %v6085 = vsel %vm6084, %v6082, %v6083
        %v6086 = vrot.slane %v6085, 1
        %vm6087 = vcmp.lt.s32.totalorder %v6085, %v6086
        %v6088 = vsel %vm6087, %v6085, %v6086
        %6089 = vset.pattern.permute.xlu0 0
        %6090 = vperm.xlu0 %6089, %v6088
        %v6091 = vpop.permute.xlu0 %6090
        %vm6092 = vcmp.eq.s32.totalorder %v5052, %v6091
        %v6093 = vlaneseq
        %v6094 = vshrl.u32 %v6093, 7
        %v6095 = vsub.s32 %v5052, %v6094
        %v6096 = vrot.slane %v6043, %v6095
        %v6097 = vsel %vm6092, %v6096, 0
        %vm6098 = vcmask 32768
        %v6099 = vsel %vm6098, %v6097, 0
        %v6100 = vand.u32 %v6099, 65535
        %v6101 = vshrl.u32 %v6099, 16
        %v6102 = vcvt.s32.f32 %v6100
        %v6103 = vcvt.s32.f32 %v6101
        %6104 = vadd.xlane.f32.xlu0 %v6102
        %v6105 = vpop.xlane.xlu0 %6104
        %6106 = vadd.xlane.f32.xlu0 %v6103
        %v6107 = vpop.xlane.xlu0 %6106
        %v6108 = vcvt.f32.s32 %v6105
        %v6109 = vcvt.f32.s32 %v6107
        %v6110 = vshll.u32 %v6109, 16
        %v6111 = vadd.s32 %v6110, %v6108
        %vm6112 = vcmp.eq.s32.totalorder %v5052, %v6111
        %v6113 = vlaneseq
        %v6114 = vshrl.u32 %v6113, 7
        %v6115 = vsub.s32 %v5052, %v6114
        %v6116 = vrot.slane %v5891, %v6115
        %v6117 = vsel %vm6112, %v6116, 0
        %v6118 = vsel %vm6098, %v6117, 0
        %v6119 = vand.u32 %v6118, 65535
        %v6120 = vshrl.u32 %v6118, 16
        %v6121 = vcvt.s32.f32 %v6119
        %v6122 = vcvt.s32.f32 %v6120
        %6123 = vadd.xlane.f32.xlu0 %v6121
        %v6124 = vpop.xlane.xlu0 %6123
        %6125 = vadd.xlane.f32.xlu0 %v6122
        %v6126 = vpop.xlane.xlu0 %6125
        %v6127 = vcvt.f32.s32 %v6124
        %v6128 = vcvt.f32.s32 %v6126
        %v6129 = vshll.u32 %v6128, 16
        %v6130 = vadd.s32 %v6129, %v6127
        %vm6131 = vcmp.eq.s32.totalorder %v5052, %v6130
        %v6132 = vlaneseq
        %v6133 = vshrl.u32 %v6132, 7
        %v6134 = vsub.s32 %v5052, %v6133
        %v6135 = vrot.slane %v5739, %v6134
        %v6136 = vsel %vm6131, %v6135, 0
        %v6137 = vsel %vm6098, %v6136, 0
        %v6138 = vand.u32 %v6137, 65535
        %v6139 = vshrl.u32 %v6137, 16
        %v6140 = vcvt.s32.f32 %v6138
        %v6141 = vcvt.s32.f32 %v6139
        %6142 = vadd.xlane.f32.xlu0 %v6140
        %v6143 = vpop.xlane.xlu0 %6142
        %6144 = vadd.xlane.f32.xlu0 %v6141
        %v6145 = vpop.xlane.xlu0 %6144
        %v6146 = vcvt.f32.s32 %v6143
        %v6147 = vcvt.f32.s32 %v6145
        %v6148 = vshll.u32 %v6147, 16
        %v6149 = vadd.s32 %v6148, %v6146
        %vm6150 = vcmp.eq.s32.totalorder %v5052, %v6149
        %v6151 = vlaneseq
        %v6152 = vshrl.u32 %v6151, 7
        %v6153 = vsub.s32 %v5052, %v6152
        %v6154 = vrot.slane %v5587, %v6153
        %v6155 = vsel %vm6150, %v6154, 0
        %v6156 = vsel %vm6098, %v6155, 0
        %v6157 = vand.u32 %v6156, 65535
        %v6158 = vshrl.u32 %v6156, 16
        %v6159 = vcvt.s32.f32 %v6157
        %v6160 = vcvt.s32.f32 %v6158
        %6161 = vadd.xlane.f32.xlu0 %v6159
        %v6162 = vpop.xlane.xlu0 %6161
        %6163 = vadd.xlane.f32.xlu0 %v6160
        %v6164 = vpop.xlane.xlu0 %6163
        %v6165 = vcvt.f32.s32 %v6162
        %v6166 = vcvt.f32.s32 %v6164
        %v6167 = vshll.u32 %v6166, 16
        %v6168 = vadd.s32 %v6167, %v6165
        %vm6169 = vcmp.eq.s32.totalorder %v5052, %v6168
        %v6170 = vlaneseq
        %v6171 = vshrl.u32 %v6170, 7
        %v6172 = vsub.s32 %v5052, %v6171
        %v6173 = vrot.slane %v5435, %v6172
        %v6174 = vsel %vm6169, %v6173, 0
        %v6175 = vsel %vm6098, %v6174, 0
        %v6176 = vand.u32 %v6175, 65535
        %v6177 = vshrl.u32 %v6175, 16
        %v6178 = vcvt.s32.f32 %v6176
        %v6179 = vcvt.s32.f32 %v6177
        %6180 = vadd.xlane.f32.xlu0 %v6178
        %v6181 = vpop.xlane.xlu0 %6180
        %6182 = vadd.xlane.f32.xlu0 %v6179
        %v6183 = vpop.xlane.xlu0 %6182
        %v6184 = vcvt.f32.s32 %v6181
        %v6185 = vcvt.f32.s32 %v6183
        %v6186 = vshll.u32 %v6185, 16
        %v6187 = vadd.s32 %v6186, %v6184
        %vm6188 = vcmp.eq.s32.totalorder %v5052, %v6187
        %v6189 = vlaneseq
        %v6190 = vshrl.u32 %v6189, 7
        %v6191 = vsub.s32 %v5052, %v6190
        %v6192 = vrot.slane %v5283, %v6191
        %v6193 = vsel %vm6188, %v6192, 0
        %v6194 = vsel %vm6098, %v6193, 0
        %v6195 = vand.u32 %v6194, 65535
        %v6196 = vshrl.u32 %v6194, 16
        %v6197 = vcvt.s32.f32 %v6195
        %v6198 = vcvt.s32.f32 %v6196
        %6199 = vadd.xlane.f32.xlu0 %v6197
        %v6200 = vpop.xlane.xlu0 %6199
        %6201 = vadd.xlane.f32.xlu0 %v6198
        %v6202 = vpop.xlane.xlu0 %6201
        %v6203 = vcvt.f32.s32 %v6200
        %v6204 = vcvt.f32.s32 %v6202
        %v6205 = vshll.u32 %v6204, 16
        %v6206 = vadd.s32 %v6205, %v6203
        %vm6207 = vcmp.eq.s32.totalorder %v5052, %v6206
        %v6208 = vlaneseq
        %v6209 = vshrl.u32 %v6208, 7
        %v6210 = vsub.s32 %v5052, %v6209
        %v6211 = vrot.slane %v5082, %v6210
        %v6212 = vsel %vm6207, %v6211, 0
        %v6213 = vsel %vm6098, %v6212, 0
        %v6214 = vand.u32 %v6213, 65535
        %v6215 = vshrl.u32 %v6213, 16
        %v6216 = vcvt.s32.f32 %v6214
        %v6217 = vcvt.s32.f32 %v6215
        %6218 = vadd.xlane.f32.xlu0 %v6216
        %v6219 = vpop.xlane.xlu0 %6218
        %6220 = vadd.xlane.f32.xlu0 %v6217
        %v6221 = vpop.xlane.xlu0 %6220
        %v6222 = vcvt.f32.s32 %v6219
        %v6223 = vcvt.f32.s32 %v6221
        %v6224 = vshll.u32 %v6223, 16
        %v6225 = vadd.s32 %v6224, %v6222
        %6226 = vrot.lane.b32.xlu0 %v6088, 7
        %v6227 = vpop.permute.xlu0 %6226
        %vm6228 = vcmask 7168
        %v6229 = vsel %vm6228, %v6225, %v6206
        %vm6230 = vcmask 15360
        %v6231 = vsel %vm6230, %v6229, %v6187
        %vm6232 = vcmask 23552
        %v6233 = vsel %vm6232, %v6231, %v6168
        %vm6234 = vcmask 31744
        %v6235 = vsel %vm6234, %v6233, %v6149
        %vm6236 = vcmask 39936
        %v6237 = vsel %vm6236, %v6235, %v6130
        %vm6238 = vcmask 48128
        %v6239 = vsel %vm6238, %v6237, %v6111
        %vm6240 = vcmask 56320
        %v6241 = vsel %vm6240, %v6239, %v6227
        %vm6242 = vcmask 57344
        %6243 = vst.msk [vmem:[%s765] sm:$0x1] %vm6242, %v6241
        %s6244 = sand.u32 %s582, 1
        %s6245 = scalar_lea.sflag [#allocation3], %s6244
        %s6246 = sand.u32 %s582, 1
        %s6247 = scalar_lea.vmem [#allocation2], %s6246
        // Predicated region
        $region121: #{forward.1} parent=119 // pred_check
          %p6248 = pneg %p592
        $region122: #{forward.1} parent=119 // pred_check_branch
          %6250 = sbr.rel (%p6248) target = $region124
        $region123: #{forward.1} parent=119 // pred_region
          %s6252 = ssub.s32 16, 16
          %6253 = vsyncadd %s6245, %s6252
          %s6254 = smul.addr %s39, 16
          %s6255 = scalar_lea.hbm %s25, %s6254
          %s6257 = sshll.u32 %s6247, 4
          %s6258 = int_to_ptr.vmem [resolvable:$true] %s6257
          %6260 = dma.vmem_to_hbm [thread:$0]  %s6258, 16, %s6255, %s6245
        $region124: #{forward.1} parent=119 // pred_fallthru
          _
      $region120: #{forward.1} parent=5 // pred_fallthru
        _
      %p6261 = scmp.le.s32.totalorder 2, %s34
      // Predicated region
      $region125: #{forward.1} parent=5 // pred_check
        %p6262 = pneg %p6261
      $region126: #{forward.1} parent=5 // pred_check_branch
        %6264 = sbr.rel (%p6262) target = $region128
      $region127: #{forward.1} parent=5 // pred_region
        %s6265 = ssub.s32 %s34, 2
        // Predicated region
        $region129: #{forward.1} parent=127 // pred_check
          %p6266 = pneg %p598
        $region130: #{forward.1} parent=127 // pred_check_branch
          %6268 = sbr.rel (%p6266) target = $region132
        $region131: #{forward.1} parent=127 // pred_region
          %s6269 = sand.u32 %s583, 1
          %s6270 = scalar_lea.sflag [#allocation3], %s6269
          %s6271 = sand.u32 %s583, 1
          %s6272 = scalar_lea.vmem [#allocation2], %s6271
          %6273 = dma.done %s6270, 16
        $region132: #{forward.1} parent=127 // pred_fallthru
          _
      $region128: #{forward.1} parent=5 // pred_fallthru
        _
    $region6: #{forward.1} parent=1 // loop_footer
      %s38 = sadd.s32 1, %s34
    $region7: #{forward.1} parent=1 // loop_footer_branch
      %33 = sbr.rel target = $region3
    $region8: #{forward.1} parent=1 // loop_exit
      _
    %6274 = vsyncpa [#allocation3], 1
    %s6275 = scalar_lea.sflag [#allocation3], 1
    %6276 = vsyncpa %s6275, 1

</llo_original>
